<compile_context>
chip_gen: v5e
topology: v5e:2x2
jax: 0.10.0
libtpu: 0.0.40
codegen_flags: <defaults>
</compile_context>

<pallas_src>
import jax
import jax.numpy as jnp
from jax import lax
from jax.experimental import pallas as pl
from jax.experimental.pallas import tpu as pltpu

H = 300   # h_dim == str_dim_size, fixed by the PyTorch module
HP = 384  # H zero-padded to a multiple of 128 for clean MXU / vreg tiling
EPS = 1e-6


# ----------------------------------------------------------------------------
# Fused kernel: bt batch elements per grid step.
# ----------------------------------------------------------------------------
def _mtree_fused_kernel(x_ref, wtptc_ref, btptc_ref, wbil_ref, wfi_ref, mask_ref,
                        dx_ref, d0_ref):
    bt, n, _ = dx_ref.shape
    hp = x_ref.shape[-1]

    # ---- fused tp/tc linear layers: one (bt*n, hp) x (hp, 2*hp) bf16 matmul ----
    x = x_ref[...]                                                  # (bt*n, hp) bf16
    tptc = jnp.dot(x, wtptc_ref[...], preferred_element_type=jnp.float32)
    tptc = jnp.maximum(tptc + btptc_ref[...], 0.0)                  # (bt*n, 2*hp) f32
    tp = tptc[:, :hp]
    tc = tptc[:, hp:]

    # bilinear projection of tp
    tpw = jnp.dot(tp.astype(jnp.bfloat16), wbil_ref[...],
                  preferred_element_type=jnp.float32)               # (bt*n, hp) f32

    # root score on the VPU (lane reduce) -> natural column layout
    root = jnp.sum(tp * wfi_ref[...], axis=-1, keepdims=True)       # (bt*n, 1) f32

    # ---- bilinear scores (single batched einsum) ----
    tpw3 = tpw.astype(jnp.bfloat16).reshape(bt, n, hp)
    tc3 = tc.astype(jnp.bfloat16).reshape(bt, n, hp)
    scores = jnp.einsum("bqh,bkh->bqk", tpw3, tc3,
                        preferred_element_type=jnp.float32)         # (bt,n,n) f32

    # ---- static (n,n) index helpers, shared by every stage ----
    row2 = lax.broadcasted_iota(jnp.int32, (n, n), 0)
    col2 = lax.broadcasted_iota(jnp.int32, (n, n), 1)
    eye2 = (row2 == col2).astype(jnp.float32)
    offd2 = 1.0 - eye2
    rowc = lax.broadcasted_iota(jnp.int32, (n, 1), 0)               # row index column

    # ---- masks, A_ij and f_i ----
    m_row = mask_ref[...]                                           # (bt,1,n)
    m_col = jnp.sum(m_row * eye2, axis=2, keepdims=True)            # (bt,n,1)
    mm = m_col * m_row                                               # (bt,n,n)

    a = (jnp.maximum(scores, 0.0) * mm + EPS) * offd2                # A_ij
    f_col = jnp.maximum(root, 0.0).reshape(bt, n, 1) * m_col + EPS   # f_i (column)
    f_row = jnp.sum(f_col * eye2, axis=1, keepdims=True)             # f_i (row)

    # ---- transposed Laplacian L_bar^T (A^T via tiny unrolled selects) ----
    a_t = jnp.zeros_like(a)
    for k in range(n):
        colk = jnp.sum(a[:, k:k + 1, :] * eye2, axis=2, keepdims=True)  # = a[:,k,:]
        a_t = jnp.where(col2 == k, colk, a_t)                           # A^T[:, :, k]

    c_col = jnp.sum(a_t, axis=-1, keepdims=True)                     # colsum(A) as column
    lbar_t = -a_t + eye2 * c_col                                     # L^T
    lbar_t = jnp.where(col2 == 0, f_col, lbar_t)                     # column 0 <- f_i

    # ---- in-kernel batched inverse of L_bar^T: unrolled Gauss-Jordan with
    #      partial pivoting (replaces torch.inverse / jnp.linalg.inv) ----
    # Padded / fully-masked batch elements yield eps-scale Laplacians; pivots
    # stay >= ~1e-6 so the inverse remains finite (results are sliced off).
    aug = lbar_t
    inv = jnp.broadcast_to(eye2, (bt, n, n))
    for k in range(n):
        # pivot selection among rows >= k (first index wins ties)
        cand = jnp.where(rowc >= k, jnp.abs(aug[:, :, k:k + 1]), -1.0)   # (bt,n,1)
        mx = jnp.max(cand, axis=1, keepdims=True)                        # (bt,1,1)
        pidx = jnp.min(jnp.where(cand == mx, rowc, n), axis=1, keepdims=True)
        is_p = (rowc == pidx)                                            # (bt,n,1)
        is_k = (row2 == k)                                               # (n,n)

        rowk_a = aug[:, k:k + 1, :]
        rowk_i = inv[:, k:k + 1, :]
        rowp_a = jnp.sum(jnp.where(is_p, aug, 0.0), axis=1, keepdims=True)
        rowp_i = jnp.sum(jnp.where(is_p, inv, 0.0), axis=1, keepdims=True)

        # swap rows k <-> p in both matrices
        aug = jnp.where(is_k, rowp_a, jnp.where(is_p, rowk_a, aug))
        inv = jnp.where(is_k, rowp_i, jnp.where(is_p, rowk_i, inv))

        # normalize pivot row and eliminate column k from every other row
        inv_p = 1.0 / aug[:, k:k + 1, k:k + 1]
        nrow_a = aug[:, k:k + 1, :] * inv_p
        nrow_i = inv[:, k:k + 1, :] * inv_p
        fac = jnp.where(rowc == k, 0.0, aug[:, :, k:k + 1])              # (bt,n,1)
        aug = jnp.where(is_k, nrow_a, aug - fac * nrow_a)
        inv = jnp.where(is_k, nrow_i, inv - fac * nrow_i)

    llinv_t = inv                                        # inv(L_bar^T) == LLinv^T

    # ---- marginals (all elementwise; LLinv^T means no transpose is needed) ----
    diag_row = jnp.sum(llinv_t * eye2, axis=1, keepdims=True)        # LLinv[j,j]
    tmp1 = a * diag_row                                              # A[i,j]*LLinv[j,j]
    tmp2 = a * llinv_t                                               # A[i,j]*LLinv[j,i]
    dx = jnp.where(col2 != 0, tmp1, 0.0) - jnp.where(row2 != 0, tmp2, 0.0)
    d0 = f_row * llinv_t[:, 0:1, :]                                  # f_i*LLinv[i,0]

    dx_ref[...] = dx
    d0_ref[...] = d0


# ----------------------------------------------------------------------------
# Wrapper
# ----------------------------------------------------------------------------
def matrix_tree_layer(sent_vecs, enc_sent_padding_mask, params, *, block_b=32):
    """block_b: batch elements per grid step (16 -> 128 MXU rows for v5e,
    32 -> 256 rows for v6e/v7x; keep >= 2 grid steps on v7x for dual-TC use)."""
    B, N, Hdim = sent_vecs.shape
    assert Hdim == H
    bt = max(1, min(block_b, B))
    n_blocks = -(-B // bt)
    Bp = n_blocks * bt
    pad_b = Bp - B
    pad_h = HP - H

    # Pad batch to a multiple of bt and hidden to HP; MXU operands in bf16.
    xs = jnp.pad(sent_vecs.astype(jnp.float32), ((0, pad_b), (0, 0), (0, pad_h)))
    x2 = xs.reshape(Bp * N, HP).astype(jnp.bfloat16)

    mask = jnp.pad(enc_sent_padding_mask.astype(jnp.float32), ((0, pad_b), (0, 0)))
    m_row = mask.reshape(Bp, 1, N)

    pad2 = lambda w: jnp.pad(w, ((0, pad_h), (0, pad_h)))
    pad_row = lambda v: jnp.pad(v, ((0, 0), (0, pad_h)))
    w_tptc = jnp.concatenate([pad2(params["wtp_t"]), pad2(params["wtc_t"])],
                             axis=1).astype(jnp.bfloat16)            # (HP, 2*HP)
    b_tptc = jnp.concatenate([pad_row(params["btp"]), pad_row(params["btc"])],
                             axis=1)                                  # (1, 2*HP) f32
    wbl = pad2(params["wbil"]).astype(jnp.bfloat16)
    wfi = pad_row(params["wfi"])                                      # (1, HP) f32

    full2 = lambda i: (0, 0)
    per_b3 = lambda i: (i, 0, 0)

    dx, d0 = pl.pallas_call(
        _mtree_fused_kernel,
        out_shape=(jax.ShapeDtypeStruct((Bp, N, N), jnp.float32),
                   jax.ShapeDtypeStruct((Bp, 1, N), jnp.float32)),
        grid=(n_blocks,),
        in_specs=[pl.BlockSpec((bt * N, HP), lambda i: (i, 0)),       # sent_vecs (flat)
                  pl.BlockSpec((HP, 2 * HP), full2),                  # [W_tp^T | W_tc^T]
                  pl.BlockSpec((1, 2 * HP), full2),                   # [b_tp | b_tc]
                  pl.BlockSpec((HP, HP), full2),                      # bilinear W
                  pl.BlockSpec((1, HP), full2),                       # fi weight (row)
                  pl.BlockSpec((bt, 1, N), per_b3)],                  # padding mask
        out_specs=(pl.BlockSpec((bt, N, N), per_b3),
                   pl.BlockSpec((bt, 1, N), per_b3)),
        compiler_params=pltpu.CompilerParams(
            dimension_semantics=("parallel",)),
    )(x2, w_tptc, b_tptc, wbl, wfi, m_row)

    return dx[:B], d0[:B, 0, :]


# ----------------------------------------------------------------------------
# Deterministic parameter init (shapes per Matrix_Tree_Layer.__init__).
# wfi is drawn non-negative so random test Laplacians stay well conditioned
# (the kernel itself handles arbitrary weights).
# ----------------------------------------------------------------------------
def init_params(key):
    k1, k2, k3, k4, k5, k6 = jax.random.split(key, 6)
    lin_scale = 1.0 / jnp.sqrt(H)
    xavier = jnp.sqrt(6.0 / (H + H))
    return {
        "wtp_t": jax.random.uniform(k1, (H, H), jnp.float32, -lin_scale, lin_scale),
        "btp":   jax.random.uniform(k2, (1, H), jnp.float32, -lin_scale, lin_scale),
        "wtc_t": jax.random.uniform(k3, (H, H), jnp.float32, -lin_scale, lin_scale),
        "btc":   jax.random.uniform(k4, (1, H), jnp.float32, -lin_scale, lin_scale),
        "wbil":  jax.random.uniform(k5, (H, H), jnp.float32, -xavier, xavier),
        "wfi":   jax.random.uniform(k6, (1, H), jnp.float32, 0.0, lin_scale),
    }


# ----------------------------------------------------------------------------
# Pure-JAX reference mirroring the kernel's bf16 quantization points; the
# inverse uses jnp.linalg.inv, independently checking the in-kernel GJ inverse.
# ----------------------------------------------------------------------------
def ref_forward(x, mask, p):
    bf = jnp.bfloat16
    xq = x.astype(bf)
    tp = jax.nn.relu(jnp.dot(xq, p["wtp_t"].astype(bf),
                             preferred_element_type=jnp.float32) + p["btp"])
    tc = jax.nn.relu(jnp.dot(xq, p["wtc_t"].astype(bf),
                             preferred_element_type=jnp.float32) + p["btc"])
    tpw = jnp.dot(tp.astype(bf), p["wbil"].astype(bf),
                  preferred_element_type=jnp.float32)
    scores = jnp.einsum("bnh,bmh->bnm", tpw.astype(bf), tc.astype(bf),
                        preferred_element_type=jnp.float32)
    root = jnp.sum(tp * p["wfi"][0], axis=-1)
    n = x.shape[1]
    eye = jnp.eye(n, dtype=jnp.float32)
    A = (jax.nn.relu(scores) * mask[:, None, :] * mask[:, :, None] + EPS) * (1.0 - eye)
    f = jax.nn.relu(root) * mask + EPS
    colsum = jnp.sum(A, axis=1)
    L = -A + eye * colsum[:, None, :]
    lbar = L.at[:, 0, :].set(f)
    llinv = jnp.linalg.inv(lbar)
    d0 = f * llinv[:, :, 0]
    diag = jnp.diagonal(llinv, axis1=-2, axis2=-1)[:, None, :]
    tmp1 = A * diag
    tmp2 = A * jnp.swapaxes(llinv, -1, -2)
    m1 = jnp.arange(n)[None, None, :] != 0
    m2 = jnp.arange(n)[None, :, None] != 0
    dx = jnp.where(m1, tmp1, 0.0) - jnp.where(m2, tmp2, 0.0)
    return dx, d0


if __name__ == "__main__":
    B, N = 6, 8
    key = jax.random.PRNGKey(0)
    kp, kx = jax.random.split(key)
    params = init_params(kp)
    sent_vecs = jax.random.normal(kx, (B, N, H), jnp.float32)
    lengths = jnp.array([8, 8, 6, 5, 8, 4])
    enc_sent_padding_mask = (jnp.arange(N)[None, :] < lengths[:, None]).astype(jnp.float32)

    # block_b=4 -> 2 grid steps plus batch padding, exercising the multi-step
    # "parallel" grid; production sizes should use block_b=16 (v5e) or 32 (v6e/v7x).
    fwd = jax.jit(lambda x, m: matrix_tree_layer(x, m, params, block_b=4))
    dx, d0 = fwd(sent_vecs, enc_sent_padding_mask)
    jax.block_until_ready((dx, d0))

    assert dx.shape == (B, N, N) and d0.shape == (B, N)
    assert bool(jnp.all(jnp.isfinite(dx))) and bool(jnp.all(jnp.isfinite(d0)))

    dx_r, d0_r = ref_forward(sent_vecs, enc_sent_padding_mask, params)
    assert jnp.allclose(dx, dx_r, rtol=2e-2, atol=2e-2), \
        float(jnp.max(jnp.abs(dx - dx_r)))
    assert jnp.allclose(d0, d0_r, rtol=2e-2, atol=2e-2), \
        float(jnp.max(jnp.abs(d0 - d0_r)))

    print("KERNEL_OK")
</pallas_src>

<mosaic_0001>
module attributes {stable_mosaic.version = 11 : i64} {
  func.func @_mtree_fused_kernel(%arg0: i32, %arg1: memref<32x384xbf16, #tpu.memory_space<vmem>>, %arg2: memref<384x768xbf16, #tpu.memory_space<vmem>>, %arg3: memref<1x768xf32, #tpu.memory_space<vmem>>, %arg4: memref<384x384xbf16, #tpu.memory_space<vmem>>, %arg5: memref<1x384xf32, #tpu.memory_space<vmem>>, %arg6: memref<4x1x8xf32, #tpu.memory_space<vmem>>, %arg7: memref<4x8x8xf32, #tpu.memory_space<vmem>>, %arg8: memref<4x1x8xf32, #tpu.memory_space<vmem>>) attributes {dimension_semantics = [#tpu.dimension_semantics<parallel>], iteration_bounds = array<i64: 2>, scalar_prefetch = 0 : i64, scratch_operands = 0 : i64, tpu.core_type = #tpu.core_type<tc>, window_params = [{transform_indices = @transform_0, window_bounds = array<i64: 32, 384>}, {pipeline_mode = #tpu.pipeline_mode<synchronous>, transform_indices = @transform_1, window_bounds = array<i64: 384, 768>}, {pipeline_mode = #tpu.pipeline_mode<synchronous>, transform_indices = @transform_2, window_bounds = array<i64: 1, 768>}, {pipeline_mode = #tpu.pipeline_mode<synchronous>, transform_indices = @transform_3, window_bounds = array<i64: 384, 384>}, {pipeline_mode = #tpu.pipeline_mode<synchronous>, transform_indices = @transform_4, window_bounds = array<i64: 1, 384>}, {transform_indices = @transform_5, window_bounds = array<i64: 4, 1, 8>}, {transform_indices = @transform_6, window_bounds = array<i64: 4, 8, 8>}, {transform_indices = @transform_7, window_bounds = array<i64: 4, 1, 8>}]} {
    %c0 = arith.constant 0 : index
    %c0_0 = arith.constant 0 : index
    %0 = vector.load %arg1[%c0, %c0_0] : memref<32x384xbf16, #tpu.memory_space<vmem>>, vector<32x384xbf16>
    %c0_1 = arith.constant 0 : index
    %c0_2 = arith.constant 0 : index
    %1 = vector.load %arg2[%c0_1, %c0_2] : memref<384x768xbf16, #tpu.memory_space<vmem>>, vector<384x768xbf16>
    %cst = arith.constant dense<0.000000e+00> : vector<32x768xf32>
    %2 = tpu.matmul %0, %1, %cst {dimension_numbers = #tpu.dot_dimension_numbers<[1], [0], [0], [1], [0, 0, 1, 1], [], []>} : vector<32x384xbf16>, vector<384x768xbf16>, vector<32x768xf32> -> vector<32x768xf32>
    %c0_3 = arith.constant 0 : index
    %c0_4 = arith.constant 0 : index
    %3 = vector.load %arg3[%c0_3, %c0_4] : memref<1x768xf32, #tpu.memory_space<vmem>>, vector<1x768xf32>
    %4 = vector.broadcast %3 : vector<1x768xf32> to vector<32x768xf32>
    %5 = arith.addf %2, %4 : vector<32x768xf32>
    %cst_5 = arith.constant 0.000000e+00 : f32
    %6 = vector.broadcast %cst_5 : f32 to vector<32x768xf32>
    %7 = arith.maximumf %5, %6 : vector<32x768xf32>
    %8 = vector.extract_strided_slice %7 {offsets = [0, 0], sizes = [32, 384], strides = [1, 1]} : vector<32x768xf32> to vector<32x384xf32>
    %9 = vector.extract_strided_slice %7 {offsets = [0, 384], sizes = [32, 384], strides = [1, 1]} : vector<32x768xf32> to vector<32x384xf32>
    %10 = arith.truncf %8 : vector<32x384xf32> to vector<32x384xbf16>
    %c0_6 = arith.constant 0 : index
    %c0_7 = arith.constant 0 : index
    %11 = vector.load %arg4[%c0_6, %c0_7] : memref<384x384xbf16, #tpu.memory_space<vmem>>, vector<384x384xbf16>
    %cst_8 = arith.constant dense<0.000000e+00> : vector<32x384xf32>
    %12 = tpu.matmul %10, %11, %cst_8 {dimension_numbers = #tpu.dot_dimension_numbers<[1], [0], [0], [1], [0, 0, 1, 1], [], []>} : vector<32x384xbf16>, vector<384x384xbf16>, vector<32x384xf32> -> vector<32x384xf32>
    %c0_9 = arith.constant 0 : index
    %c0_10 = arith.constant 0 : index
    %13 = vector.load %arg5[%c0_9, %c0_10] : memref<1x384xf32, #tpu.memory_space<vmem>>, vector<1x384xf32>
    %14 = vector.broadcast %13 : vector<1x384xf32> to vector<32x384xf32>
    %15 = arith.mulf %8, %14 : vector<32x384xf32>
    %cst_11 = arith.constant dense<0.000000e+00> : vector<32xf32>
    %16 = vector.multi_reduction <add>, %15, %cst_11 [1] : vector<32x384xf32> to vector<32xf32>
    %17 = vector.shape_cast %16 : vector<32xf32> to vector<32x1xf32>
    %18 = arith.truncf %12 : vector<32x384xf32> to vector<32x384xbf16>
    %19 = vector.shape_cast %18 : vector<32x384xbf16> to vector<4x8x384xbf16>
    %20 = arith.truncf %9 : vector<32x384xf32> to vector<32x384xbf16>
    %21 = vector.shape_cast %20 : vector<32x384xbf16> to vector<4x8x384xbf16>
    "tpu.trace_start"() <{level = 10 : i32, message = "bqh,bkh->bqk"}> : () -> ()
    %cst_12 = arith.constant dense<0.000000e+00> : vector<4x8x8xf32>
    %22 = tpu.matmul %19, %21, %cst_12 {dimension_numbers = #tpu.dot_dimension_numbers<[2], [2], [1], [1], [0, 0, 0, 1, 1, 1], [0], [0]>} : vector<4x8x384xbf16>, vector<4x8x384xbf16>, vector<4x8x8xf32> -> vector<4x8x8xf32>
    "tpu.trace_stop"() : () -> ()
    %23 = tpu.iota {dimensions = array<i32: 0>} : vector<8x8xi32>
    %24 = tpu.iota {dimensions = array<i32: 1>} : vector<8x8xi32>
    %25 = arith.cmpi eq, %23, %24 : vector<8x8xi32>
    %26 = arith.extui %25 : vector<8x8xi1> to vector<8x8xi32>
    %27 = arith.sitofp %26 : vector<8x8xi32> to vector<8x8xf32>
    %cst_13 = arith.constant 1.000000e+00 : f32
    %28 = vector.broadcast %cst_13 : f32 to vector<8x8xf32>
    %29 = arith.subf %28, %27 : vector<8x8xf32>
    %30 = tpu.iota {dimensions = array<i32: 0>} : vector<8x1xi32>
    %c0_14 = arith.constant 0 : index
    %c0_15 = arith.constant 0 : index
    %c0_16 = arith.constant 0 : index
    %31 = vector.load %arg6[%c0_14, %c0_15, %c0_16] : memref<4x1x8xf32, #tpu.memory_space<vmem>>, vector<4x1x8xf32>
    %32 = vector.shape_cast %27 : vector<8x8xf32> to vector<1x8x8xf32>
    %33 = vector.broadcast %31 : vector<4x1x8xf32> to vector<4x8x8xf32>
    %34 = vector.broadcast %32 : vector<1x8x8xf32> to vector<4x8x8xf32>
    %35 = arith.mulf %33, %34 : vector<4x8x8xf32>
    %cst_17 = arith.constant dense<0.000000e+00> : vector<4x8xf32>
    %36 = vector.multi_reduction <add>, %35, %cst_17 [2] : vector<4x8x8xf32> to vector<4x8xf32>
    %37 = vector.shape_cast %36 : vector<4x8xf32> to vector<4x8x1xf32>
    %38 = vector.broadcast %37 : vector<4x8x1xf32> to vector<4x8x8xf32>
    %39 = vector.broadcast %31 : vector<4x1x8xf32> to vector<4x8x8xf32>
    %40 = arith.mulf %38, %39 : vector<4x8x8xf32>
    %cst_18 = arith.constant 0.000000e+00 : f32
    %41 = vector.broadcast %cst_18 : f32 to vector<4x8x8xf32>
    %42 = arith.maximumf %22, %41 : vector<4x8x8xf32>
    %43 = arith.mulf %42, %40 : vector<4x8x8xf32>
    %cst_19 = arith.constant 9.99999997E-7 : f32
    %44 = vector.broadcast %cst_19 : f32 to vector<4x8x8xf32>
    %45 = arith.addf %43, %44 : vector<4x8x8xf32>
    %46 = vector.shape_cast %29 : vector<8x8xf32> to vector<1x8x8xf32>
    %47 = vector.broadcast %46 : vector<1x8x8xf32> to vector<4x8x8xf32>
    %48 = arith.mulf %45, %47 : vector<4x8x8xf32>
    %cst_20 = arith.constant 0.000000e+00 : f32
    %49 = vector.broadcast %cst_20 : f32 to vector<32x1xf32>
    %50 = arith.maximumf %17, %49 : vector<32x1xf32>
    %51 = vector.shape_cast %50 : vector<32x1xf32> to vector<4x8x1xf32>
    %52 = arith.mulf %51, %37 : vector<4x8x1xf32>
    %cst_21 = arith.constant 9.99999997E-7 : f32
    %53 = vector.broadcast %cst_21 : f32 to vector<4x8x1xf32>
    %54 = arith.addf %52, %53 : vector<4x8x1xf32>
    %55 = vector.shape_cast %27 : vector<8x8xf32> to vector<1x8x8xf32>
    %56 = vector.broadcast %54 : vector<4x8x1xf32> to vector<4x8x8xf32>
    %57 = vector.broadcast %55 : vector<1x8x8xf32> to vector<4x8x8xf32>
    %58 = arith.mulf %56, %57 : vector<4x8x8xf32>
    %cst_22 = arith.constant dense<0.000000e+00> : vector<4x8xf32>
    %59 = vector.multi_reduction <add>, %58, %cst_22 [1] : vector<4x8x8xf32> to vector<4x8xf32>
    %60 = vector.shape_cast %59 : vector<4x8xf32> to vector<4x1x8xf32>
    %cst_23 = arith.constant 0.000000e+00 : f32
    %61 = vector.broadcast %cst_23 : f32 to vector<4x8x8xf32>
    %62 = vector.extract_strided_slice %48 {offsets = [0, 0, 0], sizes = [4, 1, 8], strides = [1, 1, 1]} : vector<4x8x8xf32> to vector<4x1x8xf32>
    %63 = vector.shape_cast %27 : vector<8x8xf32> to vector<1x8x8xf32>
    %64 = vector.broadcast %62 : vector<4x1x8xf32> to vector<4x8x8xf32>
    %65 = vector.broadcast %63 : vector<1x8x8xf32> to vector<4x8x8xf32>
    %66 = arith.mulf %64, %65 : vector<4x8x8xf32>
    %cst_24 = arith.constant dense<0.000000e+00> : vector<4x8xf32>
    %67 = vector.multi_reduction <add>, %66, %cst_24 [2] : vector<4x8x8xf32> to vector<4x8xf32>
    %68 = vector.shape_cast %67 : vector<4x8xf32> to vector<4x8x1xf32>
    %c0_i32 = arith.constant 0 : i32
    %69 = vector.broadcast %c0_i32 : i32 to vector<8x8xi32>
    %70 = arith.cmpi eq, %24, %69 : vector<8x8xi32>
    %71 = vector.shape_cast %70 : vector<8x8xi1> to vector<1x8x8xi1>
    %72 = vector.broadcast %71 : vector<1x8x8xi1> to vector<4x8x8xi1>
    %73 = vector.shape_cast %68 : vector<4x8x1xf32> to vector<4x8x1xf32>
    %74 = vector.broadcast %73 : vector<4x8x1xf32> to vector<4x8x8xf32>
    %75 = arith.select %72, %74, %61 : vector<4x8x8xi1>, vector<4x8x8xf32>
    %76 = vector.extract_strided_slice %48 {offsets = [0, 1, 0], sizes = [4, 1, 8], strides = [1, 1, 1]} : vector<4x8x8xf32> to vector<4x1x8xf32>
    %77 = vector.shape_cast %27 : vector<8x8xf32> to vector<1x8x8xf32>
    %78 = vector.broadcast %76 : vector<4x1x8xf32> to vector<4x8x8xf32>
    %79 = vector.broadcast %77 : vector<1x8x8xf32> to vector<4x8x8xf32>
    %80 = arith.mulf %78, %79 : vector<4x8x8xf32>
    %cst_25 = arith.constant dense<0.000000e+00> : vector<4x8xf32>
    %81 = vector.multi_reduction <add>, %80, %cst_25 [2] : vector<4x8x8xf32> to vector<4x8xf32>
    %82 = vector.shape_cast %81 : vector<4x8xf32> to vector<4x8x1xf32>
    %c1_i32 = arith.constant 1 : i32
    %83 = vector.broadcast %c1_i32 : i32 to vector<8x8xi32>
    %84 = arith.cmpi eq, %24, %83 : vector<8x8xi32>
    %85 = vector.shape_cast %84 : vector<8x8xi1> to vector<1x8x8xi1>
    %86 = vector.broadcast %85 : vector<1x8x8xi1> to vector<4x8x8xi1>
    %87 = vector.shape_cast %82 : vector<4x8x1xf32> to vector<4x8x1xf32>
    %88 = vector.broadcast %87 : vector<4x8x1xf32> to vector<4x8x8xf32>
    %89 = arith.select %86, %88, %75 : vector<4x8x8xi1>, vector<4x8x8xf32>
    %90 = vector.extract_strided_slice %48 {offsets = [0, 2, 0], sizes = [4, 1, 8], strides = [1, 1, 1]} : vector<4x8x8xf32> to vector<4x1x8xf32>
    %91 = vector.shape_cast %27 : vector<8x8xf32> to vector<1x8x8xf32>
    %92 = vector.broadcast %90 : vector<4x1x8xf32> to vector<4x8x8xf32>
    %93 = vector.broadcast %91 : vector<1x8x8xf32> to vector<4x8x8xf32>
    %94 = arith.mulf %92, %93 : vector<4x8x8xf32>
    %cst_26 = arith.constant dense<0.000000e+00> : vector<4x8xf32>
    %95 = vector.multi_reduction <add>, %94, %cst_26 [2] : vector<4x8x8xf32> to vector<4x8xf32>
    %96 = vector.shape_cast %95 : vector<4x8xf32> to vector<4x8x1xf32>
    %c2_i32 = arith.constant 2 : i32
    %97 = vector.broadcast %c2_i32 : i32 to vector<8x8xi32>
    %98 = arith.cmpi eq, %24, %97 : vector<8x8xi32>
    %99 = vector.shape_cast %98 : vector<8x8xi1> to vector<1x8x8xi1>
    %100 = vector.broadcast %99 : vector<1x8x8xi1> to vector<4x8x8xi1>
    %101 = vector.shape_cast %96 : vector<4x8x1xf32> to vector<4x8x1xf32>
    %102 = vector.broadcast %101 : vector<4x8x1xf32> to vector<4x8x8xf32>
    %103 = arith.select %100, %102, %89 : vector<4x8x8xi1>, vector<4x8x8xf32>
    %104 = vector.extract_strided_slice %48 {offsets = [0, 3, 0], sizes = [4, 1, 8], strides = [1, 1, 1]} : vector<4x8x8xf32> to vector<4x1x8xf32>
    %105 = vector.shape_cast %27 : vector<8x8xf32> to vector<1x8x8xf32>
    %106 = vector.broadcast %104 : vector<4x1x8xf32> to vector<4x8x8xf32>
    %107 = vector.broadcast %105 : vector<1x8x8xf32> to vector<4x8x8xf32>
    %108 = arith.mulf %106, %107 : vector<4x8x8xf32>
    %cst_27 = arith.constant dense<0.000000e+00> : vector<4x8xf32>
    %109 = vector.multi_reduction <add>, %108, %cst_27 [2] : vector<4x8x8xf32> to vector<4x8xf32>
    %110 = vector.shape_cast %109 : vector<4x8xf32> to vector<4x8x1xf32>
    %c3_i32 = arith.constant 3 : i32
    %111 = vector.broadcast %c3_i32 : i32 to vector<8x8xi32>
    %112 = arith.cmpi eq, %24, %111 : vector<8x8xi32>
    %113 = vector.shape_cast %112 : vector<8x8xi1> to vector<1x8x8xi1>
    %114 = vector.broadcast %113 : vector<1x8x8xi1> to vector<4x8x8xi1>
    %115 = vector.shape_cast %110 : vector<4x8x1xf32> to vector<4x8x1xf32>
    %116 = vector.broadcast %115 : vector<4x8x1xf32> to vector<4x8x8xf32>
    %117 = arith.select %114, %116, %103 : vector<4x8x8xi1>, vector<4x8x8xf32>
    %118 = vector.extract_strided_slice %48 {offsets = [0, 4, 0], sizes = [4, 1, 8], strides = [1, 1, 1]} : vector<4x8x8xf32> to vector<4x1x8xf32>
    %119 = vector.shape_cast %27 : vector<8x8xf32> to vector<1x8x8xf32>
    %120 = vector.broadcast %118 : vector<4x1x8xf32> to vector<4x8x8xf32>
    %121 = vector.broadcast %119 : vector<1x8x8xf32> to vector<4x8x8xf32>
    %122 = arith.mulf %120, %121 : vector<4x8x8xf32>
    %cst_28 = arith.constant dense<0.000000e+00> : vector<4x8xf32>
    %123 = vector.multi_reduction <add>, %122, %cst_28 [2] : vector<4x8x8xf32> to vector<4x8xf32>
    %124 = vector.shape_cast %123 : vector<4x8xf32> to vector<4x8x1xf32>
    %c4_i32 = arith.constant 4 : i32
    %125 = vector.broadcast %c4_i32 : i32 to vector<8x8xi32>
    %126 = arith.cmpi eq, %24, %125 : vector<8x8xi32>
    %127 = vector.shape_cast %126 : vector<8x8xi1> to vector<1x8x8xi1>
    %128 = vector.broadcast %127 : vector<1x8x8xi1> to vector<4x8x8xi1>
    %129 = vector.shape_cast %124 : vector<4x8x1xf32> to vector<4x8x1xf32>
    %130 = vector.broadcast %129 : vector<4x8x1xf32> to vector<4x8x8xf32>
    %131 = arith.select %128, %130, %117 : vector<4x8x8xi1>, vector<4x8x8xf32>
    %132 = vector.extract_strided_slice %48 {offsets = [0, 5, 0], sizes = [4, 1, 8], strides = [1, 1, 1]} : vector<4x8x8xf32> to vector<4x1x8xf32>
    %133 = vector.shape_cast %27 : vector<8x8xf32> to vector<1x8x8xf32>
    %134 = vector.broadcast %132 : vector<4x1x8xf32> to vector<4x8x8xf32>
    %135 = vector.broadcast %133 : vector<1x8x8xf32> to vector<4x8x8xf32>
    %136 = arith.mulf %134, %135 : vector<4x8x8xf32>
    %cst_29 = arith.constant dense<0.000000e+00> : vector<4x8xf32>
    %137 = vector.multi_reduction <add>, %136, %cst_29 [2] : vector<4x8x8xf32> to vector<4x8xf32>
    %138 = vector.shape_cast %137 : vector<4x8xf32> to vector<4x8x1xf32>
    %c5_i32 = arith.constant 5 : i32
    %139 = vector.broadcast %c5_i32 : i32 to vector<8x8xi32>
    %140 = arith.cmpi eq, %24, %139 : vector<8x8xi32>
    %141 = vector.shape_cast %140 : vector<8x8xi1> to vector<1x8x8xi1>
    %142 = vector.broadcast %141 : vector<1x8x8xi1> to vector<4x8x8xi1>
    %143 = vector.shape_cast %138 : vector<4x8x1xf32> to vector<4x8x1xf32>
    %144 = vector.broadcast %143 : vector<4x8x1xf32> to vector<4x8x8xf32>
    %145 = arith.select %142, %144, %131 : vector<4x8x8xi1>, vector<4x8x8xf32>
    %146 = vector.extract_strided_slice %48 {offsets = [0, 6, 0], sizes = [4, 1, 8], strides = [1, 1, 1]} : vector<4x8x8xf32> to vector<4x1x8xf32>
    %147 = vector.shape_cast %27 : vector<8x8xf32> to vector<1x8x8xf32>
    %148 = vector.broadcast %146 : vector<4x1x8xf32> to vector<4x8x8xf32>
    %149 = vector.broadcast %147 : vector<1x8x8xf32> to vector<4x8x8xf32>
    %150 = arith.mulf %148, %149 : vector<4x8x8xf32>
    %cst_30 = arith.constant dense<0.000000e+00> : vector<4x8xf32>
    %151 = vector.multi_reduction <add>, %150, %cst_30 [2] : vector<4x8x8xf32> to vector<4x8xf32>
    %152 = vector.shape_cast %151 : vector<4x8xf32> to vector<4x8x1xf32>
    %c6_i32 = arith.constant 6 : i32
    %153 = vector.broadcast %c6_i32 : i32 to vector<8x8xi32>
    %154 = arith.cmpi eq, %24, %153 : vector<8x8xi32>
    %155 = vector.shape_cast %154 : vector<8x8xi1> to vector<1x8x8xi1>
    %156 = vector.broadcast %155 : vector<1x8x8xi1> to vector<4x8x8xi1>
    %157 = vector.shape_cast %152 : vector<4x8x1xf32> to vector<4x8x1xf32>
    %158 = vector.broadcast %157 : vector<4x8x1xf32> to vector<4x8x8xf32>
    %159 = arith.select %156, %158, %145 : vector<4x8x8xi1>, vector<4x8x8xf32>
    %160 = vector.extract_strided_slice %48 {offsets = [0, 7, 0], sizes = [4, 1, 8], strides = [1, 1, 1]} : vector<4x8x8xf32> to vector<4x1x8xf32>
    %161 = vector.shape_cast %27 : vector<8x8xf32> to vector<1x8x8xf32>
    %162 = vector.broadcast %160 : vector<4x1x8xf32> to vector<4x8x8xf32>
    %163 = vector.broadcast %161 : vector<1x8x8xf32> to vector<4x8x8xf32>
    %164 = arith.mulf %162, %163 : vector<4x8x8xf32>
    %cst_31 = arith.constant dense<0.000000e+00> : vector<4x8xf32>
    %165 = vector.multi_reduction <add>, %164, %cst_31 [2] : vector<4x8x8xf32> to vector<4x8xf32>
    %166 = vector.shape_cast %165 : vector<4x8xf32> to vector<4x8x1xf32>
    %c7_i32 = arith.constant 7 : i32
    %167 = vector.broadcast %c7_i32 : i32 to vector<8x8xi32>
    %168 = arith.cmpi eq, %24, %167 : vector<8x8xi32>
    %169 = vector.shape_cast %168 : vector<8x8xi1> to vector<1x8x8xi1>
    %170 = vector.broadcast %169 : vector<1x8x8xi1> to vector<4x8x8xi1>
    %171 = vector.shape_cast %166 : vector<4x8x1xf32> to vector<4x8x1xf32>
    %172 = vector.broadcast %171 : vector<4x8x1xf32> to vector<4x8x8xf32>
    %173 = arith.select %170, %172, %159 : vector<4x8x8xi1>, vector<4x8x8xf32>
    %cst_32 = arith.constant dense<0.000000e+00> : vector<4x8xf32>
    %174 = vector.multi_reduction <add>, %173, %cst_32 [2] : vector<4x8x8xf32> to vector<4x8xf32>
    %175 = vector.shape_cast %174 : vector<4x8xf32> to vector<4x8x1xf32>
    %cst_33 = arith.constant 0.000000e+00 : f32
    %176 = vector.broadcast %cst_33 : f32 to vector<4x8x8xf32>
    %177 = arith.subf %176, %173 : vector<4x8x8xf32>
    %178 = vector.shape_cast %27 : vector<8x8xf32> to vector<1x8x8xf32>
    %179 = vector.broadcast %178 : vector<1x8x8xf32> to vector<4x8x8xf32>
    %180 = vector.broadcast %175 : vector<4x8x1xf32> to vector<4x8x8xf32>
    %181 = arith.mulf %179, %180 : vector<4x8x8xf32>
    %182 = arith.addf %177, %181 : vector<4x8x8xf32>
    %c0_i32_34 = arith.constant 0 : i32
    %183 = vector.broadcast %c0_i32_34 : i32 to vector<8x8xi32>
    %184 = arith.cmpi eq, %24, %183 : vector<8x8xi32>
    %185 = vector.shape_cast %184 : vector<8x8xi1> to vector<1x8x8xi1>
    %186 = vector.broadcast %185 : vector<1x8x8xi1> to vector<4x8x8xi1>
    %187 = vector.shape_cast %54 : vector<4x8x1xf32> to vector<4x8x1xf32>
    %188 = vector.broadcast %187 : vector<4x8x1xf32> to vector<4x8x8xf32>
    %189 = arith.select %186, %188, %182 : vector<4x8x8xi1>, vector<4x8x8xf32>
    %190 = vector.shape_cast %27 : vector<8x8xf32> to vector<1x8x8xf32>
    %191 = vector.broadcast %190 : vector<1x8x8xf32> to vector<4x8x8xf32>
    %c0_i32_35 = arith.constant 0 : i32
    %192 = vector.broadcast %c0_i32_35 : i32 to vector<8x1xi32>
    %193 = arith.cmpi sge, %30, %192 : vector<8x1xi32>
    %194 = vector.extract_strided_slice %189 {offsets = [0, 0, 0], sizes = [4, 8, 1], strides = [1, 1, 1]} : vector<4x8x8xf32> to vector<4x8x1xf32>
    %195 = math.absf %194 : vector<4x8x1xf32>
    %cst_36 = arith.constant -1.000000e+00 : f32
    %196 = vector.shape_cast %193 : vector<8x1xi1> to vector<1x8x1xi1>
    %197 = vector.broadcast %196 : vector<1x8x1xi1> to vector<4x8x1xi1>
    %198 = vector.broadcast %cst_36 : f32 to vector<4x8x1xf32>
    %199 = arith.select %197, %195, %198 : vector<4x8x1xi1>, vector<4x8x1xf32>
    %cst_37 = arith.constant dense<0xFF800000> : vector<4x1xf32>
    %200 = vector.multi_reduction <maximumf>, %199, %cst_37 [1] : vector<4x8x1xf32> to vector<4x1xf32>
    %201 = vector.shape_cast %200 : vector<4x1xf32> to vector<4x1x1xf32>
    %202 = vector.broadcast %201 : vector<4x1x1xf32> to vector<4x8x1xf32>
    %203 = arith.cmpf oeq, %199, %202 : vector<4x8x1xf32>
    %c8_i32 = arith.constant 8 : i32
    %204 = vector.shape_cast %30 : vector<8x1xi32> to vector<1x8x1xi32>
    %205 = vector.broadcast %204 : vector<1x8x1xi32> to vector<4x8x1xi32>
    %206 = vector.broadcast %c8_i32 : i32 to vector<4x8x1xi32>
    %207 = arith.select %203, %205, %206 : vector<4x8x1xi1>, vector<4x8x1xi32>
    %cst_38 = arith.constant dense<2147483647> : vector<4x1xi32>
    %208 = vector.multi_reduction <minsi>, %207, %cst_38 [1] : vector<4x8x1xi32> to vector<4x1xi32>
    %209 = vector.shape_cast %208 : vector<4x1xi32> to vector<4x1x1xi32>
    %210 = vector.shape_cast %30 : vector<8x1xi32> to vector<1x8x1xi32>
    %211 = vector.broadcast %210 : vector<1x8x1xi32> to vector<4x8x1xi32>
    %212 = vector.broadcast %209 : vector<4x1x1xi32> to vector<4x8x1xi32>
    %213 = arith.cmpi eq, %211, %212 : vector<4x8x1xi32>
    %c0_i32_39 = arith.constant 0 : i32
    %214 = vector.broadcast %c0_i32_39 : i32 to vector<8x8xi32>
    %215 = arith.cmpi eq, %23, %214 : vector<8x8xi32>
    %216 = vector.extract_strided_slice %189 {offsets = [0, 0, 0], sizes = [4, 1, 8], strides = [1, 1, 1]} : vector<4x8x8xf32> to vector<4x1x8xf32>
    %217 = vector.extract_strided_slice %191 {offsets = [0, 0, 0], sizes = [4, 1, 8], strides = [1, 1, 1]} : vector<4x8x8xf32> to vector<4x1x8xf32>
    %cst_40 = arith.constant 0.000000e+00 : f32
    %218 = vector.shape_cast %213 : vector<4x8x1xi1> to vector<4x8x1xi1>
    %219 = vector.broadcast %218 : vector<4x8x1xi1> to vector<4x8x8xi1>
    %220 = vector.broadcast %cst_40 : f32 to vector<4x8x8xf32>
    %221 = arith.select %219, %189, %220 : vector<4x8x8xi1>, vector<4x8x8xf32>
    %cst_41 = arith.constant dense<0.000000e+00> : vector<4x8xf32>
    %222 = vector.multi_reduction <add>, %221, %cst_41 [1] : vector<4x8x8xf32> to vector<4x8xf32>
    %223 = vector.shape_cast %222 : vector<4x8xf32> to vector<4x1x8xf32>
    %cst_42 = arith.constant 0.000000e+00 : f32
    %224 = vector.shape_cast %213 : vector<4x8x1xi1> to vector<4x8x1xi1>
    %225 = vector.broadcast %224 : vector<4x8x1xi1> to vector<4x8x8xi1>
    %226 = vector.broadcast %cst_42 : f32 to vector<4x8x8xf32>
    %227 = arith.select %225, %191, %226 : vector<4x8x8xi1>, vector<4x8x8xf32>
    %cst_43 = arith.constant dense<0.000000e+00> : vector<4x8xf32>
    %228 = vector.multi_reduction <add>, %227, %cst_43 [1] : vector<4x8x8xf32> to vector<4x8xf32>
    %229 = vector.shape_cast %228 : vector<4x8xf32> to vector<4x1x8xf32>
    %230 = vector.shape_cast %213 : vector<4x8x1xi1> to vector<4x8x1xi1>
    %231 = vector.broadcast %230 : vector<4x8x1xi1> to vector<4x8x8xi1>
    %232 = vector.shape_cast %216 : vector<4x1x8xf32> to vector<4x1x8xf32>
    %233 = vector.broadcast %232 : vector<4x1x8xf32> to vector<4x8x8xf32>
    %234 = arith.select %231, %233, %189 : vector<4x8x8xi1>, vector<4x8x8xf32>
    %235 = vector.shape_cast %215 : vector<8x8xi1> to vector<1x8x8xi1>
    %236 = vector.broadcast %235 : vector<1x8x8xi1> to vector<4x8x8xi1>
    %237 = vector.shape_cast %223 : vector<4x1x8xf32> to vector<4x1x8xf32>
    %238 = vector.broadcast %237 : vector<4x1x8xf32> to vector<4x8x8xf32>
    %239 = arith.select %236, %238, %234 : vector<4x8x8xi1>, vector<4x8x8xf32>
    %240 = vector.shape_cast %213 : vector<4x8x1xi1> to vector<4x8x1xi1>
    %241 = vector.broadcast %240 : vector<4x8x1xi1> to vector<4x8x8xi1>
    %242 = vector.shape_cast %217 : vector<4x1x8xf32> to vector<4x1x8xf32>
    %243 = vector.broadcast %242 : vector<4x1x8xf32> to vector<4x8x8xf32>
    %244 = arith.select %241, %243, %191 : vector<4x8x8xi1>, vector<4x8x8xf32>
    %245 = vector.shape_cast %215 : vector<8x8xi1> to vector<1x8x8xi1>
    %246 = vector.broadcast %245 : vector<1x8x8xi1> to vector<4x8x8xi1>
    %247 = vector.shape_cast %229 : vector<4x1x8xf32> to vector<4x1x8xf32>
    %248 = vector.broadcast %247 : vector<4x1x8xf32> to vector<4x8x8xf32>
    %249 = arith.select %246, %248, %244 : vector<4x8x8xi1>, vector<4x8x8xf32>
    %250 = vector.extract_strided_slice %239 {offsets = [0, 0, 0], sizes = [4, 1, 1], strides = [1, 1, 1]} : vector<4x8x8xf32> to vector<4x1x1xf32>
    %cst_44 = arith.constant 1.000000e+00 : f32
    %251 = vector.broadcast %cst_44 : f32 to vector<4x1x1xf32>
    %252 = arith.divf %251, %250 : vector<4x1x1xf32>
    %253 = vector.extract_strided_slice %239 {offsets = [0, 0, 0], sizes = [4, 1, 8], strides = [1, 1, 1]} : vector<4x8x8xf32> to vector<4x1x8xf32>
    %254 = vector.broadcast %252 : vector<4x1x1xf32> to vector<4x1x8xf32>
    %255 = arith.mulf %253, %254 : vector<4x1x8xf32>
    %256 = vector.extract_strided_slice %249 {offsets = [0, 0, 0], sizes = [4, 1, 8], strides = [1, 1, 1]} : vector<4x8x8xf32> to vector<4x1x8xf32>
    %257 = vector.broadcast %252 : vector<4x1x1xf32> to vector<4x1x8xf32>
    %258 = arith.mulf %256, %257 : vector<4x1x8xf32>
    %c0_i32_45 = arith.constant 0 : i32
    %259 = vector.broadcast %c0_i32_45 : i32 to vector<8x1xi32>
    %260 = arith.cmpi eq, %30, %259 : vector<8x1xi32>
    %261 = vector.extract_strided_slice %239 {offsets = [0, 0, 0], sizes = [4, 8, 1], strides = [1, 1, 1]} : vector<4x8x8xf32> to vector<4x8x1xf32>
    %cst_46 = arith.constant 0.000000e+00 : f32
    %262 = vector.shape_cast %260 : vector<8x1xi1> to vector<1x8x1xi1>
    %263 = vector.broadcast %262 : vector<1x8x1xi1> to vector<4x8x1xi1>
    %264 = vector.broadcast %cst_46 : f32 to vector<4x8x1xf32>
    %265 = arith.select %263, %264, %261 : vector<4x8x1xi1>, vector<4x8x1xf32>
    %266 = vector.broadcast %265 : vector<4x8x1xf32> to vector<4x8x8xf32>
    %267 = vector.broadcast %255 : vector<4x1x8xf32> to vector<4x8x8xf32>
    %268 = arith.mulf %266, %267 : vector<4x8x8xf32>
    %269 = arith.subf %239, %268 : vector<4x8x8xf32>
    %270 = vector.shape_cast %215 : vector<8x8xi1> to vector<1x8x8xi1>
    %271 = vector.broadcast %270 : vector<1x8x8xi1> to vector<4x8x8xi1>
    %272 = vector.shape_cast %255 : vector<4x1x8xf32> to vector<4x1x8xf32>
    %273 = vector.broadcast %272 : vector<4x1x8xf32> to vector<4x8x8xf32>
    %274 = arith.select %271, %273, %269 : vector<4x8x8xi1>, vector<4x8x8xf32>
    %275 = vector.broadcast %265 : vector<4x8x1xf32> to vector<4x8x8xf32>
    %276 = vector.broadcast %258 : vector<4x1x8xf32> to vector<4x8x8xf32>
    %277 = arith.mulf %275, %276 : vector<4x8x8xf32>
    %278 = arith.subf %249, %277 : vector<4x8x8xf32>
    %279 = vector.shape_cast %215 : vector<8x8xi1> to vector<1x8x8xi1>
    %280 = vector.broadcast %279 : vector<1x8x8xi1> to vector<4x8x8xi1>
    %281 = vector.shape_cast %258 : vector<4x1x8xf32> to vector<4x1x8xf32>
    %282 = vector.broadcast %281 : vector<4x1x8xf32> to vector<4x8x8xf32>
    %283 = arith.select %280, %282, %278 : vector<4x8x8xi1>, vector<4x8x8xf32>
    %c1_i32_47 = arith.constant 1 : i32
    %284 = vector.broadcast %c1_i32_47 : i32 to vector<8x1xi32>
    %285 = arith.cmpi sge, %30, %284 : vector<8x1xi32>
    %286 = vector.extract_strided_slice %274 {offsets = [0, 0, 1], sizes = [4, 8, 1], strides = [1, 1, 1]} : vector<4x8x8xf32> to vector<4x8x1xf32>
    %287 = math.absf %286 : vector<4x8x1xf32>
    %cst_48 = arith.constant -1.000000e+00 : f32
    %288 = vector.shape_cast %285 : vector<8x1xi1> to vector<1x8x1xi1>
    %289 = vector.broadcast %288 : vector<1x8x1xi1> to vector<4x8x1xi1>
    %290 = vector.broadcast %cst_48 : f32 to vector<4x8x1xf32>
    %291 = arith.select %289, %287, %290 : vector<4x8x1xi1>, vector<4x8x1xf32>
    %cst_49 = arith.constant dense<0xFF800000> : vector<4x1xf32>
    %292 = vector.multi_reduction <maximumf>, %291, %cst_49 [1] : vector<4x8x1xf32> to vector<4x1xf32>
    %293 = vector.shape_cast %292 : vector<4x1xf32> to vector<4x1x1xf32>
    %294 = vector.broadcast %293 : vector<4x1x1xf32> to vector<4x8x1xf32>
    %295 = arith.cmpf oeq, %291, %294 : vector<4x8x1xf32>
    %c8_i32_50 = arith.constant 8 : i32
    %296 = vector.shape_cast %30 : vector<8x1xi32> to vector<1x8x1xi32>
    %297 = vector.broadcast %296 : vector<1x8x1xi32> to vector<4x8x1xi32>
    %298 = vector.broadcast %c8_i32_50 : i32 to vector<4x8x1xi32>
    %299 = arith.select %295, %297, %298 : vector<4x8x1xi1>, vector<4x8x1xi32>
    %cst_51 = arith.constant dense<2147483647> : vector<4x1xi32>
    %300 = vector.multi_reduction <minsi>, %299, %cst_51 [1] : vector<4x8x1xi32> to vector<4x1xi32>
    %301 = vector.shape_cast %300 : vector<4x1xi32> to vector<4x1x1xi32>
    %302 = vector.shape_cast %30 : vector<8x1xi32> to vector<1x8x1xi32>
    %303 = vector.broadcast %302 : vector<1x8x1xi32> to vector<4x8x1xi32>
    %304 = vector.broadcast %301 : vector<4x1x1xi32> to vector<4x8x1xi32>
    %305 = arith.cmpi eq, %303, %304 : vector<4x8x1xi32>
    %c1_i32_52 = arith.constant 1 : i32
    %306 = vector.broadcast %c1_i32_52 : i32 to vector<8x8xi32>
    %307 = arith.cmpi eq, %23, %306 : vector<8x8xi32>
    %308 = vector.extract_strided_slice %274 {offsets = [0, 1, 0], sizes = [4, 1, 8], strides = [1, 1, 1]} : vector<4x8x8xf32> to vector<4x1x8xf32>
    %309 = vector.extract_strided_slice %283 {offsets = [0, 1, 0], sizes = [4, 1, 8], strides = [1, 1, 1]} : vector<4x8x8xf32> to vector<4x1x8xf32>
    %cst_53 = arith.constant 0.000000e+00 : f32
    %310 = vector.shape_cast %305 : vector<4x8x1xi1> to vector<4x8x1xi1>
    %311 = vector.broadcast %310 : vector<4x8x1xi1> to vector<4x8x8xi1>
    %312 = vector.broadcast %cst_53 : f32 to vector<4x8x8xf32>
    %313 = arith.select %311, %274, %312 : vector<4x8x8xi1>, vector<4x8x8xf32>
    %cst_54 = arith.constant dense<0.000000e+00> : vector<4x8xf32>
    %314 = vector.multi_reduction <add>, %313, %cst_54 [1] : vector<4x8x8xf32> to vector<4x8xf32>
    %315 = vector.shape_cast %314 : vector<4x8xf32> to vector<4x1x8xf32>
    %cst_55 = arith.constant 0.000000e+00 : f32
    %316 = vector.shape_cast %305 : vector<4x8x1xi1> to vector<4x8x1xi1>
    %317 = vector.broadcast %316 : vector<4x8x1xi1> to vector<4x8x8xi1>
    %318 = vector.broadcast %cst_55 : f32 to vector<4x8x8xf32>
    %319 = arith.select %317, %283, %318 : vector<4x8x8xi1>, vector<4x8x8xf32>
    %cst_56 = arith.constant dense<0.000000e+00> : vector<4x8xf32>
    %320 = vector.multi_reduction <add>, %319, %cst_56 [1] : vector<4x8x8xf32> to vector<4x8xf32>
    %321 = vector.shape_cast %320 : vector<4x8xf32> to vector<4x1x8xf32>
    %322 = vector.shape_cast %305 : vector<4x8x1xi1> to vector<4x8x1xi1>
    %323 = vector.broadcast %322 : vector<4x8x1xi1> to vector<4x8x8xi1>
    %324 = vector.shape_cast %308 : vector<4x1x8xf32> to vector<4x1x8xf32>
    %325 = vector.broadcast %324 : vector<4x1x8xf32> to vector<4x8x8xf32>
    %326 = arith.select %323, %325, %274 : vector<4x8x8xi1>, vector<4x8x8xf32>
    %327 = vector.shape_cast %307 : vector<8x8xi1> to vector<1x8x8xi1>
    %328 = vector.broadcast %327 : vector<1x8x8xi1> to vector<4x8x8xi1>
    %329 = vector.shape_cast %315 : vector<4x1x8xf32> to vector<4x1x8xf32>
    %330 = vector.broadcast %329 : vector<4x1x8xf32> to vector<4x8x8xf32>
    %331 = arith.select %328, %330, %326 : vector<4x8x8xi1>, vector<4x8x8xf32>
    %332 = vector.shape_cast %305 : vector<4x8x1xi1> to vector<4x8x1xi1>
    %333 = vector.broadcast %332 : vector<4x8x1xi1> to vector<4x8x8xi1>
    %334 = vector.shape_cast %309 : vector<4x1x8xf32> to vector<4x1x8xf32>
    %335 = vector.broadcast %334 : vector<4x1x8xf32> to vector<4x8x8xf32>
    %336 = arith.select %333, %335, %283 : vector<4x8x8xi1>, vector<4x8x8xf32>
    %337 = vector.shape_cast %307 : vector<8x8xi1> to vector<1x8x8xi1>
    %338 = vector.broadcast %337 : vector<1x8x8xi1> to vector<4x8x8xi1>
    %339 = vector.shape_cast %321 : vector<4x1x8xf32> to vector<4x1x8xf32>
    %340 = vector.broadcast %339 : vector<4x1x8xf32> to vector<4x8x8xf32>
    %341 = arith.select %338, %340, %336 : vector<4x8x8xi1>, vector<4x8x8xf32>
    %342 = vector.extract_strided_slice %331 {offsets = [0, 1, 1], sizes = [4, 1, 1], strides = [1, 1, 1]} : vector<4x8x8xf32> to vector<4x1x1xf32>
    %cst_57 = arith.constant 1.000000e+00 : f32
    %343 = vector.broadcast %cst_57 : f32 to vector<4x1x1xf32>
    %344 = arith.divf %343, %342 : vector<4x1x1xf32>
    %345 = vector.extract_strided_slice %331 {offsets = [0, 1, 0], sizes = [4, 1, 8], strides = [1, 1, 1]} : vector<4x8x8xf32> to vector<4x1x8xf32>
    %346 = vector.broadcast %344 : vector<4x1x1xf32> to vector<4x1x8xf32>
    %347 = arith.mulf %345, %346 : vector<4x1x8xf32>
    %348 = vector.extract_strided_slice %341 {offsets = [0, 1, 0], sizes = [4, 1, 8], strides = [1, 1, 1]} : vector<4x8x8xf32> to vector<4x1x8xf32>
    %349 = vector.broadcast %344 : vector<4x1x1xf32> to vector<4x1x8xf32>
    %350 = arith.mulf %348, %349 : vector<4x1x8xf32>
    %c1_i32_58 = arith.constant 1 : i32
    %351 = vector.broadcast %c1_i32_58 : i32 to vector<8x1xi32>
    %352 = arith.cmpi eq, %30, %351 : vector<8x1xi32>
    %353 = vector.extract_strided_slice %331 {offsets = [0, 0, 1], sizes = [4, 8, 1], strides = [1, 1, 1]} : vector<4x8x8xf32> to vector<4x8x1xf32>
    %cst_59 = arith.constant 0.000000e+00 : f32
    %354 = vector.shape_cast %352 : vector<8x1xi1> to vector<1x8x1xi1>
    %355 = vector.broadcast %354 : vector<1x8x1xi1> to vector<4x8x1xi1>
    %356 = vector.broadcast %cst_59 : f32 to vector<4x8x1xf32>
    %357 = arith.select %355, %356, %353 : vector<4x8x1xi1>, vector<4x8x1xf32>
    %358 = vector.broadcast %357 : vector<4x8x1xf32> to vector<4x8x8xf32>
    %359 = vector.broadcast %347 : vector<4x1x8xf32> to vector<4x8x8xf32>
    %360 = arith.mulf %358, %359 : vector<4x8x8xf32>
    %361 = arith.subf %331, %360 : vector<4x8x8xf32>
    %362 = vector.shape_cast %307 : vector<8x8xi1> to vector<1x8x8xi1>
    %363 = vector.broadcast %362 : vector<1x8x8xi1> to vector<4x8x8xi1>
    %364 = vector.shape_cast %347 : vector<4x1x8xf32> to vector<4x1x8xf32>
    %365 = vector.broadcast %364 : vector<4x1x8xf32> to vector<4x8x8xf32>
    %366 = arith.select %363, %365, %361 : vector<4x8x8xi1>, vector<4x8x8xf32>
    %367 = vector.broadcast %357 : vector<4x8x1xf32> to vector<4x8x8xf32>
    %368 = vector.broadcast %350 : vector<4x1x8xf32> to vector<4x8x8xf32>
    %369 = arith.mulf %367, %368 : vector<4x8x8xf32>
    %370 = arith.subf %341, %369 : vector<4x8x8xf32>
    %371 = vector.shape_cast %307 : vector<8x8xi1> to vector<1x8x8xi1>
    %372 = vector.broadcast %371 : vector<1x8x8xi1> to vector<4x8x8xi1>
    %373 = vector.shape_cast %350 : vector<4x1x8xf32> to vector<4x1x8xf32>
    %374 = vector.broadcast %373 : vector<4x1x8xf32> to vector<4x8x8xf32>
    %375 = arith.select %372, %374, %370 : vector<4x8x8xi1>, vector<4x8x8xf32>
    %c2_i32_60 = arith.constant 2 : i32
    %376 = vector.broadcast %c2_i32_60 : i32 to vector<8x1xi32>
    %377 = arith.cmpi sge, %30, %376 : vector<8x1xi32>
    %378 = vector.extract_strided_slice %366 {offsets = [0, 0, 2], sizes = [4, 8, 1], strides = [1, 1, 1]} : vector<4x8x8xf32> to vector<4x8x1xf32>
    %379 = math.absf %378 : vector<4x8x1xf32>
    %cst_61 = arith.constant -1.000000e+00 : f32
    %380 = vector.shape_cast %377 : vector<8x1xi1> to vector<1x8x1xi1>
    %381 = vector.broadcast %380 : vector<1x8x1xi1> to vector<4x8x1xi1>
    %382 = vector.broadcast %cst_61 : f32 to vector<4x8x1xf32>
    %383 = arith.select %381, %379, %382 : vector<4x8x1xi1>, vector<4x8x1xf32>
    %cst_62 = arith.constant dense<0xFF800000> : vector<4x1xf32>
    %384 = vector.multi_reduction <maximumf>, %383, %cst_62 [1] : vector<4x8x1xf32> to vector<4x1xf32>
    %385 = vector.shape_cast %384 : vector<4x1xf32> to vector<4x1x1xf32>
    %386 = vector.broadcast %385 : vector<4x1x1xf32> to vector<4x8x1xf32>
    %387 = arith.cmpf oeq, %383, %386 : vector<4x8x1xf32>
    %c8_i32_63 = arith.constant 8 : i32
    %388 = vector.shape_cast %30 : vector<8x1xi32> to vector<1x8x1xi32>
    %389 = vector.broadcast %388 : vector<1x8x1xi32> to vector<4x8x1xi32>
    %390 = vector.broadcast %c8_i32_63 : i32 to vector<4x8x1xi32>
    %391 = arith.select %387, %389, %390 : vector<4x8x1xi1>, vector<4x8x1xi32>
    %cst_64 = arith.constant dense<2147483647> : vector<4x1xi32>
    %392 = vector.multi_reduction <minsi>, %391, %cst_64 [1] : vector<4x8x1xi32> to vector<4x1xi32>
    %393 = vector.shape_cast %392 : vector<4x1xi32> to vector<4x1x1xi32>
    %394 = vector.shape_cast %30 : vector<8x1xi32> to vector<1x8x1xi32>
    %395 = vector.broadcast %394 : vector<1x8x1xi32> to vector<4x8x1xi32>
    %396 = vector.broadcast %393 : vector<4x1x1xi32> to vector<4x8x1xi32>
    %397 = arith.cmpi eq, %395, %396 : vector<4x8x1xi32>
    %c2_i32_65 = arith.constant 2 : i32
    %398 = vector.broadcast %c2_i32_65 : i32 to vector<8x8xi32>
    %399 = arith.cmpi eq, %23, %398 : vector<8x8xi32>
    %400 = vector.extract_strided_slice %366 {offsets = [0, 2, 0], sizes = [4, 1, 8], strides = [1, 1, 1]} : vector<4x8x8xf32> to vector<4x1x8xf32>
    %401 = vector.extract_strided_slice %375 {offsets = [0, 2, 0], sizes = [4, 1, 8], strides = [1, 1, 1]} : vector<4x8x8xf32> to vector<4x1x8xf32>
    %cst_66 = arith.constant 0.000000e+00 : f32
    %402 = vector.shape_cast %397 : vector<4x8x1xi1> to vector<4x8x1xi1>
    %403 = vector.broadcast %402 : vector<4x8x1xi1> to vector<4x8x8xi1>
    %404 = vector.broadcast %cst_66 : f32 to vector<4x8x8xf32>
    %405 = arith.select %403, %366, %404 : vector<4x8x8xi1>, vector<4x8x8xf32>
    %cst_67 = arith.constant dense<0.000000e+00> : vector<4x8xf32>
    %406 = vector.multi_reduction <add>, %405, %cst_67 [1] : vector<4x8x8xf32> to vector<4x8xf32>
    %407 = vector.shape_cast %406 : vector<4x8xf32> to vector<4x1x8xf32>
    %cst_68 = arith.constant 0.000000e+00 : f32
    %408 = vector.shape_cast %397 : vector<4x8x1xi1> to vector<4x8x1xi1>
    %409 = vector.broadcast %408 : vector<4x8x1xi1> to vector<4x8x8xi1>
    %410 = vector.broadcast %cst_68 : f32 to vector<4x8x8xf32>
    %411 = arith.select %409, %375, %410 : vector<4x8x8xi1>, vector<4x8x8xf32>
    %cst_69 = arith.constant dense<0.000000e+00> : vector<4x8xf32>
    %412 = vector.multi_reduction <add>, %411, %cst_69 [1] : vector<4x8x8xf32> to vector<4x8xf32>
    %413 = vector.shape_cast %412 : vector<4x8xf32> to vector<4x1x8xf32>
    %414 = vector.shape_cast %397 : vector<4x8x1xi1> to vector<4x8x1xi1>
    %415 = vector.broadcast %414 : vector<4x8x1xi1> to vector<4x8x8xi1>
    %416 = vector.shape_cast %400 : vector<4x1x8xf32> to vector<4x1x8xf32>
    %417 = vector.broadcast %416 : vector<4x1x8xf32> to vector<4x8x8xf32>
    %418 = arith.select %415, %417, %366 : vector<4x8x8xi1>, vector<4x8x8xf32>
    %419 = vector.shape_cast %399 : vector<8x8xi1> to vector<1x8x8xi1>
    %420 = vector.broadcast %419 : vector<1x8x8xi1> to vector<4x8x8xi1>
    %421 = vector.shape_cast %407 : vector<4x1x8xf32> to vector<4x1x8xf32>
    %422 = vector.broadcast %421 : vector<4x1x8xf32> to vector<4x8x8xf32>
    %423 = arith.select %420, %422, %418 : vector<4x8x8xi1>, vector<4x8x8xf32>
    %424 = vector.shape_cast %397 : vector<4x8x1xi1> to vector<4x8x1xi1>
    %425 = vector.broadcast %424 : vector<4x8x1xi1> to vector<4x8x8xi1>
    %426 = vector.shape_cast %401 : vector<4x1x8xf32> to vector<4x1x8xf32>
    %427 = vector.broadcast %426 : vector<4x1x8xf32> to vector<4x8x8xf32>
    %428 = arith.select %425, %427, %375 : vector<4x8x8xi1>, vector<4x8x8xf32>
    %429 = vector.shape_cast %399 : vector<8x8xi1> to vector<1x8x8xi1>
    %430 = vector.broadcast %429 : vector<1x8x8xi1> to vector<4x8x8xi1>
    %431 = vector.shape_cast %413 : vector<4x1x8xf32> to vector<4x1x8xf32>
    %432 = vector.broadcast %431 : vector<4x1x8xf32> to vector<4x8x8xf32>
    %433 = arith.select %430, %432, %428 : vector<4x8x8xi1>, vector<4x8x8xf32>
    %434 = vector.extract_strided_slice %423 {offsets = [0, 2, 2], sizes = [4, 1, 1], strides = [1, 1, 1]} : vector<4x8x8xf32> to vector<4x1x1xf32>
    %cst_70 = arith.constant 1.000000e+00 : f32
    %435 = vector.broadcast %cst_70 : f32 to vector<4x1x1xf32>
    %436 = arith.divf %435, %434 : vector<4x1x1xf32>
    %437 = vector.extract_strided_slice %423 {offsets = [0, 2, 0], sizes = [4, 1, 8], strides = [1, 1, 1]} : vector<4x8x8xf32> to vector<4x1x8xf32>
    %438 = vector.broadcast %436 : vector<4x1x1xf32> to vector<4x1x8xf32>
    %439 = arith.mulf %437, %438 : vector<4x1x8xf32>
    %440 = vector.extract_strided_slice %433 {offsets = [0, 2, 0], sizes = [4, 1, 8], strides = [1, 1, 1]} : vector<4x8x8xf32> to vector<4x1x8xf32>
    %441 = vector.broadcast %436 : vector<4x1x1xf32> to vector<4x1x8xf32>
    %442 = arith.mulf %440, %441 : vector<4x1x8xf32>
    %c2_i32_71 = arith.constant 2 : i32
    %443 = vector.broadcast %c2_i32_71 : i32 to vector<8x1xi32>
    %444 = arith.cmpi eq, %30, %443 : vector<8x1xi32>
    %445 = vector.extract_strided_slice %423 {offsets = [0, 0, 2], sizes = [4, 8, 1], strides = [1, 1, 1]} : vector<4x8x8xf32> to vector<4x8x1xf32>
    %cst_72 = arith.constant 0.000000e+00 : f32
    %446 = vector.shape_cast %444 : vector<8x1xi1> to vector<1x8x1xi1>
    %447 = vector.broadcast %446 : vector<1x8x1xi1> to vector<4x8x1xi1>
    %448 = vector.broadcast %cst_72 : f32 to vector<4x8x1xf32>
    %449 = arith.select %447, %448, %445 : vector<4x8x1xi1>, vector<4x8x1xf32>
    %450 = vector.broadcast %449 : vector<4x8x1xf32> to vector<4x8x8xf32>
    %451 = vector.broadcast %439 : vector<4x1x8xf32> to vector<4x8x8xf32>
    %452 = arith.mulf %450, %451 : vector<4x8x8xf32>
    %453 = arith.subf %423, %452 : vector<4x8x8xf32>
    %454 = vector.shape_cast %399 : vector<8x8xi1> to vector<1x8x8xi1>
    %455 = vector.broadcast %454 : vector<1x8x8xi1> to vector<4x8x8xi1>
    %456 = vector.shape_cast %439 : vector<4x1x8xf32> to vector<4x1x8xf32>
    %457 = vector.broadcast %456 : vector<4x1x8xf32> to vector<4x8x8xf32>
    %458 = arith.select %455, %457, %453 : vector<4x8x8xi1>, vector<4x8x8xf32>
    %459 = vector.broadcast %449 : vector<4x8x1xf32> to vector<4x8x8xf32>
    %460 = vector.broadcast %442 : vector<4x1x8xf32> to vector<4x8x8xf32>
    %461 = arith.mulf %459, %460 : vector<4x8x8xf32>
    %462 = arith.subf %433, %461 : vector<4x8x8xf32>
    %463 = vector.shape_cast %399 : vector<8x8xi1> to vector<1x8x8xi1>
    %464 = vector.broadcast %463 : vector<1x8x8xi1> to vector<4x8x8xi1>
    %465 = vector.shape_cast %442 : vector<4x1x8xf32> to vector<4x1x8xf32>
    %466 = vector.broadcast %465 : vector<4x1x8xf32> to vector<4x8x8xf32>
    %467 = arith.select %464, %466, %462 : vector<4x8x8xi1>, vector<4x8x8xf32>
    %c3_i32_73 = arith.constant 3 : i32
    %468 = vector.broadcast %c3_i32_73 : i32 to vector<8x1xi32>
    %469 = arith.cmpi sge, %30, %468 : vector<8x1xi32>
    %470 = vector.extract_strided_slice %458 {offsets = [0, 0, 3], sizes = [4, 8, 1], strides = [1, 1, 1]} : vector<4x8x8xf32> to vector<4x8x1xf32>
    %471 = math.absf %470 : vector<4x8x1xf32>
    %cst_74 = arith.constant -1.000000e+00 : f32
    %472 = vector.shape_cast %469 : vector<8x1xi1> to vector<1x8x1xi1>
    %473 = vector.broadcast %472 : vector<1x8x1xi1> to vector<4x8x1xi1>
    %474 = vector.broadcast %cst_74 : f32 to vector<4x8x1xf32>
    %475 = arith.select %473, %471, %474 : vector<4x8x1xi1>, vector<4x8x1xf32>
    %cst_75 = arith.constant dense<0xFF800000> : vector<4x1xf32>
    %476 = vector.multi_reduction <maximumf>, %475, %cst_75 [1] : vector<4x8x1xf32> to vector<4x1xf32>
    %477 = vector.shape_cast %476 : vector<4x1xf32> to vector<4x1x1xf32>
    %478 = vector.broadcast %477 : vector<4x1x1xf32> to vector<4x8x1xf32>
    %479 = arith.cmpf oeq, %475, %478 : vector<4x8x1xf32>
    %c8_i32_76 = arith.constant 8 : i32
    %480 = vector.shape_cast %30 : vector<8x1xi32> to vector<1x8x1xi32>
    %481 = vector.broadcast %480 : vector<1x8x1xi32> to vector<4x8x1xi32>
    %482 = vector.broadcast %c8_i32_76 : i32 to vector<4x8x1xi32>
    %483 = arith.select %479, %481, %482 : vector<4x8x1xi1>, vector<4x8x1xi32>
    %cst_77 = arith.constant dense<2147483647> : vector<4x1xi32>
    %484 = vector.multi_reduction <minsi>, %483, %cst_77 [1] : vector<4x8x1xi32> to vector<4x1xi32>
    %485 = vector.shape_cast %484 : vector<4x1xi32> to vector<4x1x1xi32>
    %486 = vector.shape_cast %30 : vector<8x1xi32> to vector<1x8x1xi32>
    %487 = vector.broadcast %486 : vector<1x8x1xi32> to vector<4x8x1xi32>
    %488 = vector.broadcast %485 : vector<4x1x1xi32> to vector<4x8x1xi32>
    %489 = arith.cmpi eq, %487, %488 : vector<4x8x1xi32>
    %c3_i32_78 = arith.constant 3 : i32
    %490 = vector.broadcast %c3_i32_78 : i32 to vector<8x8xi32>
    %491 = arith.cmpi eq, %23, %490 : vector<8x8xi32>
    %492 = vector.extract_strided_slice %458 {offsets = [0, 3, 0], sizes = [4, 1, 8], strides = [1, 1, 1]} : vector<4x8x8xf32> to vector<4x1x8xf32>
    %493 = vector.extract_strided_slice %467 {offsets = [0, 3, 0], sizes = [4, 1, 8], strides = [1, 1, 1]} : vector<4x8x8xf32> to vector<4x1x8xf32>
    %cst_79 = arith.constant 0.000000e+00 : f32
    %494 = vector.shape_cast %489 : vector<4x8x1xi1> to vector<4x8x1xi1>
    %495 = vector.broadcast %494 : vector<4x8x1xi1> to vector<4x8x8xi1>
    %496 = vector.broadcast %cst_79 : f32 to vector<4x8x8xf32>
    %497 = arith.select %495, %458, %496 : vector<4x8x8xi1>, vector<4x8x8xf32>
    %cst_80 = arith.constant dense<0.000000e+00> : vector<4x8xf32>
    %498 = vector.multi_reduction <add>, %497, %cst_80 [1] : vector<4x8x8xf32> to vector<4x8xf32>
    %499 = vector.shape_cast %498 : vector<4x8xf32> to vector<4x1x8xf32>
    %cst_81 = arith.constant 0.000000e+00 : f32
    %500 = vector.shape_cast %489 : vector<4x8x1xi1> to vector<4x8x1xi1>
    %501 = vector.broadcast %500 : vector<4x8x1xi1> to vector<4x8x8xi1>
    %502 = vector.broadcast %cst_81 : f32 to vector<4x8x8xf32>
    %503 = arith.select %501, %467, %502 : vector<4x8x8xi1>, vector<4x8x8xf32>
    %cst_82 = arith.constant dense<0.000000e+00> : vector<4x8xf32>
    %504 = vector.multi_reduction <add>, %503, %cst_82 [1] : vector<4x8x8xf32> to vector<4x8xf32>
    %505 = vector.shape_cast %504 : vector<4x8xf32> to vector<4x1x8xf32>
    %506 = vector.shape_cast %489 : vector<4x8x1xi1> to vector<4x8x1xi1>
    %507 = vector.broadcast %506 : vector<4x8x1xi1> to vector<4x8x8xi1>
    %508 = vector.shape_cast %492 : vector<4x1x8xf32> to vector<4x1x8xf32>
    %509 = vector.broadcast %508 : vector<4x1x8xf32> to vector<4x8x8xf32>
    %510 = arith.select %507, %509, %458 : vector<4x8x8xi1>, vector<4x8x8xf32>
    %511 = vector.shape_cast %491 : vector<8x8xi1> to vector<1x8x8xi1>
    %512 = vector.broadcast %511 : vector<1x8x8xi1> to vector<4x8x8xi1>
    %513 = vector.shape_cast %499 : vector<4x1x8xf32> to vector<4x1x8xf32>
    %514 = vector.broadcast %513 : vector<4x1x8xf32> to vector<4x8x8xf32>
    %515 = arith.select %512, %514, %510 : vector<4x8x8xi1>, vector<4x8x8xf32>
    %516 = vector.shape_cast %489 : vector<4x8x1xi1> to vector<4x8x1xi1>
    %517 = vector.broadcast %516 : vector<4x8x1xi1> to vector<4x8x8xi1>
    %518 = vector.shape_cast %493 : vector<4x1x8xf32> to vector<4x1x8xf32>
    %519 = vector.broadcast %518 : vector<4x1x8xf32> to vector<4x8x8xf32>
    %520 = arith.select %517, %519, %467 : vector<4x8x8xi1>, vector<4x8x8xf32>
    %521 = vector.shape_cast %491 : vector<8x8xi1> to vector<1x8x8xi1>
    %522 = vector.broadcast %521 : vector<1x8x8xi1> to vector<4x8x8xi1>
    %523 = vector.shape_cast %505 : vector<4x1x8xf32> to vector<4x1x8xf32>
    %524 = vector.broadcast %523 : vector<4x1x8xf32> to vector<4x8x8xf32>
    %525 = arith.select %522, %524, %520 : vector<4x8x8xi1>, vector<4x8x8xf32>
    %526 = vector.extract_strided_slice %515 {offsets = [0, 3, 3], sizes = [4, 1, 1], strides = [1, 1, 1]} : vector<4x8x8xf32> to vector<4x1x1xf32>
    %cst_83 = arith.constant 1.000000e+00 : f32
    %527 = vector.broadcast %cst_83 : f32 to vector<4x1x1xf32>
    %528 = arith.divf %527, %526 : vector<4x1x1xf32>
    %529 = vector.extract_strided_slice %515 {offsets = [0, 3, 0], sizes = [4, 1, 8], strides = [1, 1, 1]} : vector<4x8x8xf32> to vector<4x1x8xf32>
    %530 = vector.broadcast %528 : vector<4x1x1xf32> to vector<4x1x8xf32>
    %531 = arith.mulf %529, %530 : vector<4x1x8xf32>
    %532 = vector.extract_strided_slice %525 {offsets = [0, 3, 0], sizes = [4, 1, 8], strides = [1, 1, 1]} : vector<4x8x8xf32> to vector<4x1x8xf32>
    %533 = vector.broadcast %528 : vector<4x1x1xf32> to vector<4x1x8xf32>
    %534 = arith.mulf %532, %533 : vector<4x1x8xf32>
    %c3_i32_84 = arith.constant 3 : i32
    %535 = vector.broadcast %c3_i32_84 : i32 to vector<8x1xi32>
    %536 = arith.cmpi eq, %30, %535 : vector<8x1xi32>
    %537 = vector.extract_strided_slice %515 {offsets = [0, 0, 3], sizes = [4, 8, 1], strides = [1, 1, 1]} : vector<4x8x8xf32> to vector<4x8x1xf32>
    %cst_85 = arith.constant 0.000000e+00 : f32
    %538 = vector.shape_cast %536 : vector<8x1xi1> to vector<1x8x1xi1>
    %539 = vector.broadcast %538 : vector<1x8x1xi1> to vector<4x8x1xi1>
    %540 = vector.broadcast %cst_85 : f32 to vector<4x8x1xf32>
    %541 = arith.select %539, %540, %537 : vector<4x8x1xi1>, vector<4x8x1xf32>
    %542 = vector.broadcast %541 : vector<4x8x1xf32> to vector<4x8x8xf32>
    %543 = vector.broadcast %531 : vector<4x1x8xf32> to vector<4x8x8xf32>
    %544 = arith.mulf %542, %543 : vector<4x8x8xf32>
    %545 = arith.subf %515, %544 : vector<4x8x8xf32>
    %546 = vector.shape_cast %491 : vector<8x8xi1> to vector<1x8x8xi1>
    %547 = vector.broadcast %546 : vector<1x8x8xi1> to vector<4x8x8xi1>
    %548 = vector.shape_cast %531 : vector<4x1x8xf32> to vector<4x1x8xf32>
    %549 = vector.broadcast %548 : vector<4x1x8xf32> to vector<4x8x8xf32>
    %550 = arith.select %547, %549, %545 : vector<4x8x8xi1>, vector<4x8x8xf32>
    %551 = vector.broadcast %541 : vector<4x8x1xf32> to vector<4x8x8xf32>
    %552 = vector.broadcast %534 : vector<4x1x8xf32> to vector<4x8x8xf32>
    %553 = arith.mulf %551, %552 : vector<4x8x8xf32>
    %554 = arith.subf %525, %553 : vector<4x8x8xf32>
    %555 = vector.shape_cast %491 : vector<8x8xi1> to vector<1x8x8xi1>
    %556 = vector.broadcast %555 : vector<1x8x8xi1> to vector<4x8x8xi1>
    %557 = vector.shape_cast %534 : vector<4x1x8xf32> to vector<4x1x8xf32>
    %558 = vector.broadcast %557 : vector<4x1x8xf32> to vector<4x8x8xf32>
    %559 = arith.select %556, %558, %554 : vector<4x8x8xi1>, vector<4x8x8xf32>
    %c4_i32_86 = arith.constant 4 : i32
    %560 = vector.broadcast %c4_i32_86 : i32 to vector<8x1xi32>
    %561 = arith.cmpi sge, %30, %560 : vector<8x1xi32>
    %562 = vector.extract_strided_slice %550 {offsets = [0, 0, 4], sizes = [4, 8, 1], strides = [1, 1, 1]} : vector<4x8x8xf32> to vector<4x8x1xf32>
    %563 = math.absf %562 : vector<4x8x1xf32>
    %cst_87 = arith.constant -1.000000e+00 : f32
    %564 = vector.shape_cast %561 : vector<8x1xi1> to vector<1x8x1xi1>
    %565 = vector.broadcast %564 : vector<1x8x1xi1> to vector<4x8x1xi1>
    %566 = vector.broadcast %cst_87 : f32 to vector<4x8x1xf32>
    %567 = arith.select %565, %563, %566 : vector<4x8x1xi1>, vector<4x8x1xf32>
    %cst_88 = arith.constant dense<0xFF800000> : vector<4x1xf32>
    %568 = vector.multi_reduction <maximumf>, %567, %cst_88 [1] : vector<4x8x1xf32> to vector<4x1xf32>
    %569 = vector.shape_cast %568 : vector<4x1xf32> to vector<4x1x1xf32>
    %570 = vector.broadcast %569 : vector<4x1x1xf32> to vector<4x8x1xf32>
    %571 = arith.cmpf oeq, %567, %570 : vector<4x8x1xf32>
    %c8_i32_89 = arith.constant 8 : i32
    %572 = vector.shape_cast %30 : vector<8x1xi32> to vector<1x8x1xi32>
    %573 = vector.broadcast %572 : vector<1x8x1xi32> to vector<4x8x1xi32>
    %574 = vector.broadcast %c8_i32_89 : i32 to vector<4x8x1xi32>
    %575 = arith.select %571, %573, %574 : vector<4x8x1xi1>, vector<4x8x1xi32>
    %cst_90 = arith.constant dense<2147483647> : vector<4x1xi32>
    %576 = vector.multi_reduction <minsi>, %575, %cst_90 [1] : vector<4x8x1xi32> to vector<4x1xi32>
    %577 = vector.shape_cast %576 : vector<4x1xi32> to vector<4x1x1xi32>
    %578 = vector.shape_cast %30 : vector<8x1xi32> to vector<1x8x1xi32>
    %579 = vector.broadcast %578 : vector<1x8x1xi32> to vector<4x8x1xi32>
    %580 = vector.broadcast %577 : vector<4x1x1xi32> to vector<4x8x1xi32>
    %581 = arith.cmpi eq, %579, %580 : vector<4x8x1xi32>
    %c4_i32_91 = arith.constant 4 : i32
    %582 = vector.broadcast %c4_i32_91 : i32 to vector<8x8xi32>
    %583 = arith.cmpi eq, %23, %582 : vector<8x8xi32>
    %584 = vector.extract_strided_slice %550 {offsets = [0, 4, 0], sizes = [4, 1, 8], strides = [1, 1, 1]} : vector<4x8x8xf32> to vector<4x1x8xf32>
    %585 = vector.extract_strided_slice %559 {offsets = [0, 4, 0], sizes = [4, 1, 8], strides = [1, 1, 1]} : vector<4x8x8xf32> to vector<4x1x8xf32>
    %cst_92 = arith.constant 0.000000e+00 : f32
    %586 = vector.shape_cast %581 : vector<4x8x1xi1> to vector<4x8x1xi1>
    %587 = vector.broadcast %586 : vector<4x8x1xi1> to vector<4x8x8xi1>
    %588 = vector.broadcast %cst_92 : f32 to vector<4x8x8xf32>
    %589 = arith.select %587, %550, %588 : vector<4x8x8xi1>, vector<4x8x8xf32>
    %cst_93 = arith.constant dense<0.000000e+00> : vector<4x8xf32>
    %590 = vector.multi_reduction <add>, %589, %cst_93 [1] : vector<4x8x8xf32> to vector<4x8xf32>
    %591 = vector.shape_cast %590 : vector<4x8xf32> to vector<4x1x8xf32>
    %cst_94 = arith.constant 0.000000e+00 : f32
    %592 = vector.shape_cast %581 : vector<4x8x1xi1> to vector<4x8x1xi1>
    %593 = vector.broadcast %592 : vector<4x8x1xi1> to vector<4x8x8xi1>
    %594 = vector.broadcast %cst_94 : f32 to vector<4x8x8xf32>
    %595 = arith.select %593, %559, %594 : vector<4x8x8xi1>, vector<4x8x8xf32>
    %cst_95 = arith.constant dense<0.000000e+00> : vector<4x8xf32>
    %596 = vector.multi_reduction <add>, %595, %cst_95 [1] : vector<4x8x8xf32> to vector<4x8xf32>
    %597 = vector.shape_cast %596 : vector<4x8xf32> to vector<4x1x8xf32>
    %598 = vector.shape_cast %581 : vector<4x8x1xi1> to vector<4x8x1xi1>
    %599 = vector.broadcast %598 : vector<4x8x1xi1> to vector<4x8x8xi1>
    %600 = vector.shape_cast %584 : vector<4x1x8xf32> to vector<4x1x8xf32>
    %601 = vector.broadcast %600 : vector<4x1x8xf32> to vector<4x8x8xf32>
    %602 = arith.select %599, %601, %550 : vector<4x8x8xi1>, vector<4x8x8xf32>
    %603 = vector.shape_cast %583 : vector<8x8xi1> to vector<1x8x8xi1>
    %604 = vector.broadcast %603 : vector<1x8x8xi1> to vector<4x8x8xi1>
    %605 = vector.shape_cast %591 : vector<4x1x8xf32> to vector<4x1x8xf32>
    %606 = vector.broadcast %605 : vector<4x1x8xf32> to vector<4x8x8xf32>
    %607 = arith.select %604, %606, %602 : vector<4x8x8xi1>, vector<4x8x8xf32>
    %608 = vector.shape_cast %581 : vector<4x8x1xi1> to vector<4x8x1xi1>
    %609 = vector.broadcast %608 : vector<4x8x1xi1> to vector<4x8x8xi1>
    %610 = vector.shape_cast %585 : vector<4x1x8xf32> to vector<4x1x8xf32>
    %611 = vector.broadcast %610 : vector<4x1x8xf32> to vector<4x8x8xf32>
    %612 = arith.select %609, %611, %559 : vector<4x8x8xi1>, vector<4x8x8xf32>
    %613 = vector.shape_cast %583 : vector<8x8xi1> to vector<1x8x8xi1>
    %614 = vector.broadcast %613 : vector<1x8x8xi1> to vector<4x8x8xi1>
    %615 = vector.shape_cast %597 : vector<4x1x8xf32> to vector<4x1x8xf32>
    %616 = vector.broadcast %615 : vector<4x1x8xf32> to vector<4x8x8xf32>
    %617 = arith.select %614, %616, %612 : vector<4x8x8xi1>, vector<4x8x8xf32>
    %618 = vector.extract_strided_slice %607 {offsets = [0, 4, 4], sizes = [4, 1, 1], strides = [1, 1, 1]} : vector<4x8x8xf32> to vector<4x1x1xf32>
    %cst_96 = arith.constant 1.000000e+00 : f32
    %619 = vector.broadcast %cst_96 : f32 to vector<4x1x1xf32>
    %620 = arith.divf %619, %618 : vector<4x1x1xf32>
    %621 = vector.extract_strided_slice %607 {offsets = [0, 4, 0], sizes = [4, 1, 8], strides = [1, 1, 1]} : vector<4x8x8xf32> to vector<4x1x8xf32>
    %622 = vector.broadcast %620 : vector<4x1x1xf32> to vector<4x1x8xf32>
    %623 = arith.mulf %621, %622 : vector<4x1x8xf32>
    %624 = vector.extract_strided_slice %617 {offsets = [0, 4, 0], sizes = [4, 1, 8], strides = [1, 1, 1]} : vector<4x8x8xf32> to vector<4x1x8xf32>
    %625 = vector.broadcast %620 : vector<4x1x1xf32> to vector<4x1x8xf32>
    %626 = arith.mulf %624, %625 : vector<4x1x8xf32>
    %c4_i32_97 = arith.constant 4 : i32
    %627 = vector.broadcast %c4_i32_97 : i32 to vector<8x1xi32>
    %628 = arith.cmpi eq, %30, %627 : vector<8x1xi32>
    %629 = vector.extract_strided_slice %607 {offsets = [0, 0, 4], sizes = [4, 8, 1], strides = [1, 1, 1]} : vector<4x8x8xf32> to vector<4x8x1xf32>
    %cst_98 = arith.constant 0.000000e+00 : f32
    %630 = vector.shape_cast %628 : vector<8x1xi1> to vector<1x8x1xi1>
    %631 = vector.broadcast %630 : vector<1x8x1xi1> to vector<4x8x1xi1>
    %632 = vector.broadcast %cst_98 : f32 to vector<4x8x1xf32>
    %633 = arith.select %631, %632, %629 : vector<4x8x1xi1>, vector<4x8x1xf32>
    %634 = vector.broadcast %633 : vector<4x8x1xf32> to vector<4x8x8xf32>
    %635 = vector.broadcast %623 : vector<4x1x8xf32> to vector<4x8x8xf32>
    %636 = arith.mulf %634, %635 : vector<4x8x8xf32>
    %637 = arith.subf %607, %636 : vector<4x8x8xf32>
    %638 = vector.shape_cast %583 : vector<8x8xi1> to vector<1x8x8xi1>
    %639 = vector.broadcast %638 : vector<1x8x8xi1> to vector<4x8x8xi1>
    %640 = vector.shape_cast %623 : vector<4x1x8xf32> to vector<4x1x8xf32>
    %641 = vector.broadcast %640 : vector<4x1x8xf32> to vector<4x8x8xf32>
    %642 = arith.select %639, %641, %637 : vector<4x8x8xi1>, vector<4x8x8xf32>
    %643 = vector.broadcast %633 : vector<4x8x1xf32> to vector<4x8x8xf32>
    %644 = vector.broadcast %626 : vector<4x1x8xf32> to vector<4x8x8xf32>
    %645 = arith.mulf %643, %644 : vector<4x8x8xf32>
    %646 = arith.subf %617, %645 : vector<4x8x8xf32>
    %647 = vector.shape_cast %583 : vector<8x8xi1> to vector<1x8x8xi1>
    %648 = vector.broadcast %647 : vector<1x8x8xi1> to vector<4x8x8xi1>
    %649 = vector.shape_cast %626 : vector<4x1x8xf32> to vector<4x1x8xf32>
    %650 = vector.broadcast %649 : vector<4x1x8xf32> to vector<4x8x8xf32>
    %651 = arith.select %648, %650, %646 : vector<4x8x8xi1>, vector<4x8x8xf32>
    %c5_i32_99 = arith.constant 5 : i32
    %652 = vector.broadcast %c5_i32_99 : i32 to vector<8x1xi32>
    %653 = arith.cmpi sge, %30, %652 : vector<8x1xi32>
    %654 = vector.extract_strided_slice %642 {offsets = [0, 0, 5], sizes = [4, 8, 1], strides = [1, 1, 1]} : vector<4x8x8xf32> to vector<4x8x1xf32>
    %655 = math.absf %654 : vector<4x8x1xf32>
    %cst_100 = arith.constant -1.000000e+00 : f32
    %656 = vector.shape_cast %653 : vector<8x1xi1> to vector<1x8x1xi1>
    %657 = vector.broadcast %656 : vector<1x8x1xi1> to vector<4x8x1xi1>
    %658 = vector.broadcast %cst_100 : f32 to vector<4x8x1xf32>
    %659 = arith.select %657, %655, %658 : vector<4x8x1xi1>, vector<4x8x1xf32>
    %cst_101 = arith.constant dense<0xFF800000> : vector<4x1xf32>
    %660 = vector.multi_reduction <maximumf>, %659, %cst_101 [1] : vector<4x8x1xf32> to vector<4x1xf32>
    %661 = vector.shape_cast %660 : vector<4x1xf32> to vector<4x1x1xf32>
    %662 = vector.broadcast %661 : vector<4x1x1xf32> to vector<4x8x1xf32>
    %663 = arith.cmpf oeq, %659, %662 : vector<4x8x1xf32>
    %c8_i32_102 = arith.constant 8 : i32
    %664 = vector.shape_cast %30 : vector<8x1xi32> to vector<1x8x1xi32>
    %665 = vector.broadcast %664 : vector<1x8x1xi32> to vector<4x8x1xi32>
    %666 = vector.broadcast %c8_i32_102 : i32 to vector<4x8x1xi32>
    %667 = arith.select %663, %665, %666 : vector<4x8x1xi1>, vector<4x8x1xi32>
    %cst_103 = arith.constant dense<2147483647> : vector<4x1xi32>
    %668 = vector.multi_reduction <minsi>, %667, %cst_103 [1] : vector<4x8x1xi32> to vector<4x1xi32>
    %669 = vector.shape_cast %668 : vector<4x1xi32> to vector<4x1x1xi32>
    %670 = vector.shape_cast %30 : vector<8x1xi32> to vector<1x8x1xi32>
    %671 = vector.broadcast %670 : vector<1x8x1xi32> to vector<4x8x1xi32>
    %672 = vector.broadcast %669 : vector<4x1x1xi32> to vector<4x8x1xi32>
    %673 = arith.cmpi eq, %671, %672 : vector<4x8x1xi32>
    %c5_i32_104 = arith.constant 5 : i32
    %674 = vector.broadcast %c5_i32_104 : i32 to vector<8x8xi32>
    %675 = arith.cmpi eq, %23, %674 : vector<8x8xi32>
    %676 = vector.extract_strided_slice %642 {offsets = [0, 5, 0], sizes = [4, 1, 8], strides = [1, 1, 1]} : vector<4x8x8xf32> to vector<4x1x8xf32>
    %677 = vector.extract_strided_slice %651 {offsets = [0, 5, 0], sizes = [4, 1, 8], strides = [1, 1, 1]} : vector<4x8x8xf32> to vector<4x1x8xf32>
    %cst_105 = arith.constant 0.000000e+00 : f32
    %678 = vector.shape_cast %673 : vector<4x8x1xi1> to vector<4x8x1xi1>
    %679 = vector.broadcast %678 : vector<4x8x1xi1> to vector<4x8x8xi1>
    %680 = vector.broadcast %cst_105 : f32 to vector<4x8x8xf32>
    %681 = arith.select %679, %642, %680 : vector<4x8x8xi1>, vector<4x8x8xf32>
    %cst_106 = arith.constant dense<0.000000e+00> : vector<4x8xf32>
    %682 = vector.multi_reduction <add>, %681, %cst_106 [1] : vector<4x8x8xf32> to vector<4x8xf32>
    %683 = vector.shape_cast %682 : vector<4x8xf32> to vector<4x1x8xf32>
    %cst_107 = arith.constant 0.000000e+00 : f32
    %684 = vector.shape_cast %673 : vector<4x8x1xi1> to vector<4x8x1xi1>
    %685 = vector.broadcast %684 : vector<4x8x1xi1> to vector<4x8x8xi1>
    %686 = vector.broadcast %cst_107 : f32 to vector<4x8x8xf32>
    %687 = arith.select %685, %651, %686 : vector<4x8x8xi1>, vector<4x8x8xf32>
    %cst_108 = arith.constant dense<0.000000e+00> : vector<4x8xf32>
    %688 = vector.multi_reduction <add>, %687, %cst_108 [1] : vector<4x8x8xf32> to vector<4x8xf32>
    %689 = vector.shape_cast %688 : vector<4x8xf32> to vector<4x1x8xf32>
    %690 = vector.shape_cast %673 : vector<4x8x1xi1> to vector<4x8x1xi1>
    %691 = vector.broadcast %690 : vector<4x8x1xi1> to vector<4x8x8xi1>
    %692 = vector.shape_cast %676 : vector<4x1x8xf32> to vector<4x1x8xf32>
    %693 = vector.broadcast %692 : vector<4x1x8xf32> to vector<4x8x8xf32>
    %694 = arith.select %691, %693, %642 : vector<4x8x8xi1>, vector<4x8x8xf32>
    %695 = vector.shape_cast %675 : vector<8x8xi1> to vector<1x8x8xi1>
    %696 = vector.broadcast %695 : vector<1x8x8xi1> to vector<4x8x8xi1>
    %697 = vector.shape_cast %683 : vector<4x1x8xf32> to vector<4x1x8xf32>
    %698 = vector.broadcast %697 : vector<4x1x8xf32> to vector<4x8x8xf32>
    %699 = arith.select %696, %698, %694 : vector<4x8x8xi1>, vector<4x8x8xf32>
    %700 = vector.shape_cast %673 : vector<4x8x1xi1> to vector<4x8x1xi1>
    %701 = vector.broadcast %700 : vector<4x8x1xi1> to vector<4x8x8xi1>
    %702 = vector.shape_cast %677 : vector<4x1x8xf32> to vector<4x1x8xf32>
    %703 = vector.broadcast %702 : vector<4x1x8xf32> to vector<4x8x8xf32>
    %704 = arith.select %701, %703, %651 : vector<4x8x8xi1>, vector<4x8x8xf32>
    %705 = vector.shape_cast %675 : vector<8x8xi1> to vector<1x8x8xi1>
    %706 = vector.broadcast %705 : vector<1x8x8xi1> to vector<4x8x8xi1>
    %707 = vector.shape_cast %689 : vector<4x1x8xf32> to vector<4x1x8xf32>
    %708 = vector.broadcast %707 : vector<4x1x8xf32> to vector<4x8x8xf32>
    %709 = arith.select %706, %708, %704 : vector<4x8x8xi1>, vector<4x8x8xf32>
    %710 = vector.extract_strided_slice %699 {offsets = [0, 5, 5], sizes = [4, 1, 1], strides = [1, 1, 1]} : vector<4x8x8xf32> to vector<4x1x1xf32>
    %cst_109 = arith.constant 1.000000e+00 : f32
    %711 = vector.broadcast %cst_109 : f32 to vector<4x1x1xf32>
    %712 = arith.divf %711, %710 : vector<4x1x1xf32>
    %713 = vector.extract_strided_slice %699 {offsets = [0, 5, 0], sizes = [4, 1, 8], strides = [1, 1, 1]} : vector<4x8x8xf32> to vector<4x1x8xf32>
    %714 = vector.broadcast %712 : vector<4x1x1xf32> to vector<4x1x8xf32>
    %715 = arith.mulf %713, %714 : vector<4x1x8xf32>
    %716 = vector.extract_strided_slice %709 {offsets = [0, 5, 0], sizes = [4, 1, 8], strides = [1, 1, 1]} : vector<4x8x8xf32> to vector<4x1x8xf32>
    %717 = vector.broadcast %712 : vector<4x1x1xf32> to vector<4x1x8xf32>
    %718 = arith.mulf %716, %717 : vector<4x1x8xf32>
    %c5_i32_110 = arith.constant 5 : i32
    %719 = vector.broadcast %c5_i32_110 : i32 to vector<8x1xi32>
    %720 = arith.cmpi eq, %30, %719 : vector<8x1xi32>
    %721 = vector.extract_strided_slice %699 {offsets = [0, 0, 5], sizes = [4, 8, 1], strides = [1, 1, 1]} : vector<4x8x8xf32> to vector<4x8x1xf32>
    %cst_111 = arith.constant 0.000000e+00 : f32
    %722 = vector.shape_cast %720 : vector<8x1xi1> to vector<1x8x1xi1>
    %723 = vector.broadcast %722 : vector<1x8x1xi1> to vector<4x8x1xi1>
    %724 = vector.broadcast %cst_111 : f32 to vector<4x8x1xf32>
    %725 = arith.select %723, %724, %721 : vector<4x8x1xi1>, vector<4x8x1xf32>
    %726 = vector.broadcast %725 : vector<4x8x1xf32> to vector<4x8x8xf32>
    %727 = vector.broadcast %715 : vector<4x1x8xf32> to vector<4x8x8xf32>
    %728 = arith.mulf %726, %727 : vector<4x8x8xf32>
    %729 = arith.subf %699, %728 : vector<4x8x8xf32>
    %730 = vector.shape_cast %675 : vector<8x8xi1> to vector<1x8x8xi1>
    %731 = vector.broadcast %730 : vector<1x8x8xi1> to vector<4x8x8xi1>
    %732 = vector.shape_cast %715 : vector<4x1x8xf32> to vector<4x1x8xf32>
    %733 = vector.broadcast %732 : vector<4x1x8xf32> to vector<4x8x8xf32>
    %734 = arith.select %731, %733, %729 : vector<4x8x8xi1>, vector<4x8x8xf32>
    %735 = vector.broadcast %725 : vector<4x8x1xf32> to vector<4x8x8xf32>
    %736 = vector.broadcast %718 : vector<4x1x8xf32> to vector<4x8x8xf32>
    %737 = arith.mulf %735, %736 : vector<4x8x8xf32>
    %738 = arith.subf %709, %737 : vector<4x8x8xf32>
    %739 = vector.shape_cast %675 : vector<8x8xi1> to vector<1x8x8xi1>
    %740 = vector.broadcast %739 : vector<1x8x8xi1> to vector<4x8x8xi1>
    %741 = vector.shape_cast %718 : vector<4x1x8xf32> to vector<4x1x8xf32>
    %742 = vector.broadcast %741 : vector<4x1x8xf32> to vector<4x8x8xf32>
    %743 = arith.select %740, %742, %738 : vector<4x8x8xi1>, vector<4x8x8xf32>
    %c6_i32_112 = arith.constant 6 : i32
    %744 = vector.broadcast %c6_i32_112 : i32 to vector<8x1xi32>
    %745 = arith.cmpi sge, %30, %744 : vector<8x1xi32>
    %746 = vector.extract_strided_slice %734 {offsets = [0, 0, 6], sizes = [4, 8, 1], strides = [1, 1, 1]} : vector<4x8x8xf32> to vector<4x8x1xf32>
    %747 = math.absf %746 : vector<4x8x1xf32>
    %cst_113 = arith.constant -1.000000e+00 : f32
    %748 = vector.shape_cast %745 : vector<8x1xi1> to vector<1x8x1xi1>
    %749 = vector.broadcast %748 : vector<1x8x1xi1> to vector<4x8x1xi1>
    %750 = vector.broadcast %cst_113 : f32 to vector<4x8x1xf32>
    %751 = arith.select %749, %747, %750 : vector<4x8x1xi1>, vector<4x8x1xf32>
    %cst_114 = arith.constant dense<0xFF800000> : vector<4x1xf32>
    %752 = vector.multi_reduction <maximumf>, %751, %cst_114 [1] : vector<4x8x1xf32> to vector<4x1xf32>
    %753 = vector.shape_cast %752 : vector<4x1xf32> to vector<4x1x1xf32>
    %754 = vector.broadcast %753 : vector<4x1x1xf32> to vector<4x8x1xf32>
    %755 = arith.cmpf oeq, %751, %754 : vector<4x8x1xf32>
    %c8_i32_115 = arith.constant 8 : i32
    %756 = vector.shape_cast %30 : vector<8x1xi32> to vector<1x8x1xi32>
    %757 = vector.broadcast %756 : vector<1x8x1xi32> to vector<4x8x1xi32>
    %758 = vector.broadcast %c8_i32_115 : i32 to vector<4x8x1xi32>
    %759 = arith.select %755, %757, %758 : vector<4x8x1xi1>, vector<4x8x1xi32>
    %cst_116 = arith.constant dense<2147483647> : vector<4x1xi32>
    %760 = vector.multi_reduction <minsi>, %759, %cst_116 [1] : vector<4x8x1xi32> to vector<4x1xi32>
    %761 = vector.shape_cast %760 : vector<4x1xi32> to vector<4x1x1xi32>
    %762 = vector.shape_cast %30 : vector<8x1xi32> to vector<1x8x1xi32>
    %763 = vector.broadcast %762 : vector<1x8x1xi32> to vector<4x8x1xi32>
    %764 = vector.broadcast %761 : vector<4x1x1xi32> to vector<4x8x1xi32>
    %765 = arith.cmpi eq, %763, %764 : vector<4x8x1xi32>
    %c6_i32_117 = arith.constant 6 : i32
    %766 = vector.broadcast %c6_i32_117 : i32 to vector<8x8xi32>
    %767 = arith.cmpi eq, %23, %766 : vector<8x8xi32>
    %768 = vector.extract_strided_slice %734 {offsets = [0, 6, 0], sizes = [4, 1, 8], strides = [1, 1, 1]} : vector<4x8x8xf32> to vector<4x1x8xf32>
    %769 = vector.extract_strided_slice %743 {offsets = [0, 6, 0], sizes = [4, 1, 8], strides = [1, 1, 1]} : vector<4x8x8xf32> to vector<4x1x8xf32>
    %cst_118 = arith.constant 0.000000e+00 : f32
    %770 = vector.shape_cast %765 : vector<4x8x1xi1> to vector<4x8x1xi1>
    %771 = vector.broadcast %770 : vector<4x8x1xi1> to vector<4x8x8xi1>
    %772 = vector.broadcast %cst_118 : f32 to vector<4x8x8xf32>
    %773 = arith.select %771, %734, %772 : vector<4x8x8xi1>, vector<4x8x8xf32>
    %cst_119 = arith.constant dense<0.000000e+00> : vector<4x8xf32>
    %774 = vector.multi_reduction <add>, %773, %cst_119 [1] : vector<4x8x8xf32> to vector<4x8xf32>
    %775 = vector.shape_cast %774 : vector<4x8xf32> to vector<4x1x8xf32>
    %cst_120 = arith.constant 0.000000e+00 : f32
    %776 = vector.shape_cast %765 : vector<4x8x1xi1> to vector<4x8x1xi1>
    %777 = vector.broadcast %776 : vector<4x8x1xi1> to vector<4x8x8xi1>
    %778 = vector.broadcast %cst_120 : f32 to vector<4x8x8xf32>
    %779 = arith.select %777, %743, %778 : vector<4x8x8xi1>, vector<4x8x8xf32>
    %cst_121 = arith.constant dense<0.000000e+00> : vector<4x8xf32>
    %780 = vector.multi_reduction <add>, %779, %cst_121 [1] : vector<4x8x8xf32> to vector<4x8xf32>
    %781 = vector.shape_cast %780 : vector<4x8xf32> to vector<4x1x8xf32>
    %782 = vector.shape_cast %765 : vector<4x8x1xi1> to vector<4x8x1xi1>
    %783 = vector.broadcast %782 : vector<4x8x1xi1> to vector<4x8x8xi1>
    %784 = vector.shape_cast %768 : vector<4x1x8xf32> to vector<4x1x8xf32>
    %785 = vector.broadcast %784 : vector<4x1x8xf32> to vector<4x8x8xf32>
    %786 = arith.select %783, %785, %734 : vector<4x8x8xi1>, vector<4x8x8xf32>
    %787 = vector.shape_cast %767 : vector<8x8xi1> to vector<1x8x8xi1>
    %788 = vector.broadcast %787 : vector<1x8x8xi1> to vector<4x8x8xi1>
    %789 = vector.shape_cast %775 : vector<4x1x8xf32> to vector<4x1x8xf32>
    %790 = vector.broadcast %789 : vector<4x1x8xf32> to vector<4x8x8xf32>
    %791 = arith.select %788, %790, %786 : vector<4x8x8xi1>, vector<4x8x8xf32>
    %792 = vector.shape_cast %765 : vector<4x8x1xi1> to vector<4x8x1xi1>
    %793 = vector.broadcast %792 : vector<4x8x1xi1> to vector<4x8x8xi1>
    %794 = vector.shape_cast %769 : vector<4x1x8xf32> to vector<4x1x8xf32>
    %795 = vector.broadcast %794 : vector<4x1x8xf32> to vector<4x8x8xf32>
    %796 = arith.select %793, %795, %743 : vector<4x8x8xi1>, vector<4x8x8xf32>
    %797 = vector.shape_cast %767 : vector<8x8xi1> to vector<1x8x8xi1>
    %798 = vector.broadcast %797 : vector<1x8x8xi1> to vector<4x8x8xi1>
    %799 = vector.shape_cast %781 : vector<4x1x8xf32> to vector<4x1x8xf32>
    %800 = vector.broadcast %799 : vector<4x1x8xf32> to vector<4x8x8xf32>
    %801 = arith.select %798, %800, %796 : vector<4x8x8xi1>, vector<4x8x8xf32>
    %802 = vector.extract_strided_slice %791 {offsets = [0, 6, 6], sizes = [4, 1, 1], strides = [1, 1, 1]} : vector<4x8x8xf32> to vector<4x1x1xf32>
    %cst_122 = arith.constant 1.000000e+00 : f32
    %803 = vector.broadcast %cst_122 : f32 to vector<4x1x1xf32>
    %804 = arith.divf %803, %802 : vector<4x1x1xf32>
    %805 = vector.extract_strided_slice %791 {offsets = [0, 6, 0], sizes = [4, 1, 8], strides = [1, 1, 1]} : vector<4x8x8xf32> to vector<4x1x8xf32>
    %806 = vector.broadcast %804 : vector<4x1x1xf32> to vector<4x1x8xf32>
    %807 = arith.mulf %805, %806 : vector<4x1x8xf32>
    %808 = vector.extract_strided_slice %801 {offsets = [0, 6, 0], sizes = [4, 1, 8], strides = [1, 1, 1]} : vector<4x8x8xf32> to vector<4x1x8xf32>
    %809 = vector.broadcast %804 : vector<4x1x1xf32> to vector<4x1x8xf32>
    %810 = arith.mulf %808, %809 : vector<4x1x8xf32>
    %c6_i32_123 = arith.constant 6 : i32
    %811 = vector.broadcast %c6_i32_123 : i32 to vector<8x1xi32>
    %812 = arith.cmpi eq, %30, %811 : vector<8x1xi32>
    %813 = vector.extract_strided_slice %791 {offsets = [0, 0, 6], sizes = [4, 8, 1], strides = [1, 1, 1]} : vector<4x8x8xf32> to vector<4x8x1xf32>
    %cst_124 = arith.constant 0.000000e+00 : f32
    %814 = vector.shape_cast %812 : vector<8x1xi1> to vector<1x8x1xi1>
    %815 = vector.broadcast %814 : vector<1x8x1xi1> to vector<4x8x1xi1>
    %816 = vector.broadcast %cst_124 : f32 to vector<4x8x1xf32>
    %817 = arith.select %815, %816, %813 : vector<4x8x1xi1>, vector<4x8x1xf32>
    %818 = vector.broadcast %817 : vector<4x8x1xf32> to vector<4x8x8xf32>
    %819 = vector.broadcast %807 : vector<4x1x8xf32> to vector<4x8x8xf32>
    %820 = arith.mulf %818, %819 : vector<4x8x8xf32>
    %821 = arith.subf %791, %820 : vector<4x8x8xf32>
    %822 = vector.shape_cast %767 : vector<8x8xi1> to vector<1x8x8xi1>
    %823 = vector.broadcast %822 : vector<1x8x8xi1> to vector<4x8x8xi1>
    %824 = vector.shape_cast %807 : vector<4x1x8xf32> to vector<4x1x8xf32>
    %825 = vector.broadcast %824 : vector<4x1x8xf32> to vector<4x8x8xf32>
    %826 = arith.select %823, %825, %821 : vector<4x8x8xi1>, vector<4x8x8xf32>
    %827 = vector.broadcast %817 : vector<4x8x1xf32> to vector<4x8x8xf32>
    %828 = vector.broadcast %810 : vector<4x1x8xf32> to vector<4x8x8xf32>
    %829 = arith.mulf %827, %828 : vector<4x8x8xf32>
    %830 = arith.subf %801, %829 : vector<4x8x8xf32>
    %831 = vector.shape_cast %767 : vector<8x8xi1> to vector<1x8x8xi1>
    %832 = vector.broadcast %831 : vector<1x8x8xi1> to vector<4x8x8xi1>
    %833 = vector.shape_cast %810 : vector<4x1x8xf32> to vector<4x1x8xf32>
    %834 = vector.broadcast %833 : vector<4x1x8xf32> to vector<4x8x8xf32>
    %835 = arith.select %832, %834, %830 : vector<4x8x8xi1>, vector<4x8x8xf32>
    %c7_i32_125 = arith.constant 7 : i32
    %836 = vector.broadcast %c7_i32_125 : i32 to vector<8x1xi32>
    %837 = arith.cmpi sge, %30, %836 : vector<8x1xi32>
    %838 = vector.extract_strided_slice %826 {offsets = [0, 0, 7], sizes = [4, 8, 1], strides = [1, 1, 1]} : vector<4x8x8xf32> to vector<4x8x1xf32>
    %839 = math.absf %838 : vector<4x8x1xf32>
    %cst_126 = arith.constant -1.000000e+00 : f32
    %840 = vector.shape_cast %837 : vector<8x1xi1> to vector<1x8x1xi1>
    %841 = vector.broadcast %840 : vector<1x8x1xi1> to vector<4x8x1xi1>
    %842 = vector.broadcast %cst_126 : f32 to vector<4x8x1xf32>
    %843 = arith.select %841, %839, %842 : vector<4x8x1xi1>, vector<4x8x1xf32>
    %cst_127 = arith.constant dense<0xFF800000> : vector<4x1xf32>
    %844 = vector.multi_reduction <maximumf>, %843, %cst_127 [1] : vector<4x8x1xf32> to vector<4x1xf32>
    %845 = vector.shape_cast %844 : vector<4x1xf32> to vector<4x1x1xf32>
    %846 = vector.broadcast %845 : vector<4x1x1xf32> to vector<4x8x1xf32>
    %847 = arith.cmpf oeq, %843, %846 : vector<4x8x1xf32>
    %c8_i32_128 = arith.constant 8 : i32
    %848 = vector.shape_cast %30 : vector<8x1xi32> to vector<1x8x1xi32>
    %849 = vector.broadcast %848 : vector<1x8x1xi32> to vector<4x8x1xi32>
    %850 = vector.broadcast %c8_i32_128 : i32 to vector<4x8x1xi32>
    %851 = arith.select %847, %849, %850 : vector<4x8x1xi1>, vector<4x8x1xi32>
    %cst_129 = arith.constant dense<2147483647> : vector<4x1xi32>
    %852 = vector.multi_reduction <minsi>, %851, %cst_129 [1] : vector<4x8x1xi32> to vector<4x1xi32>
    %853 = vector.shape_cast %852 : vector<4x1xi32> to vector<4x1x1xi32>
    %854 = vector.shape_cast %30 : vector<8x1xi32> to vector<1x8x1xi32>
    %855 = vector.broadcast %854 : vector<1x8x1xi32> to vector<4x8x1xi32>
    %856 = vector.broadcast %853 : vector<4x1x1xi32> to vector<4x8x1xi32>
    %857 = arith.cmpi eq, %855, %856 : vector<4x8x1xi32>
    %c7_i32_130 = arith.constant 7 : i32
    %858 = vector.broadcast %c7_i32_130 : i32 to vector<8x8xi32>
    %859 = arith.cmpi eq, %23, %858 : vector<8x8xi32>
    %860 = vector.extract_strided_slice %826 {offsets = [0, 7, 0], sizes = [4, 1, 8], strides = [1, 1, 1]} : vector<4x8x8xf32> to vector<4x1x8xf32>
    %861 = vector.extract_strided_slice %835 {offsets = [0, 7, 0], sizes = [4, 1, 8], strides = [1, 1, 1]} : vector<4x8x8xf32> to vector<4x1x8xf32>
    %cst_131 = arith.constant 0.000000e+00 : f32
    %862 = vector.shape_cast %857 : vector<4x8x1xi1> to vector<4x8x1xi1>
    %863 = vector.broadcast %862 : vector<4x8x1xi1> to vector<4x8x8xi1>
    %864 = vector.broadcast %cst_131 : f32 to vector<4x8x8xf32>
    %865 = arith.select %863, %826, %864 : vector<4x8x8xi1>, vector<4x8x8xf32>
    %cst_132 = arith.constant dense<0.000000e+00> : vector<4x8xf32>
    %866 = vector.multi_reduction <add>, %865, %cst_132 [1] : vector<4x8x8xf32> to vector<4x8xf32>
    %867 = vector.shape_cast %866 : vector<4x8xf32> to vector<4x1x8xf32>
    %cst_133 = arith.constant 0.000000e+00 : f32
    %868 = vector.shape_cast %857 : vector<4x8x1xi1> to vector<4x8x1xi1>
    %869 = vector.broadcast %868 : vector<4x8x1xi1> to vector<4x8x8xi1>
    %870 = vector.broadcast %cst_133 : f32 to vector<4x8x8xf32>
    %871 = arith.select %869, %835, %870 : vector<4x8x8xi1>, vector<4x8x8xf32>
    %cst_134 = arith.constant dense<0.000000e+00> : vector<4x8xf32>
    %872 = vector.multi_reduction <add>, %871, %cst_134 [1] : vector<4x8x8xf32> to vector<4x8xf32>
    %873 = vector.shape_cast %872 : vector<4x8xf32> to vector<4x1x8xf32>
    %874 = vector.shape_cast %857 : vector<4x8x1xi1> to vector<4x8x1xi1>
    %875 = vector.broadcast %874 : vector<4x8x1xi1> to vector<4x8x8xi1>
    %876 = vector.shape_cast %860 : vector<4x1x8xf32> to vector<4x1x8xf32>
    %877 = vector.broadcast %876 : vector<4x1x8xf32> to vector<4x8x8xf32>
    %878 = arith.select %875, %877, %826 : vector<4x8x8xi1>, vector<4x8x8xf32>
    %879 = vector.shape_cast %859 : vector<8x8xi1> to vector<1x8x8xi1>
    %880 = vector.broadcast %879 : vector<1x8x8xi1> to vector<4x8x8xi1>
    %881 = vector.shape_cast %867 : vector<4x1x8xf32> to vector<4x1x8xf32>
    %882 = vector.broadcast %881 : vector<4x1x8xf32> to vector<4x8x8xf32>
    %883 = arith.select %880, %882, %878 : vector<4x8x8xi1>, vector<4x8x8xf32>
    %884 = vector.shape_cast %857 : vector<4x8x1xi1> to vector<4x8x1xi1>
    %885 = vector.broadcast %884 : vector<4x8x1xi1> to vector<4x8x8xi1>
    %886 = vector.shape_cast %861 : vector<4x1x8xf32> to vector<4x1x8xf32>
    %887 = vector.broadcast %886 : vector<4x1x8xf32> to vector<4x8x8xf32>
    %888 = arith.select %885, %887, %835 : vector<4x8x8xi1>, vector<4x8x8xf32>
    %889 = vector.shape_cast %859 : vector<8x8xi1> to vector<1x8x8xi1>
    %890 = vector.broadcast %889 : vector<1x8x8xi1> to vector<4x8x8xi1>
    %891 = vector.shape_cast %873 : vector<4x1x8xf32> to vector<4x1x8xf32>
    %892 = vector.broadcast %891 : vector<4x1x8xf32> to vector<4x8x8xf32>
    %893 = arith.select %890, %892, %888 : vector<4x8x8xi1>, vector<4x8x8xf32>
    %894 = vector.extract_strided_slice %883 {offsets = [0, 7, 7], sizes = [4, 1, 1], strides = [1, 1, 1]} : vector<4x8x8xf32> to vector<4x1x1xf32>
    %cst_135 = arith.constant 1.000000e+00 : f32
    %895 = vector.broadcast %cst_135 : f32 to vector<4x1x1xf32>
    %896 = arith.divf %895, %894 : vector<4x1x1xf32>
    %897 = vector.extract_strided_slice %893 {offsets = [0, 7, 0], sizes = [4, 1, 8], strides = [1, 1, 1]} : vector<4x8x8xf32> to vector<4x1x8xf32>
    %898 = vector.broadcast %896 : vector<4x1x1xf32> to vector<4x1x8xf32>
    %899 = arith.mulf %897, %898 : vector<4x1x8xf32>
    %c7_i32_136 = arith.constant 7 : i32
    %900 = vector.broadcast %c7_i32_136 : i32 to vector<8x1xi32>
    %901 = arith.cmpi eq, %30, %900 : vector<8x1xi32>
    %902 = vector.extract_strided_slice %883 {offsets = [0, 0, 7], sizes = [4, 8, 1], strides = [1, 1, 1]} : vector<4x8x8xf32> to vector<4x8x1xf32>
    %cst_137 = arith.constant 0.000000e+00 : f32
    %903 = vector.shape_cast %901 : vector<8x1xi1> to vector<1x8x1xi1>
    %904 = vector.broadcast %903 : vector<1x8x1xi1> to vector<4x8x1xi1>
    %905 = vector.broadcast %cst_137 : f32 to vector<4x8x1xf32>
    %906 = arith.select %904, %905, %902 : vector<4x8x1xi1>, vector<4x8x1xf32>
    %907 = vector.broadcast %906 : vector<4x8x1xf32> to vector<4x8x8xf32>
    %908 = vector.broadcast %899 : vector<4x1x8xf32> to vector<4x8x8xf32>
    %909 = arith.mulf %907, %908 : vector<4x8x8xf32>
    %910 = arith.subf %893, %909 : vector<4x8x8xf32>
    %911 = vector.shape_cast %859 : vector<8x8xi1> to vector<1x8x8xi1>
    %912 = vector.broadcast %911 : vector<1x8x8xi1> to vector<4x8x8xi1>
    %913 = vector.shape_cast %899 : vector<4x1x8xf32> to vector<4x1x8xf32>
    %914 = vector.broadcast %913 : vector<4x1x8xf32> to vector<4x8x8xf32>
    %915 = arith.select %912, %914, %910 : vector<4x8x8xi1>, vector<4x8x8xf32>
    %916 = vector.shape_cast %27 : vector<8x8xf32> to vector<1x8x8xf32>
    %917 = vector.broadcast %916 : vector<1x8x8xf32> to vector<4x8x8xf32>
    %918 = arith.mulf %915, %917 : vector<4x8x8xf32>
    %cst_138 = arith.constant dense<0.000000e+00> : vector<4x8xf32>
    %919 = vector.multi_reduction <add>, %918, %cst_138 [1] : vector<4x8x8xf32> to vector<4x8xf32>
    %920 = vector.shape_cast %919 : vector<4x8xf32> to vector<4x1x8xf32>
    %921 = vector.broadcast %920 : vector<4x1x8xf32> to vector<4x8x8xf32>
    %922 = arith.mulf %48, %921 : vector<4x8x8xf32>
    %923 = arith.mulf %48, %915 : vector<4x8x8xf32>
    %c0_i32_139 = arith.constant 0 : i32
    %924 = vector.broadcast %c0_i32_139 : i32 to vector<8x8xi32>
    %925 = arith.cmpi ne, %24, %924 : vector<8x8xi32>
    %cst_140 = arith.constant 0.000000e+00 : f32
    %926 = vector.shape_cast %925 : vector<8x8xi1> to vector<1x8x8xi1>
    %927 = vector.broadcast %926 : vector<1x8x8xi1> to vector<4x8x8xi1>
    %928 = vector.broadcast %cst_140 : f32 to vector<4x8x8xf32>
    %929 = arith.select %927, %922, %928 : vector<4x8x8xi1>, vector<4x8x8xf32>
    %c0_i32_141 = arith.constant 0 : i32
    %930 = vector.broadcast %c0_i32_141 : i32 to vector<8x8xi32>
    %931 = arith.cmpi ne, %23, %930 : vector<8x8xi32>
    %cst_142 = arith.constant 0.000000e+00 : f32
    %932 = vector.shape_cast %931 : vector<8x8xi1> to vector<1x8x8xi1>
    %933 = vector.broadcast %932 : vector<1x8x8xi1> to vector<4x8x8xi1>
    %934 = vector.broadcast %cst_142 : f32 to vector<4x8x8xf32>
    %935 = arith.select %933, %923, %934 : vector<4x8x8xi1>, vector<4x8x8xf32>
    %936 = arith.subf %929, %935 : vector<4x8x8xf32>
    %937 = vector.extract_strided_slice %915 {offsets = [0, 0, 0], sizes = [4, 1, 8], strides = [1, 1, 1]} : vector<4x8x8xf32> to vector<4x1x8xf32>
    %938 = arith.mulf %60, %937 : vector<4x1x8xf32>
    %c0_143 = arith.constant 0 : index
    %c0_144 = arith.constant 0 : index
    %c0_145 = arith.constant 0 : index
    %939 = vector.load %arg7[%c0_143, %c0_144, %c0_145] : memref<4x8x8xf32, #tpu.memory_space<vmem>>, vector<4x8x8xf32>
    tpu.vector_store %arg7[%c0_143, %c0_144, %c0_145], %936 {strides = array<i32>} : memref<4x8x8xf32, #tpu.memory_space<vmem>>, vector<4x8x8xf32>,
    %c0_146 = arith.constant 0 : index
    %c0_147 = arith.constant 0 : index
    %c0_148 = arith.constant 0 : index
    %940 = vector.load %arg8[%c0_146, %c0_147, %c0_148] : memref<4x1x8xf32, #tpu.memory_space<vmem>>, vector<4x1x8xf32>
    tpu.vector_store %arg8[%c0_146, %c0_147, %c0_148], %938 {strides = array<i32>} : memref<4x1x8xf32, #tpu.memory_space<vmem>>, vector<4x1x8xf32>,
    return
  }
  func.func @transform_0(%arg0: i32) -> (i32, i32) {
    %c0_i32 = arith.constant 0 : i32
    %c0_i32_0 = arith.constant 0 : i32
    return %arg0, %c0_i32 : i32, i32
  }
  func.func @transform_1(%arg0: i32) -> (i32, i32) {
    %c0_i32 = arith.constant 0 : i32
    %c0_i32_0 = arith.constant 0 : i32
    %c0_i32_1 = arith.constant 0 : i32
    return %c0_i32, %c0_i32_0 : i32, i32
  }
  func.func @transform_2(%arg0: i32) -> (i32, i32) {
    %c0_i32 = arith.constant 0 : i32
    %c0_i32_0 = arith.constant 0 : i32
    %c0_i32_1 = arith.constant 0 : i32
    return %c0_i32, %c0_i32_0 : i32, i32
  }
  func.func @transform_3(%arg0: i32) -> (i32, i32) {
    %c0_i32 = arith.constant 0 : i32
    %c0_i32_0 = arith.constant 0 : i32
    %c0_i32_1 = arith.constant 0 : i32
    return %c0_i32, %c0_i32_0 : i32, i32
  }
  func.func @transform_4(%arg0: i32) -> (i32, i32) {
    %c0_i32 = arith.constant 0 : i32
    %c0_i32_0 = arith.constant 0 : i32
    %c0_i32_1 = arith.constant 0 : i32
    return %c0_i32, %c0_i32_0 : i32, i32
  }
  func.func @transform_5(%arg0: i32) -> (i32, i32, i32) {
    %c0_i32 = arith.constant 0 : i32
    %c0_i32_0 = arith.constant 0 : i32
    %c0_i32_1 = arith.constant 0 : i32
    return %arg0, %c0_i32, %c0_i32_0 : i32, i32, i32
  }
  func.func @transform_6(%arg0: i32) -> (i32, i32, i32) {
    %c0_i32 = arith.constant 0 : i32
    %c0_i32_0 = arith.constant 0 : i32
    %c0_i32_1 = arith.constant 0 : i32
    return %arg0, %c0_i32, %c0_i32_0 : i32, i32, i32
  }
  func.func @transform_7(%arg0: i32) -> (i32, i32, i32) {
    %c0_i32 = arith.constant 0 : i32
    %c0_i32_0 = arith.constant 0 : i32
    %c0_i32_1 = arith.constant 0 : i32
    return %arg0, %c0_i32, %c0_i32_0 : i32, i32, i32
  }
}

</mosaic_0001>

<llo_original>
// kernel: _lambda_.1
$region0: #{_lambda_.1}
  #allocation0 [shape = 'u32[]', space=smem, size = 0x4, offset = 0x4, fixed_abs, tag = 'smem constant byte address 0x4 - core index']
  #allocation1 [shape = 'u32[72,128]{1,0:T(1,128)}', space=vmem, size = 0x9000, scoped, tag = 'internal scratch']
  %s0 = inlined_call_operand.vmem [shape: bf16[64,384], index: 0, kind: input, shape index: {}]
  %s1 = inlined_call_operand.hbm [shape: bf16[384,768], index: 1, kind: input, shape index: {}]
  %s2 = inlined_call_operand.vmem [shape: f32[1,768], index: 2, kind: input, shape index: {}]
  %s3 = inlined_call_operand.hbm [shape: bf16[384,384], index: 3, kind: input, shape index: {}]
  %s4 = inlined_call_operand.vmem [shape: f32[1,384], index: 4, kind: input, shape index: {}]
  %s5 = inlined_call_operand.vmem [shape: f32[8,1,8], index: 5, kind: input, shape index: {}]
  %s6 = inlined_call_operand.vmem [shape: f32[8,8,8], index: 6, kind: output, shape index: {0}]
  %s7 = inlined_call_operand.vmem [shape: f32[8,1,8], index: 7, kind: output, shape index: {1}]
  %8 = xla_tuple %s6, %s7
  %s9 = sld [smem:[#allocation0]]
  $region73: #{_lambda_.1} parent=0
    _
  %s11 = ssub.s32 1, %s9
  %s12 = scalar_select 0, %s11, %s9
  $region1: #{_lambda_.1} parent=0
    #allocation2 [shape = 'u8[589824]{0}', space=vmem, size = 0x90000, scoped, tag = 'input window, operand 1, single buffered']
    #allocation3 [shape = 's32[2]{0}', space=sflag, size = 0x8, scoped, tag = 'scoped memory for _lambda_.1']
    #allocation4 [shape = 'u8[294912]{0}', space=vmem, size = 0x48000, scoped, tag = 'input window, operand 3, single buffered']
    #allocation5 [shape = 's32[1]{0}', space=sflag, size = 0x4, scoped, tag = 'scoped memory for _lambda_.1']
    %13 = vsyncpa [#allocation3], 0
    %14 = vsyncpa [#allocation5], 0
    loop: start=0, step=1, limit=4
    $region2: #{_lambda_.1} parent=1 // loop_pre_header
      _
    $region3: #{_lambda_.1} parent=1 // loop_header
      %s16 = sphi 0, %s20
      %p17 = scmp.ge.s32.totalorder %s16, 4
      %s26 = sphi 0, %s28
      %s29 = sphi 0, %s26
      %s30 = sphi 0, %s29
      %s46 = sphi 0, %s30
      %s50 = sphi 0, %s50
      %s52 = sphi 0, %s50
      %s53 = sphi 0, %s52
      %s67 = sphi 0, %s53
      %s71 = sphi 0, %s71
      %s73 = sphi 0, %s71
      %s74 = sphi 0, %s73
      %s88 = sphi 0, %s74
      %s92 = sphi 0, %s92
      %s94 = sphi 0, %s92
      %s95 = sphi 0, %s94
      %s109 = sphi 0, %s95
      %s113 = sphi 0, %s113
      %s115 = sphi 0, %s113
      %s116 = sphi 0, %s115
      %s130 = sphi 0, %s116
      %s136 = sphi 0, %s138
      %s139 = sphi 0, %s136
      %s140 = sphi 0, %s139
      %s156 = sphi 0, %s140
      %s162 = sphi 0, %s164
      %s165 = sphi 0, %s162
      %s166 = sphi 0, %s165
      %s182 = sphi 0, %s166
      %s188 = sphi 0, %s190
      %s191 = sphi 0, %s188
      %s192 = sphi 0, %s191
      %s208 = sphi 0, %s192
    $region4: #{_lambda_.1} parent=1 // loop_header_branch
      %19 = sbr.rel (%p17) target = $region8
    $region5: #{_lambda_.1} parent=1 // loop_body
      %s21 = ssub.s32 %s16, 1
      %s22 = ssub.s32 %s16, 2
      %s23 = sadd.s32 %s16, 1
      %s24 = ssub.s32 %s16, %s23
      %p25 = scmp.eq.s32.totalorder %s24, 0
      %s27 = sadd.s32 %s26, 1
      %s28 = scalar_select %p25, %s26, %s27
      %p31 = pneg %p25
      %p32 = scmp.eq.s32.totalorder %s16, 1
      %p33 = por %p31, %p32
      %p34 = scmp.ne.s32.totalorder %s26, %s29
      %p35 = scmp.eq.s32.totalorder %s16, 0
      %p36 = por %p34, %p35
      %p37 = scmp.ne.s32.totalorder %s26, %s29
      %p38 = scmp.eq.s32.totalorder %s21, 1
      %p39 = por %p37, %p38
      %p40 = scmp.ne.s32.totalorder %s29, %s30
      %p41 = scmp.eq.s32.totalorder %s21, 0
      %p42 = por %p40, %p41
      %p43 = scmp.ne.s32.totalorder %s29, %s30
      %p44 = scmp.eq.s32.totalorder %s22, 1
      %p45 = por %p43, %p44
      %p47 = scmp.ne.s32.totalorder %s30, %s46
      %p48 = scmp.eq.s32.totalorder %s22, 0
      %p49 = por %p47, %p48
      %s51 = sadd.s32 %s50, 1
      %p54 = scmp.eq.s32.totalorder %s16, 1
      %p55 = scmp.ne.s32.totalorder %s50, %s52
      %p56 = scmp.eq.s32.totalorder %s16, 0
      %p57 = por %p55, %p56
      %p58 = scmp.ne.s32.totalorder %s50, %s52
      %p59 = scmp.eq.s32.totalorder %s21, 1
      %p60 = por %p58, %p59
      %p61 = scmp.ne.s32.totalorder %s52, %s53
      %p62 = scmp.eq.s32.totalorder %s21, 0
      %p63 = por %p61, %p62
      %p64 = scmp.ne.s32.totalorder %s52, %s53
      %p65 = scmp.eq.s32.totalorder %s22, 1
      %p66 = por %p64, %p65
      %p68 = scmp.ne.s32.totalorder %s53, %s67
      %p69 = scmp.eq.s32.totalorder %s22, 0
      %p70 = por %p68, %p69
      %s72 = sadd.s32 %s71, 1
      %p75 = scmp.eq.s32.totalorder %s16, 1
      %p76 = scmp.ne.s32.totalorder %s71, %s73
      %p77 = scmp.eq.s32.totalorder %s16, 0
      %p78 = por %p76, %p77
      %p79 = scmp.ne.s32.totalorder %s71, %s73
      %p80 = scmp.eq.s32.totalorder %s21, 1
      %p81 = por %p79, %p80
      %p82 = scmp.ne.s32.totalorder %s73, %s74
      %p83 = scmp.eq.s32.totalorder %s21, 0
      %p84 = por %p82, %p83
      %p85 = scmp.ne.s32.totalorder %s73, %s74
      %p86 = scmp.eq.s32.totalorder %s22, 1
      %p87 = por %p85, %p86
      %p89 = scmp.ne.s32.totalorder %s74, %s88
      %p90 = scmp.eq.s32.totalorder %s22, 0
      %p91 = por %p89, %p90
      %s93 = sadd.s32 %s92, 1
      %p96 = scmp.eq.s32.totalorder %s16, 1
      %p97 = scmp.ne.s32.totalorder %s92, %s94
      %p98 = scmp.eq.s32.totalorder %s16, 0
      %p99 = por %p97, %p98
      %p100 = scmp.ne.s32.totalorder %s92, %s94
      %p101 = scmp.eq.s32.totalorder %s21, 1
      %p102 = por %p100, %p101
      %p103 = scmp.ne.s32.totalorder %s94, %s95
      %p104 = scmp.eq.s32.totalorder %s21, 0
      %p105 = por %p103, %p104
      %p106 = scmp.ne.s32.totalorder %s94, %s95
      %p107 = scmp.eq.s32.totalorder %s22, 1
      %p108 = por %p106, %p107
      %p110 = scmp.ne.s32.totalorder %s95, %s109
      %p111 = scmp.eq.s32.totalorder %s22, 0
      %p112 = por %p110, %p111
      %s114 = sadd.s32 %s113, 1
      %p117 = scmp.eq.s32.totalorder %s16, 1
      %p118 = scmp.ne.s32.totalorder %s113, %s115
      %p119 = scmp.eq.s32.totalorder %s16, 0
      %p120 = por %p118, %p119
      %p121 = scmp.ne.s32.totalorder %s113, %s115
      %p122 = scmp.eq.s32.totalorder %s21, 1
      %p123 = por %p121, %p122
      %p124 = scmp.ne.s32.totalorder %s115, %s116
      %p125 = scmp.eq.s32.totalorder %s21, 0
      %p126 = por %p124, %p125
      %p127 = scmp.ne.s32.totalorder %s115, %s116
      %p128 = scmp.eq.s32.totalorder %s22, 1
      %p129 = por %p127, %p128
      %p131 = scmp.ne.s32.totalorder %s116, %s130
      %p132 = scmp.eq.s32.totalorder %s22, 0
      %p133 = por %p131, %p132
      %s134 = ssub.s32 %s16, %s23
      %p135 = scmp.eq.s32.totalorder %s134, 0
      %s137 = sadd.s32 %s136, 1
      %s138 = scalar_select %p135, %s136, %s137
      %p141 = pneg %p135
      %p142 = scmp.eq.s32.totalorder %s16, 1
      %p143 = por %p141, %p142
      %p144 = scmp.ne.s32.totalorder %s136, %s139
      %p145 = scmp.eq.s32.totalorder %s16, 0
      %p146 = por %p144, %p145
      %p147 = scmp.ne.s32.totalorder %s136, %s139
      %p148 = scmp.eq.s32.totalorder %s21, 1
      %p149 = por %p147, %p148
      %p150 = scmp.ne.s32.totalorder %s139, %s140
      %p151 = scmp.eq.s32.totalorder %s21, 0
      %p152 = por %p150, %p151
      %p153 = scmp.ne.s32.totalorder %s139, %s140
      %p154 = scmp.eq.s32.totalorder %s22, 1
      %p155 = por %p153, %p154
      %p157 = scmp.ne.s32.totalorder %s140, %s156
      %p158 = scmp.eq.s32.totalorder %s22, 0
      %p159 = por %p157, %p158
      %s160 = ssub.s32 %s16, %s23
      %p161 = scmp.eq.s32.totalorder %s160, 0
      %s163 = sadd.s32 %s162, 1
      %s164 = scalar_select %p161, %s162, %s163
      %p167 = pneg %p161
      %p168 = scmp.eq.s32.totalorder %s16, 1
      %p169 = por %p167, %p168
      %p170 = scmp.ne.s32.totalorder %s162, %s165
      %p171 = scmp.eq.s32.totalorder %s16, 0
      %p172 = por %p170, %p171
      %p173 = scmp.ne.s32.totalorder %s162, %s165
      %p174 = scmp.eq.s32.totalorder %s21, 1
      %p175 = por %p173, %p174
      %p176 = scmp.ne.s32.totalorder %s165, %s166
      %p177 = scmp.eq.s32.totalorder %s21, 0
      %p178 = por %p176, %p177
      %p179 = scmp.ne.s32.totalorder %s165, %s166
      %p180 = scmp.eq.s32.totalorder %s22, 1
      %p181 = por %p179, %p180
      %p183 = scmp.ne.s32.totalorder %s166, %s182
      %p184 = scmp.eq.s32.totalorder %s22, 0
      %p185 = por %p183, %p184
      %s186 = ssub.s32 %s16, %s23
      %p187 = scmp.eq.s32.totalorder %s186, 0
      %s189 = sadd.s32 %s188, 1
      %s190 = scalar_select %p187, %s188, %s189
      %p193 = pneg %p187
      %p194 = scmp.eq.s32.totalorder %s16, 1
      %p195 = por %p193, %p194
      %p196 = scmp.ne.s32.totalorder %s188, %s191
      %p197 = scmp.eq.s32.totalorder %s16, 0
      %p198 = por %p196, %p197
      %p199 = scmp.ne.s32.totalorder %s188, %s191
      %p200 = scmp.eq.s32.totalorder %s21, 1
      %p201 = por %p199, %p200
      %p202 = scmp.ne.s32.totalorder %s191, %s192
      %p203 = scmp.eq.s32.totalorder %s21, 0
      %p204 = por %p202, %p203
      %p205 = scmp.ne.s32.totalorder %s191, %s192
      %p206 = scmp.eq.s32.totalorder %s22, 1
      %p207 = por %p205, %p206
      %p209 = scmp.ne.s32.totalorder %s192, %s208
      %p210 = scmp.eq.s32.totalorder %s22, 0
      %p211 = por %p209, %p210
      %p212 = scmp.le.s32.totalorder 1, %s16
      %p213 = scmp.lt.s32.totalorder %s16, 3
      %p214 = pnand %p212, %p213
      %p215 = pneg %p214
      // Predicated region
      $region9: #{_lambda_.1} parent=5 // pred_check
        _
      $region10: #{_lambda_.1} parent=5 // pred_check_branch
        %217 = sbr.rel (%p214) target = $region12
      $region11: #{_lambda_.1} parent=5 // pred_region
        %s218 = ssub.s32 %s16, 1
        // Predicated region
        $region13: #{_lambda_.1} parent=11 // pred_check
          %p219 = pneg %p63
        $region14: #{_lambda_.1} parent=11 // pred_check_branch
          %221 = sbr.rel (%p219) target = $region16
        $region15: #{_lambda_.1} parent=11 // pred_region
          %223 = vsyncadd [#allocation3], 0
          %s224 = sshll.u32 %s1, 4
          %s225 = int_to_ptr.hbm [resolvable:$true] %s224
          %s226 = sshll.u32 [#allocation2], 4
          %s227 = int_to_ptr.vmem [resolvable:$true] %s226
          %232 = dma.hbm_to_vmem [thread:$0]  %s225, 18432, %s227, [#allocation3], 384, 384, 24
        $region16: #{_lambda_.1} parent=11 // pred_fallthru
          _
        // Predicated region
        $region17: #{_lambda_.1} parent=11 // pred_check
          %p233 = pneg %p84
        $region18: #{_lambda_.1} parent=11 // pred_check_branch
          %235 = sbr.rel (%p233) target = $region20
        $region19: #{_lambda_.1} parent=11 // pred_region
          _
        $region20: #{_lambda_.1} parent=11 // pred_fallthru
          _
        // Predicated region
        $region21: #{_lambda_.1} parent=11 // pred_check
          %p236 = pneg %p105
        $region22: #{_lambda_.1} parent=11 // pred_check_branch
          %238 = sbr.rel (%p236) target = $region24
        $region23: #{_lambda_.1} parent=11 // pred_region
          %240 = vsyncadd [#allocation5], 0
          %s241 = sshll.u32 %s3, 4
          %s242 = int_to_ptr.hbm [resolvable:$true] %s241
          %s243 = sshll.u32 [#allocation4], 4
          %s244 = int_to_ptr.vmem [resolvable:$true] %s243
          %249 = dma.hbm_to_vmem [thread:$0]  %s242, 9216, %s244, [#allocation5], 192, 192, 12
        $region24: #{_lambda_.1} parent=11 // pred_fallthru
          _
        // Predicated region
        $region25: #{_lambda_.1} parent=11 // pred_check
          %p250 = pneg %p126
        $region26: #{_lambda_.1} parent=11 // pred_check_branch
          %252 = sbr.rel (%p250) target = $region28
        $region27: #{_lambda_.1} parent=11 // pred_region
          _
        $region28: #{_lambda_.1} parent=11 // pred_fallthru
          _
      $region12: #{_lambda_.1} parent=5 // pred_fallthru
        _
      %p253 = scmp.lt.s32.totalorder %s16, 2
      // Predicated region
      $region29: #{_lambda_.1} parent=5 // pred_check
        %p254 = pneg %p253
      $region30: #{_lambda_.1} parent=5 // pred_check_branch
        %256 = sbr.rel (%p254) target = $region32
      $region31: #{_lambda_.1} parent=5 // pred_region
        // Predicated region
        $region33: #{_lambda_.1} parent=31 // pred_check
          %p257 = pneg %p36
        $region34: #{_lambda_.1} parent=31 // pred_check_branch
          %259 = sbr.rel (%p257) target = $region36
        $region35: #{_lambda_.1} parent=31 // pred_region
          %s260 = smul.u32 4, %s16
          %p261 = scmp.lt.s32.totalorder %s260, 7
          %s262 = scalar_select %p261, %s260, 7
          %s263 = smul.addr %s262, 3
          %s264 = smul.addr %s263, 4
          %s265 = scalar_lea.vmem %s0, %s264
          %s266 = smul.u32 4, %s16
        $region36: #{_lambda_.1} parent=31 // pred_fallthru
          _
        // Predicated region
        $region37: #{_lambda_.1} parent=31 // pred_check
          %p267 = pneg %p146
        $region38: #{_lambda_.1} parent=31 // pred_check_branch
          %269 = sbr.rel (%p267) target = $region40
        $region39: #{_lambda_.1} parent=31 // pred_region
          %s270 = smul.u32 4, %s16
          %p271 = scmp.lt.s32.totalorder %s270, 7
          %s272 = scalar_select %p271, %s270, 7
          %s273 = scalar_lea.vmem %s5, %s272
          %s274 = smul.u32 4, %s16
        $region40: #{_lambda_.1} parent=31 // pred_fallthru
          _
      $region32: #{_lambda_.1} parent=5 // pred_fallthru
        _
      %p275 = scmp.le.s32.totalorder 1, %s16
      %p276 = scmp.lt.s32.totalorder %s16, 3
      %p277 = pnand %p275, %p276
      %p278 = pneg %p277
      // Predicated region
      $region41: #{_lambda_.1} parent=5 // pred_check
        _
      $region42: #{_lambda_.1} parent=5 // pred_check_branch
        %280 = sbr.rel (%p277) target = $region44
      $region43: #{_lambda_.1} parent=5 // pred_region
        %s281 = ssub.s32 %s16, 1
        // Predicated region
        $region45: #{_lambda_.1} parent=43 // pred_check
          %p282 = pneg %p63
        $region46: #{_lambda_.1} parent=43 // pred_check_branch
          %284 = sbr.rel (%p282) target = $region48
        $region47: #{_lambda_.1} parent=43 // pred_region
          %286 = dma.done [#allocation3], 18432
        $region48: #{_lambda_.1} parent=43 // pred_fallthru
          _
        // Predicated region
        $region49: #{_lambda_.1} parent=43 // pred_check
          %p287 = pneg %p105
        $region50: #{_lambda_.1} parent=43 // pred_check_branch
          %289 = sbr.rel (%p287) target = $region52
        $region51: #{_lambda_.1} parent=43 // pred_region
          %291 = dma.done [#allocation5], 9216
        $region52: #{_lambda_.1} parent=43 // pred_fallthru
          _
        %s292 = smul.u32 4, %s21
        %p293 = scmp.lt.s32.totalorder %s292, 7
        %s294 = scalar_select %p293, %s292, 7
        %s295 = smul.addr %s294, 3
        %s296 = smul.addr %s295, 4
        %s297 = scalar_lea.vmem %s0, %s296
        %p298 = pneg %p42
        %p299 = pneg %p39
        %p300 = pneg %p63
        %p301 = pneg %p60
        %p302 = pneg %p84
        %p303 = pneg %p81
        %p304 = pneg %p105
        %p305 = pneg %p102
        %p306 = pneg %p126
        %p307 = pneg %p123
        %s308 = smul.u32 4, %s21
        %p309 = scmp.lt.s32.totalorder %s308, 7
        %s310 = scalar_select %p309, %s308, 7
        %s311 = scalar_lea.vmem %s5, %s310
        %p312 = pneg %p152
        %p313 = pneg %p149
        %p314 = pneg %p178
        %p315 = pneg %p175
        %s316 = smul.u32 4, %s21
        %p317 = scmp.lt.s32.totalorder %s316, 7
        %s318 = scalar_select %p317, %s316, 7
        %s319 = smul.addr %s318, 8
        %s320 = scalar_lea.vmem %s6, %s319
        %p321 = pneg %p204
        %p322 = pneg %p201
        %s323 = smul.u32 4, %s21
        %p324 = scmp.lt.s32.totalorder %s323, 7
        %s325 = scalar_select %p324, %s323, 7
        %s326 = scalar_lea.vmem %s7, %s325
        %s327 = smul.u32 4, %s21
        %p328 = scmp.lt.s32.totalorder %s327, 7
        %s329 = scalar_select %p328, %s327, 7
        %s330 = smul.addr %s329, 3
        %s331 = smul.addr %s330, 4
        %s332 = scalar_lea.vmem %s0, %s331
        %s333 = smul.u32 4, %s21
        %s334 = smul.u32 4, %s21
        %p335 = scmp.lt.s32.totalorder %s334, 7
        %s336 = scalar_select %p335, %s334, 7
        %s337 = scalar_lea.vmem %s5, %s336
        %s338 = smul.u32 4, %s21
        %s339 = smul.u32 4, %s21
        %p340 = scmp.lt.s32.totalorder %s339, 7
        %s341 = scalar_select %p340, %s339, 7
        %s342 = smul.addr %s341, 8
        %s343 = scalar_lea.vmem %s6, %s342
        %s344 = smul.u32 4, %s21
        %s345 = smul.u32 4, %s21
        %p346 = scmp.lt.s32.totalorder %s345, 7
        %s347 = scalar_select %p346, %s345, 7
        %s348 = scalar_lea.vmem %s7, %s347
        %s349 = smul.u32 4, %s21
        %v351 = vld [vmem:[%s332] sm:$0xff]
        %v352 = vld [vmem:[%s332 + $0x8] sm:$0xf]
        %v353 = vld [vmem:[%s332 + $0xc] sm:$0xff]
        %v354 = vld [vmem:[%s332 + $0x14] sm:$0xf]
        %v355 = vld [vmem:[%s332 + $0x18] sm:$0xff]
        %v356 = vld [vmem:[%s332 + $0x20] sm:$0xf]
        %v357 = vld [vmem:[%s332 + $0x24] sm:$0xff]
        %v358 = vld [vmem:[%s332 + $0x2c] sm:$0xf]
        %v359 = vld [vmem:[#allocation2] sm:$0xff]
        %v360 = vld [vmem:[#allocation2 + $0x8] sm:$0xff]
        %v361 = vld [vmem:[#allocation2 + $0x10] sm:$0xff]
        %v362 = vld [vmem:[#allocation2 + $0x18] sm:$0xff]
        %v363 = vld [vmem:[#allocation2 + $0x20] sm:$0xff]
        %v364 = vld [vmem:[#allocation2 + $0x28] sm:$0xff]
        %v365 = vld [vmem:[#allocation2 + $0x30] sm:$0xff]
        %v366 = vld [vmem:[#allocation2 + $0x38] sm:$0xff]
        %v367 = vld [vmem:[#allocation2 + $0x40] sm:$0xff]
        %v368 = vld [vmem:[#allocation2 + $0x48] sm:$0xff]
        %v369 = vld [vmem:[#allocation2 + $0x50] sm:$0xff]
        %v370 = vld [vmem:[#allocation2 + $0x58] sm:$0xff]
        %v371 = vld [vmem:[#allocation2 + $0x60] sm:$0xff]
        %v372 = vld [vmem:[#allocation2 + $0x68] sm:$0xff]
        %v373 = vld [vmem:[#allocation2 + $0x70] sm:$0xff]
        %v374 = vld [vmem:[#allocation2 + $0x78] sm:$0xff]
        %v375 = vld [vmem:[#allocation2 + $0x80] sm:$0xff]
        %v376 = vld [vmem:[#allocation2 + $0x88] sm:$0xff]
        %v377 = vld [vmem:[#allocation2 + $0x90] sm:$0xff]
        %v378 = vld [vmem:[#allocation2 + $0x98] sm:$0xff]
        %v379 = vld [vmem:[#allocation2 + $0xa0] sm:$0xff]
        %v380 = vld [vmem:[#allocation2 + $0xa8] sm:$0xff]
        %v381 = vld [vmem:[#allocation2 + $0xb0] sm:$0xff]
        %v382 = vld [vmem:[#allocation2 + $0xb8] sm:$0xff]
        %v383 = vld [vmem:[#allocation2 + $0xc0] sm:$0xff]
        %v384 = vld [vmem:[#allocation2 + $0xc8] sm:$0xff]
        %v385 = vld [vmem:[#allocation2 + $0xd0] sm:$0xff]
        %v386 = vld [vmem:[#allocation2 + $0xd8] sm:$0xff]
        %v387 = vld [vmem:[#allocation2 + $0xe0] sm:$0xff]
        %v388 = vld [vmem:[#allocation2 + $0xe8] sm:$0xff]
        %v389 = vld [vmem:[#allocation2 + $0xf0] sm:$0xff]
        %v390 = vld [vmem:[#allocation2 + $0xf8] sm:$0xff]
        %v391 = vld [vmem:[#allocation2 + $0x100] sm:$0xff]
        %v392 = vld [vmem:[#allocation2 + $0x108] sm:$0xff]
        %v393 = vld [vmem:[#allocation2 + $0x110] sm:$0xff]
        %v394 = vld [vmem:[#allocation2 + $0x118] sm:$0xff]
        %v395 = vld [vmem:[#allocation2 + $0x120] sm:$0xff]
        %v396 = vld [vmem:[#allocation2 + $0x128] sm:$0xff]
        %v397 = vld [vmem:[#allocation2 + $0x130] sm:$0xff]
        %v398 = vld [vmem:[#allocation2 + $0x138] sm:$0xff]
        %v399 = vld [vmem:[#allocation2 + $0x140] sm:$0xff]
        %v400 = vld [vmem:[#allocation2 + $0x148] sm:$0xff]
        %v401 = vld [vmem:[#allocation2 + $0x150] sm:$0xff]
        %v402 = vld [vmem:[#allocation2 + $0x158] sm:$0xff]
        %v403 = vld [vmem:[#allocation2 + $0x160] sm:$0xff]
        %v404 = vld [vmem:[#allocation2 + $0x168] sm:$0xff]
        %v405 = vld [vmem:[#allocation2 + $0x170] sm:$0xff]
        %v406 = vld [vmem:[#allocation2 + $0x178] sm:$0xff]
        %v407 = vld [vmem:[#allocation2 + $0x180] sm:$0xff]
        %v408 = vld [vmem:[#allocation2 + $0x188] sm:$0xff]
        %v409 = vld [vmem:[#allocation2 + $0x190] sm:$0xff]
        %v410 = vld [vmem:[#allocation2 + $0x198] sm:$0xff]
        %v411 = vld [vmem:[#allocation2 + $0x1a0] sm:$0xff]
        %v412 = vld [vmem:[#allocation2 + $0x1a8] sm:$0xff]
        %v413 = vld [vmem:[#allocation2 + $0x1b0] sm:$0xff]
        %v414 = vld [vmem:[#allocation2 + $0x1b8] sm:$0xff]
        %v415 = vld [vmem:[#allocation2 + $0x1c0] sm:$0xff]
        %v416 = vld [vmem:[#allocation2 + $0x1c8] sm:$0xff]
        %v417 = vld [vmem:[#allocation2 + $0x1d0] sm:$0xff]
        %v418 = vld [vmem:[#allocation2 + $0x1d8] sm:$0xff]
        %v419 = vld [vmem:[#allocation2 + $0x1e0] sm:$0xff]
        %v420 = vld [vmem:[#allocation2 + $0x1e8] sm:$0xff]
        %v421 = vld [vmem:[#allocation2 + $0x1f0] sm:$0xff]
        %v422 = vld [vmem:[#allocation2 + $0x1f8] sm:$0xff]
        %v423 = vld [vmem:[#allocation2 + $0x200] sm:$0xff]
        %v424 = vld [vmem:[#allocation2 + $0x208] sm:$0xff]
        %v425 = vld [vmem:[#allocation2 + $0x210] sm:$0xff]
        %v426 = vld [vmem:[#allocation2 + $0x218] sm:$0xff]
        %v427 = vld [vmem:[#allocation2 + $0x220] sm:$0xff]
        %v428 = vld [vmem:[#allocation2 + $0x228] sm:$0xff]
        %v429 = vld [vmem:[#allocation2 + $0x230] sm:$0xff]
        %v430 = vld [vmem:[#allocation2 + $0x238] sm:$0xff]
        %v431 = vld [vmem:[#allocation2 + $0x240] sm:$0xff]
        %v432 = vld [vmem:[#allocation2 + $0x248] sm:$0xff]
        %v433 = vld [vmem:[#allocation2 + $0x250] sm:$0xff]
        %v434 = vld [vmem:[#allocation2 + $0x258] sm:$0xff]
        %v435 = vld [vmem:[#allocation2 + $0x260] sm:$0xff]
        %v436 = vld [vmem:[#allocation2 + $0x268] sm:$0xff]
        %v437 = vld [vmem:[#allocation2 + $0x270] sm:$0xff]
        %v438 = vld [vmem:[#allocation2 + $0x278] sm:$0xff]
        %v439 = vld [vmem:[#allocation2 + $0x280] sm:$0xff]
        %v440 = vld [vmem:[#allocation2 + $0x288] sm:$0xff]
        %v441 = vld [vmem:[#allocation2 + $0x290] sm:$0xff]
        %v442 = vld [vmem:[#allocation2 + $0x298] sm:$0xff]
        %v443 = vld [vmem:[#allocation2 + $0x2a0] sm:$0xff]
        %v444 = vld [vmem:[#allocation2 + $0x2a8] sm:$0xff]
        %v445 = vld [vmem:[#allocation2 + $0x2b0] sm:$0xff]
        %v446 = vld [vmem:[#allocation2 + $0x2b8] sm:$0xff]
        %v447 = vld [vmem:[#allocation2 + $0x2c0] sm:$0xff]
        %v448 = vld [vmem:[#allocation2 + $0x2c8] sm:$0xff]
        %v449 = vld [vmem:[#allocation2 + $0x2d0] sm:$0xff]
        %v450 = vld [vmem:[#allocation2 + $0x2d8] sm:$0xff]
        %v451 = vld [vmem:[#allocation2 + $0x2e0] sm:$0xff]
        %v452 = vld [vmem:[#allocation2 + $0x2e8] sm:$0xff]
        %v453 = vld [vmem:[#allocation2 + $0x2f0] sm:$0xff]
        %v454 = vld [vmem:[#allocation2 + $0x2f8] sm:$0xff]
        %v455 = vld [vmem:[#allocation2 + $0x300] sm:$0xff]
        %v456 = vld [vmem:[#allocation2 + $0x308] sm:$0xff]
        %v457 = vld [vmem:[#allocation2 + $0x310] sm:$0xff]
        %v458 = vld [vmem:[#allocation2 + $0x318] sm:$0xff]
        %v459 = vld [vmem:[#allocation2 + $0x320] sm:$0xff]
        %v460 = vld [vmem:[#allocation2 + $0x328] sm:$0xff]
        %v461 = vld [vmem:[#allocation2 + $0x330] sm:$0xff]
        %v462 = vld [vmem:[#allocation2 + $0x338] sm:$0xff]
        %v463 = vld [vmem:[#allocation2 + $0x340] sm:$0xff]
        %v464 = vld [vmem:[#allocation2 + $0x348] sm:$0xff]
        %v465 = vld [vmem:[#allocation2 + $0x350] sm:$0xff]
        %v466 = vld [vmem:[#allocation2 + $0x358] sm:$0xff]
        %v467 = vld [vmem:[#allocation2 + $0x360] sm:$0xff]
        %v468 = vld [vmem:[#allocation2 + $0x368] sm:$0xff]
        %v469 = vld [vmem:[#allocation2 + $0x370] sm:$0xff]
        %v470 = vld [vmem:[#allocation2 + $0x378] sm:$0xff]
        %v471 = vld [vmem:[#allocation2 + $0x380] sm:$0xff]
        %v472 = vld [vmem:[#allocation2 + $0x388] sm:$0xff]
        %v473 = vld [vmem:[#allocation2 + $0x390] sm:$0xff]
        %v474 = vld [vmem:[#allocation2 + $0x398] sm:$0xff]
        %v475 = vld [vmem:[#allocation2 + $0x3a0] sm:$0xff]
        %v476 = vld [vmem:[#allocation2 + $0x3a8] sm:$0xff]
        %v477 = vld [vmem:[#allocation2 + $0x3b0] sm:$0xff]
        %v478 = vld [vmem:[#allocation2 + $0x3b8] sm:$0xff]
        %v479 = vld [vmem:[#allocation2 + $0x3c0] sm:$0xff]
        %v480 = vld [vmem:[#allocation2 + $0x3c8] sm:$0xff]
        %v481 = vld [vmem:[#allocation2 + $0x3d0] sm:$0xff]
        %v482 = vld [vmem:[#allocation2 + $0x3d8] sm:$0xff]
        %v483 = vld [vmem:[#allocation2 + $0x3e0] sm:$0xff]
        %v484 = vld [vmem:[#allocation2 + $0x3e8] sm:$0xff]
        %v485 = vld [vmem:[#allocation2 + $0x3f0] sm:$0xff]
        %v486 = vld [vmem:[#allocation2 + $0x3f8] sm:$0xff]
        %v487 = vld [vmem:[#allocation2 + $0x400] sm:$0xff]
        %v488 = vld [vmem:[#allocation2 + $0x408] sm:$0xff]
        %v489 = vld [vmem:[#allocation2 + $0x410] sm:$0xff]
        %v490 = vld [vmem:[#allocation2 + $0x418] sm:$0xff]
        %v491 = vld [vmem:[#allocation2 + $0x420] sm:$0xff]
        %v492 = vld [vmem:[#allocation2 + $0x428] sm:$0xff]
        %v493 = vld [vmem:[#allocation2 + $0x430] sm:$0xff]
        %v494 = vld [vmem:[#allocation2 + $0x438] sm:$0xff]
        %v495 = vld [vmem:[#allocation2 + $0x440] sm:$0xff]
        %v496 = vld [vmem:[#allocation2 + $0x448] sm:$0xff]
        %v497 = vld [vmem:[#allocation2 + $0x450] sm:$0xff]
        %v498 = vld [vmem:[#allocation2 + $0x458] sm:$0xff]
        %v499 = vld [vmem:[#allocation2 + $0x460] sm:$0xff]
        %v500 = vld [vmem:[#allocation2 + $0x468] sm:$0xff]
        %v501 = vld [vmem:[#allocation2 + $0x470] sm:$0xff]
        %v502 = vld [vmem:[#allocation2 + $0x478] sm:$0xff]
        %v503 = vld [vmem:[%s2] sm:$0x3f]
        %v505 = vperm.slane %v503, 0
        %v506 = vperm.slane %v503, 1
        %v507 = vperm.slane %v503, 2
        %v508 = vperm.slane %v503, 3
        %v509 = vperm.slane %v503, 4
        %v510 = vperm.slane %v503, 5
        %v525 = vunpack.c.l.b16 %v351
        %v526 = vunpack.c.h.b16 %v351
        %v527 = vunpack.c.l.b16 %v352
        %v528 = vunpack.c.l.b16 %v353
        %v529 = vunpack.c.h.b16 %v353
        %v530 = vunpack.c.l.b16 %v354
        %v531 = vunpack.c.l.b16 %v355
        %v532 = vunpack.c.h.b16 %v355
        %v533 = vunpack.c.l.b16 %v356
        %v534 = vunpack.c.l.b16 %v357
        %v535 = vunpack.c.h.b16 %v357
        %v536 = vunpack.c.l.b16 %v358
        %v537 = vpack.c.b16 %v528, %v525
        %v538 = vpack.c.b16 %v529, %v526
        %v539 = vpack.c.b16 %v530, %v527
        %v540 = vpack.c.b16 %v534, %v531
        %v541 = vpack.c.b16 %v535, %v532
        %v542 = vpack.c.b16 %v536, %v533
        %v693 = vunpack.c.l.b16 %v359
        %v694 = vunpack.c.h.b16 %v359
        %v695 = vunpack.c.l.b16 %v360
        %v696 = vunpack.c.h.b16 %v360
        %v697 = vunpack.c.l.b16 %v361
        %v698 = vunpack.c.h.b16 %v361
        %v699 = vunpack.c.l.b16 %v362
        %v700 = vunpack.c.h.b16 %v362
        %v701 = vunpack.c.l.b16 %v363
        %v702 = vunpack.c.h.b16 %v363
        %v703 = vunpack.c.l.b16 %v364
        %v704 = vunpack.c.h.b16 %v364
        %v705 = vunpack.c.l.b16 %v365
        %v706 = vunpack.c.h.b16 %v365
        %v707 = vunpack.c.l.b16 %v366
        %v708 = vunpack.c.h.b16 %v366
        %v709 = vunpack.c.l.b16 %v367
        %v710 = vunpack.c.h.b16 %v367
        %v711 = vunpack.c.l.b16 %v368
        %v712 = vunpack.c.h.b16 %v368
        %v713 = vunpack.c.l.b16 %v369
        %v714 = vunpack.c.h.b16 %v369
        %v715 = vunpack.c.l.b16 %v370
        %v716 = vunpack.c.h.b16 %v370
        %v717 = vunpack.c.l.b16 %v371
        %v718 = vunpack.c.h.b16 %v371
        %v719 = vunpack.c.l.b16 %v372
        %v720 = vunpack.c.h.b16 %v372
        %v721 = vunpack.c.l.b16 %v373
        %v722 = vunpack.c.h.b16 %v373
        %v723 = vunpack.c.l.b16 %v374
        %v724 = vunpack.c.h.b16 %v374
        %v725 = vunpack.c.l.b16 %v375
        %v726 = vunpack.c.h.b16 %v375
        %v727 = vunpack.c.l.b16 %v376
        %v728 = vunpack.c.h.b16 %v376
        %v729 = vunpack.c.l.b16 %v377
        %v730 = vunpack.c.h.b16 %v377
        %v731 = vunpack.c.l.b16 %v378
        %v732 = vunpack.c.h.b16 %v378
        %v733 = vunpack.c.l.b16 %v379
        %v734 = vunpack.c.h.b16 %v379
        %v735 = vunpack.c.l.b16 %v380
        %v736 = vunpack.c.h.b16 %v380
        %v737 = vunpack.c.l.b16 %v381
        %v738 = vunpack.c.h.b16 %v381
        %v739 = vunpack.c.l.b16 %v382
        %v740 = vunpack.c.h.b16 %v382
        %v741 = vunpack.c.l.b16 %v383
        %v742 = vunpack.c.h.b16 %v383
        %v743 = vunpack.c.l.b16 %v384
        %v744 = vunpack.c.h.b16 %v384
        %v745 = vunpack.c.l.b16 %v385
        %v746 = vunpack.c.h.b16 %v385
        %v747 = vunpack.c.l.b16 %v386
        %v748 = vunpack.c.h.b16 %v386
        %v749 = vunpack.c.l.b16 %v387
        %v750 = vunpack.c.h.b16 %v387
        %v751 = vunpack.c.l.b16 %v388
        %v752 = vunpack.c.h.b16 %v388
        %v753 = vunpack.c.l.b16 %v389
        %v754 = vunpack.c.h.b16 %v389
        %v755 = vunpack.c.l.b16 %v390
        %v756 = vunpack.c.h.b16 %v390
        %v757 = vunpack.c.l.b16 %v391
        %v758 = vunpack.c.h.b16 %v391
        %v759 = vunpack.c.l.b16 %v392
        %v760 = vunpack.c.h.b16 %v392
        %v761 = vunpack.c.l.b16 %v393
        %v762 = vunpack.c.h.b16 %v393
        %v763 = vunpack.c.l.b16 %v394
        %v764 = vunpack.c.h.b16 %v394
        %v765 = vunpack.c.l.b16 %v395
        %v766 = vunpack.c.h.b16 %v395
        %v767 = vunpack.c.l.b16 %v396
        %v768 = vunpack.c.h.b16 %v396
        %v769 = vunpack.c.l.b16 %v397
        %v770 = vunpack.c.h.b16 %v397
        %v771 = vunpack.c.l.b16 %v398
        %v772 = vunpack.c.h.b16 %v398
        %v773 = vunpack.c.l.b16 %v399
        %v774 = vunpack.c.h.b16 %v399
        %v775 = vunpack.c.l.b16 %v400
        %v776 = vunpack.c.h.b16 %v400
        %v777 = vunpack.c.l.b16 %v401
        %v778 = vunpack.c.h.b16 %v401
        %v779 = vunpack.c.l.b16 %v402
        %v780 = vunpack.c.h.b16 %v402
        %v781 = vunpack.c.l.b16 %v403
        %v782 = vunpack.c.h.b16 %v403
        %v783 = vunpack.c.l.b16 %v404
        %v784 = vunpack.c.h.b16 %v404
        %v785 = vunpack.c.l.b16 %v405
        %v786 = vunpack.c.h.b16 %v405
        %v787 = vunpack.c.l.b16 %v406
        %v788 = vunpack.c.h.b16 %v406
        %v789 = vunpack.c.l.b16 %v407
        %v790 = vunpack.c.h.b16 %v407
        %v791 = vunpack.c.l.b16 %v408
        %v792 = vunpack.c.h.b16 %v408
        %v793 = vunpack.c.l.b16 %v409
        %v794 = vunpack.c.h.b16 %v409
        %v795 = vunpack.c.l.b16 %v410
        %v796 = vunpack.c.h.b16 %v410
        %v797 = vunpack.c.l.b16 %v411
        %v798 = vunpack.c.h.b16 %v411
        %v799 = vunpack.c.l.b16 %v412
        %v800 = vunpack.c.h.b16 %v412
        %v801 = vunpack.c.l.b16 %v413
        %v802 = vunpack.c.h.b16 %v413
        %v803 = vunpack.c.l.b16 %v414
        %v804 = vunpack.c.h.b16 %v414
        %v805 = vunpack.c.l.b16 %v415
        %v806 = vunpack.c.h.b16 %v415
        %v807 = vunpack.c.l.b16 %v416
        %v808 = vunpack.c.h.b16 %v416
        %v809 = vunpack.c.l.b16 %v417
        %v810 = vunpack.c.h.b16 %v417
        %v811 = vunpack.c.l.b16 %v418
        %v812 = vunpack.c.h.b16 %v418
        %v813 = vunpack.c.l.b16 %v419
        %v814 = vunpack.c.h.b16 %v419
        %v815 = vunpack.c.l.b16 %v420
        %v816 = vunpack.c.h.b16 %v420
        %v817 = vunpack.c.l.b16 %v421
        %v818 = vunpack.c.h.b16 %v421
        %v819 = vunpack.c.l.b16 %v422
        %v820 = vunpack.c.h.b16 %v422
        %v821 = vunpack.c.l.b16 %v423
        %v822 = vunpack.c.h.b16 %v423
        %v823 = vunpack.c.l.b16 %v424
        %v824 = vunpack.c.h.b16 %v424
        %v825 = vunpack.c.l.b16 %v425
        %v826 = vunpack.c.h.b16 %v425
        %v827 = vunpack.c.l.b16 %v426
        %v828 = vunpack.c.h.b16 %v426
        %v829 = vunpack.c.l.b16 %v427
        %v830 = vunpack.c.h.b16 %v427
        %v831 = vunpack.c.l.b16 %v428
        %v832 = vunpack.c.h.b16 %v428
        %v833 = vunpack.c.l.b16 %v429
        %v834 = vunpack.c.h.b16 %v429
        %v835 = vunpack.c.l.b16 %v430
        %v836 = vunpack.c.h.b16 %v430
        %v837 = vunpack.c.l.b16 %v431
        %v838 = vunpack.c.h.b16 %v431
        %v839 = vunpack.c.l.b16 %v432
        %v840 = vunpack.c.h.b16 %v432
        %v841 = vunpack.c.l.b16 %v433
        %v842 = vunpack.c.h.b16 %v433
        %v843 = vunpack.c.l.b16 %v434
        %v844 = vunpack.c.h.b16 %v434
        %v845 = vunpack.c.l.b16 %v435
        %v846 = vunpack.c.h.b16 %v435
        %v847 = vunpack.c.l.b16 %v436
        %v848 = vunpack.c.h.b16 %v436
        %v849 = vunpack.c.l.b16 %v437
        %v850 = vunpack.c.h.b16 %v437
        %v851 = vunpack.c.l.b16 %v438
        %v852 = vunpack.c.h.b16 %v438
        %v853 = vunpack.c.l.b16 %v439
        %v854 = vunpack.c.h.b16 %v439
        %v855 = vunpack.c.l.b16 %v440
        %v856 = vunpack.c.h.b16 %v440
        %v857 = vunpack.c.l.b16 %v441
        %v858 = vunpack.c.h.b16 %v441
        %v859 = vunpack.c.l.b16 %v442
        %v860 = vunpack.c.h.b16 %v442
        %v861 = vunpack.c.l.b16 %v443
        %v862 = vunpack.c.h.b16 %v443
        %v863 = vunpack.c.l.b16 %v444
        %v864 = vunpack.c.h.b16 %v444
        %v865 = vunpack.c.l.b16 %v445
        %v866 = vunpack.c.h.b16 %v445
        %v867 = vunpack.c.l.b16 %v446
        %v868 = vunpack.c.h.b16 %v446
        %v869 = vunpack.c.l.b16 %v447
        %v870 = vunpack.c.h.b16 %v447
        %v871 = vunpack.c.l.b16 %v448
        %v872 = vunpack.c.h.b16 %v448
        %v873 = vunpack.c.l.b16 %v449
        %v874 = vunpack.c.h.b16 %v449
        %v875 = vunpack.c.l.b16 %v450
        %v876 = vunpack.c.h.b16 %v450
        %v877 = vunpack.c.l.b16 %v451
        %v878 = vunpack.c.h.b16 %v451
        %v879 = vunpack.c.l.b16 %v452
        %v880 = vunpack.c.h.b16 %v452
        %v881 = vunpack.c.l.b16 %v453
        %v882 = vunpack.c.h.b16 %v453
        %v883 = vunpack.c.l.b16 %v454
        %v884 = vunpack.c.h.b16 %v454
        %v885 = vunpack.c.l.b16 %v455
        %v886 = vunpack.c.h.b16 %v455
        %v887 = vunpack.c.l.b16 %v456
        %v888 = vunpack.c.h.b16 %v456
        %v889 = vunpack.c.l.b16 %v457
        %v890 = vunpack.c.h.b16 %v457
        %v891 = vunpack.c.l.b16 %v458
        %v892 = vunpack.c.h.b16 %v458
        %v893 = vunpack.c.l.b16 %v459
        %v894 = vunpack.c.h.b16 %v459
        %v895 = vunpack.c.l.b16 %v460
        %v896 = vunpack.c.h.b16 %v460
        %v897 = vunpack.c.l.b16 %v461
        %v898 = vunpack.c.h.b16 %v461
        %v899 = vunpack.c.l.b16 %v462
        %v900 = vunpack.c.h.b16 %v462
        %v901 = vunpack.c.l.b16 %v463
        %v902 = vunpack.c.h.b16 %v463
        %v903 = vunpack.c.l.b16 %v464
        %v904 = vunpack.c.h.b16 %v464
        %v905 = vunpack.c.l.b16 %v465
        %v906 = vunpack.c.h.b16 %v465
        %v907 = vunpack.c.l.b16 %v466
        %v908 = vunpack.c.h.b16 %v466
        %v909 = vunpack.c.l.b16 %v467
        %v910 = vunpack.c.h.b16 %v467
        %v911 = vunpack.c.l.b16 %v468
        %v912 = vunpack.c.h.b16 %v468
        %v913 = vunpack.c.l.b16 %v469
        %v914 = vunpack.c.h.b16 %v469
        %v915 = vunpack.c.l.b16 %v470
        %v916 = vunpack.c.h.b16 %v470
        %v917 = vunpack.c.l.b16 %v471
        %v918 = vunpack.c.h.b16 %v471
        %v919 = vunpack.c.l.b16 %v472
        %v920 = vunpack.c.h.b16 %v472
        %v921 = vunpack.c.l.b16 %v473
        %v922 = vunpack.c.h.b16 %v473
        %v923 = vunpack.c.l.b16 %v474
        %v924 = vunpack.c.h.b16 %v474
        %v925 = vunpack.c.l.b16 %v475
        %v926 = vunpack.c.h.b16 %v475
        %v927 = vunpack.c.l.b16 %v476
        %v928 = vunpack.c.h.b16 %v476
        %v929 = vunpack.c.l.b16 %v477
        %v930 = vunpack.c.h.b16 %v477
        %v931 = vunpack.c.l.b16 %v478
        %v932 = vunpack.c.h.b16 %v478
        %v933 = vunpack.c.l.b16 %v479
        %v934 = vunpack.c.h.b16 %v479
        %v935 = vunpack.c.l.b16 %v480
        %v936 = vunpack.c.h.b16 %v480
        %v937 = vunpack.c.l.b16 %v481
        %v938 = vunpack.c.h.b16 %v481
        %v939 = vunpack.c.l.b16 %v482
        %v940 = vunpack.c.h.b16 %v482
        %v941 = vunpack.c.l.b16 %v483
        %v942 = vunpack.c.h.b16 %v483
        %v943 = vunpack.c.l.b16 %v484
        %v944 = vunpack.c.h.b16 %v484
        %v945 = vunpack.c.l.b16 %v485
        %v946 = vunpack.c.h.b16 %v485
        %v947 = vunpack.c.l.b16 %v486
        %v948 = vunpack.c.h.b16 %v486
        %v949 = vunpack.c.l.b16 %v487
        %v950 = vunpack.c.h.b16 %v487
        %v951 = vunpack.c.l.b16 %v488
        %v952 = vunpack.c.h.b16 %v488
        %v953 = vunpack.c.l.b16 %v489
        %v954 = vunpack.c.h.b16 %v489
        %v955 = vunpack.c.l.b16 %v490
        %v956 = vunpack.c.h.b16 %v490
        %v957 = vunpack.c.l.b16 %v491
        %v958 = vunpack.c.h.b16 %v491
        %v959 = vunpack.c.l.b16 %v492
        %v960 = vunpack.c.h.b16 %v492
        %v961 = vunpack.c.l.b16 %v493
        %v962 = vunpack.c.h.b16 %v493
        %v963 = vunpack.c.l.b16 %v494
        %v964 = vunpack.c.h.b16 %v494
        %v965 = vunpack.c.l.b16 %v495
        %v966 = vunpack.c.h.b16 %v495
        %v967 = vunpack.c.l.b16 %v496
        %v968 = vunpack.c.h.b16 %v496
        %v969 = vunpack.c.l.b16 %v497
        %v970 = vunpack.c.h.b16 %v497
        %v971 = vunpack.c.l.b16 %v498
        %v972 = vunpack.c.h.b16 %v498
        %v973 = vunpack.c.l.b16 %v499
        %v974 = vunpack.c.h.b16 %v499
        %v975 = vunpack.c.l.b16 %v500
        %v976 = vunpack.c.h.b16 %v500
        %v977 = vunpack.c.l.b16 %v501
        %v978 = vunpack.c.h.b16 %v501
        %v979 = vunpack.c.l.b16 %v502
        %v980 = vunpack.c.h.b16 %v502
        %v981 = vpack.c.b16 %v699, %v693
        %v982 = vpack.c.b16 %v700, %v694
        %v983 = vpack.c.b16 %v701, %v695
        %v984 = vpack.c.b16 %v702, %v696
        %v985 = vpack.c.b16 %v703, %v697
        %v986 = vpack.c.b16 %v704, %v698
        %v987 = vpack.c.b16 %v711, %v705
        %v988 = vpack.c.b16 %v712, %v706
        %v989 = vpack.c.b16 %v713, %v707
        %v990 = vpack.c.b16 %v714, %v708
        %v991 = vpack.c.b16 %v715, %v709
        %v992 = vpack.c.b16 %v716, %v710
        %v993 = vpack.c.b16 %v723, %v717
        %v994 = vpack.c.b16 %v724, %v718
        %v995 = vpack.c.b16 %v725, %v719
        %v996 = vpack.c.b16 %v726, %v720
        %v997 = vpack.c.b16 %v727, %v721
        %v998 = vpack.c.b16 %v728, %v722
        %v999 = vpack.c.b16 %v735, %v729
        %v1000 = vpack.c.b16 %v736, %v730
        %v1001 = vpack.c.b16 %v737, %v731
        %v1002 = vpack.c.b16 %v738, %v732
        %v1003 = vpack.c.b16 %v739, %v733
        %v1004 = vpack.c.b16 %v740, %v734
        %v1005 = vpack.c.b16 %v747, %v741
        %v1006 = vpack.c.b16 %v748, %v742
        %v1007 = vpack.c.b16 %v749, %v743
        %v1008 = vpack.c.b16 %v750, %v744
        %v1009 = vpack.c.b16 %v751, %v745
        %v1010 = vpack.c.b16 %v752, %v746
        %v1011 = vpack.c.b16 %v759, %v753
        %v1012 = vpack.c.b16 %v760, %v754
        %v1013 = vpack.c.b16 %v761, %v755
        %v1014 = vpack.c.b16 %v762, %v756
        %v1015 = vpack.c.b16 %v763, %v757
        %v1016 = vpack.c.b16 %v764, %v758
        %v1017 = vpack.c.b16 %v771, %v765
        %v1018 = vpack.c.b16 %v772, %v766
        %v1019 = vpack.c.b16 %v773, %v767
        %v1020 = vpack.c.b16 %v774, %v768
        %v1021 = vpack.c.b16 %v775, %v769
        %v1022 = vpack.c.b16 %v776, %v770
        %v1023 = vpack.c.b16 %v783, %v777
        %v1024 = vpack.c.b16 %v784, %v778
        %v1025 = vpack.c.b16 %v785, %v779
        %v1026 = vpack.c.b16 %v786, %v780
        %v1027 = vpack.c.b16 %v787, %v781
        %v1028 = vpack.c.b16 %v788, %v782
        %v1029 = vpack.c.b16 %v795, %v789
        %v1030 = vpack.c.b16 %v796, %v790
        %v1031 = vpack.c.b16 %v797, %v791
        %v1032 = vpack.c.b16 %v798, %v792
        %v1033 = vpack.c.b16 %v799, %v793
        %v1034 = vpack.c.b16 %v800, %v794
        %v1035 = vpack.c.b16 %v807, %v801
        %v1036 = vpack.c.b16 %v808, %v802
        %v1037 = vpack.c.b16 %v809, %v803
        %v1038 = vpack.c.b16 %v810, %v804
        %v1039 = vpack.c.b16 %v811, %v805
        %v1040 = vpack.c.b16 %v812, %v806
        %v1041 = vpack.c.b16 %v819, %v813
        %v1042 = vpack.c.b16 %v820, %v814
        %v1043 = vpack.c.b16 %v821, %v815
        %v1044 = vpack.c.b16 %v822, %v816
        %v1045 = vpack.c.b16 %v823, %v817
        %v1046 = vpack.c.b16 %v824, %v818
        %v1047 = vpack.c.b16 %v831, %v825
        %v1048 = vpack.c.b16 %v832, %v826
        %v1049 = vpack.c.b16 %v833, %v827
        %v1050 = vpack.c.b16 %v834, %v828
        %v1051 = vpack.c.b16 %v835, %v829
        %v1052 = vpack.c.b16 %v836, %v830
        %v1053 = vpack.c.b16 %v843, %v837
        %v1054 = vpack.c.b16 %v844, %v838
        %v1055 = vpack.c.b16 %v845, %v839
        %v1056 = vpack.c.b16 %v846, %v840
        %v1057 = vpack.c.b16 %v847, %v841
        %v1058 = vpack.c.b16 %v848, %v842
        %v1059 = vpack.c.b16 %v855, %v849
        %v1060 = vpack.c.b16 %v856, %v850
        %v1061 = vpack.c.b16 %v857, %v851
        %v1062 = vpack.c.b16 %v858, %v852
        %v1063 = vpack.c.b16 %v859, %v853
        %v1064 = vpack.c.b16 %v860, %v854
        %v1065 = vpack.c.b16 %v867, %v861
        %v1066 = vpack.c.b16 %v868, %v862
        %v1067 = vpack.c.b16 %v869, %v863
        %v1068 = vpack.c.b16 %v870, %v864
        %v1069 = vpack.c.b16 %v871, %v865
        %v1070 = vpack.c.b16 %v872, %v866
        %v1071 = vpack.c.b16 %v879, %v873
        %v1072 = vpack.c.b16 %v880, %v874
        %v1073 = vpack.c.b16 %v881, %v875
        %v1074 = vpack.c.b16 %v882, %v876
        %v1075 = vpack.c.b16 %v883, %v877
        %v1076 = vpack.c.b16 %v884, %v878
        %v1077 = vpack.c.b16 %v891, %v885
        %v1078 = vpack.c.b16 %v892, %v886
        %v1079 = vpack.c.b16 %v893, %v887
        %v1080 = vpack.c.b16 %v894, %v888
        %v1081 = vpack.c.b16 %v895, %v889
        %v1082 = vpack.c.b16 %v896, %v890
        %v1083 = vpack.c.b16 %v903, %v897
        %v1084 = vpack.c.b16 %v904, %v898
        %v1085 = vpack.c.b16 %v905, %v899
        %v1086 = vpack.c.b16 %v906, %v900
        %v1087 = vpack.c.b16 %v907, %v901
        %v1088 = vpack.c.b16 %v908, %v902
        %v1089 = vpack.c.b16 %v915, %v909
        %v1090 = vpack.c.b16 %v916, %v910
        %v1091 = vpack.c.b16 %v917, %v911
        %v1092 = vpack.c.b16 %v918, %v912
        %v1093 = vpack.c.b16 %v919, %v913
        %v1094 = vpack.c.b16 %v920, %v914
        %v1095 = vpack.c.b16 %v927, %v921
        %v1096 = vpack.c.b16 %v928, %v922
        %v1097 = vpack.c.b16 %v929, %v923
        %v1098 = vpack.c.b16 %v930, %v924
        %v1099 = vpack.c.b16 %v931, %v925
        %v1100 = vpack.c.b16 %v932, %v926
        %v1101 = vpack.c.b16 %v939, %v933
        %v1102 = vpack.c.b16 %v940, %v934
        %v1103 = vpack.c.b16 %v941, %v935
        %v1104 = vpack.c.b16 %v942, %v936
        %v1105 = vpack.c.b16 %v943, %v937
        %v1106 = vpack.c.b16 %v944, %v938
        %v1107 = vpack.c.b16 %v951, %v945
        %v1108 = vpack.c.b16 %v952, %v946
        %v1109 = vpack.c.b16 %v953, %v947
        %v1110 = vpack.c.b16 %v954, %v948
        %v1111 = vpack.c.b16 %v955, %v949
        %v1112 = vpack.c.b16 %v956, %v950
        %v1113 = vpack.c.b16 %v963, %v957
        %v1114 = vpack.c.b16 %v964, %v958
        %v1115 = vpack.c.b16 %v965, %v959
        %v1116 = vpack.c.b16 %v966, %v960
        %v1117 = vpack.c.b16 %v967, %v961
        %v1118 = vpack.c.b16 %v968, %v962
        %v1119 = vpack.c.b16 %v975, %v969
        %v1120 = vpack.c.b16 %v976, %v970
        %v1121 = vpack.c.b16 %v977, %v971
        %v1122 = vpack.c.b16 %v978, %v972
        %v1123 = vpack.c.b16 %v979, %v973
        %v1124 = vpack.c.b16 %v980, %v974
        %1269 = vmatpush.bf16.msra.mxu0 %v1023
        %1270 = vmatpush.bf16.msra.mxu0 %v1017
        %1271 = vmatpush.bf16.msra.mxu0 %v1011
        %1272 = vmatpush.bf16.msra.mxu0 %v1005
        %1273 = vmatpush.bf16.msra.mxu0 %v999
        %1274 = vmatpush.bf16.msra.mxu0 %v993
        %1275 = vmatpush.bf16.msra.mxu0 %v987
        %1276 = vmatpush.bf16.msra.mxu0 %v981
        %1277 = vmatmul.bf16.gmra.mxu0 %v537
        %v1278 = vpop.f32.mrf.mxu0
        %v1279 = vadd.f32 %v505, %v1278
        %v1280 = vpop.f32.mrf.mxu0
        %v1281 = vadd.f32 %v505, %v1280
        %1282 = vmatmul.bf16.gmra.mxu0 %v540
        %v1283 = vpop.f32.mrf.mxu0
        %v1284 = vadd.f32 %v505, %v1283
        %v1285 = vpop.f32.mrf.mxu0
        %v1286 = vadd.f32 %v505, %v1285
        %1287 = vdwg.mxu0
        %1288 = vmatpush.bf16.msra.mxu0 %v1071
        %1289 = vmatpush.bf16.msra.mxu0 %v1065
        %1290 = vmatpush.bf16.msra.mxu0 %v1059
        %1291 = vmatpush.bf16.msra.mxu0 %v1053
        %1292 = vmatpush.bf16.msra.mxu0 %v1047
        %1293 = vmatpush.bf16.msra.mxu0 %v1041
        %1294 = vmatpush.bf16.msra.mxu0 %v1035
        %1295 = vmatpush.bf16.msra.mxu0 %v1029
        %1296 = vmatmul.bf16.gmra.mxu0 %v538
        %v1297 = vpop.f32.mrf.mxu0
        %v1298 = vadd.f32 %v1279, %v1297
        %v1299 = vpop.f32.mrf.mxu0
        %v1300 = vadd.f32 %v1281, %v1299
        %1301 = vmatmul.bf16.gmra.mxu0 %v541
        %v1302 = vpop.f32.mrf.mxu0
        %v1303 = vadd.f32 %v1284, %v1302
        %v1304 = vpop.f32.mrf.mxu0
        %v1305 = vadd.f32 %v1286, %v1304
        %1306 = vdwg.mxu0
        %1307 = vmatpush.bf16.msra.mxu0 %v1119
        %1308 = vmatpush.bf16.msra.mxu0 %v1113
        %1309 = vmatpush.bf16.msra.mxu0 %v1107
        %1310 = vmatpush.bf16.msra.mxu0 %v1101
        %1311 = vmatpush.bf16.msra.mxu0 %v1095
        %1312 = vmatpush.bf16.msra.mxu0 %v1089
        %1313 = vmatpush.bf16.msra.mxu0 %v1083
        %1314 = vmatpush.bf16.msra.mxu0 %v1077
        %1315 = vmatmul.bf16.gmra.mxu0 %v539
        %v1316 = vpop.f32.mrf.mxu0
        %v1317 = vadd.f32 %v1298, %v1316
        %v1318 = vpop.f32.mrf.mxu0
        %v1319 = vadd.f32 %v1300, %v1318
        %1320 = vmatmul.bf16.gmra.mxu0 %v542
        %v1321 = vpop.f32.mrf.mxu0
        %v1322 = vadd.f32 %v1303, %v1321
        %v1323 = vpop.f32.mrf.mxu0
        %v1324 = vadd.f32 %v1305, %v1323
        %1325 = vdwg.mxu0
        %1326 = vmatpush.bf16.msra.mxu0 %v1024
        %1327 = vmatpush.bf16.msra.mxu0 %v1018
        %1328 = vmatpush.bf16.msra.mxu0 %v1012
        %1329 = vmatpush.bf16.msra.mxu0 %v1006
        %1330 = vmatpush.bf16.msra.mxu0 %v1000
        %1331 = vmatpush.bf16.msra.mxu0 %v994
        %1332 = vmatpush.bf16.msra.mxu0 %v988
        %1333 = vmatpush.bf16.msra.mxu0 %v982
        %1334 = vmatmul.bf16.gmra.mxu0 %v537
        %v1335 = vpop.f32.mrf.mxu0
        %v1336 = vadd.f32 %v506, %v1335
        %v1337 = vpop.f32.mrf.mxu0
        %v1338 = vadd.f32 %v506, %v1337
        %1339 = vmatmul.bf16.gmra.mxu0 %v540
        %v1340 = vpop.f32.mrf.mxu0
        %v1341 = vadd.f32 %v506, %v1340
        %v1342 = vpop.f32.mrf.mxu0
        %v1343 = vadd.f32 %v506, %v1342
        %1344 = vdwg.mxu0
        %1345 = vmatpush.bf16.msra.mxu0 %v1072
        %1346 = vmatpush.bf16.msra.mxu0 %v1066
        %1347 = vmatpush.bf16.msra.mxu0 %v1060
        %1348 = vmatpush.bf16.msra.mxu0 %v1054
        %1349 = vmatpush.bf16.msra.mxu0 %v1048
        %1350 = vmatpush.bf16.msra.mxu0 %v1042
        %1351 = vmatpush.bf16.msra.mxu0 %v1036
        %1352 = vmatpush.bf16.msra.mxu0 %v1030
        %1353 = vmatmul.bf16.gmra.mxu0 %v538
        %v1354 = vpop.f32.mrf.mxu0
        %v1355 = vadd.f32 %v1336, %v1354
        %v1356 = vpop.f32.mrf.mxu0
        %v1357 = vadd.f32 %v1338, %v1356
        %1358 = vmatmul.bf16.gmra.mxu0 %v541
        %v1359 = vpop.f32.mrf.mxu0
        %v1360 = vadd.f32 %v1341, %v1359
        %v1361 = vpop.f32.mrf.mxu0
        %v1362 = vadd.f32 %v1343, %v1361
        %1363 = vdwg.mxu0
        %1364 = vmatpush.bf16.msra.mxu0 %v1120
        %1365 = vmatpush.bf16.msra.mxu0 %v1114
        %1366 = vmatpush.bf16.msra.mxu0 %v1108
        %1367 = vmatpush.bf16.msra.mxu0 %v1102
        %1368 = vmatpush.bf16.msra.mxu0 %v1096
        %1369 = vmatpush.bf16.msra.mxu0 %v1090
        %1370 = vmatpush.bf16.msra.mxu0 %v1084
        %1371 = vmatpush.bf16.msra.mxu0 %v1078
        %1372 = vmatmul.bf16.gmra.mxu0 %v539
        %v1373 = vpop.f32.mrf.mxu0
        %v1374 = vadd.f32 %v1355, %v1373
        %v1375 = vpop.f32.mrf.mxu0
        %v1376 = vadd.f32 %v1357, %v1375
        %1377 = vmatmul.bf16.gmra.mxu0 %v542
        %v1378 = vpop.f32.mrf.mxu0
        %v1379 = vadd.f32 %v1360, %v1378
        %v1380 = vpop.f32.mrf.mxu0
        %v1381 = vadd.f32 %v1362, %v1380
        %1382 = vdwg.mxu0
        %1383 = vmatpush.bf16.msra.mxu0 %v1025
        %1384 = vmatpush.bf16.msra.mxu0 %v1019
        %1385 = vmatpush.bf16.msra.mxu0 %v1013
        %1386 = vmatpush.bf16.msra.mxu0 %v1007
        %1387 = vmatpush.bf16.msra.mxu0 %v1001
        %1388 = vmatpush.bf16.msra.mxu0 %v995
        %1389 = vmatpush.bf16.msra.mxu0 %v989
        %1390 = vmatpush.bf16.msra.mxu0 %v983
        %1391 = vmatmul.bf16.gmra.mxu0 %v537
        %v1392 = vpop.f32.mrf.mxu0
        %v1393 = vadd.f32 %v507, %v1392
        %v1394 = vpop.f32.mrf.mxu0
        %v1395 = vadd.f32 %v507, %v1394
        %1396 = vmatmul.bf16.gmra.mxu0 %v540
        %v1397 = vpop.f32.mrf.mxu0
        %v1398 = vadd.f32 %v507, %v1397
        %v1399 = vpop.f32.mrf.mxu0
        %v1400 = vadd.f32 %v507, %v1399
        %1401 = vdwg.mxu0
        %1402 = vmatpush.bf16.msra.mxu0 %v1073
        %1403 = vmatpush.bf16.msra.mxu0 %v1067
        %1404 = vmatpush.bf16.msra.mxu0 %v1061
        %1405 = vmatpush.bf16.msra.mxu0 %v1055
        %1406 = vmatpush.bf16.msra.mxu0 %v1049
        %1407 = vmatpush.bf16.msra.mxu0 %v1043
        %1408 = vmatpush.bf16.msra.mxu0 %v1037
        %1409 = vmatpush.bf16.msra.mxu0 %v1031
        %1410 = vmatmul.bf16.gmra.mxu0 %v538
        %v1411 = vpop.f32.mrf.mxu0
        %v1412 = vadd.f32 %v1393, %v1411
        %v1413 = vpop.f32.mrf.mxu0
        %v1414 = vadd.f32 %v1395, %v1413
        %1415 = vmatmul.bf16.gmra.mxu0 %v541
        %v1416 = vpop.f32.mrf.mxu0
        %v1417 = vadd.f32 %v1398, %v1416
        %v1418 = vpop.f32.mrf.mxu0
        %v1419 = vadd.f32 %v1400, %v1418
        %1420 = vdwg.mxu0
        %1421 = vmatpush.bf16.msra.mxu0 %v1121
        %1422 = vmatpush.bf16.msra.mxu0 %v1115
        %1423 = vmatpush.bf16.msra.mxu0 %v1109
        %1424 = vmatpush.bf16.msra.mxu0 %v1103
        %1425 = vmatpush.bf16.msra.mxu0 %v1097
        %1426 = vmatpush.bf16.msra.mxu0 %v1091
        %1427 = vmatpush.bf16.msra.mxu0 %v1085
        %1428 = vmatpush.bf16.msra.mxu0 %v1079
        %1429 = vmatmul.bf16.gmra.mxu0 %v539
        %v1430 = vpop.f32.mrf.mxu0
        %v1431 = vadd.f32 %v1412, %v1430
        %v1432 = vpop.f32.mrf.mxu0
        %v1433 = vadd.f32 %v1414, %v1432
        %1434 = vmatmul.bf16.gmra.mxu0 %v542
        %v1435 = vpop.f32.mrf.mxu0
        %v1436 = vadd.f32 %v1417, %v1435
        %v1437 = vpop.f32.mrf.mxu0
        %v1438 = vadd.f32 %v1419, %v1437
        %1439 = vdwg.mxu0
        %1440 = vmatpush.bf16.msra.mxu0 %v1026
        %1441 = vmatpush.bf16.msra.mxu0 %v1020
        %1442 = vmatpush.bf16.msra.mxu0 %v1014
        %1443 = vmatpush.bf16.msra.mxu0 %v1008
        %1444 = vmatpush.bf16.msra.mxu0 %v1002
        %1445 = vmatpush.bf16.msra.mxu0 %v996
        %1446 = vmatpush.bf16.msra.mxu0 %v990
        %1447 = vmatpush.bf16.msra.mxu0 %v984
        %1448 = vmatmul.bf16.gmra.mxu0 %v537
        %v1449 = vpop.f32.mrf.mxu0
        %v1450 = vadd.f32 %v508, %v1449
        %v1451 = vpop.f32.mrf.mxu0
        %v1452 = vadd.f32 %v508, %v1451
        %1453 = vmatmul.bf16.gmra.mxu0 %v540
        %v1454 = vpop.f32.mrf.mxu0
        %v1455 = vadd.f32 %v508, %v1454
        %v1456 = vpop.f32.mrf.mxu0
        %v1457 = vadd.f32 %v508, %v1456
        %1458 = vdwg.mxu0
        %1459 = vmatpush.bf16.msra.mxu0 %v1074
        %1460 = vmatpush.bf16.msra.mxu0 %v1068
        %1461 = vmatpush.bf16.msra.mxu0 %v1062
        %1462 = vmatpush.bf16.msra.mxu0 %v1056
        %1463 = vmatpush.bf16.msra.mxu0 %v1050
        %1464 = vmatpush.bf16.msra.mxu0 %v1044
        %1465 = vmatpush.bf16.msra.mxu0 %v1038
        %1466 = vmatpush.bf16.msra.mxu0 %v1032
        %1467 = vmatmul.bf16.gmra.mxu0 %v538
        %v1468 = vpop.f32.mrf.mxu0
        %v1469 = vadd.f32 %v1450, %v1468
        %v1470 = vpop.f32.mrf.mxu0
        %v1471 = vadd.f32 %v1452, %v1470
        %1472 = vmatmul.bf16.gmra.mxu0 %v541
        %v1473 = vpop.f32.mrf.mxu0
        %v1474 = vadd.f32 %v1455, %v1473
        %v1475 = vpop.f32.mrf.mxu0
        %v1476 = vadd.f32 %v1457, %v1475
        %1477 = vdwg.mxu0
        %1478 = vmatpush.bf16.msra.mxu0 %v1122
        %1479 = vmatpush.bf16.msra.mxu0 %v1116
        %1480 = vmatpush.bf16.msra.mxu0 %v1110
        %1481 = vmatpush.bf16.msra.mxu0 %v1104
        %1482 = vmatpush.bf16.msra.mxu0 %v1098
        %1483 = vmatpush.bf16.msra.mxu0 %v1092
        %1484 = vmatpush.bf16.msra.mxu0 %v1086
        %1485 = vmatpush.bf16.msra.mxu0 %v1080
        %1486 = vmatmul.bf16.gmra.mxu0 %v539
        %v1487 = vpop.f32.mrf.mxu0
        %v1488 = vadd.f32 %v1469, %v1487
        %v1489 = vpop.f32.mrf.mxu0
        %v1490 = vadd.f32 %v1471, %v1489
        %1491 = vmatmul.bf16.gmra.mxu0 %v542
        %v1492 = vpop.f32.mrf.mxu0
        %v1493 = vadd.f32 %v1474, %v1492
        %v1494 = vpop.f32.mrf.mxu0
        %v1495 = vadd.f32 %v1476, %v1494
        %1496 = vdwg.mxu0
        %1497 = vmatpush.bf16.msra.mxu0 %v1027
        %1498 = vmatpush.bf16.msra.mxu0 %v1021
        %1499 = vmatpush.bf16.msra.mxu0 %v1015
        %1500 = vmatpush.bf16.msra.mxu0 %v1009
        %1501 = vmatpush.bf16.msra.mxu0 %v1003
        %1502 = vmatpush.bf16.msra.mxu0 %v997
        %1503 = vmatpush.bf16.msra.mxu0 %v991
        %1504 = vmatpush.bf16.msra.mxu0 %v985
        %1505 = vmatmul.bf16.gmra.mxu0 %v537
        %v1506 = vpop.f32.mrf.mxu0
        %v1507 = vadd.f32 %v509, %v1506
        %v1508 = vpop.f32.mrf.mxu0
        %v1509 = vadd.f32 %v509, %v1508
        %1510 = vmatmul.bf16.gmra.mxu0 %v540
        %v1511 = vpop.f32.mrf.mxu0
        %v1512 = vadd.f32 %v509, %v1511
        %v1513 = vpop.f32.mrf.mxu0
        %v1514 = vadd.f32 %v509, %v1513
        %1515 = vdwg.mxu0
        %1516 = vmatpush.bf16.msra.mxu0 %v1075
        %1517 = vmatpush.bf16.msra.mxu0 %v1069
        %1518 = vmatpush.bf16.msra.mxu0 %v1063
        %1519 = vmatpush.bf16.msra.mxu0 %v1057
        %1520 = vmatpush.bf16.msra.mxu0 %v1051
        %1521 = vmatpush.bf16.msra.mxu0 %v1045
        %1522 = vmatpush.bf16.msra.mxu0 %v1039
        %1523 = vmatpush.bf16.msra.mxu0 %v1033
        %1524 = vmatmul.bf16.gmra.mxu0 %v538
        %v1525 = vpop.f32.mrf.mxu0
        %v1526 = vadd.f32 %v1507, %v1525
        %v1527 = vpop.f32.mrf.mxu0
        %v1528 = vadd.f32 %v1509, %v1527
        %1529 = vmatmul.bf16.gmra.mxu0 %v541
        %v1530 = vpop.f32.mrf.mxu0
        %v1531 = vadd.f32 %v1512, %v1530
        %v1532 = vpop.f32.mrf.mxu0
        %v1533 = vadd.f32 %v1514, %v1532
        %1534 = vdwg.mxu0
        %1535 = vmatpush.bf16.msra.mxu0 %v1123
        %1536 = vmatpush.bf16.msra.mxu0 %v1117
        %1537 = vmatpush.bf16.msra.mxu0 %v1111
        %1538 = vmatpush.bf16.msra.mxu0 %v1105
        %1539 = vmatpush.bf16.msra.mxu0 %v1099
        %1540 = vmatpush.bf16.msra.mxu0 %v1093
        %1541 = vmatpush.bf16.msra.mxu0 %v1087
        %1542 = vmatpush.bf16.msra.mxu0 %v1081
        %1543 = vmatmul.bf16.gmra.mxu0 %v539
        %v1544 = vpop.f32.mrf.mxu0
        %v1545 = vadd.f32 %v1526, %v1544
        %v1546 = vpop.f32.mrf.mxu0
        %v1547 = vadd.f32 %v1528, %v1546
        %1548 = vmatmul.bf16.gmra.mxu0 %v542
        %v1549 = vpop.f32.mrf.mxu0
        %v1550 = vadd.f32 %v1531, %v1549
        %v1551 = vpop.f32.mrf.mxu0
        %v1552 = vadd.f32 %v1533, %v1551
        %1553 = vdwg.mxu0
        %1554 = vmatpush.bf16.msra.mxu0 %v1028
        %1555 = vmatpush.bf16.msra.mxu0 %v1022
        %1556 = vmatpush.bf16.msra.mxu0 %v1016
        %1557 = vmatpush.bf16.msra.mxu0 %v1010
        %1558 = vmatpush.bf16.msra.mxu0 %v1004
        %1559 = vmatpush.bf16.msra.mxu0 %v998
        %1560 = vmatpush.bf16.msra.mxu0 %v992
        %1561 = vmatpush.bf16.msra.mxu0 %v986
        %1562 = vmatmul.bf16.gmra.mxu0 %v537
        %v1563 = vpop.f32.mrf.mxu0
        %v1564 = vadd.f32 %v510, %v1563
        %v1565 = vpop.f32.mrf.mxu0
        %v1566 = vadd.f32 %v510, %v1565
        %1567 = vmatmul.bf16.gmra.mxu0 %v540
        %v1568 = vpop.f32.mrf.mxu0
        %v1569 = vadd.f32 %v510, %v1568
        %v1570 = vpop.f32.mrf.mxu0
        %v1571 = vadd.f32 %v510, %v1570
        %1572 = vdwg.mxu0
        %1573 = vmatpush.bf16.msra.mxu0 %v1076
        %1574 = vmatpush.bf16.msra.mxu0 %v1070
        %1575 = vmatpush.bf16.msra.mxu0 %v1064
        %1576 = vmatpush.bf16.msra.mxu0 %v1058
        %1577 = vmatpush.bf16.msra.mxu0 %v1052
        %1578 = vmatpush.bf16.msra.mxu0 %v1046
        %1579 = vmatpush.bf16.msra.mxu0 %v1040
        %1580 = vmatpush.bf16.msra.mxu0 %v1034
        %1581 = vmatmul.bf16.gmra.mxu0 %v538
        %v1582 = vpop.f32.mrf.mxu0
        %v1583 = vadd.f32 %v1564, %v1582
        %v1584 = vpop.f32.mrf.mxu0
        %v1585 = vadd.f32 %v1566, %v1584
        %1586 = vmatmul.bf16.gmra.mxu0 %v541
        %v1587 = vpop.f32.mrf.mxu0
        %v1588 = vadd.f32 %v1569, %v1587
        %v1589 = vpop.f32.mrf.mxu0
        %v1590 = vadd.f32 %v1571, %v1589
        %1591 = vdwg.mxu0
        %1592 = vmatpush.bf16.msra.mxu0 %v1124
        %1593 = vmatpush.bf16.msra.mxu0 %v1118
        %1594 = vmatpush.bf16.msra.mxu0 %v1112
        %1595 = vmatpush.bf16.msra.mxu0 %v1106
        %1596 = vmatpush.bf16.msra.mxu0 %v1100
        %1597 = vmatpush.bf16.msra.mxu0 %v1094
        %1598 = vmatpush.bf16.msra.mxu0 %v1088
        %1599 = vmatpush.bf16.msra.mxu0 %v1082
        %1600 = vmatmul.bf16.gmra.mxu0 %v539
        %v1601 = vpop.f32.mrf.mxu0
        %v1602 = vadd.f32 %v1583, %v1601
        %v1603 = vpop.f32.mrf.mxu0
        %v1604 = vadd.f32 %v1585, %v1603
        %1605 = vmatmul.bf16.gmra.mxu0 %v542
        %v1606 = vpop.f32.mrf.mxu0
        %v1607 = vadd.f32 %v1588, %v1606
        %v1608 = vpop.f32.mrf.mxu0
        %v1609 = vadd.f32 %v1590, %v1608
        %1610 = vdwg.mxu0
        %v1611 = vmax.f32 %v1317, 0.0
        %v1612 = vmax.f32 %v1374, 0.0
        %v1613 = vmax.f32 %v1431, 0.0
        %v1614 = vmax.f32 %v1488, 0.0
        %v1615 = vmax.f32 %v1545, 0.0
        %v1616 = vmax.f32 %v1602, 0.0
        %v1617 = vmax.f32 %v1319, 0.0
        %v1618 = vmax.f32 %v1376, 0.0
        %v1619 = vmax.f32 %v1433, 0.0
        %v1620 = vmax.f32 %v1490, 0.0
        %v1621 = vmax.f32 %v1547, 0.0
        %v1622 = vmax.f32 %v1604, 0.0
        %v1623 = vmax.f32 %v1322, 0.0
        %v1624 = vmax.f32 %v1379, 0.0
        %v1625 = vmax.f32 %v1436, 0.0
        %v1626 = vmax.f32 %v1493, 0.0
        %v1627 = vmax.f32 %v1550, 0.0
        %v1628 = vmax.f32 %v1607, 0.0
        %v1629 = vmax.f32 %v1324, 0.0
        %v1630 = vmax.f32 %v1381, 0.0
        %v1631 = vmax.f32 %v1438, 0.0
        %v1632 = vmax.f32 %v1495, 0.0
        %v1633 = vmax.f32 %v1552, 0.0
        %v1634 = vmax.f32 %v1609, 0.0
        %v1635 = vpack.c.bf16 %v1617, %v1611
        %v1636 = vpack.c.bf16 %v1618, %v1612
        %v1637 = vpack.c.bf16 %v1619, %v1613
        %v1638 = vpack.c.bf16 %v1629, %v1623
        %v1639 = vpack.c.bf16 %v1630, %v1624
        %v1640 = vpack.c.bf16 %v1631, %v1625
        %v1641 = vld [vmem:[#allocation4] sm:$0xff]
        %v1642 = vld [vmem:[#allocation4 + $0x8] sm:$0xf]
        %v1643 = vld [vmem:[#allocation4 + $0xc] sm:$0xff]
        %v1644 = vld [vmem:[#allocation4 + $0x14] sm:$0xf]
        %v1645 = vld [vmem:[#allocation4 + $0x18] sm:$0xff]
        %v1646 = vld [vmem:[#allocation4 + $0x20] sm:$0xf]
        %v1647 = vld [vmem:[#allocation4 + $0x24] sm:$0xff]
        %v1648 = vld [vmem:[#allocation4 + $0x2c] sm:$0xf]
        %v1649 = vld [vmem:[#allocation4 + $0x30] sm:$0xff]
        %v1650 = vld [vmem:[#allocation4 + $0x38] sm:$0xf]
        %v1651 = vld [vmem:[#allocation4 + $0x3c] sm:$0xff]
        %v1652 = vld [vmem:[#allocation4 + $0x44] sm:$0xf]
        %v1653 = vld [vmem:[#allocation4 + $0x48] sm:$0xff]
        %v1654 = vld [vmem:[#allocation4 + $0x50] sm:$0xf]
        %v1655 = vld [vmem:[#allocation4 + $0x54] sm:$0xff]
        %v1656 = vld [vmem:[#allocation4 + $0x5c] sm:$0xf]
        %v1657 = vld [vmem:[#allocation4 + $0x60] sm:$0xff]
        %v1658 = vld [vmem:[#allocation4 + $0x68] sm:$0xf]
        %v1659 = vld [vmem:[#allocation4 + $0x6c] sm:$0xff]
        %v1660 = vld [vmem:[#allocation4 + $0x74] sm:$0xf]
        %v1661 = vld [vmem:[#allocation4 + $0x78] sm:$0xff]
        %v1662 = vld [vmem:[#allocation4 + $0x80] sm:$0xf]
        %v1663 = vld [vmem:[#allocation4 + $0x84] sm:$0xff]
        %v1664 = vld [vmem:[#allocation4 + $0x8c] sm:$0xf]
        %v1665 = vld [vmem:[#allocation4 + $0x90] sm:$0xff]
        %v1666 = vld [vmem:[#allocation4 + $0x98] sm:$0xf]
        %v1667 = vld [vmem:[#allocation4 + $0x9c] sm:$0xff]
        %v1668 = vld [vmem:[#allocation4 + $0xa4] sm:$0xf]
        %v1669 = vld [vmem:[#allocation4 + $0xa8] sm:$0xff]
        %v1670 = vld [vmem:[#allocation4 + $0xb0] sm:$0xf]
        %v1671 = vld [vmem:[#allocation4 + $0xb4] sm:$0xff]
        %v1672 = vld [vmem:[#allocation4 + $0xbc] sm:$0xf]
        %v1673 = vld [vmem:[#allocation4 + $0xc0] sm:$0xff]
        %v1674 = vld [vmem:[#allocation4 + $0xc8] sm:$0xf]
        %v1675 = vld [vmem:[#allocation4 + $0xcc] sm:$0xff]
        %v1676 = vld [vmem:[#allocation4 + $0xd4] sm:$0xf]
        %v1677 = vld [vmem:[#allocation4 + $0xd8] sm:$0xff]
        %v1678 = vld [vmem:[#allocation4 + $0xe0] sm:$0xf]
        %v1679 = vld [vmem:[#allocation4 + $0xe4] sm:$0xff]
        %v1680 = vld [vmem:[#allocation4 + $0xec] sm:$0xf]
        %v1681 = vld [vmem:[#allocation4 + $0xf0] sm:$0xff]
        %v1682 = vld [vmem:[#allocation4 + $0xf8] sm:$0xf]
        %v1683 = vld [vmem:[#allocation4 + $0xfc] sm:$0xff]
        %v1684 = vld [vmem:[#allocation4 + $0x104] sm:$0xf]
        %v1685 = vld [vmem:[#allocation4 + $0x108] sm:$0xff]
        %v1686 = vld [vmem:[#allocation4 + $0x110] sm:$0xf]
        %v1687 = vld [vmem:[#allocation4 + $0x114] sm:$0xff]
        %v1688 = vld [vmem:[#allocation4 + $0x11c] sm:$0xf]
        %v1689 = vld [vmem:[#allocation4 + $0x120] sm:$0xff]
        %v1690 = vld [vmem:[#allocation4 + $0x128] sm:$0xf]
        %v1691 = vld [vmem:[#allocation4 + $0x12c] sm:$0xff]
        %v1692 = vld [vmem:[#allocation4 + $0x134] sm:$0xf]
        %v1693 = vld [vmem:[#allocation4 + $0x138] sm:$0xff]
        %v1694 = vld [vmem:[#allocation4 + $0x140] sm:$0xf]
        %v1695 = vld [vmem:[#allocation4 + $0x144] sm:$0xff]
        %v1696 = vld [vmem:[#allocation4 + $0x14c] sm:$0xf]
        %v1697 = vld [vmem:[#allocation4 + $0x150] sm:$0xff]
        %v1698 = vld [vmem:[#allocation4 + $0x158] sm:$0xf]
        %v1699 = vld [vmem:[#allocation4 + $0x15c] sm:$0xff]
        %v1700 = vld [vmem:[#allocation4 + $0x164] sm:$0xf]
        %v1701 = vld [vmem:[#allocation4 + $0x168] sm:$0xff]
        %v1702 = vld [vmem:[#allocation4 + $0x170] sm:$0xf]
        %v1703 = vld [vmem:[#allocation4 + $0x174] sm:$0xff]
        %v1704 = vld [vmem:[#allocation4 + $0x17c] sm:$0xf]
        %v1705 = vld [vmem:[#allocation4 + $0x180] sm:$0xff]
        %v1706 = vld [vmem:[#allocation4 + $0x188] sm:$0xf]
        %v1707 = vld [vmem:[#allocation4 + $0x18c] sm:$0xff]
        %v1708 = vld [vmem:[#allocation4 + $0x194] sm:$0xf]
        %v1709 = vld [vmem:[#allocation4 + $0x198] sm:$0xff]
        %v1710 = vld [vmem:[#allocation4 + $0x1a0] sm:$0xf]
        %v1711 = vld [vmem:[#allocation4 + $0x1a4] sm:$0xff]
        %v1712 = vld [vmem:[#allocation4 + $0x1ac] sm:$0xf]
        %v1713 = vld [vmem:[#allocation4 + $0x1b0] sm:$0xff]
        %v1714 = vld [vmem:[#allocation4 + $0x1b8] sm:$0xf]
        %v1715 = vld [vmem:[#allocation4 + $0x1bc] sm:$0xff]
        %v1716 = vld [vmem:[#allocation4 + $0x1c4] sm:$0xf]
        %v1717 = vld [vmem:[#allocation4 + $0x1c8] sm:$0xff]
        %v1718 = vld [vmem:[#allocation4 + $0x1d0] sm:$0xf]
        %v1719 = vld [vmem:[#allocation4 + $0x1d4] sm:$0xff]
        %v1720 = vld [vmem:[#allocation4 + $0x1dc] sm:$0xf]
        %v1721 = vld [vmem:[#allocation4 + $0x1e0] sm:$0xff]
        %v1722 = vld [vmem:[#allocation4 + $0x1e8] sm:$0xf]
        %v1723 = vld [vmem:[#allocation4 + $0x1ec] sm:$0xff]
        %v1724 = vld [vmem:[#allocation4 + $0x1f4] sm:$0xf]
        %v1725 = vld [vmem:[#allocation4 + $0x1f8] sm:$0xff]
        %v1726 = vld [vmem:[#allocation4 + $0x200] sm:$0xf]
        %v1727 = vld [vmem:[#allocation4 + $0x204] sm:$0xff]
        %v1728 = vld [vmem:[#allocation4 + $0x20c] sm:$0xf]
        %v1729 = vld [vmem:[#allocation4 + $0x210] sm:$0xff]
        %v1730 = vld [vmem:[#allocation4 + $0x218] sm:$0xf]
        %v1731 = vld [vmem:[#allocation4 + $0x21c] sm:$0xff]
        %v1732 = vld [vmem:[#allocation4 + $0x224] sm:$0xf]
        %v1733 = vld [vmem:[#allocation4 + $0x228] sm:$0xff]
        %v1734 = vld [vmem:[#allocation4 + $0x230] sm:$0xf]
        %v1735 = vld [vmem:[#allocation4 + $0x234] sm:$0xff]
        %v1736 = vld [vmem:[#allocation4 + $0x23c] sm:$0xf]
        %v1833 = vunpack.c.l.b16 %v1641
        %v1834 = vunpack.c.h.b16 %v1641
        %v1835 = vunpack.c.l.b16 %v1642
        %v1836 = vunpack.c.l.b16 %v1643
        %v1837 = vunpack.c.h.b16 %v1643
        %v1838 = vunpack.c.l.b16 %v1644
        %v1839 = vunpack.c.l.b16 %v1645
        %v1840 = vunpack.c.h.b16 %v1645
        %v1841 = vunpack.c.l.b16 %v1646
        %v1842 = vunpack.c.l.b16 %v1647
        %v1843 = vunpack.c.h.b16 %v1647
        %v1844 = vunpack.c.l.b16 %v1648
        %v1845 = vunpack.c.l.b16 %v1649
        %v1846 = vunpack.c.h.b16 %v1649
        %v1847 = vunpack.c.l.b16 %v1650
        %v1848 = vunpack.c.l.b16 %v1651
        %v1849 = vunpack.c.h.b16 %v1651
        %v1850 = vunpack.c.l.b16 %v1652
        %v1851 = vunpack.c.l.b16 %v1653
        %v1852 = vunpack.c.h.b16 %v1653
        %v1853 = vunpack.c.l.b16 %v1654
        %v1854 = vunpack.c.l.b16 %v1655
        %v1855 = vunpack.c.h.b16 %v1655
        %v1856 = vunpack.c.l.b16 %v1656
        %v1857 = vunpack.c.l.b16 %v1657
        %v1858 = vunpack.c.h.b16 %v1657
        %v1859 = vunpack.c.l.b16 %v1658
        %v1860 = vunpack.c.l.b16 %v1659
        %v1861 = vunpack.c.h.b16 %v1659
        %v1862 = vunpack.c.l.b16 %v1660
        %v1863 = vunpack.c.l.b16 %v1661
        %v1864 = vunpack.c.h.b16 %v1661
        %v1865 = vunpack.c.l.b16 %v1662
        %v1866 = vunpack.c.l.b16 %v1663
        %v1867 = vunpack.c.h.b16 %v1663
        %v1868 = vunpack.c.l.b16 %v1664
        %v1869 = vunpack.c.l.b16 %v1665
        %v1870 = vunpack.c.h.b16 %v1665
        %v1871 = vunpack.c.l.b16 %v1666
        %v1872 = vunpack.c.l.b16 %v1667
        %v1873 = vunpack.c.h.b16 %v1667
        %v1874 = vunpack.c.l.b16 %v1668
        %v1875 = vunpack.c.l.b16 %v1669
        %v1876 = vunpack.c.h.b16 %v1669
        %v1877 = vunpack.c.l.b16 %v1670
        %v1878 = vunpack.c.l.b16 %v1671
        %v1879 = vunpack.c.h.b16 %v1671
        %v1880 = vunpack.c.l.b16 %v1672
        %v1881 = vunpack.c.l.b16 %v1673
        %v1882 = vunpack.c.h.b16 %v1673
        %v1883 = vunpack.c.l.b16 %v1674
        %v1884 = vunpack.c.l.b16 %v1675
        %v1885 = vunpack.c.h.b16 %v1675
        %v1886 = vunpack.c.l.b16 %v1676
        %v1887 = vunpack.c.l.b16 %v1677
        %v1888 = vunpack.c.h.b16 %v1677
        %v1889 = vunpack.c.l.b16 %v1678
        %v1890 = vunpack.c.l.b16 %v1679
        %v1891 = vunpack.c.h.b16 %v1679
        %v1892 = vunpack.c.l.b16 %v1680
        %v1893 = vunpack.c.l.b16 %v1681
        %v1894 = vunpack.c.h.b16 %v1681
        %v1895 = vunpack.c.l.b16 %v1682
        %v1896 = vunpack.c.l.b16 %v1683
        %v1897 = vunpack.c.h.b16 %v1683
        %v1898 = vunpack.c.l.b16 %v1684
        %v1899 = vunpack.c.l.b16 %v1685
        %v1900 = vunpack.c.h.b16 %v1685
        %v1901 = vunpack.c.l.b16 %v1686
        %v1902 = vunpack.c.l.b16 %v1687
        %v1903 = vunpack.c.h.b16 %v1687
        %v1904 = vunpack.c.l.b16 %v1688
        %v1905 = vunpack.c.l.b16 %v1689
        %v1906 = vunpack.c.h.b16 %v1689
        %v1907 = vunpack.c.l.b16 %v1690
        %v1908 = vunpack.c.l.b16 %v1691
        %v1909 = vunpack.c.h.b16 %v1691
        %v1910 = vunpack.c.l.b16 %v1692
        %v1911 = vunpack.c.l.b16 %v1693
        %v1912 = vunpack.c.h.b16 %v1693
        %v1913 = vunpack.c.l.b16 %v1694
        %v1914 = vunpack.c.l.b16 %v1695
        %v1915 = vunpack.c.h.b16 %v1695
        %v1916 = vunpack.c.l.b16 %v1696
        %v1917 = vunpack.c.l.b16 %v1697
        %v1918 = vunpack.c.h.b16 %v1697
        %v1919 = vunpack.c.l.b16 %v1698
        %v1920 = vunpack.c.l.b16 %v1699
        %v1921 = vunpack.c.h.b16 %v1699
        %v1922 = vunpack.c.l.b16 %v1700
        %v1923 = vunpack.c.l.b16 %v1701
        %v1924 = vunpack.c.h.b16 %v1701
        %v1925 = vunpack.c.l.b16 %v1702
        %v1926 = vunpack.c.l.b16 %v1703
        %v1927 = vunpack.c.h.b16 %v1703
        %v1928 = vunpack.c.l.b16 %v1704
        %v1929 = vunpack.c.l.b16 %v1705
        %v1930 = vunpack.c.h.b16 %v1705
        %v1931 = vunpack.c.l.b16 %v1706
        %v1932 = vunpack.c.l.b16 %v1707
        %v1933 = vunpack.c.h.b16 %v1707
        %v1934 = vunpack.c.l.b16 %v1708
        %v1935 = vunpack.c.l.b16 %v1709
        %v1936 = vunpack.c.h.b16 %v1709
        %v1937 = vunpack.c.l.b16 %v1710
        %v1938 = vunpack.c.l.b16 %v1711
        %v1939 = vunpack.c.h.b16 %v1711
        %v1940 = vunpack.c.l.b16 %v1712
        %v1941 = vunpack.c.l.b16 %v1713
        %v1942 = vunpack.c.h.b16 %v1713
        %v1943 = vunpack.c.l.b16 %v1714
        %v1944 = vunpack.c.l.b16 %v1715
        %v1945 = vunpack.c.h.b16 %v1715
        %v1946 = vunpack.c.l.b16 %v1716
        %v1947 = vunpack.c.l.b16 %v1717
        %v1948 = vunpack.c.h.b16 %v1717
        %v1949 = vunpack.c.l.b16 %v1718
        %v1950 = vunpack.c.l.b16 %v1719
        %v1951 = vunpack.c.h.b16 %v1719
        %v1952 = vunpack.c.l.b16 %v1720
        %v1953 = vunpack.c.l.b16 %v1721
        %v1954 = vunpack.c.h.b16 %v1721
        %v1955 = vunpack.c.l.b16 %v1722
        %v1956 = vunpack.c.l.b16 %v1723
        %v1957 = vunpack.c.h.b16 %v1723
        %v1958 = vunpack.c.l.b16 %v1724
        %v1959 = vunpack.c.l.b16 %v1725
        %v1960 = vunpack.c.h.b16 %v1725
        %v1961 = vunpack.c.l.b16 %v1726
        %v1962 = vunpack.c.l.b16 %v1727
        %v1963 = vunpack.c.h.b16 %v1727
        %v1964 = vunpack.c.l.b16 %v1728
        %v1965 = vunpack.c.l.b16 %v1729
        %v1966 = vunpack.c.h.b16 %v1729
        %v1967 = vunpack.c.l.b16 %v1730
        %v1968 = vunpack.c.l.b16 %v1731
        %v1969 = vunpack.c.h.b16 %v1731
        %v1970 = vunpack.c.l.b16 %v1732
        %v1971 = vunpack.c.l.b16 %v1733
        %v1972 = vunpack.c.h.b16 %v1733
        %v1973 = vunpack.c.l.b16 %v1734
        %v1974 = vunpack.c.l.b16 %v1735
        %v1975 = vunpack.c.h.b16 %v1735
        %v1976 = vunpack.c.l.b16 %v1736
        %v1977 = vpack.c.b16 %v1836, %v1833
        %v1978 = vpack.c.b16 %v1837, %v1834
        %v1979 = vpack.c.b16 %v1838, %v1835
        %v1980 = vpack.c.b16 %v1842, %v1839
        %v1981 = vpack.c.b16 %v1843, %v1840
        %v1982 = vpack.c.b16 %v1844, %v1841
        %v1983 = vpack.c.b16 %v1848, %v1845
        %v1984 = vpack.c.b16 %v1849, %v1846
        %v1985 = vpack.c.b16 %v1850, %v1847
        %v1986 = vpack.c.b16 %v1854, %v1851
        %v1987 = vpack.c.b16 %v1855, %v1852
        %v1988 = vpack.c.b16 %v1856, %v1853
        %v1989 = vpack.c.b16 %v1860, %v1857
        %v1990 = vpack.c.b16 %v1861, %v1858
        %v1991 = vpack.c.b16 %v1862, %v1859
        %v1992 = vpack.c.b16 %v1866, %v1863
        %v1993 = vpack.c.b16 %v1867, %v1864
        %v1994 = vpack.c.b16 %v1868, %v1865
        %v1995 = vpack.c.b16 %v1872, %v1869
        %v1996 = vpack.c.b16 %v1873, %v1870
        %v1997 = vpack.c.b16 %v1874, %v1871
        %v1998 = vpack.c.b16 %v1878, %v1875
        %v1999 = vpack.c.b16 %v1879, %v1876
        %v2000 = vpack.c.b16 %v1880, %v1877
        %v2001 = vpack.c.b16 %v1884, %v1881
        %v2002 = vpack.c.b16 %v1885, %v1882
        %v2003 = vpack.c.b16 %v1886, %v1883
        %v2004 = vpack.c.b16 %v1890, %v1887
        %v2005 = vpack.c.b16 %v1891, %v1888
        %v2006 = vpack.c.b16 %v1892, %v1889
        %v2007 = vpack.c.b16 %v1896, %v1893
        %v2008 = vpack.c.b16 %v1897, %v1894
        %v2009 = vpack.c.b16 %v1898, %v1895
        %v2010 = vpack.c.b16 %v1902, %v1899
        %v2011 = vpack.c.b16 %v1903, %v1900
        %v2012 = vpack.c.b16 %v1904, %v1901
        %v2013 = vpack.c.b16 %v1908, %v1905
        %v2014 = vpack.c.b16 %v1909, %v1906
        %v2015 = vpack.c.b16 %v1910, %v1907
        %v2016 = vpack.c.b16 %v1914, %v1911
        %v2017 = vpack.c.b16 %v1915, %v1912
        %v2018 = vpack.c.b16 %v1916, %v1913
        %v2019 = vpack.c.b16 %v1920, %v1917
        %v2020 = vpack.c.b16 %v1921, %v1918
        %v2021 = vpack.c.b16 %v1922, %v1919
        %v2022 = vpack.c.b16 %v1926, %v1923
        %v2023 = vpack.c.b16 %v1927, %v1924
        %v2024 = vpack.c.b16 %v1928, %v1925
        %v2025 = vpack.c.b16 %v1932, %v1929
        %v2026 = vpack.c.b16 %v1933, %v1930
        %v2027 = vpack.c.b16 %v1934, %v1931
        %v2028 = vpack.c.b16 %v1938, %v1935
        %v2029 = vpack.c.b16 %v1939, %v1936
        %v2030 = vpack.c.b16 %v1940, %v1937
        %v2031 = vpack.c.b16 %v1944, %v1941
        %v2032 = vpack.c.b16 %v1945, %v1942
        %v2033 = vpack.c.b16 %v1946, %v1943
        %v2034 = vpack.c.b16 %v1950, %v1947
        %v2035 = vpack.c.b16 %v1951, %v1948
        %v2036 = vpack.c.b16 %v1952, %v1949
        %v2037 = vpack.c.b16 %v1956, %v1953
        %v2038 = vpack.c.b16 %v1957, %v1954
        %v2039 = vpack.c.b16 %v1958, %v1955
        %v2040 = vpack.c.b16 %v1962, %v1959
        %v2041 = vpack.c.b16 %v1963, %v1960
        %v2042 = vpack.c.b16 %v1964, %v1961
        %v2043 = vpack.c.b16 %v1968, %v1965
        %v2044 = vpack.c.b16 %v1969, %v1966
        %v2045 = vpack.c.b16 %v1970, %v1967
        %v2046 = vpack.c.b16 %v1974, %v1971
        %v2047 = vpack.c.b16 %v1975, %v1972
        %v2048 = vpack.c.b16 %v1976, %v1973
        %2121 = vmatpush.bf16.msra.mxu0 %v1998
        %2122 = vmatpush.bf16.msra.mxu0 %v1995
        %2123 = vmatpush.bf16.msra.mxu0 %v1992
        %2124 = vmatpush.bf16.msra.mxu0 %v1989
        %2125 = vmatpush.bf16.msra.mxu0 %v1986
        %2126 = vmatpush.bf16.msra.mxu0 %v1983
        %2127 = vmatpush.bf16.msra.mxu0 %v1980
        %2128 = vmatpush.bf16.msra.mxu0 %v1977
        %2129 = vmatmul.bf16.gmra.mxu0 %v1635
        %v2130 = vpop.f32.mrf.mxu0
        %v2131 = vadd.f32 0.0, %v2130
        %v2132 = vpop.f32.mrf.mxu0
        %v2133 = vadd.f32 0.0, %v2132
        %2134 = vmatmul.bf16.gmra.mxu0 %v1638
        %v2135 = vpop.f32.mrf.mxu0
        %v2136 = vadd.f32 0.0, %v2135
        %v2137 = vpop.f32.mrf.mxu0
        %v2138 = vadd.f32 0.0, %v2137
        %2139 = vdwg.mxu0
        %2140 = vmatpush.bf16.msra.mxu0 %v2022
        %2141 = vmatpush.bf16.msra.mxu0 %v2019
        %2142 = vmatpush.bf16.msra.mxu0 %v2016
        %2143 = vmatpush.bf16.msra.mxu0 %v2013
        %2144 = vmatpush.bf16.msra.mxu0 %v2010
        %2145 = vmatpush.bf16.msra.mxu0 %v2007
        %2146 = vmatpush.bf16.msra.mxu0 %v2004
        %2147 = vmatpush.bf16.msra.mxu0 %v2001
        %2148 = vmatmul.bf16.gmra.mxu0 %v1636
        %v2149 = vpop.f32.mrf.mxu0
        %v2150 = vadd.f32 %v2131, %v2149
        %v2151 = vpop.f32.mrf.mxu0
        %v2152 = vadd.f32 %v2133, %v2151
        %2153 = vmatmul.bf16.gmra.mxu0 %v1639
        %v2154 = vpop.f32.mrf.mxu0
        %v2155 = vadd.f32 %v2136, %v2154
        %v2156 = vpop.f32.mrf.mxu0
        %v2157 = vadd.f32 %v2138, %v2156
        %2158 = vdwg.mxu0
        %2159 = vmatpush.bf16.msra.mxu0 %v2046
        %2160 = vmatpush.bf16.msra.mxu0 %v2043
        %2161 = vmatpush.bf16.msra.mxu0 %v2040
        %2162 = vmatpush.bf16.msra.mxu0 %v2037
        %2163 = vmatpush.bf16.msra.mxu0 %v2034
        %2164 = vmatpush.bf16.msra.mxu0 %v2031
        %2165 = vmatpush.bf16.msra.mxu0 %v2028
        %2166 = vmatpush.bf16.msra.mxu0 %v2025
        %2167 = vmatmul.bf16.gmra.mxu0 %v1637
        %v2168 = vpop.f32.mrf.mxu0
        %v2169 = vadd.f32 %v2150, %v2168
        %v2170 = vpop.f32.mrf.mxu0
        %v2171 = vadd.f32 %v2152, %v2170
        %2172 = vmatmul.bf16.gmra.mxu0 %v1640
        %v2173 = vpop.f32.mrf.mxu0
        %v2174 = vadd.f32 %v2155, %v2173
        %v2175 = vpop.f32.mrf.mxu0
        %v2176 = vadd.f32 %v2157, %v2175
        %2177 = vdwg.mxu0
        %2178 = vmatpush.bf16.msra.mxu0 %v1999
        %2179 = vmatpush.bf16.msra.mxu0 %v1996
        %2180 = vmatpush.bf16.msra.mxu0 %v1993
        %2181 = vmatpush.bf16.msra.mxu0 %v1990
        %2182 = vmatpush.bf16.msra.mxu0 %v1987
        %2183 = vmatpush.bf16.msra.mxu0 %v1984
        %2184 = vmatpush.bf16.msra.mxu0 %v1981
        %2185 = vmatpush.bf16.msra.mxu0 %v1978
        %2186 = vmatmul.bf16.gmra.mxu0 %v1635
        %v2187 = vpop.f32.mrf.mxu0
        %v2188 = vadd.f32 0.0, %v2187
        %v2189 = vpop.f32.mrf.mxu0
        %v2190 = vadd.f32 0.0, %v2189
        %2191 = vmatmul.bf16.gmra.mxu0 %v1638
        %v2192 = vpop.f32.mrf.mxu0
        %v2193 = vadd.f32 0.0, %v2192
        %v2194 = vpop.f32.mrf.mxu0
        %v2195 = vadd.f32 0.0, %v2194
        %2196 = vdwg.mxu0
        %2197 = vmatpush.bf16.msra.mxu0 %v2023
        %2198 = vmatpush.bf16.msra.mxu0 %v2020
        %2199 = vmatpush.bf16.msra.mxu0 %v2017
        %2200 = vmatpush.bf16.msra.mxu0 %v2014
        %2201 = vmatpush.bf16.msra.mxu0 %v2011
        %2202 = vmatpush.bf16.msra.mxu0 %v2008
        %2203 = vmatpush.bf16.msra.mxu0 %v2005
        %2204 = vmatpush.bf16.msra.mxu0 %v2002
        %2205 = vmatmul.bf16.gmra.mxu0 %v1636
        %v2206 = vpop.f32.mrf.mxu0
        %v2207 = vadd.f32 %v2188, %v2206
        %v2208 = vpop.f32.mrf.mxu0
        %v2209 = vadd.f32 %v2190, %v2208
        %2210 = vmatmul.bf16.gmra.mxu0 %v1639
        %v2211 = vpop.f32.mrf.mxu0
        %v2212 = vadd.f32 %v2193, %v2211
        %v2213 = vpop.f32.mrf.mxu0
        %v2214 = vadd.f32 %v2195, %v2213
        %2215 = vdwg.mxu0
        %2216 = vmatpush.bf16.msra.mxu0 %v2047
        %2217 = vmatpush.bf16.msra.mxu0 %v2044
        %2218 = vmatpush.bf16.msra.mxu0 %v2041
        %2219 = vmatpush.bf16.msra.mxu0 %v2038
        %2220 = vmatpush.bf16.msra.mxu0 %v2035
        %2221 = vmatpush.bf16.msra.mxu0 %v2032
        %2222 = vmatpush.bf16.msra.mxu0 %v2029
        %2223 = vmatpush.bf16.msra.mxu0 %v2026
        %2224 = vmatmul.bf16.gmra.mxu0 %v1637
        %v2225 = vpop.f32.mrf.mxu0
        %v2226 = vadd.f32 %v2207, %v2225
        %v2227 = vpop.f32.mrf.mxu0
        %v2228 = vadd.f32 %v2209, %v2227
        %2229 = vmatmul.bf16.gmra.mxu0 %v1640
        %v2230 = vpop.f32.mrf.mxu0
        %v2231 = vadd.f32 %v2212, %v2230
        %v2232 = vpop.f32.mrf.mxu0
        %v2233 = vadd.f32 %v2214, %v2232
        %2234 = vdwg.mxu0
        %2235 = vmatpush.bf16.msra.mxu0 %v2000
        %2236 = vmatpush.bf16.msra.mxu0 %v1997
        %2237 = vmatpush.bf16.msra.mxu0 %v1994
        %2238 = vmatpush.bf16.msra.mxu0 %v1991
        %2239 = vmatpush.bf16.msra.mxu0 %v1988
        %2240 = vmatpush.bf16.msra.mxu0 %v1985
        %2241 = vmatpush.bf16.msra.mxu0 %v1982
        %2242 = vmatpush.bf16.msra.mxu0 %v1979
        %2243 = vmatmul.bf16.gmra.mxu0 %v1635
        %v2244 = vpop.f32.mrf.mxu0
        %v2245 = vadd.f32 0.0, %v2244
        %v2246 = vpop.f32.mrf.mxu0
        %v2247 = vadd.f32 0.0, %v2246
        %2248 = vmatmul.bf16.gmra.mxu0 %v1638
        %v2249 = vpop.f32.mrf.mxu0
        %v2250 = vadd.f32 0.0, %v2249
        %v2251 = vpop.f32.mrf.mxu0
        %v2252 = vadd.f32 0.0, %v2251
        %2253 = vdwg.mxu0
        %2254 = vmatpush.bf16.msra.mxu0 %v2024
        %2255 = vmatpush.bf16.msra.mxu0 %v2021
        %2256 = vmatpush.bf16.msra.mxu0 %v2018
        %2257 = vmatpush.bf16.msra.mxu0 %v2015
        %2258 = vmatpush.bf16.msra.mxu0 %v2012
        %2259 = vmatpush.bf16.msra.mxu0 %v2009
        %2260 = vmatpush.bf16.msra.mxu0 %v2006
        %2261 = vmatpush.bf16.msra.mxu0 %v2003
        %2262 = vmatmul.bf16.gmra.mxu0 %v1636
        %v2263 = vpop.f32.mrf.mxu0
        %v2264 = vadd.f32 %v2245, %v2263
        %v2265 = vpop.f32.mrf.mxu0
        %v2266 = vadd.f32 %v2247, %v2265
        %2267 = vmatmul.bf16.gmra.mxu0 %v1639
        %v2268 = vpop.f32.mrf.mxu0
        %v2269 = vadd.f32 %v2250, %v2268
        %v2270 = vpop.f32.mrf.mxu0
        %v2271 = vadd.f32 %v2252, %v2270
        %2272 = vdwg.mxu0
        %2273 = vmatpush.bf16.msra.mxu0 %v2048
        %2274 = vmatpush.bf16.msra.mxu0 %v2045
        %2275 = vmatpush.bf16.msra.mxu0 %v2042
        %2276 = vmatpush.bf16.msra.mxu0 %v2039
        %2277 = vmatpush.bf16.msra.mxu0 %v2036
        %2278 = vmatpush.bf16.msra.mxu0 %v2033
        %2279 = vmatpush.bf16.msra.mxu0 %v2030
        %2280 = vmatpush.bf16.msra.mxu0 %v2027
        %2281 = vmatmul.bf16.gmra.mxu0 %v1637
        %v2282 = vpop.f32.mrf.mxu0
        %v2283 = vadd.f32 %v2264, %v2282
        %v2284 = vpop.f32.mrf.mxu0
        %v2285 = vadd.f32 %v2266, %v2284
        %2286 = vmatmul.bf16.gmra.mxu0 %v1640
        %v2287 = vpop.f32.mrf.mxu0
        %v2288 = vadd.f32 %v2269, %v2287
        %v2289 = vpop.f32.mrf.mxu0
        %v2290 = vadd.f32 %v2271, %v2289
        %2291 = vdwg.mxu0
        %v2292 = vld [vmem:[%s4] sm:$0x7]
        %v2294 = vperm.slane %v2292, 0
        %v2295 = vperm.slane %v2292, 1
        %v2296 = vperm.slane %v2292, 2
        %v2300 = vmul.f32 %v1611, %v2294
        %v2301 = vmul.f32 %v1612, %v2295
        %v2302 = vmul.f32 %v1613, %v2296
        %v2303 = vmul.f32 %v1617, %v2294
        %v2304 = vmul.f32 %v1618, %v2295
        %v2305 = vmul.f32 %v1619, %v2296
        %v2306 = vmul.f32 %v1623, %v2294
        %v2307 = vmul.f32 %v1624, %v2295
        %v2308 = vmul.f32 %v1625, %v2296
        %v2309 = vmul.f32 %v1629, %v2294
        %v2310 = vmul.f32 %v1630, %v2295
        %v2311 = vmul.f32 %v1631, %v2296
        %v2312 = vadd.f32 %v2300, %v2301
        %v2313 = vadd.f32 %v2312, %v2302
        %2314 = vadd.xlane.f32.xlu0 %v2313
        %v2315 = vpop.xlane.xlu0 %2314
        %v2316 = vadd.f32 %v2303, %v2304
        %v2317 = vadd.f32 %v2316, %v2305
        %2318 = vadd.xlane.f32.xlu0 %v2317
        %v2319 = vpop.xlane.xlu0 %2318
        %v2320 = vadd.f32 %v2306, %v2307
        %v2321 = vadd.f32 %v2320, %v2308
        %2322 = vadd.xlane.f32.xlu0 %v2321
        %v2323 = vpop.xlane.xlu0 %2322
        %v2324 = vadd.f32 %v2309, %v2310
        %v2325 = vadd.f32 %v2324, %v2311
        %2326 = vadd.xlane.f32.xlu0 %v2325
        %v2327 = vpop.xlane.xlu0 %2326
        %v2328 = vpack.c.bf16 %v2226, %v2169
        %v2329 = vpack.c.bf16 %v2283, %v2283
        %v2330 = vpack.c.bf16 %v2228, %v2171
        %v2331 = vpack.c.bf16 %v2285, %v2285
        %v2332 = vpack.c.bf16 %v2231, %v2174
        %v2333 = vpack.c.bf16 %v2288, %v2288
        %v2334 = vpack.c.bf16 %v2233, %v2176
        %v2335 = vpack.c.bf16 %v2290, %v2290
        %v2336 = vpack.c.bf16 %v1615, %v1614
        %v2337 = vpack.c.bf16 %v1616, %v1616
        %v2338 = vpack.c.bf16 %v1621, %v1620
        %v2339 = vpack.c.bf16 %v1622, %v1622
        %v2340 = vpack.c.bf16 %v1627, %v1626
        %v2341 = vpack.c.bf16 %v1628, %v1628
        %v2342 = vpack.c.bf16 %v1633, %v1632
        %v2343 = vpack.c.bf16 %v1634, %v1634
        %v2346 = vunpack.c.l.b16 %v2328
        %v2347 = vunpack.c.h.b16 %v2328
        %v2348 = vunpack.c.l.b16 %v2329
        %v2349 = vpack.c.b16 %v2346, %v2346
        %v2350 = vpack.c.b16 %v2347, %v2347
        %v2351 = vpack.c.b16 %v2348, %v2348
        %v2357 = vunpack.c.l.b16 %v2336
        %v2358 = vunpack.c.h.b16 %v2336
        %v2359 = vunpack.c.l.b16 %v2337
        %v2360 = vpack.c.b16 %v2357, %v2357
        %v2361 = vpack.c.b16 %v2358, %v2358
        %v2362 = vpack.c.b16 %v2359, %v2359
        %2366 = vmatpush.bf16.xpose.msra.mxu0 0
        %2367 = vmatpush.bf16.xpose.msra.mxu0 0
        %2368 = vmatpush.bf16.xpose.msra.mxu0 0
        %2369 = vmatpush.bf16.xpose.msra.mxu0 0
        %2370 = vmatpush.bf16.xpose.msra.mxu0 0
        %2371 = vmatpush.bf16.xpose.msra.mxu0 0
        %2372 = vmatpush.bf16.xpose.msra.mxu0 0
        %2373 = vmatpush.bf16.xpose.msra.mxu0 %v2360
        %2374 = vmatmul.bf16.gmra.mxu0 %v2349
        %v2375 = vpop.f32.mrf.mxu0
        %v2376 = vadd.f32 0.0, %v2375
        %v2377 = vpop.f32.mrf.mxu0
        %2378 = vdwg.mxu0
        %2379 = vmatpush.bf16.xpose.msra.mxu0 0
        %2380 = vmatpush.bf16.xpose.msra.mxu0 0
        %2381 = vmatpush.bf16.xpose.msra.mxu0 0
        %2382 = vmatpush.bf16.xpose.msra.mxu0 0
        %2383 = vmatpush.bf16.xpose.msra.mxu0 0
        %2384 = vmatpush.bf16.xpose.msra.mxu0 0
        %2385 = vmatpush.bf16.xpose.msra.mxu0 0
        %2386 = vmatpush.bf16.xpose.msra.mxu0 %v2361
        %2387 = vmatmul.bf16.gmra.mxu0 %v2350
        %v2388 = vpop.f32.mrf.mxu0
        %v2389 = vadd.f32 %v2376, %v2388
        %v2390 = vpop.f32.mrf.mxu0
        %2391 = vdwg.mxu0
        %2392 = vmatpush.bf16.xpose.msra.mxu0 0
        %2393 = vmatpush.bf16.xpose.msra.mxu0 0
        %2394 = vmatpush.bf16.xpose.msra.mxu0 0
        %2395 = vmatpush.bf16.xpose.msra.mxu0 0
        %2396 = vmatpush.bf16.xpose.msra.mxu0 0
        %2397 = vmatpush.bf16.xpose.msra.mxu0 0
        %2398 = vmatpush.bf16.xpose.msra.mxu0 0
        %2399 = vmatpush.bf16.xpose.msra.mxu0 %v2362
        %2400 = vmatmul.bf16.gmra.mxu0 %v2351
        %v2401 = vpop.f32.mrf.mxu0
        %v2402 = vadd.f32 %v2389, %v2401
        %v2403 = vpop.f32.mrf.mxu0
        %2404 = vdwg.mxu0
        %v2407 = vunpack.c.l.b16 %v2330
        %v2408 = vunpack.c.h.b16 %v2330
        %v2409 = vunpack.c.l.b16 %v2331
        %v2410 = vpack.c.b16 %v2407, %v2407
        %v2411 = vpack.c.b16 %v2408, %v2408
        %v2412 = vpack.c.b16 %v2409, %v2409
        %v2418 = vunpack.c.l.b16 %v2338
        %v2419 = vunpack.c.h.b16 %v2338
        %v2420 = vunpack.c.l.b16 %v2339
        %v2421 = vpack.c.b16 %v2418, %v2418
        %v2422 = vpack.c.b16 %v2419, %v2419
        %v2423 = vpack.c.b16 %v2420, %v2420
        %2427 = vmatpush.bf16.xpose.msra.mxu0 0
        %2428 = vmatpush.bf16.xpose.msra.mxu0 0
        %2429 = vmatpush.bf16.xpose.msra.mxu0 0
        %2430 = vmatpush.bf16.xpose.msra.mxu0 0
        %2431 = vmatpush.bf16.xpose.msra.mxu0 0
        %2432 = vmatpush.bf16.xpose.msra.mxu0 0
        %2433 = vmatpush.bf16.xpose.msra.mxu0 0
        %2434 = vmatpush.bf16.xpose.msra.mxu0 %v2421
        %2435 = vmatmul.bf16.gmra.mxu0 %v2410
        %v2436 = vpop.f32.mrf.mxu0
        %v2437 = vadd.f32 0.0, %v2436
        %v2438 = vpop.f32.mrf.mxu0
        %2439 = vdwg.mxu0
        %2440 = vmatpush.bf16.xpose.msra.mxu0 0
        %2441 = vmatpush.bf16.xpose.msra.mxu0 0
        %2442 = vmatpush.bf16.xpose.msra.mxu0 0
        %2443 = vmatpush.bf16.xpose.msra.mxu0 0
        %2444 = vmatpush.bf16.xpose.msra.mxu0 0
        %2445 = vmatpush.bf16.xpose.msra.mxu0 0
        %2446 = vmatpush.bf16.xpose.msra.mxu0 0
        %2447 = vmatpush.bf16.xpose.msra.mxu0 %v2422
        %2448 = vmatmul.bf16.gmra.mxu0 %v2411
        %v2449 = vpop.f32.mrf.mxu0
        %v2450 = vadd.f32 %v2437, %v2449
        %v2451 = vpop.f32.mrf.mxu0
        %2452 = vdwg.mxu0
        %2453 = vmatpush.bf16.xpose.msra.mxu0 0
        %2454 = vmatpush.bf16.xpose.msra.mxu0 0
        %2455 = vmatpush.bf16.xpose.msra.mxu0 0
        %2456 = vmatpush.bf16.xpose.msra.mxu0 0
        %2457 = vmatpush.bf16.xpose.msra.mxu0 0
        %2458 = vmatpush.bf16.xpose.msra.mxu0 0
        %2459 = vmatpush.bf16.xpose.msra.mxu0 0
        %2460 = vmatpush.bf16.xpose.msra.mxu0 %v2423
        %2461 = vmatmul.bf16.gmra.mxu0 %v2412
        %v2462 = vpop.f32.mrf.mxu0
        %v2463 = vadd.f32 %v2450, %v2462
        %v2464 = vpop.f32.mrf.mxu0
        %2465 = vdwg.mxu0
        %v2468 = vunpack.c.l.b16 %v2332
        %v2469 = vunpack.c.h.b16 %v2332
        %v2470 = vunpack.c.l.b16 %v2333
        %v2471 = vpack.c.b16 %v2468, %v2468
        %v2472 = vpack.c.b16 %v2469, %v2469
        %v2473 = vpack.c.b16 %v2470, %v2470
        %v2479 = vunpack.c.l.b16 %v2340
        %v2480 = vunpack.c.h.b16 %v2340
        %v2481 = vunpack.c.l.b16 %v2341
        %v2482 = vpack.c.b16 %v2479, %v2479
        %v2483 = vpack.c.b16 %v2480, %v2480
        %v2484 = vpack.c.b16 %v2481, %v2481
        %2488 = vmatpush.bf16.xpose.msra.mxu0 0
        %2489 = vmatpush.bf16.xpose.msra.mxu0 0
        %2490 = vmatpush.bf16.xpose.msra.mxu0 0
        %2491 = vmatpush.bf16.xpose.msra.mxu0 0
        %2492 = vmatpush.bf16.xpose.msra.mxu0 0
        %2493 = vmatpush.bf16.xpose.msra.mxu0 0
        %2494 = vmatpush.bf16.xpose.msra.mxu0 0
        %2495 = vmatpush.bf16.xpose.msra.mxu0 %v2482
        %2496 = vmatmul.bf16.gmra.mxu0 %v2471
        %v2497 = vpop.f32.mrf.mxu0
        %v2498 = vadd.f32 0.0, %v2497
        %v2499 = vpop.f32.mrf.mxu0
        %2500 = vdwg.mxu0
        %2501 = vmatpush.bf16.xpose.msra.mxu0 0
        %2502 = vmatpush.bf16.xpose.msra.mxu0 0
        %2503 = vmatpush.bf16.xpose.msra.mxu0 0
        %2504 = vmatpush.bf16.xpose.msra.mxu0 0
        %2505 = vmatpush.bf16.xpose.msra.mxu0 0
        %2506 = vmatpush.bf16.xpose.msra.mxu0 0
        %2507 = vmatpush.bf16.xpose.msra.mxu0 0
        %2508 = vmatpush.bf16.xpose.msra.mxu0 %v2483
        %2509 = vmatmul.bf16.gmra.mxu0 %v2472
        %v2510 = vpop.f32.mrf.mxu0
        %v2511 = vadd.f32 %v2498, %v2510
        %v2512 = vpop.f32.mrf.mxu0
        %2513 = vdwg.mxu0
        %2514 = vmatpush.bf16.xpose.msra.mxu0 0
        %2515 = vmatpush.bf16.xpose.msra.mxu0 0
        %2516 = vmatpush.bf16.xpose.msra.mxu0 0
        %2517 = vmatpush.bf16.xpose.msra.mxu0 0
        %2518 = vmatpush.bf16.xpose.msra.mxu0 0
        %2519 = vmatpush.bf16.xpose.msra.mxu0 0
        %2520 = vmatpush.bf16.xpose.msra.mxu0 0
        %2521 = vmatpush.bf16.xpose.msra.mxu0 %v2484
        %2522 = vmatmul.bf16.gmra.mxu0 %v2473
        %v2523 = vpop.f32.mrf.mxu0
        %v2524 = vadd.f32 %v2511, %v2523
        %v2525 = vpop.f32.mrf.mxu0
        %2526 = vdwg.mxu0
        %v2529 = vunpack.c.l.b16 %v2334
        %v2530 = vunpack.c.h.b16 %v2334
        %v2531 = vunpack.c.l.b16 %v2335
        %v2532 = vpack.c.b16 %v2529, %v2529
        %v2533 = vpack.c.b16 %v2530, %v2530
        %v2534 = vpack.c.b16 %v2531, %v2531
        %v2540 = vunpack.c.l.b16 %v2342
        %v2541 = vunpack.c.h.b16 %v2342
        %v2542 = vunpack.c.l.b16 %v2343
        %v2543 = vpack.c.b16 %v2540, %v2540
        %v2544 = vpack.c.b16 %v2541, %v2541
        %v2545 = vpack.c.b16 %v2542, %v2542
        %2549 = vmatpush.bf16.xpose.msra.mxu0 0
        %2550 = vmatpush.bf16.xpose.msra.mxu0 0
        %2551 = vmatpush.bf16.xpose.msra.mxu0 0
        %2552 = vmatpush.bf16.xpose.msra.mxu0 0
        %2553 = vmatpush.bf16.xpose.msra.mxu0 0
        %2554 = vmatpush.bf16.xpose.msra.mxu0 0
        %2555 = vmatpush.bf16.xpose.msra.mxu0 0
        %2556 = vmatpush.bf16.xpose.msra.mxu0 %v2543
        %2557 = vmatmul.bf16.gmra.mxu0 %v2532
        %v2558 = vpop.f32.mrf.mxu0
        %v2559 = vadd.f32 0.0, %v2558
        %v2560 = vpop.f32.mrf.mxu0
        %2561 = vdwg.mxu0
        %2562 = vmatpush.bf16.xpose.msra.mxu0 0
        %2563 = vmatpush.bf16.xpose.msra.mxu0 0
        %2564 = vmatpush.bf16.xpose.msra.mxu0 0
        %2565 = vmatpush.bf16.xpose.msra.mxu0 0
        %2566 = vmatpush.bf16.xpose.msra.mxu0 0
        %2567 = vmatpush.bf16.xpose.msra.mxu0 0
        %2568 = vmatpush.bf16.xpose.msra.mxu0 0
        %2569 = vmatpush.bf16.xpose.msra.mxu0 %v2544
        %2570 = vmatmul.bf16.gmra.mxu0 %v2533
        %v2571 = vpop.f32.mrf.mxu0
        %v2572 = vadd.f32 %v2559, %v2571
        %v2573 = vpop.f32.mrf.mxu0
        %2574 = vdwg.mxu0
        %2575 = vmatpush.bf16.xpose.msra.mxu0 0
        %2576 = vmatpush.bf16.xpose.msra.mxu0 0
        %2577 = vmatpush.bf16.xpose.msra.mxu0 0
        %2578 = vmatpush.bf16.xpose.msra.mxu0 0
        %2579 = vmatpush.bf16.xpose.msra.mxu0 0
        %2580 = vmatpush.bf16.xpose.msra.mxu0 0
        %2581 = vmatpush.bf16.xpose.msra.mxu0 0
        %2582 = vmatpush.bf16.xpose.msra.mxu0 %v2545
        %2583 = vmatmul.bf16.gmra.mxu0 %v2534
        %v2584 = vpop.f32.mrf.mxu0
        %v2585 = vadd.f32 %v2572, %v2584
        %v2586 = vpop.f32.mrf.mxu0
        %2587 = vdwg.mxu0
        %v2588 = vlaneseq
        %v2589 = vshrl.u32 %v2588, 7
        %v2590 = vlaneseq
        %v2591 = vand.u32 %v2590, 127
        %vm2592 = vcmp.eq.s32.totalorder %v2589, %v2591
        %v2593 = vsel %vm2592, 1, 0
        %v2594 = vcvt.s32.f32 %v2593
        %v2595 = vsub.f32 1.0, %v2594
        %v2596 = vld [vmem:[%s337] sm:$0x1]
        %v2597 = vld [vmem:[%s337 + $0x1] sm:$0x1]
        %v2598 = vld [vmem:[%s337 + $0x2] sm:$0x1]
        %v2599 = vld [vmem:[%s337 + $0x3] sm:$0x1]
        %v2604 = vperm.slane %v2596, 0
        %v2605 = vperm.slane %v2597, 0
        %v2606 = vperm.slane %v2598, 0
        %v2607 = vperm.slane %v2599, 0
        %v2612 = vmul.f32 %v2604, %v2594
        %v2613 = vmul.f32 %v2605, %v2594
        %v2614 = vmul.f32 %v2606, %v2594
        %v2615 = vmul.f32 %v2607, %v2594
        %vm2616 = vcmask 64512
        %v2617 = vsel %vm2616, %v2612, 0.0
        %2618 = vadd.xlane.f32.xlu0 %v2617
        %v2619 = vpop.xlane.xlu0 %2618
        %v2620 = vsel %vm2616, %v2613, 0.0
        %2621 = vadd.xlane.f32.xlu0 %v2620
        %v2622 = vpop.xlane.xlu0 %2621
        %v2623 = vsel %vm2616, %v2614, 0.0
        %2624 = vadd.xlane.f32.xlu0 %v2623
        %v2625 = vpop.xlane.xlu0 %2624
        %v2626 = vsel %vm2616, %v2615, 0.0
        %2627 = vadd.xlane.f32.xlu0 %v2626
        %v2628 = vpop.xlane.xlu0 %2627
        %v2629 = vmul.f32 %v2619, %v2604
        %v2630 = vmul.f32 %v2622, %v2605
        %v2631 = vmul.f32 %v2625, %v2606
        %v2632 = vmul.f32 %v2628, %v2607
        %v2633 = vmax.f32 %v2402, 0.0
        %v2634 = vmax.f32 %v2463, 0.0
        %v2635 = vmax.f32 %v2524, 0.0
        %v2636 = vmax.f32 %v2585, 0.0
        %v2637 = vmul.f32 %v2633, %v2629
        %v2638 = vmul.f32 %v2634, %v2630
        %v2639 = vmul.f32 %v2635, %v2631
        %v2640 = vmul.f32 %v2636, %v2632
        %v2641 = vadd.f32 %v2637, 1e-06
        %v2642 = vadd.f32 %v2638, 1e-06
        %v2643 = vadd.f32 %v2639, 1e-06
        %v2644 = vadd.f32 %v2640, 1e-06
        %v2645 = vmul.f32 %v2641, %v2595
        %v2646 = vmul.f32 %v2642, %v2595
        %v2647 = vmul.f32 %v2643, %v2595
        %v2648 = vmul.f32 %v2644, %v2595
        %v2649 = vmax.f32 %v2315, 0.0
        %v2650 = vmax.f32 %v2319, 0.0
        %v2651 = vmax.f32 %v2323, 0.0
        %v2652 = vmax.f32 %v2327, 0.0
        %v2653 = vmul.f32 %v2649, %v2619
        %v2654 = vmul.f32 %v2650, %v2622
        %v2655 = vmul.f32 %v2651, %v2625
        %v2656 = vmul.f32 %v2652, %v2628
        %v2657 = vadd.f32 %v2653, 1e-06
        %v2658 = vadd.f32 %v2654, 1e-06
        %v2659 = vadd.f32 %v2655, 1e-06
        %v2660 = vadd.f32 %v2656, 1e-06
        %v2661 = vmul.f32 %v2657, %v2594
        %v2662 = vmul.f32 %v2658, %v2594
        %v2663 = vmul.f32 %v2659, %v2594
        %v2664 = vmul.f32 %v2660, %v2594
        %v2665 = vsel %vm2616, %v2661, 0.0
        %v2666 = vrot.slane %v2665, 4
        %v2667 = vadd.f32 %v2665, %v2666
        %v2668 = vrot.slane %v2667, 2
        %v2669 = vadd.f32 %v2667, %v2668
        %v2670 = vrot.slane %v2669, 1
        %v2671 = vadd.f32 %v2669, %v2670
        %v2672 = vsel %vm2616, %v2662, 0.0
        %v2673 = vrot.slane %v2672, 4
        %v2674 = vadd.f32 %v2672, %v2673
        %v2675 = vrot.slane %v2674, 2
        %v2676 = vadd.f32 %v2674, %v2675
        %v2677 = vrot.slane %v2676, 1
        %v2678 = vadd.f32 %v2676, %v2677
        %v2679 = vsel %vm2616, %v2663, 0.0
        %v2680 = vrot.slane %v2679, 4
        %v2681 = vadd.f32 %v2679, %v2680
        %v2682 = vrot.slane %v2681, 2
        %v2683 = vadd.f32 %v2681, %v2682
        %v2684 = vrot.slane %v2683, 1
        %v2685 = vadd.f32 %v2683, %v2684
        %v2686 = vsel %vm2616, %v2664, 0.0
        %v2687 = vrot.slane %v2686, 4
        %v2688 = vadd.f32 %v2686, %v2687
        %v2689 = vrot.slane %v2688, 2
        %v2690 = vadd.f32 %v2688, %v2689
        %v2691 = vrot.slane %v2690, 1
        %v2692 = vadd.f32 %v2690, %v2691
        %v2693 = vperm.slane %v2645, 0
        %v2694 = vperm.slane %v2646, 0
        %v2695 = vperm.slane %v2647, 0
        %v2696 = vperm.slane %v2648, 0
        %v2697 = vmul.f32 %v2693, %v2594
        %v2698 = vmul.f32 %v2694, %v2594
        %v2699 = vmul.f32 %v2695, %v2594
        %v2700 = vmul.f32 %v2696, %v2594
        %v2701 = vsel %vm2616, %v2697, 0.0
        %2702 = vadd.xlane.f32.xlu0 %v2701
        %v2703 = vpop.xlane.xlu0 %2702
        %v2704 = vsel %vm2616, %v2698, 0.0
        %2705 = vadd.xlane.f32.xlu0 %v2704
        %v2706 = vpop.xlane.xlu0 %2705
        %v2707 = vsel %vm2616, %v2699, 0.0
        %2708 = vadd.xlane.f32.xlu0 %v2707
        %v2709 = vpop.xlane.xlu0 %2708
        %v2710 = vsel %vm2616, %v2700, 0.0
        %2711 = vadd.xlane.f32.xlu0 %v2710
        %v2712 = vpop.xlane.xlu0 %2711
        %vm2713 = vcmp.eq.s32.totalorder %v2591, 0
        %v2714 = vsel %vm2713, 1, 0
        %vm2715 = vcmp.eq.s32.totalorder %v2714, 1
        %v2716 = vsel %vm2715, %v2703, 0.0
        %v2717 = vsel %vm2715, %v2706, 0.0
        %v2718 = vsel %vm2715, %v2709, 0.0
        %v2719 = vsel %vm2715, %v2712, 0.0
        %v2720 = vperm.slane %v2645, 1
        %v2721 = vperm.slane %v2646, 1
        %v2722 = vperm.slane %v2647, 1
        %v2723 = vperm.slane %v2648, 1
        %v2724 = vmul.f32 %v2720, %v2594
        %v2725 = vmul.f32 %v2721, %v2594
        %v2726 = vmul.f32 %v2722, %v2594
        %v2727 = vmul.f32 %v2723, %v2594
        %v2728 = vsel %vm2616, %v2724, 0.0
        %2729 = vadd.xlane.f32.xlu0 %v2728
        %v2730 = vpop.xlane.xlu0 %2729
        %v2731 = vsel %vm2616, %v2725, 0.0
        %2732 = vadd.xlane.f32.xlu0 %v2731
        %v2733 = vpop.xlane.xlu0 %2732
        %v2734 = vsel %vm2616, %v2726, 0.0
        %2735 = vadd.xlane.f32.xlu0 %v2734
        %v2736 = vpop.xlane.xlu0 %2735
        %v2737 = vsel %vm2616, %v2727, 0.0
        %2738 = vadd.xlane.f32.xlu0 %v2737
        %v2739 = vpop.xlane.xlu0 %2738
        %vm2740 = vcmp.eq.s32.totalorder %v2591, 1
        %v2741 = vsel %vm2740, 1, 0
        %vm2742 = vcmp.eq.s32.totalorder %v2741, 1
        %v2743 = vsel %vm2742, %v2730, %v2716
        %v2744 = vsel %vm2742, %v2733, %v2717
        %v2745 = vsel %vm2742, %v2736, %v2718
        %v2746 = vsel %vm2742, %v2739, %v2719
        %v2747 = vperm.slane %v2645, 2
        %v2748 = vperm.slane %v2646, 2
        %v2749 = vperm.slane %v2647, 2
        %v2750 = vperm.slane %v2648, 2
        %v2751 = vmul.f32 %v2747, %v2594
        %v2752 = vmul.f32 %v2748, %v2594
        %v2753 = vmul.f32 %v2749, %v2594
        %v2754 = vmul.f32 %v2750, %v2594
        %v2755 = vsel %vm2616, %v2751, 0.0
        %2756 = vadd.xlane.f32.xlu0 %v2755
        %v2757 = vpop.xlane.xlu0 %2756
        %v2758 = vsel %vm2616, %v2752, 0.0
        %2759 = vadd.xlane.f32.xlu0 %v2758
        %v2760 = vpop.xlane.xlu0 %2759
        %v2761 = vsel %vm2616, %v2753, 0.0
        %2762 = vadd.xlane.f32.xlu0 %v2761
        %v2763 = vpop.xlane.xlu0 %2762
        %v2764 = vsel %vm2616, %v2754, 0.0
        %2765 = vadd.xlane.f32.xlu0 %v2764
        %v2766 = vpop.xlane.xlu0 %2765
        %vm2767 = vcmp.eq.s32.totalorder %v2591, 2
        %v2768 = vsel %vm2767, 1, 0
        %vm2769 = vcmp.eq.s32.totalorder %v2768, 1
        %v2770 = vsel %vm2769, %v2757, %v2743
        %v2771 = vsel %vm2769, %v2760, %v2744
        %v2772 = vsel %vm2769, %v2763, %v2745
        %v2773 = vsel %vm2769, %v2766, %v2746
        %v2774 = vperm.slane %v2645, 3
        %v2775 = vperm.slane %v2646, 3
        %v2776 = vperm.slane %v2647, 3
        %v2777 = vperm.slane %v2648, 3
        %v2778 = vmul.f32 %v2774, %v2594
        %v2779 = vmul.f32 %v2775, %v2594
        %v2780 = vmul.f32 %v2776, %v2594
        %v2781 = vmul.f32 %v2777, %v2594
        %v2782 = vsel %vm2616, %v2778, 0.0
        %2783 = vadd.xlane.f32.xlu0 %v2782
        %v2784 = vpop.xlane.xlu0 %2783
        %v2785 = vsel %vm2616, %v2779, 0.0
        %2786 = vadd.xlane.f32.xlu0 %v2785
        %v2787 = vpop.xlane.xlu0 %2786
        %v2788 = vsel %vm2616, %v2780, 0.0
        %2789 = vadd.xlane.f32.xlu0 %v2788
        %v2790 = vpop.xlane.xlu0 %2789
        %v2791 = vsel %vm2616, %v2781, 0.0
        %2792 = vadd.xlane.f32.xlu0 %v2791
        %v2793 = vpop.xlane.xlu0 %2792
        %vm2794 = vcmp.eq.s32.totalorder %v2591, 3
        %v2795 = vsel %vm2794, 1, 0
        %vm2796 = vcmp.eq.s32.totalorder %v2795, 1
        %v2797 = vsel %vm2796, %v2784, %v2770
        %v2798 = vsel %vm2796, %v2787, %v2771
        %v2799 = vsel %vm2796, %v2790, %v2772
        %v2800 = vsel %vm2796, %v2793, %v2773
        %v2801 = vperm.slane %v2645, 4
        %v2802 = vperm.slane %v2646, 4
        %v2803 = vperm.slane %v2647, 4
        %v2804 = vperm.slane %v2648, 4
        %v2805 = vmul.f32 %v2801, %v2594
        %v2806 = vmul.f32 %v2802, %v2594
        %v2807 = vmul.f32 %v2803, %v2594
        %v2808 = vmul.f32 %v2804, %v2594
        %v2809 = vsel %vm2616, %v2805, 0.0
        %2810 = vadd.xlane.f32.xlu0 %v2809
        %v2811 = vpop.xlane.xlu0 %2810
        %v2812 = vsel %vm2616, %v2806, 0.0
        %2813 = vadd.xlane.f32.xlu0 %v2812
        %v2814 = vpop.xlane.xlu0 %2813
        %v2815 = vsel %vm2616, %v2807, 0.0
        %2816 = vadd.xlane.f32.xlu0 %v2815
        %v2817 = vpop.xlane.xlu0 %2816
        %v2818 = vsel %vm2616, %v2808, 0.0
        %2819 = vadd.xlane.f32.xlu0 %v2818
        %v2820 = vpop.xlane.xlu0 %2819
        %vm2821 = vcmp.eq.s32.totalorder %v2591, 4
        %v2822 = vsel %vm2821, 1, 0
        %vm2823 = vcmp.eq.s32.totalorder %v2822, 1
        %v2824 = vsel %vm2823, %v2811, %v2797
        %v2825 = vsel %vm2823, %v2814, %v2798
        %v2826 = vsel %vm2823, %v2817, %v2799
        %v2827 = vsel %vm2823, %v2820, %v2800
        %v2828 = vperm.slane %v2645, 5
        %v2829 = vperm.slane %v2646, 5
        %v2830 = vperm.slane %v2647, 5
        %v2831 = vperm.slane %v2648, 5
        %v2832 = vmul.f32 %v2828, %v2594
        %v2833 = vmul.f32 %v2829, %v2594
        %v2834 = vmul.f32 %v2830, %v2594
        %v2835 = vmul.f32 %v2831, %v2594
        %v2836 = vsel %vm2616, %v2832, 0.0
        %2837 = vadd.xlane.f32.xlu0 %v2836
        %v2838 = vpop.xlane.xlu0 %2837
        %v2839 = vsel %vm2616, %v2833, 0.0
        %2840 = vadd.xlane.f32.xlu0 %v2839
        %v2841 = vpop.xlane.xlu0 %2840
        %v2842 = vsel %vm2616, %v2834, 0.0
        %2843 = vadd.xlane.f32.xlu0 %v2842
        %v2844 = vpop.xlane.xlu0 %2843
        %v2845 = vsel %vm2616, %v2835, 0.0
        %2846 = vadd.xlane.f32.xlu0 %v2845
        %v2847 = vpop.xlane.xlu0 %2846
        %vm2848 = vcmp.eq.s32.totalorder %v2591, 5
        %v2849 = vsel %vm2848, 1, 0
        %vm2850 = vcmp.eq.s32.totalorder %v2849, 1
        %v2851 = vsel %vm2850, %v2838, %v2824
        %v2852 = vsel %vm2850, %v2841, %v2825
        %v2853 = vsel %vm2850, %v2844, %v2826
        %v2854 = vsel %vm2850, %v2847, %v2827
        %v2855 = vperm.slane %v2645, 6
        %v2856 = vperm.slane %v2646, 6
        %v2857 = vperm.slane %v2647, 6
        %v2858 = vperm.slane %v2648, 6
        %v2859 = vmul.f32 %v2855, %v2594
        %v2860 = vmul.f32 %v2856, %v2594
        %v2861 = vmul.f32 %v2857, %v2594
        %v2862 = vmul.f32 %v2858, %v2594
        %v2863 = vsel %vm2616, %v2859, 0.0
        %2864 = vadd.xlane.f32.xlu0 %v2863
        %v2865 = vpop.xlane.xlu0 %2864
        %v2866 = vsel %vm2616, %v2860, 0.0
        %2867 = vadd.xlane.f32.xlu0 %v2866
        %v2868 = vpop.xlane.xlu0 %2867
        %v2869 = vsel %vm2616, %v2861, 0.0
        %2870 = vadd.xlane.f32.xlu0 %v2869
        %v2871 = vpop.xlane.xlu0 %2870
        %v2872 = vsel %vm2616, %v2862, 0.0
        %2873 = vadd.xlane.f32.xlu0 %v2872
        %v2874 = vpop.xlane.xlu0 %2873
        %vm2875 = vcmp.eq.s32.totalorder %v2591, 6
        %v2876 = vsel %vm2875, 1, 0
        %vm2877 = vcmp.eq.s32.totalorder %v2876, 1
        %v2878 = vsel %vm2877, %v2865, %v2851
        %v2879 = vsel %vm2877, %v2868, %v2852
        %v2880 = vsel %vm2877, %v2871, %v2853
        %v2881 = vsel %vm2877, %v2874, %v2854
        %v2882 = vperm.slane %v2645, 7
        %v2883 = vperm.slane %v2646, 7
        %v2884 = vperm.slane %v2647, 7
        %v2885 = vperm.slane %v2648, 7
        %v2886 = vmul.f32 %v2882, %v2594
        %v2887 = vmul.f32 %v2883, %v2594
        %v2888 = vmul.f32 %v2884, %v2594
        %v2889 = vmul.f32 %v2885, %v2594
        %v2890 = vsel %vm2616, %v2886, 0.0
        %2891 = vadd.xlane.f32.xlu0 %v2890
        %v2892 = vpop.xlane.xlu0 %2891
        %v2893 = vsel %vm2616, %v2887, 0.0
        %2894 = vadd.xlane.f32.xlu0 %v2893
        %v2895 = vpop.xlane.xlu0 %2894
        %v2896 = vsel %vm2616, %v2888, 0.0
        %2897 = vadd.xlane.f32.xlu0 %v2896
        %v2898 = vpop.xlane.xlu0 %2897
        %v2899 = vsel %vm2616, %v2889, 0.0
        %2900 = vadd.xlane.f32.xlu0 %v2899
        %v2901 = vpop.xlane.xlu0 %2900
        %vm2902 = vcmp.eq.s32.totalorder %v2591, 7
        %v2903 = vsel %vm2902, 1, 0
        %vm2904 = vcmp.eq.s32.totalorder %v2903, 1
        %v2905 = vsel %vm2904, %v2892, %v2878
        %v2906 = vsel %vm2904, %v2895, %v2879
        %v2907 = vsel %vm2904, %v2898, %v2880
        %v2908 = vsel %vm2904, %v2901, %v2881
        %v2909 = vsel %vm2616, %v2905, 0.0
        %2910 = vadd.xlane.f32.xlu0 %v2909
        %v2911 = vpop.xlane.xlu0 %2910
        %v2912 = vsel %vm2616, %v2906, 0.0
        %2913 = vadd.xlane.f32.xlu0 %v2912
        %v2914 = vpop.xlane.xlu0 %2913
        %v2915 = vsel %vm2616, %v2907, 0.0
        %2916 = vadd.xlane.f32.xlu0 %v2915
        %v2917 = vpop.xlane.xlu0 %2916
        %v2918 = vsel %vm2616, %v2908, 0.0
        %2919 = vadd.xlane.f32.xlu0 %v2918
        %v2920 = vpop.xlane.xlu0 %2919
        %v2921 = vsub.f32 0.0, %v2905
        %v2922 = vsub.f32 0.0, %v2906
        %v2923 = vsub.f32 0.0, %v2907
        %v2924 = vsub.f32 0.0, %v2908
        %v2925 = vmul.f32 %v2594, %v2911
        %v2926 = vmul.f32 %v2594, %v2914
        %v2927 = vmul.f32 %v2594, %v2917
        %v2928 = vmul.f32 %v2594, %v2920
        %v2929 = vadd.f32 %v2921, %v2925
        %v2930 = vadd.f32 %v2922, %v2926
        %v2931 = vadd.f32 %v2923, %v2927
        %v2932 = vadd.f32 %v2924, %v2928
        %v2933 = vsel %vm2715, %v2657, %v2929
        %v2934 = vsel %vm2715, %v2658, %v2930
        %v2935 = vsel %vm2715, %v2659, %v2931
        %v2936 = vsel %vm2715, %v2660, %v2932
        %vm2937 = vcmp.ge.s32.totalorder %v2589, 0
        %v2938 = vand.u32 2147483647, %v2933
        %v2939 = vand.u32 2147483647, %v2934
        %v2940 = vand.u32 2147483647, %v2935
        %v2941 = vand.u32 2147483647, %v2936
        %v2942 = vsel %vm2937, 1, 0
        %vm2943 = vcmp.eq.s32.totalorder %v2942, 1
        %v2944 = vsel %vm2943, %v2938, -1.0
        %v2945 = vsel %vm2943, %v2939, -1.0
        %v2946 = vsel %vm2943, %v2940, -1.0
        %v2947 = vsel %vm2943, %v2941, -1.0
        %vm2948 = vcmask 7168
        %v2949 = vsel %vm2948, %v2944, -inf
        %v2950 = vrot.slane %v2949, 4
        %v2951 = vmax.f32 %v2949, %v2950
        %v2952 = vrot.slane %v2951, 2
        %v2953 = vmax.f32 %v2951, %v2952
        %v2954 = vrot.slane %v2953, 1
        %v2955 = vmax.f32 %v2953, %v2954
        %v2956 = vsel %vm2948, %v2945, -inf
        %v2957 = vrot.slane %v2956, 4
        %v2958 = vmax.f32 %v2956, %v2957
        %v2959 = vrot.slane %v2958, 2
        %v2960 = vmax.f32 %v2958, %v2959
        %v2961 = vrot.slane %v2960, 1
        %v2962 = vmax.f32 %v2960, %v2961
        %v2963 = vsel %vm2948, %v2946, -inf
        %v2964 = vrot.slane %v2963, 4
        %v2965 = vmax.f32 %v2963, %v2964
        %v2966 = vrot.slane %v2965, 2
        %v2967 = vmax.f32 %v2965, %v2966
        %v2968 = vrot.slane %v2967, 1
        %v2969 = vmax.f32 %v2967, %v2968
        %v2970 = vsel %vm2948, %v2947, -inf
        %v2971 = vrot.slane %v2970, 4
        %v2972 = vmax.f32 %v2970, %v2971
        %v2973 = vrot.slane %v2972, 2
        %v2974 = vmax.f32 %v2972, %v2973
        %v2975 = vrot.slane %v2974, 1
        %v2976 = vmax.f32 %v2974, %v2975
        %vm2977 = vcmp.eq.f32.partialorder %v2944, %v2955
        %vm2978 = vcmp.eq.f32.partialorder %v2945, %v2962
        %vm2979 = vcmp.eq.f32.partialorder %v2946, %v2969
        %vm2980 = vcmp.eq.f32.partialorder %v2947, %v2976
        %v2981 = vsel %vm2977, %v2589, 8
        %v2982 = vsel %vm2978, %v2589, 8
        %v2983 = vsel %vm2979, %v2589, 8
        %v2984 = vsel %vm2980, %v2589, 8
        %v2985 = vsel %vm2948, %v2981, 2147483647
        %v2986 = vrot.slane %v2985, 4
        %vm2987 = vcmp.lt.s32.totalorder %v2985, %v2986
        %v2988 = vsel %vm2987, %v2985, %v2986
        %v2989 = vrot.slane %v2988, 2
        %vm2990 = vcmp.lt.s32.totalorder %v2988, %v2989
        %v2991 = vsel %vm2990, %v2988, %v2989
        %v2992 = vrot.slane %v2991, 1
        %vm2993 = vcmp.lt.s32.totalorder %v2991, %v2992
        %v2994 = vsel %vm2993, %v2991, %v2992
        %v2995 = vsel %vm2948, %v2982, 2147483647
        %v2996 = vrot.slane %v2995, 4
        %vm2997 = vcmp.lt.s32.totalorder %v2995, %v2996
        %v2998 = vsel %vm2997, %v2995, %v2996
        %v2999 = vrot.slane %v2998, 2
        %vm3000 = vcmp.lt.s32.totalorder %v2998, %v2999
        %v3001 = vsel %vm3000, %v2998, %v2999
        %v3002 = vrot.slane %v3001, 1
        %vm3003 = vcmp.lt.s32.totalorder %v3001, %v3002
        %v3004 = vsel %vm3003, %v3001, %v3002
        %v3005 = vsel %vm2948, %v2983, 2147483647
        %v3006 = vrot.slane %v3005, 4
        %vm3007 = vcmp.lt.s32.totalorder %v3005, %v3006
        %v3008 = vsel %vm3007, %v3005, %v3006
        %v3009 = vrot.slane %v3008, 2
        %vm3010 = vcmp.lt.s32.totalorder %v3008, %v3009
        %v3011 = vsel %vm3010, %v3008, %v3009
        %v3012 = vrot.slane %v3011, 1
        %vm3013 = vcmp.lt.s32.totalorder %v3011, %v3012
        %v3014 = vsel %vm3013, %v3011, %v3012
        %v3015 = vsel %vm2948, %v2984, 2147483647
        %v3016 = vrot.slane %v3015, 4
        %vm3017 = vcmp.lt.s32.totalorder %v3015, %v3016
        %v3018 = vsel %vm3017, %v3015, %v3016
        %v3019 = vrot.slane %v3018, 2
        %vm3020 = vcmp.lt.s32.totalorder %v3018, %v3019
        %v3021 = vsel %vm3020, %v3018, %v3019
        %v3022 = vrot.slane %v3021, 1
        %vm3023 = vcmp.lt.s32.totalorder %v3021, %v3022
        %v3024 = vsel %vm3023, %v3021, %v3022
        %vm3025 = vcmp.eq.s32.totalorder %v2589, %v2994
        %vm3026 = vcmp.eq.s32.totalorder %v2589, %v3004
        %vm3027 = vcmp.eq.s32.totalorder %v2589, %v3014
        %vm3028 = vcmp.eq.s32.totalorder %v2589, %v3024
        %vm3029 = vcmp.eq.s32.totalorder %v2589, 0
        %v3030 = vsel %vm3025, 1, 0
        %v3031 = vsel %vm3026, 1, 0
        %v3032 = vsel %vm3027, 1, 0
        %v3033 = vsel %vm3028, 1, 0
        %3034 = vset.pattern.permute.xlu0 0
        %3035 = vperm.xlu0 %3034, %v3030
        %v3036 = vpop.permute.xlu0 %3035
        %3037 = vset.pattern.permute.xlu0 0
        %3038 = vperm.xlu0 %3037, %v3031
        %v3039 = vpop.permute.xlu0 %3038
        %3040 = vset.pattern.permute.xlu0 0
        %3041 = vperm.xlu0 %3040, %v3032
        %v3042 = vpop.permute.xlu0 %3041
        %3043 = vset.pattern.permute.xlu0 0
        %3044 = vperm.xlu0 %3043, %v3033
        %v3045 = vpop.permute.xlu0 %3044
        %vm3046 = vcmp.eq.s32.totalorder %v3036, 1
        %vm3047 = vcmp.eq.s32.totalorder %v3039, 1
        %vm3048 = vcmp.eq.s32.totalorder %v3042, 1
        %vm3049 = vcmp.eq.s32.totalorder %v3045, 1
        %v3050 = vsel %vm3046, %v2933, 0.0
        %v3051 = vsel %vm3047, %v2934, 0.0
        %v3052 = vsel %vm3048, %v2935, 0.0
        %v3053 = vsel %vm3049, %v2936, 0.0
        %v3054 = vsel %vm2616, %v3050, 0.0
        %v3055 = vrot.slane %v3054, 4
        %v3056 = vadd.f32 %v3054, %v3055
        %v3057 = vrot.slane %v3056, 2
        %v3058 = vadd.f32 %v3056, %v3057
        %v3059 = vrot.slane %v3058, 1
        %v3060 = vadd.f32 %v3058, %v3059
        %v3061 = vsel %vm2616, %v3051, 0.0
        %v3062 = vrot.slane %v3061, 4
        %v3063 = vadd.f32 %v3061, %v3062
        %v3064 = vrot.slane %v3063, 2
        %v3065 = vadd.f32 %v3063, %v3064
        %v3066 = vrot.slane %v3065, 1
        %v3067 = vadd.f32 %v3065, %v3066
        %v3068 = vsel %vm2616, %v3052, 0.0
        %v3069 = vrot.slane %v3068, 4
        %v3070 = vadd.f32 %v3068, %v3069
        %v3071 = vrot.slane %v3070, 2
        %v3072 = vadd.f32 %v3070, %v3071
        %v3073 = vrot.slane %v3072, 1
        %v3074 = vadd.f32 %v3072, %v3073
        %v3075 = vsel %vm2616, %v3053, 0.0
        %v3076 = vrot.slane %v3075, 4
        %v3077 = vadd.f32 %v3075, %v3076
        %v3078 = vrot.slane %v3077, 2
        %v3079 = vadd.f32 %v3077, %v3078
        %v3080 = vrot.slane %v3079, 1
        %v3081 = vadd.f32 %v3079, %v3080
        %v3082 = vsel %vm3046, %v2594, 0.0
        %v3083 = vsel %vm3047, %v2594, 0.0
        %v3084 = vsel %vm3048, %v2594, 0.0
        %v3085 = vsel %vm3049, %v2594, 0.0
        %v3086 = vsel %vm2616, %v3082, 0.0
        %v3087 = vrot.slane %v3086, 4
        %v3088 = vadd.f32 %v3086, %v3087
        %v3089 = vrot.slane %v3088, 2
        %v3090 = vadd.f32 %v3088, %v3089
        %v3091 = vrot.slane %v3090, 1
        %v3092 = vadd.f32 %v3090, %v3091
        %v3093 = vsel %vm2616, %v3083, 0.0
        %v3094 = vrot.slane %v3093, 4
        %v3095 = vadd.f32 %v3093, %v3094
        %v3096 = vrot.slane %v3095, 2
        %v3097 = vadd.f32 %v3095, %v3096
        %v3098 = vrot.slane %v3097, 1
        %v3099 = vadd.f32 %v3097, %v3098
        %v3100 = vsel %vm2616, %v3084, 0.0
        %v3101 = vrot.slane %v3100, 4
        %v3102 = vadd.f32 %v3100, %v3101
        %v3103 = vrot.slane %v3102, 2
        %v3104 = vadd.f32 %v3102, %v3103
        %v3105 = vrot.slane %v3104, 1
        %v3106 = vadd.f32 %v3104, %v3105
        %v3107 = vsel %vm2616, %v3085, 0.0
        %v3108 = vrot.slane %v3107, 4
        %v3109 = vadd.f32 %v3107, %v3108
        %v3110 = vrot.slane %v3109, 2
        %v3111 = vadd.f32 %v3109, %v3110
        %v3112 = vrot.slane %v3111, 1
        %v3113 = vadd.f32 %v3111, %v3112
        %v3114 = vperm.slane %v2933, 0
        %v3115 = vperm.slane %v2934, 0
        %v3116 = vperm.slane %v2935, 0
        %v3117 = vperm.slane %v2936, 0
        %v3118 = vsel %vm3046, %v3114, %v2933
        %v3119 = vsel %vm3047, %v3115, %v2934
        %v3120 = vsel %vm3048, %v3116, %v2935
        %v3121 = vsel %vm3049, %v3117, %v2936
        %v3122 = vsel %vm3029, 1, 0
        %vm3123 = vcmp.eq.s32.totalorder %v3122, 1
        %v3124 = vsel %vm3123, %v3060, %v3118
        %v3125 = vsel %vm3123, %v3067, %v3119
        %v3126 = vsel %vm3123, %v3074, %v3120
        %v3127 = vsel %vm3123, %v3081, %v3121
        %v3128 = vperm.slane %v2594, 0
        %v3129 = vsel %vm3046, %v3128, %v2594
        %v3130 = vsel %vm3047, %v3128, %v2594
        %v3131 = vsel %vm3048, %v3128, %v2594
        %v3132 = vsel %vm3049, %v3128, %v2594
        %v3133 = vsel %vm3123, %v3092, %v3129
        %v3134 = vsel %vm3123, %v3099, %v3130
        %v3135 = vsel %vm3123, %v3106, %v3131
        %v3136 = vsel %vm3123, %v3113, %v3132
        %v3137 = vrcp.pop %v3124
        %v3138 = vmul.f32 %v3124, %v3137
        %v3139 = vsub.f32 1.0, %v3138
        %v3140 = vmul.f32 %v3137, %v3139
        %v3141 = vadd.f32 %v3137, %v3140
        %vm3142 = vweird.f32 %v3124
        %vm3143 = vweird.f32 %v3137
        %vm3144 = vmor %vm3142, %vm3143
        %v3145 = vsel %vm3144, %v3137, %v3141
        %v3146 = vand.u32 2147483647, %v3124
        %vm3147 = vcmp.eq.f32.partialorder %v3146, 8.507059e+37
        %v3148 = vand.u32 %v3124, 2147483648
        %v3149 = vor.u32 1.1754944e-38, %v3148
        %v3150 = vsel %vm3147, %v3149, %v3145
        %v3151 = vmul.f32 1.0, %v3150
        %v3152 = vrcp.pop %v3125
        %v3153 = vmul.f32 %v3125, %v3152
        %v3154 = vsub.f32 1.0, %v3153
        %v3155 = vmul.f32 %v3152, %v3154
        %v3156 = vadd.f32 %v3152, %v3155
        %vm3157 = vweird.f32 %v3125
        %vm3158 = vweird.f32 %v3152
        %vm3159 = vmor %vm3157, %vm3158
        %v3160 = vsel %vm3159, %v3152, %v3156
        %v3161 = vand.u32 2147483647, %v3125
        %vm3162 = vcmp.eq.f32.partialorder %v3161, 8.507059e+37
        %v3163 = vand.u32 %v3125, 2147483648
        %v3164 = vor.u32 1.1754944e-38, %v3163
        %v3165 = vsel %vm3162, %v3164, %v3160
        %v3166 = vmul.f32 1.0, %v3165
        %v3167 = vrcp.pop %v3126
        %v3168 = vmul.f32 %v3126, %v3167
        %v3169 = vsub.f32 1.0, %v3168
        %v3170 = vmul.f32 %v3167, %v3169
        %v3171 = vadd.f32 %v3167, %v3170
        %vm3172 = vweird.f32 %v3126
        %vm3173 = vweird.f32 %v3167
        %vm3174 = vmor %vm3172, %vm3173
        %v3175 = vsel %vm3174, %v3167, %v3171
        %v3176 = vand.u32 2147483647, %v3126
        %vm3177 = vcmp.eq.f32.partialorder %v3176, 8.507059e+37
        %v3178 = vand.u32 %v3126, 2147483648
        %v3179 = vor.u32 1.1754944e-38, %v3178
        %v3180 = vsel %vm3177, %v3179, %v3175
        %v3181 = vmul.f32 1.0, %v3180
        %v3182 = vrcp.pop %v3127
        %v3183 = vmul.f32 %v3127, %v3182
        %v3184 = vsub.f32 1.0, %v3183
        %v3185 = vmul.f32 %v3182, %v3184
        %v3186 = vadd.f32 %v3182, %v3185
        %vm3187 = vweird.f32 %v3127
        %vm3188 = vweird.f32 %v3182
        %vm3189 = vmor %vm3187, %vm3188
        %v3190 = vsel %vm3189, %v3182, %v3186
        %v3191 = vand.u32 2147483647, %v3127
        %vm3192 = vcmp.eq.f32.partialorder %v3191, 8.507059e+37
        %v3193 = vand.u32 %v3127, 2147483648
        %v3194 = vor.u32 1.1754944e-38, %v3193
        %v3195 = vsel %vm3192, %v3194, %v3190
        %v3196 = vmul.f32 1.0, %v3195
        %3198 = vset.pattern.permute.xlu0 0
        %3199 = vperm.xlu0 %3198, %v3151
        %v3200 = vpop.permute.xlu0 %3199
        %3203 = vset.pattern.permute.xlu0 0
        %3204 = vperm.xlu0 %3203, %v3166
        %v3205 = vpop.permute.xlu0 %3204
        %3208 = vset.pattern.permute.xlu0 0
        %3209 = vperm.xlu0 %3208, %v3181
        %v3210 = vpop.permute.xlu0 %3209
        %3213 = vset.pattern.permute.xlu0 0
        %3214 = vperm.xlu0 %3213, %v3196
        %v3215 = vpop.permute.xlu0 %3214
        %v3217 = vmul.f32 %v3124, %v3200
        %v3218 = vmul.f32 %v3125, %v3205
        %v3219 = vmul.f32 %v3126, %v3210
        %v3220 = vmul.f32 %v3127, %v3215
        %v3221 = vmul.f32 %v3133, %v3200
        %v3222 = vmul.f32 %v3134, %v3205
        %v3223 = vmul.f32 %v3135, %v3210
        %v3224 = vmul.f32 %v3136, %v3215
        %v3225 = vsel %vm3123, 0.0, %v3124
        %v3226 = vsel %vm3123, 0.0, %v3125
        %v3227 = vsel %vm3123, 0.0, %v3126
        %v3228 = vsel %vm3123, 0.0, %v3127
        %3230 = vset.pattern.permute.xlu0 0
        %3231 = vperm.xlu0 %3230, %v3225
        %v3232 = vpop.permute.xlu0 %3231
        %3235 = vset.pattern.permute.xlu0 0
        %3236 = vperm.xlu0 %3235, %v3226
        %v3237 = vpop.permute.xlu0 %3236
        %3240 = vset.pattern.permute.xlu0 0
        %3241 = vperm.xlu0 %3240, %v3227
        %v3242 = vpop.permute.xlu0 %3241
        %3245 = vset.pattern.permute.xlu0 0
        %3246 = vperm.xlu0 %3245, %v3228
        %v3247 = vpop.permute.xlu0 %3246
        %v3249 = vperm.slane %v3217, 0
        %v3250 = vperm.slane %v3218, 0
        %v3251 = vperm.slane %v3219, 0
        %v3252 = vperm.slane %v3220, 0
        %v3253 = vmul.f32 %v3232, %v3249
        %v3254 = vmul.f32 %v3237, %v3250
        %v3255 = vmul.f32 %v3242, %v3251
        %v3256 = vmul.f32 %v3247, %v3252
        %v3257 = vsub.f32 %v3124, %v3253
        %v3258 = vsub.f32 %v3125, %v3254
        %v3259 = vsub.f32 %v3126, %v3255
        %v3260 = vsub.f32 %v3127, %v3256
        %v3261 = vsel %vm3123, %v3249, %v3257
        %v3262 = vsel %vm3123, %v3250, %v3258
        %v3263 = vsel %vm3123, %v3251, %v3259
        %v3264 = vsel %vm3123, %v3252, %v3260
        %v3265 = vperm.slane %v3221, 0
        %v3266 = vperm.slane %v3222, 0
        %v3267 = vperm.slane %v3223, 0
        %v3268 = vperm.slane %v3224, 0
        %v3269 = vmul.f32 %v3232, %v3265
        %v3270 = vmul.f32 %v3237, %v3266
        %v3271 = vmul.f32 %v3242, %v3267
        %v3272 = vmul.f32 %v3247, %v3268
        %v3273 = vsub.f32 %v3133, %v3269
        %v3274 = vsub.f32 %v3134, %v3270
        %v3275 = vsub.f32 %v3135, %v3271
        %v3276 = vsub.f32 %v3136, %v3272
        %v3277 = vsel %vm3123, %v3265, %v3273
        %v3278 = vsel %vm3123, %v3266, %v3274
        %v3279 = vsel %vm3123, %v3267, %v3275
        %v3280 = vsel %vm3123, %v3268, %v3276
        %vm3281 = vcmp.ge.s32.totalorder %v2589, 1
        %v3282 = vand.u32 2147483647, %v3261
        %v3283 = vand.u32 2147483647, %v3262
        %v3284 = vand.u32 2147483647, %v3263
        %v3285 = vand.u32 2147483647, %v3264
        %v3286 = vsel %vm3281, 1, 0
        %vm3287 = vcmp.eq.s32.totalorder %v3286, 1
        %v3288 = vsel %vm3287, %v3282, -1.0
        %v3289 = vsel %vm3287, %v3283, -1.0
        %v3290 = vsel %vm3287, %v3284, -1.0
        %v3291 = vsel %vm3287, %v3285, -1.0
        %vm3292 = vcmask 15368
        %v3293 = vsel %vm3292, %v3288, -inf
        %v3294 = vrot.slane %v3293, 4
        %v3295 = vmax.f32 %v3293, %v3294
        %v3296 = vrot.slane %v3295, 2
        %v3297 = vmax.f32 %v3295, %v3296
        %v3298 = vrot.slane %v3297, 1
        %v3299 = vmax.f32 %v3297, %v3298
        %v3300 = vsel %vm3292, %v3289, -inf
        %v3301 = vrot.slane %v3300, 4
        %v3302 = vmax.f32 %v3300, %v3301
        %v3303 = vrot.slane %v3302, 2
        %v3304 = vmax.f32 %v3302, %v3303
        %v3305 = vrot.slane %v3304, 1
        %v3306 = vmax.f32 %v3304, %v3305
        %v3307 = vsel %vm3292, %v3290, -inf
        %v3308 = vrot.slane %v3307, 4
        %v3309 = vmax.f32 %v3307, %v3308
        %v3310 = vrot.slane %v3309, 2
        %v3311 = vmax.f32 %v3309, %v3310
        %v3312 = vrot.slane %v3311, 1
        %v3313 = vmax.f32 %v3311, %v3312
        %v3314 = vsel %vm3292, %v3291, -inf
        %v3315 = vrot.slane %v3314, 4
        %v3316 = vmax.f32 %v3314, %v3315
        %v3317 = vrot.slane %v3316, 2
        %v3318 = vmax.f32 %v3316, %v3317
        %v3319 = vrot.slane %v3318, 1
        %v3320 = vmax.f32 %v3318, %v3319
        %vm3321 = vcmp.eq.f32.partialorder %v3288, %v3299
        %vm3322 = vcmp.eq.f32.partialorder %v3289, %v3306
        %vm3323 = vcmp.eq.f32.partialorder %v3290, %v3313
        %vm3324 = vcmp.eq.f32.partialorder %v3291, %v3320
        %v3325 = vsel %vm3321, %v2589, 8
        %v3326 = vsel %vm3322, %v2589, 8
        %v3327 = vsel %vm3323, %v2589, 8
        %v3328 = vsel %vm3324, %v2589, 8
        %v3329 = vsel %vm3292, %v3325, 2147483647
        %v3330 = vrot.slane %v3329, 4
        %vm3331 = vcmp.lt.s32.totalorder %v3329, %v3330
        %v3332 = vsel %vm3331, %v3329, %v3330
        %v3333 = vrot.slane %v3332, 2
        %vm3334 = vcmp.lt.s32.totalorder %v3332, %v3333
        %v3335 = vsel %vm3334, %v3332, %v3333
        %v3336 = vrot.slane %v3335, 1
        %vm3337 = vcmp.lt.s32.totalorder %v3335, %v3336
        %v3338 = vsel %vm3337, %v3335, %v3336
        %v3339 = vsel %vm3292, %v3326, 2147483647
        %v3340 = vrot.slane %v3339, 4
        %vm3341 = vcmp.lt.s32.totalorder %v3339, %v3340
        %v3342 = vsel %vm3341, %v3339, %v3340
        %v3343 = vrot.slane %v3342, 2
        %vm3344 = vcmp.lt.s32.totalorder %v3342, %v3343
        %v3345 = vsel %vm3344, %v3342, %v3343
        %v3346 = vrot.slane %v3345, 1
        %vm3347 = vcmp.lt.s32.totalorder %v3345, %v3346
        %v3348 = vsel %vm3347, %v3345, %v3346
        %v3349 = vsel %vm3292, %v3327, 2147483647
        %v3350 = vrot.slane %v3349, 4
        %vm3351 = vcmp.lt.s32.totalorder %v3349, %v3350
        %v3352 = vsel %vm3351, %v3349, %v3350
        %v3353 = vrot.slane %v3352, 2
        %vm3354 = vcmp.lt.s32.totalorder %v3352, %v3353
        %v3355 = vsel %vm3354, %v3352, %v3353
        %v3356 = vrot.slane %v3355, 1
        %vm3357 = vcmp.lt.s32.totalorder %v3355, %v3356
        %v3358 = vsel %vm3357, %v3355, %v3356
        %v3359 = vsel %vm3292, %v3328, 2147483647
        %v3360 = vrot.slane %v3359, 4
        %vm3361 = vcmp.lt.s32.totalorder %v3359, %v3360
        %v3362 = vsel %vm3361, %v3359, %v3360
        %v3363 = vrot.slane %v3362, 2
        %vm3364 = vcmp.lt.s32.totalorder %v3362, %v3363
        %v3365 = vsel %vm3364, %v3362, %v3363
        %v3366 = vrot.slane %v3365, 1
        %vm3367 = vcmp.lt.s32.totalorder %v3365, %v3366
        %v3368 = vsel %vm3367, %v3365, %v3366
        %vm3369 = vcmp.eq.s32.totalorder %v2589, %v3338
        %vm3370 = vcmp.eq.s32.totalorder %v2589, %v3348
        %vm3371 = vcmp.eq.s32.totalorder %v2589, %v3358
        %vm3372 = vcmp.eq.s32.totalorder %v2589, %v3368
        %vm3373 = vcmp.eq.s32.totalorder %v2589, 1
        %v3374 = vsel %vm3369, 1, 0
        %v3375 = vsel %vm3370, 1, 0
        %v3376 = vsel %vm3371, 1, 0
        %v3377 = vsel %vm3372, 1, 0
        %3378 = vset.pattern.permute.xlu0 1
        %3379 = vperm.xlu0 %3378, %v3374
        %v3380 = vpop.permute.xlu0 %3379
        %3381 = vset.pattern.permute.xlu0 1
        %3382 = vperm.xlu0 %3381, %v3375
        %v3383 = vpop.permute.xlu0 %3382
        %3384 = vset.pattern.permute.xlu0 1
        %3385 = vperm.xlu0 %3384, %v3376
        %v3386 = vpop.permute.xlu0 %3385
        %3387 = vset.pattern.permute.xlu0 1
        %3388 = vperm.xlu0 %3387, %v3377
        %v3389 = vpop.permute.xlu0 %3388
        %vm3390 = vcmp.eq.s32.totalorder %v3380, 1
        %vm3391 = vcmp.eq.s32.totalorder %v3383, 1
        %vm3392 = vcmp.eq.s32.totalorder %v3386, 1
        %vm3393 = vcmp.eq.s32.totalorder %v3389, 1
        %v3394 = vsel %vm3390, %v3261, 0.0
        %v3395 = vsel %vm3391, %v3262, 0.0
        %v3396 = vsel %vm3392, %v3263, 0.0
        %v3397 = vsel %vm3393, %v3264, 0.0
        %v3398 = vsel %vm2616, %v3394, 0.0
        %v3399 = vrot.slane %v3398, 4
        %v3400 = vadd.f32 %v3398, %v3399
        %v3401 = vrot.slane %v3400, 2
        %v3402 = vadd.f32 %v3400, %v3401
        %v3403 = vrot.slane %v3402, 1
        %v3404 = vadd.f32 %v3402, %v3403
        %v3405 = vsel %vm2616, %v3395, 0.0
        %v3406 = vrot.slane %v3405, 4
        %v3407 = vadd.f32 %v3405, %v3406
        %v3408 = vrot.slane %v3407, 2
        %v3409 = vadd.f32 %v3407, %v3408
        %v3410 = vrot.slane %v3409, 1
        %v3411 = vadd.f32 %v3409, %v3410
        %v3412 = vsel %vm2616, %v3396, 0.0
        %v3413 = vrot.slane %v3412, 4
        %v3414 = vadd.f32 %v3412, %v3413
        %v3415 = vrot.slane %v3414, 2
        %v3416 = vadd.f32 %v3414, %v3415
        %v3417 = vrot.slane %v3416, 1
        %v3418 = vadd.f32 %v3416, %v3417
        %v3419 = vsel %vm2616, %v3397, 0.0
        %v3420 = vrot.slane %v3419, 4
        %v3421 = vadd.f32 %v3419, %v3420
        %v3422 = vrot.slane %v3421, 2
        %v3423 = vadd.f32 %v3421, %v3422
        %v3424 = vrot.slane %v3423, 1
        %v3425 = vadd.f32 %v3423, %v3424
        %v3426 = vsel %vm3390, %v3277, 0.0
        %v3427 = vsel %vm3391, %v3278, 0.0
        %v3428 = vsel %vm3392, %v3279, 0.0
        %v3429 = vsel %vm3393, %v3280, 0.0
        %v3430 = vsel %vm2616, %v3426, 0.0
        %v3431 = vrot.slane %v3430, 4
        %v3432 = vadd.f32 %v3430, %v3431
        %v3433 = vrot.slane %v3432, 2
        %v3434 = vadd.f32 %v3432, %v3433
        %v3435 = vrot.slane %v3434, 1
        %v3436 = vadd.f32 %v3434, %v3435
        %v3437 = vsel %vm2616, %v3427, 0.0
        %v3438 = vrot.slane %v3437, 4
        %v3439 = vadd.f32 %v3437, %v3438
        %v3440 = vrot.slane %v3439, 2
        %v3441 = vadd.f32 %v3439, %v3440
        %v3442 = vrot.slane %v3441, 1
        %v3443 = vadd.f32 %v3441, %v3442
        %v3444 = vsel %vm2616, %v3428, 0.0
        %v3445 = vrot.slane %v3444, 4
        %v3446 = vadd.f32 %v3444, %v3445
        %v3447 = vrot.slane %v3446, 2
        %v3448 = vadd.f32 %v3446, %v3447
        %v3449 = vrot.slane %v3448, 1
        %v3450 = vadd.f32 %v3448, %v3449
        %v3451 = vsel %vm2616, %v3429, 0.0
        %v3452 = vrot.slane %v3451, 4
        %v3453 = vadd.f32 %v3451, %v3452
        %v3454 = vrot.slane %v3453, 2
        %v3455 = vadd.f32 %v3453, %v3454
        %v3456 = vrot.slane %v3455, 1
        %v3457 = vadd.f32 %v3455, %v3456
        %v3458 = vperm.slane %v3261, 1
        %v3459 = vperm.slane %v3262, 1
        %v3460 = vperm.slane %v3263, 1
        %v3461 = vperm.slane %v3264, 1
        %v3462 = vsel %vm3390, %v3458, %v3261
        %v3463 = vsel %vm3391, %v3459, %v3262
        %v3464 = vsel %vm3392, %v3460, %v3263
        %v3465 = vsel %vm3393, %v3461, %v3264
        %v3466 = vsel %vm3373, 1, 0
        %vm3467 = vcmp.eq.s32.totalorder %v3466, 1
        %v3468 = vsel %vm3467, %v3404, %v3462
        %v3469 = vsel %vm3467, %v3411, %v3463
        %v3470 = vsel %vm3467, %v3418, %v3464
        %v3471 = vsel %vm3467, %v3425, %v3465
        %v3472 = vperm.slane %v3277, 1
        %v3473 = vperm.slane %v3278, 1
        %v3474 = vperm.slane %v3279, 1
        %v3475 = vperm.slane %v3280, 1
        %v3476 = vsel %vm3390, %v3472, %v3277
        %v3477 = vsel %vm3391, %v3473, %v3278
        %v3478 = vsel %vm3392, %v3474, %v3279
        %v3479 = vsel %vm3393, %v3475, %v3280
        %v3480 = vsel %vm3467, %v3436, %v3476
        %v3481 = vsel %vm3467, %v3443, %v3477
        %v3482 = vsel %vm3467, %v3450, %v3478
        %v3483 = vsel %vm3467, %v3457, %v3479
        %v3484 = vrcp.pop %v3468
        %v3485 = vmul.f32 %v3468, %v3484
        %v3486 = vsub.f32 1.0, %v3485
        %v3487 = vmul.f32 %v3484, %v3486
        %v3488 = vadd.f32 %v3484, %v3487
        %vm3489 = vweird.f32 %v3468
        %vm3490 = vweird.f32 %v3484
        %vm3491 = vmor %vm3489, %vm3490
        %v3492 = vsel %vm3491, %v3484, %v3488
        %v3493 = vand.u32 2147483647, %v3468
        %vm3494 = vcmp.eq.f32.partialorder %v3493, 8.507059e+37
        %v3495 = vand.u32 %v3468, 2147483648
        %v3496 = vor.u32 1.1754944e-38, %v3495
        %v3497 = vsel %vm3494, %v3496, %v3492
        %v3498 = vmul.f32 1.0, %v3497
        %v3499 = vrcp.pop %v3469
        %v3500 = vmul.f32 %v3469, %v3499
        %v3501 = vsub.f32 1.0, %v3500
        %v3502 = vmul.f32 %v3499, %v3501
        %v3503 = vadd.f32 %v3499, %v3502
        %vm3504 = vweird.f32 %v3469
        %vm3505 = vweird.f32 %v3499
        %vm3506 = vmor %vm3504, %vm3505
        %v3507 = vsel %vm3506, %v3499, %v3503
        %v3508 = vand.u32 2147483647, %v3469
        %vm3509 = vcmp.eq.f32.partialorder %v3508, 8.507059e+37
        %v3510 = vand.u32 %v3469, 2147483648
        %v3511 = vor.u32 1.1754944e-38, %v3510
        %v3512 = vsel %vm3509, %v3511, %v3507
        %v3513 = vmul.f32 1.0, %v3512
        %v3514 = vrcp.pop %v3470
        %v3515 = vmul.f32 %v3470, %v3514
        %v3516 = vsub.f32 1.0, %v3515
        %v3517 = vmul.f32 %v3514, %v3516
        %v3518 = vadd.f32 %v3514, %v3517
        %vm3519 = vweird.f32 %v3470
        %vm3520 = vweird.f32 %v3514
        %vm3521 = vmor %vm3519, %vm3520
        %v3522 = vsel %vm3521, %v3514, %v3518
        %v3523 = vand.u32 2147483647, %v3470
        %vm3524 = vcmp.eq.f32.partialorder %v3523, 8.507059e+37
        %v3525 = vand.u32 %v3470, 2147483648
        %v3526 = vor.u32 1.1754944e-38, %v3525
        %v3527 = vsel %vm3524, %v3526, %v3522
        %v3528 = vmul.f32 1.0, %v3527
        %v3529 = vrcp.pop %v3471
        %v3530 = vmul.f32 %v3471, %v3529
        %v3531 = vsub.f32 1.0, %v3530
        %v3532 = vmul.f32 %v3529, %v3531
        %v3533 = vadd.f32 %v3529, %v3532
        %vm3534 = vweird.f32 %v3471
        %vm3535 = vweird.f32 %v3529
        %vm3536 = vmor %vm3534, %vm3535
        %v3537 = vsel %vm3536, %v3529, %v3533
        %v3538 = vand.u32 2147483647, %v3471
        %vm3539 = vcmp.eq.f32.partialorder %v3538, 8.507059e+37
        %v3540 = vand.u32 %v3471, 2147483648
        %v3541 = vor.u32 1.1754944e-38, %v3540
        %v3542 = vsel %vm3539, %v3541, %v3537
        %v3543 = vmul.f32 1.0, %v3542
        %3545 = vset.pattern.permute.xlu0 1
        %3546 = vperm.xlu0 %3545, %v3498
        %v3547 = vpop.permute.xlu0 %3546
        %3550 = vset.pattern.permute.xlu0 1
        %3551 = vperm.xlu0 %3550, %v3513
        %v3552 = vpop.permute.xlu0 %3551
        %3555 = vset.pattern.permute.xlu0 1
        %3556 = vperm.xlu0 %3555, %v3528
        %v3557 = vpop.permute.xlu0 %3556
        %3560 = vset.pattern.permute.xlu0 1
        %3561 = vperm.xlu0 %3560, %v3543
        %v3562 = vpop.permute.xlu0 %3561
        %v3564 = vmul.f32 %v3468, %v3547
        %v3565 = vmul.f32 %v3469, %v3552
        %v3566 = vmul.f32 %v3470, %v3557
        %v3567 = vmul.f32 %v3471, %v3562
        %v3568 = vmul.f32 %v3480, %v3547
        %v3569 = vmul.f32 %v3481, %v3552
        %v3570 = vmul.f32 %v3482, %v3557
        %v3571 = vmul.f32 %v3483, %v3562
        %v3572 = vsel %vm3467, 0.0, %v3468
        %v3573 = vsel %vm3467, 0.0, %v3469
        %v3574 = vsel %vm3467, 0.0, %v3470
        %v3575 = vsel %vm3467, 0.0, %v3471
        %3577 = vset.pattern.permute.xlu0 1
        %3578 = vperm.xlu0 %3577, %v3572
        %v3579 = vpop.permute.xlu0 %3578
        %3582 = vset.pattern.permute.xlu0 1
        %3583 = vperm.xlu0 %3582, %v3573
        %v3584 = vpop.permute.xlu0 %3583
        %3587 = vset.pattern.permute.xlu0 1
        %3588 = vperm.xlu0 %3587, %v3574
        %v3589 = vpop.permute.xlu0 %3588
        %3592 = vset.pattern.permute.xlu0 1
        %3593 = vperm.xlu0 %3592, %v3575
        %v3594 = vpop.permute.xlu0 %3593
        %v3596 = vperm.slane %v3564, 1
        %v3597 = vperm.slane %v3565, 1
        %v3598 = vperm.slane %v3566, 1
        %v3599 = vperm.slane %v3567, 1
        %v3600 = vmul.f32 %v3579, %v3596
        %v3601 = vmul.f32 %v3584, %v3597
        %v3602 = vmul.f32 %v3589, %v3598
        %v3603 = vmul.f32 %v3594, %v3599
        %v3604 = vsub.f32 %v3468, %v3600
        %v3605 = vsub.f32 %v3469, %v3601
        %v3606 = vsub.f32 %v3470, %v3602
        %v3607 = vsub.f32 %v3471, %v3603
        %v3608 = vsel %vm3467, %v3596, %v3604
        %v3609 = vsel %vm3467, %v3597, %v3605
        %v3610 = vsel %vm3467, %v3598, %v3606
        %v3611 = vsel %vm3467, %v3599, %v3607
        %v3612 = vperm.slane %v3568, 1
        %v3613 = vperm.slane %v3569, 1
        %v3614 = vperm.slane %v3570, 1
        %v3615 = vperm.slane %v3571, 1
        %v3616 = vmul.f32 %v3579, %v3612
        %v3617 = vmul.f32 %v3584, %v3613
        %v3618 = vmul.f32 %v3589, %v3614
        %v3619 = vmul.f32 %v3594, %v3615
        %v3620 = vsub.f32 %v3480, %v3616
        %v3621 = vsub.f32 %v3481, %v3617
        %v3622 = vsub.f32 %v3482, %v3618
        %v3623 = vsub.f32 %v3483, %v3619
        %v3624 = vsel %vm3467, %v3612, %v3620
        %v3625 = vsel %vm3467, %v3613, %v3621
        %v3626 = vsel %vm3467, %v3614, %v3622
        %v3627 = vsel %vm3467, %v3615, %v3623
        %vm3628 = vcmp.ge.s32.totalorder %v2589, 2
        %v3629 = vand.u32 2147483647, %v3608
        %v3630 = vand.u32 2147483647, %v3609
        %v3631 = vand.u32 2147483647, %v3610
        %v3632 = vand.u32 2147483647, %v3611
        %v3633 = vsel %vm3628, 1, 0
        %vm3634 = vcmp.eq.s32.totalorder %v3633, 1
        %v3635 = vsel %vm3634, %v3629, -1.0
        %v3636 = vsel %vm3634, %v3630, -1.0
        %v3637 = vsel %vm3634, %v3631, -1.0
        %v3638 = vsel %vm3634, %v3632, -1.0
        %vm3639 = vcmask 23568
        %v3640 = vsel %vm3639, %v3635, -inf
        %v3641 = vrot.slane %v3640, 4
        %v3642 = vmax.f32 %v3640, %v3641
        %v3643 = vrot.slane %v3642, 2
        %v3644 = vmax.f32 %v3642, %v3643
        %v3645 = vrot.slane %v3644, 1
        %v3646 = vmax.f32 %v3644, %v3645
        %v3647 = vsel %vm3639, %v3636, -inf
        %v3648 = vrot.slane %v3647, 4
        %v3649 = vmax.f32 %v3647, %v3648
        %v3650 = vrot.slane %v3649, 2
        %v3651 = vmax.f32 %v3649, %v3650
        %v3652 = vrot.slane %v3651, 1
        %v3653 = vmax.f32 %v3651, %v3652
        %v3654 = vsel %vm3639, %v3637, -inf
        %v3655 = vrot.slane %v3654, 4
        %v3656 = vmax.f32 %v3654, %v3655
        %v3657 = vrot.slane %v3656, 2
        %v3658 = vmax.f32 %v3656, %v3657
        %v3659 = vrot.slane %v3658, 1
        %v3660 = vmax.f32 %v3658, %v3659
        %v3661 = vsel %vm3639, %v3638, -inf
        %v3662 = vrot.slane %v3661, 4
        %v3663 = vmax.f32 %v3661, %v3662
        %v3664 = vrot.slane %v3663, 2
        %v3665 = vmax.f32 %v3663, %v3664
        %v3666 = vrot.slane %v3665, 1
        %v3667 = vmax.f32 %v3665, %v3666
        %vm3668 = vcmp.eq.f32.partialorder %v3635, %v3646
        %vm3669 = vcmp.eq.f32.partialorder %v3636, %v3653
        %vm3670 = vcmp.eq.f32.partialorder %v3637, %v3660
        %vm3671 = vcmp.eq.f32.partialorder %v3638, %v3667
        %v3672 = vsel %vm3668, %v2589, 8
        %v3673 = vsel %vm3669, %v2589, 8
        %v3674 = vsel %vm3670, %v2589, 8
        %v3675 = vsel %vm3671, %v2589, 8
        %v3676 = vsel %vm3639, %v3672, 2147483647
        %v3677 = vrot.slane %v3676, 4
        %vm3678 = vcmp.lt.s32.totalorder %v3676, %v3677
        %v3679 = vsel %vm3678, %v3676, %v3677
        %v3680 = vrot.slane %v3679, 2
        %vm3681 = vcmp.lt.s32.totalorder %v3679, %v3680
        %v3682 = vsel %vm3681, %v3679, %v3680
        %v3683 = vrot.slane %v3682, 1
        %vm3684 = vcmp.lt.s32.totalorder %v3682, %v3683
        %v3685 = vsel %vm3684, %v3682, %v3683
        %v3686 = vsel %vm3639, %v3673, 2147483647
        %v3687 = vrot.slane %v3686, 4
        %vm3688 = vcmp.lt.s32.totalorder %v3686, %v3687
        %v3689 = vsel %vm3688, %v3686, %v3687
        %v3690 = vrot.slane %v3689, 2
        %vm3691 = vcmp.lt.s32.totalorder %v3689, %v3690
        %v3692 = vsel %vm3691, %v3689, %v3690
        %v3693 = vrot.slane %v3692, 1
        %vm3694 = vcmp.lt.s32.totalorder %v3692, %v3693
        %v3695 = vsel %vm3694, %v3692, %v3693
        %v3696 = vsel %vm3639, %v3674, 2147483647
        %v3697 = vrot.slane %v3696, 4
        %vm3698 = vcmp.lt.s32.totalorder %v3696, %v3697
        %v3699 = vsel %vm3698, %v3696, %v3697
        %v3700 = vrot.slane %v3699, 2
        %vm3701 = vcmp.lt.s32.totalorder %v3699, %v3700
        %v3702 = vsel %vm3701, %v3699, %v3700
        %v3703 = vrot.slane %v3702, 1
        %vm3704 = vcmp.lt.s32.totalorder %v3702, %v3703
        %v3705 = vsel %vm3704, %v3702, %v3703
        %v3706 = vsel %vm3639, %v3675, 2147483647
        %v3707 = vrot.slane %v3706, 4
        %vm3708 = vcmp.lt.s32.totalorder %v3706, %v3707
        %v3709 = vsel %vm3708, %v3706, %v3707
        %v3710 = vrot.slane %v3709, 2
        %vm3711 = vcmp.lt.s32.totalorder %v3709, %v3710
        %v3712 = vsel %vm3711, %v3709, %v3710
        %v3713 = vrot.slane %v3712, 1
        %vm3714 = vcmp.lt.s32.totalorder %v3712, %v3713
        %v3715 = vsel %vm3714, %v3712, %v3713
        %vm3716 = vcmp.eq.s32.totalorder %v2589, %v3685
        %vm3717 = vcmp.eq.s32.totalorder %v2589, %v3695
        %vm3718 = vcmp.eq.s32.totalorder %v2589, %v3705
        %vm3719 = vcmp.eq.s32.totalorder %v2589, %v3715
        %vm3720 = vcmp.eq.s32.totalorder %v2589, 2
        %v3721 = vsel %vm3716, 1, 0
        %v3722 = vsel %vm3717, 1, 0
        %v3723 = vsel %vm3718, 1, 0
        %v3724 = vsel %vm3719, 1, 0
        %3725 = vset.pattern.permute.xlu0 2
        %3726 = vperm.xlu0 %3725, %v3721
        %v3727 = vpop.permute.xlu0 %3726
        %3728 = vset.pattern.permute.xlu0 2
        %3729 = vperm.xlu0 %3728, %v3722
        %v3730 = vpop.permute.xlu0 %3729
        %3731 = vset.pattern.permute.xlu0 2
        %3732 = vperm.xlu0 %3731, %v3723
        %v3733 = vpop.permute.xlu0 %3732
        %3734 = vset.pattern.permute.xlu0 2
        %3735 = vperm.xlu0 %3734, %v3724
        %v3736 = vpop.permute.xlu0 %3735
        %vm3737 = vcmp.eq.s32.totalorder %v3727, 1
        %vm3738 = vcmp.eq.s32.totalorder %v3730, 1
        %vm3739 = vcmp.eq.s32.totalorder %v3733, 1
        %vm3740 = vcmp.eq.s32.totalorder %v3736, 1
        %v3741 = vsel %vm3737, %v3608, 0.0
        %v3742 = vsel %vm3738, %v3609, 0.0
        %v3743 = vsel %vm3739, %v3610, 0.0
        %v3744 = vsel %vm3740, %v3611, 0.0
        %v3745 = vsel %vm2616, %v3741, 0.0
        %v3746 = vrot.slane %v3745, 4
        %v3747 = vadd.f32 %v3745, %v3746
        %v3748 = vrot.slane %v3747, 2
        %v3749 = vadd.f32 %v3747, %v3748
        %v3750 = vrot.slane %v3749, 1
        %v3751 = vadd.f32 %v3749, %v3750
        %v3752 = vsel %vm2616, %v3742, 0.0
        %v3753 = vrot.slane %v3752, 4
        %v3754 = vadd.f32 %v3752, %v3753
        %v3755 = vrot.slane %v3754, 2
        %v3756 = vadd.f32 %v3754, %v3755
        %v3757 = vrot.slane %v3756, 1
        %v3758 = vadd.f32 %v3756, %v3757
        %v3759 = vsel %vm2616, %v3743, 0.0
        %v3760 = vrot.slane %v3759, 4
        %v3761 = vadd.f32 %v3759, %v3760
        %v3762 = vrot.slane %v3761, 2
        %v3763 = vadd.f32 %v3761, %v3762
        %v3764 = vrot.slane %v3763, 1
        %v3765 = vadd.f32 %v3763, %v3764
        %v3766 = vsel %vm2616, %v3744, 0.0
        %v3767 = vrot.slane %v3766, 4
        %v3768 = vadd.f32 %v3766, %v3767
        %v3769 = vrot.slane %v3768, 2
        %v3770 = vadd.f32 %v3768, %v3769
        %v3771 = vrot.slane %v3770, 1
        %v3772 = vadd.f32 %v3770, %v3771
        %v3773 = vsel %vm3737, %v3624, 0.0
        %v3774 = vsel %vm3738, %v3625, 0.0
        %v3775 = vsel %vm3739, %v3626, 0.0
        %v3776 = vsel %vm3740, %v3627, 0.0
        %v3777 = vsel %vm2616, %v3773, 0.0
        %v3778 = vrot.slane %v3777, 4
        %v3779 = vadd.f32 %v3777, %v3778
        %v3780 = vrot.slane %v3779, 2
        %v3781 = vadd.f32 %v3779, %v3780
        %v3782 = vrot.slane %v3781, 1
        %v3783 = vadd.f32 %v3781, %v3782
        %v3784 = vsel %vm2616, %v3774, 0.0
        %v3785 = vrot.slane %v3784, 4
        %v3786 = vadd.f32 %v3784, %v3785
        %v3787 = vrot.slane %v3786, 2
        %v3788 = vadd.f32 %v3786, %v3787
        %v3789 = vrot.slane %v3788, 1
        %v3790 = vadd.f32 %v3788, %v3789
        %v3791 = vsel %vm2616, %v3775, 0.0
        %v3792 = vrot.slane %v3791, 4
        %v3793 = vadd.f32 %v3791, %v3792
        %v3794 = vrot.slane %v3793, 2
        %v3795 = vadd.f32 %v3793, %v3794
        %v3796 = vrot.slane %v3795, 1
        %v3797 = vadd.f32 %v3795, %v3796
        %v3798 = vsel %vm2616, %v3776, 0.0
        %v3799 = vrot.slane %v3798, 4
        %v3800 = vadd.f32 %v3798, %v3799
        %v3801 = vrot.slane %v3800, 2
        %v3802 = vadd.f32 %v3800, %v3801
        %v3803 = vrot.slane %v3802, 1
        %v3804 = vadd.f32 %v3802, %v3803
        %v3805 = vperm.slane %v3608, 2
        %v3806 = vperm.slane %v3609, 2
        %v3807 = vperm.slane %v3610, 2
        %v3808 = vperm.slane %v3611, 2
        %v3809 = vsel %vm3737, %v3805, %v3608
        %v3810 = vsel %vm3738, %v3806, %v3609
        %v3811 = vsel %vm3739, %v3807, %v3610
        %v3812 = vsel %vm3740, %v3808, %v3611
        %v3813 = vsel %vm3720, 1, 0
        %vm3814 = vcmp.eq.s32.totalorder %v3813, 1
        %v3815 = vsel %vm3814, %v3751, %v3809
        %v3816 = vsel %vm3814, %v3758, %v3810
        %v3817 = vsel %vm3814, %v3765, %v3811
        %v3818 = vsel %vm3814, %v3772, %v3812
        %v3819 = vperm.slane %v3624, 2
        %v3820 = vperm.slane %v3625, 2
        %v3821 = vperm.slane %v3626, 2
        %v3822 = vperm.slane %v3627, 2
        %v3823 = vsel %vm3737, %v3819, %v3624
        %v3824 = vsel %vm3738, %v3820, %v3625
        %v3825 = vsel %vm3739, %v3821, %v3626
        %v3826 = vsel %vm3740, %v3822, %v3627
        %v3827 = vsel %vm3814, %v3783, %v3823
        %v3828 = vsel %vm3814, %v3790, %v3824
        %v3829 = vsel %vm3814, %v3797, %v3825
        %v3830 = vsel %vm3814, %v3804, %v3826
        %v3831 = vrcp.pop %v3815
        %v3832 = vmul.f32 %v3815, %v3831
        %v3833 = vsub.f32 1.0, %v3832
        %v3834 = vmul.f32 %v3831, %v3833
        %v3835 = vadd.f32 %v3831, %v3834
        %vm3836 = vweird.f32 %v3815
        %vm3837 = vweird.f32 %v3831
        %vm3838 = vmor %vm3836, %vm3837
        %v3839 = vsel %vm3838, %v3831, %v3835
        %v3840 = vand.u32 2147483647, %v3815
        %vm3841 = vcmp.eq.f32.partialorder %v3840, 8.507059e+37
        %v3842 = vand.u32 %v3815, 2147483648
        %v3843 = vor.u32 1.1754944e-38, %v3842
        %v3844 = vsel %vm3841, %v3843, %v3839
        %v3845 = vmul.f32 1.0, %v3844
        %v3846 = vrcp.pop %v3816
        %v3847 = vmul.f32 %v3816, %v3846
        %v3848 = vsub.f32 1.0, %v3847
        %v3849 = vmul.f32 %v3846, %v3848
        %v3850 = vadd.f32 %v3846, %v3849
        %vm3851 = vweird.f32 %v3816
        %vm3852 = vweird.f32 %v3846
        %vm3853 = vmor %vm3851, %vm3852
        %v3854 = vsel %vm3853, %v3846, %v3850
        %v3855 = vand.u32 2147483647, %v3816
        %vm3856 = vcmp.eq.f32.partialorder %v3855, 8.507059e+37
        %v3857 = vand.u32 %v3816, 2147483648
        %v3858 = vor.u32 1.1754944e-38, %v3857
        %v3859 = vsel %vm3856, %v3858, %v3854
        %v3860 = vmul.f32 1.0, %v3859
        %v3861 = vrcp.pop %v3817
        %v3862 = vmul.f32 %v3817, %v3861
        %v3863 = vsub.f32 1.0, %v3862
        %v3864 = vmul.f32 %v3861, %v3863
        %v3865 = vadd.f32 %v3861, %v3864
        %vm3866 = vweird.f32 %v3817
        %vm3867 = vweird.f32 %v3861
        %vm3868 = vmor %vm3866, %vm3867
        %v3869 = vsel %vm3868, %v3861, %v3865
        %v3870 = vand.u32 2147483647, %v3817
        %vm3871 = vcmp.eq.f32.partialorder %v3870, 8.507059e+37
        %v3872 = vand.u32 %v3817, 2147483648
        %v3873 = vor.u32 1.1754944e-38, %v3872
        %v3874 = vsel %vm3871, %v3873, %v3869
        %v3875 = vmul.f32 1.0, %v3874
        %v3876 = vrcp.pop %v3818
        %v3877 = vmul.f32 %v3818, %v3876
        %v3878 = vsub.f32 1.0, %v3877
        %v3879 = vmul.f32 %v3876, %v3878
        %v3880 = vadd.f32 %v3876, %v3879
        %vm3881 = vweird.f32 %v3818
        %vm3882 = vweird.f32 %v3876
        %vm3883 = vmor %vm3881, %vm3882
        %v3884 = vsel %vm3883, %v3876, %v3880
        %v3885 = vand.u32 2147483647, %v3818
        %vm3886 = vcmp.eq.f32.partialorder %v3885, 8.507059e+37
        %v3887 = vand.u32 %v3818, 2147483648
        %v3888 = vor.u32 1.1754944e-38, %v3887
        %v3889 = vsel %vm3886, %v3888, %v3884
        %v3890 = vmul.f32 1.0, %v3889
        %3892 = vset.pattern.permute.xlu0 2
        %3893 = vperm.xlu0 %3892, %v3845
        %v3894 = vpop.permute.xlu0 %3893
        %3897 = vset.pattern.permute.xlu0 2
        %3898 = vperm.xlu0 %3897, %v3860
        %v3899 = vpop.permute.xlu0 %3898
        %3902 = vset.pattern.permute.xlu0 2
        %3903 = vperm.xlu0 %3902, %v3875
        %v3904 = vpop.permute.xlu0 %3903
        %3907 = vset.pattern.permute.xlu0 2
        %3908 = vperm.xlu0 %3907, %v3890
        %v3909 = vpop.permute.xlu0 %3908
        %v3911 = vmul.f32 %v3815, %v3894
        %v3912 = vmul.f32 %v3816, %v3899
        %v3913 = vmul.f32 %v3817, %v3904
        %v3914 = vmul.f32 %v3818, %v3909
        %v3915 = vmul.f32 %v3827, %v3894
        %v3916 = vmul.f32 %v3828, %v3899
        %v3917 = vmul.f32 %v3829, %v3904
        %v3918 = vmul.f32 %v3830, %v3909
        %v3919 = vsel %vm3814, 0.0, %v3815
        %v3920 = vsel %vm3814, 0.0, %v3816
        %v3921 = vsel %vm3814, 0.0, %v3817
        %v3922 = vsel %vm3814, 0.0, %v3818
        %3924 = vset.pattern.permute.xlu0 2
        %3925 = vperm.xlu0 %3924, %v3919
        %v3926 = vpop.permute.xlu0 %3925
        %3929 = vset.pattern.permute.xlu0 2
        %3930 = vperm.xlu0 %3929, %v3920
        %v3931 = vpop.permute.xlu0 %3930
        %3934 = vset.pattern.permute.xlu0 2
        %3935 = vperm.xlu0 %3934, %v3921
        %v3936 = vpop.permute.xlu0 %3935
        %3939 = vset.pattern.permute.xlu0 2
        %3940 = vperm.xlu0 %3939, %v3922
        %v3941 = vpop.permute.xlu0 %3940
        %v3943 = vperm.slane %v3911, 2
        %v3944 = vperm.slane %v3912, 2
        %v3945 = vperm.slane %v3913, 2
        %v3946 = vperm.slane %v3914, 2
        %v3947 = vmul.f32 %v3926, %v3943
        %v3948 = vmul.f32 %v3931, %v3944
        %v3949 = vmul.f32 %v3936, %v3945
        %v3950 = vmul.f32 %v3941, %v3946
        %v3951 = vsub.f32 %v3815, %v3947
        %v3952 = vsub.f32 %v3816, %v3948
        %v3953 = vsub.f32 %v3817, %v3949
        %v3954 = vsub.f32 %v3818, %v3950
        %v3955 = vsel %vm3814, %v3943, %v3951
        %v3956 = vsel %vm3814, %v3944, %v3952
        %v3957 = vsel %vm3814, %v3945, %v3953
        %v3958 = vsel %vm3814, %v3946, %v3954
        %v3959 = vperm.slane %v3915, 2
        %v3960 = vperm.slane %v3916, 2
        %v3961 = vperm.slane %v3917, 2
        %v3962 = vperm.slane %v3918, 2
        %v3963 = vmul.f32 %v3926, %v3959
        %v3964 = vmul.f32 %v3931, %v3960
        %v3965 = vmul.f32 %v3936, %v3961
        %v3966 = vmul.f32 %v3941, %v3962
        %v3967 = vsub.f32 %v3827, %v3963
        %v3968 = vsub.f32 %v3828, %v3964
        %v3969 = vsub.f32 %v3829, %v3965
        %v3970 = vsub.f32 %v3830, %v3966
        %v3971 = vsel %vm3814, %v3959, %v3967
        %v3972 = vsel %vm3814, %v3960, %v3968
        %v3973 = vsel %vm3814, %v3961, %v3969
        %v3974 = vsel %vm3814, %v3962, %v3970
        %vm3975 = vcmp.ge.s32.totalorder %v2589, 3
        %v3976 = vand.u32 2147483647, %v3955
        %v3977 = vand.u32 2147483647, %v3956
        %v3978 = vand.u32 2147483647, %v3957
        %v3979 = vand.u32 2147483647, %v3958
        %v3980 = vsel %vm3975, 1, 0
        %vm3981 = vcmp.eq.s32.totalorder %v3980, 1
        %v3982 = vsel %vm3981, %v3976, -1.0
        %v3983 = vsel %vm3981, %v3977, -1.0
        %v3984 = vsel %vm3981, %v3978, -1.0
        %v3985 = vsel %vm3981, %v3979, -1.0
        %vm3986 = vcmask 31768
        %v3987 = vsel %vm3986, %v3982, -inf
        %v3988 = vrot.slane %v3987, 4
        %v3989 = vmax.f32 %v3987, %v3988
        %v3990 = vrot.slane %v3989, 2
        %v3991 = vmax.f32 %v3989, %v3990
        %v3992 = vrot.slane %v3991, 1
        %v3993 = vmax.f32 %v3991, %v3992
        %v3994 = vsel %vm3986, %v3983, -inf
        %v3995 = vrot.slane %v3994, 4
        %v3996 = vmax.f32 %v3994, %v3995
        %v3997 = vrot.slane %v3996, 2
        %v3998 = vmax.f32 %v3996, %v3997
        %v3999 = vrot.slane %v3998, 1
        %v4000 = vmax.f32 %v3998, %v3999
        %v4001 = vsel %vm3986, %v3984, -inf
        %v4002 = vrot.slane %v4001, 4
        %v4003 = vmax.f32 %v4001, %v4002
        %v4004 = vrot.slane %v4003, 2
        %v4005 = vmax.f32 %v4003, %v4004
        %v4006 = vrot.slane %v4005, 1
        %v4007 = vmax.f32 %v4005, %v4006
        %v4008 = vsel %vm3986, %v3985, -inf
        %v4009 = vrot.slane %v4008, 4
        %v4010 = vmax.f32 %v4008, %v4009
        %v4011 = vrot.slane %v4010, 2
        %v4012 = vmax.f32 %v4010, %v4011
        %v4013 = vrot.slane %v4012, 1
        %v4014 = vmax.f32 %v4012, %v4013
        %vm4015 = vcmp.eq.f32.partialorder %v3982, %v3993
        %vm4016 = vcmp.eq.f32.partialorder %v3983, %v4000
        %vm4017 = vcmp.eq.f32.partialorder %v3984, %v4007
        %vm4018 = vcmp.eq.f32.partialorder %v3985, %v4014
        %v4019 = vsel %vm4015, %v2589, 8
        %v4020 = vsel %vm4016, %v2589, 8
        %v4021 = vsel %vm4017, %v2589, 8
        %v4022 = vsel %vm4018, %v2589, 8
        %v4023 = vsel %vm3986, %v4019, 2147483647
        %v4024 = vrot.slane %v4023, 4
        %vm4025 = vcmp.lt.s32.totalorder %v4023, %v4024
        %v4026 = vsel %vm4025, %v4023, %v4024
        %v4027 = vrot.slane %v4026, 2
        %vm4028 = vcmp.lt.s32.totalorder %v4026, %v4027
        %v4029 = vsel %vm4028, %v4026, %v4027
        %v4030 = vrot.slane %v4029, 1
        %vm4031 = vcmp.lt.s32.totalorder %v4029, %v4030
        %v4032 = vsel %vm4031, %v4029, %v4030
        %v4033 = vsel %vm3986, %v4020, 2147483647
        %v4034 = vrot.slane %v4033, 4
        %vm4035 = vcmp.lt.s32.totalorder %v4033, %v4034
        %v4036 = vsel %vm4035, %v4033, %v4034
        %v4037 = vrot.slane %v4036, 2
        %vm4038 = vcmp.lt.s32.totalorder %v4036, %v4037
        %v4039 = vsel %vm4038, %v4036, %v4037
        %v4040 = vrot.slane %v4039, 1
        %vm4041 = vcmp.lt.s32.totalorder %v4039, %v4040
        %v4042 = vsel %vm4041, %v4039, %v4040
        %v4043 = vsel %vm3986, %v4021, 2147483647
        %v4044 = vrot.slane %v4043, 4
        %vm4045 = vcmp.lt.s32.totalorder %v4043, %v4044
        %v4046 = vsel %vm4045, %v4043, %v4044
        %v4047 = vrot.slane %v4046, 2
        %vm4048 = vcmp.lt.s32.totalorder %v4046, %v4047
        %v4049 = vsel %vm4048, %v4046, %v4047
        %v4050 = vrot.slane %v4049, 1
        %vm4051 = vcmp.lt.s32.totalorder %v4049, %v4050
        %v4052 = vsel %vm4051, %v4049, %v4050
        %v4053 = vsel %vm3986, %v4022, 2147483647
        %v4054 = vrot.slane %v4053, 4
        %vm4055 = vcmp.lt.s32.totalorder %v4053, %v4054
        %v4056 = vsel %vm4055, %v4053, %v4054
        %v4057 = vrot.slane %v4056, 2
        %vm4058 = vcmp.lt.s32.totalorder %v4056, %v4057
        %v4059 = vsel %vm4058, %v4056, %v4057
        %v4060 = vrot.slane %v4059, 1
        %vm4061 = vcmp.lt.s32.totalorder %v4059, %v4060
        %v4062 = vsel %vm4061, %v4059, %v4060
        %vm4063 = vcmp.eq.s32.totalorder %v2589, %v4032
        %vm4064 = vcmp.eq.s32.totalorder %v2589, %v4042
        %vm4065 = vcmp.eq.s32.totalorder %v2589, %v4052
        %vm4066 = vcmp.eq.s32.totalorder %v2589, %v4062
        %vm4067 = vcmp.eq.s32.totalorder %v2589, 3
        %v4068 = vsel %vm4063, 1, 0
        %v4069 = vsel %vm4064, 1, 0
        %v4070 = vsel %vm4065, 1, 0
        %v4071 = vsel %vm4066, 1, 0
        %4072 = vset.pattern.permute.xlu0 3
        %4073 = vperm.xlu0 %4072, %v4068
        %v4074 = vpop.permute.xlu0 %4073
        %4075 = vset.pattern.permute.xlu0 3
        %4076 = vperm.xlu0 %4075, %v4069
        %v4077 = vpop.permute.xlu0 %4076
        %4078 = vset.pattern.permute.xlu0 3
        %4079 = vperm.xlu0 %4078, %v4070
        %v4080 = vpop.permute.xlu0 %4079
        %4081 = vset.pattern.permute.xlu0 3
        %4082 = vperm.xlu0 %4081, %v4071
        %v4083 = vpop.permute.xlu0 %4082
        %vm4084 = vcmp.eq.s32.totalorder %v4074, 1
        %vm4085 = vcmp.eq.s32.totalorder %v4077, 1
        %vm4086 = vcmp.eq.s32.totalorder %v4080, 1
        %vm4087 = vcmp.eq.s32.totalorder %v4083, 1
        %v4088 = vsel %vm4084, %v3955, 0.0
        %v4089 = vsel %vm4085, %v3956, 0.0
        %v4090 = vsel %vm4086, %v3957, 0.0
        %v4091 = vsel %vm4087, %v3958, 0.0
        %v4092 = vsel %vm2616, %v4088, 0.0
        %v4093 = vrot.slane %v4092, 4
        %v4094 = vadd.f32 %v4092, %v4093
        %v4095 = vrot.slane %v4094, 2
        %v4096 = vadd.f32 %v4094, %v4095
        %v4097 = vrot.slane %v4096, 1
        %v4098 = vadd.f32 %v4096, %v4097
        %v4099 = vsel %vm2616, %v4089, 0.0
        %v4100 = vrot.slane %v4099, 4
        %v4101 = vadd.f32 %v4099, %v4100
        %v4102 = vrot.slane %v4101, 2
        %v4103 = vadd.f32 %v4101, %v4102
        %v4104 = vrot.slane %v4103, 1
        %v4105 = vadd.f32 %v4103, %v4104
        %v4106 = vsel %vm2616, %v4090, 0.0
        %v4107 = vrot.slane %v4106, 4
        %v4108 = vadd.f32 %v4106, %v4107
        %v4109 = vrot.slane %v4108, 2
        %v4110 = vadd.f32 %v4108, %v4109
        %v4111 = vrot.slane %v4110, 1
        %v4112 = vadd.f32 %v4110, %v4111
        %v4113 = vsel %vm2616, %v4091, 0.0
        %v4114 = vrot.slane %v4113, 4
        %v4115 = vadd.f32 %v4113, %v4114
        %v4116 = vrot.slane %v4115, 2
        %v4117 = vadd.f32 %v4115, %v4116
        %v4118 = vrot.slane %v4117, 1
        %v4119 = vadd.f32 %v4117, %v4118
        %v4120 = vsel %vm4084, %v3971, 0.0
        %v4121 = vsel %vm4085, %v3972, 0.0
        %v4122 = vsel %vm4086, %v3973, 0.0
        %v4123 = vsel %vm4087, %v3974, 0.0
        %v4124 = vsel %vm2616, %v4120, 0.0
        %v4125 = vrot.slane %v4124, 4
        %v4126 = vadd.f32 %v4124, %v4125
        %v4127 = vrot.slane %v4126, 2
        %v4128 = vadd.f32 %v4126, %v4127
        %v4129 = vrot.slane %v4128, 1
        %v4130 = vadd.f32 %v4128, %v4129
        %v4131 = vsel %vm2616, %v4121, 0.0
        %v4132 = vrot.slane %v4131, 4
        %v4133 = vadd.f32 %v4131, %v4132
        %v4134 = vrot.slane %v4133, 2
        %v4135 = vadd.f32 %v4133, %v4134
        %v4136 = vrot.slane %v4135, 1
        %v4137 = vadd.f32 %v4135, %v4136
        %v4138 = vsel %vm2616, %v4122, 0.0
        %v4139 = vrot.slane %v4138, 4
        %v4140 = vadd.f32 %v4138, %v4139
        %v4141 = vrot.slane %v4140, 2
        %v4142 = vadd.f32 %v4140, %v4141
        %v4143 = vrot.slane %v4142, 1
        %v4144 = vadd.f32 %v4142, %v4143
        %v4145 = vsel %vm2616, %v4123, 0.0
        %v4146 = vrot.slane %v4145, 4
        %v4147 = vadd.f32 %v4145, %v4146
        %v4148 = vrot.slane %v4147, 2
        %v4149 = vadd.f32 %v4147, %v4148
        %v4150 = vrot.slane %v4149, 1
        %v4151 = vadd.f32 %v4149, %v4150
        %v4152 = vperm.slane %v3955, 3
        %v4153 = vperm.slane %v3956, 3
        %v4154 = vperm.slane %v3957, 3
        %v4155 = vperm.slane %v3958, 3
        %v4156 = vsel %vm4084, %v4152, %v3955
        %v4157 = vsel %vm4085, %v4153, %v3956
        %v4158 = vsel %vm4086, %v4154, %v3957
        %v4159 = vsel %vm4087, %v4155, %v3958
        %v4160 = vsel %vm4067, 1, 0
        %vm4161 = vcmp.eq.s32.totalorder %v4160, 1
        %v4162 = vsel %vm4161, %v4098, %v4156
        %v4163 = vsel %vm4161, %v4105, %v4157
        %v4164 = vsel %vm4161, %v4112, %v4158
        %v4165 = vsel %vm4161, %v4119, %v4159
        %v4166 = vperm.slane %v3971, 3
        %v4167 = vperm.slane %v3972, 3
        %v4168 = vperm.slane %v3973, 3
        %v4169 = vperm.slane %v3974, 3
        %v4170 = vsel %vm4084, %v4166, %v3971
        %v4171 = vsel %vm4085, %v4167, %v3972
        %v4172 = vsel %vm4086, %v4168, %v3973
        %v4173 = vsel %vm4087, %v4169, %v3974
        %v4174 = vsel %vm4161, %v4130, %v4170
        %v4175 = vsel %vm4161, %v4137, %v4171
        %v4176 = vsel %vm4161, %v4144, %v4172
        %v4177 = vsel %vm4161, %v4151, %v4173
        %v4178 = vrcp.pop %v4162
        %v4179 = vmul.f32 %v4162, %v4178
        %v4180 = vsub.f32 1.0, %v4179
        %v4181 = vmul.f32 %v4178, %v4180
        %v4182 = vadd.f32 %v4178, %v4181
        %vm4183 = vweird.f32 %v4162
        %vm4184 = vweird.f32 %v4178
        %vm4185 = vmor %vm4183, %vm4184
        %v4186 = vsel %vm4185, %v4178, %v4182
        %v4187 = vand.u32 2147483647, %v4162
        %vm4188 = vcmp.eq.f32.partialorder %v4187, 8.507059e+37
        %v4189 = vand.u32 %v4162, 2147483648
        %v4190 = vor.u32 1.1754944e-38, %v4189
        %v4191 = vsel %vm4188, %v4190, %v4186
        %v4192 = vmul.f32 1.0, %v4191
        %v4193 = vrcp.pop %v4163
        %v4194 = vmul.f32 %v4163, %v4193
        %v4195 = vsub.f32 1.0, %v4194
        %v4196 = vmul.f32 %v4193, %v4195
        %v4197 = vadd.f32 %v4193, %v4196
        %vm4198 = vweird.f32 %v4163
        %vm4199 = vweird.f32 %v4193
        %vm4200 = vmor %vm4198, %vm4199
        %v4201 = vsel %vm4200, %v4193, %v4197
        %v4202 = vand.u32 2147483647, %v4163
        %vm4203 = vcmp.eq.f32.partialorder %v4202, 8.507059e+37
        %v4204 = vand.u32 %v4163, 2147483648
        %v4205 = vor.u32 1.1754944e-38, %v4204
        %v4206 = vsel %vm4203, %v4205, %v4201
        %v4207 = vmul.f32 1.0, %v4206
        %v4208 = vrcp.pop %v4164
        %v4209 = vmul.f32 %v4164, %v4208
        %v4210 = vsub.f32 1.0, %v4209
        %v4211 = vmul.f32 %v4208, %v4210
        %v4212 = vadd.f32 %v4208, %v4211
        %vm4213 = vweird.f32 %v4164
        %vm4214 = vweird.f32 %v4208
        %vm4215 = vmor %vm4213, %vm4214
        %v4216 = vsel %vm4215, %v4208, %v4212
        %v4217 = vand.u32 2147483647, %v4164
        %vm4218 = vcmp.eq.f32.partialorder %v4217, 8.507059e+37
        %v4219 = vand.u32 %v4164, 2147483648
        %v4220 = vor.u32 1.1754944e-38, %v4219
        %v4221 = vsel %vm4218, %v4220, %v4216
        %v4222 = vmul.f32 1.0, %v4221
        %v4223 = vrcp.pop %v4165
        %v4224 = vmul.f32 %v4165, %v4223
        %v4225 = vsub.f32 1.0, %v4224
        %v4226 = vmul.f32 %v4223, %v4225
        %v4227 = vadd.f32 %v4223, %v4226
        %vm4228 = vweird.f32 %v4165
        %vm4229 = vweird.f32 %v4223
        %vm4230 = vmor %vm4228, %vm4229
        %v4231 = vsel %vm4230, %v4223, %v4227
        %v4232 = vand.u32 2147483647, %v4165
        %vm4233 = vcmp.eq.f32.partialorder %v4232, 8.507059e+37
        %v4234 = vand.u32 %v4165, 2147483648
        %v4235 = vor.u32 1.1754944e-38, %v4234
        %v4236 = vsel %vm4233, %v4235, %v4231
        %v4237 = vmul.f32 1.0, %v4236
        %4239 = vset.pattern.permute.xlu0 3
        %4240 = vperm.xlu0 %4239, %v4192
        %v4241 = vpop.permute.xlu0 %4240
        %4244 = vset.pattern.permute.xlu0 3
        %4245 = vperm.xlu0 %4244, %v4207
        %v4246 = vpop.permute.xlu0 %4245
        %4249 = vset.pattern.permute.xlu0 3
        %4250 = vperm.xlu0 %4249, %v4222
        %v4251 = vpop.permute.xlu0 %4250
        %4254 = vset.pattern.permute.xlu0 3
        %4255 = vperm.xlu0 %4254, %v4237
        %v4256 = vpop.permute.xlu0 %4255
        %v4258 = vmul.f32 %v4162, %v4241
        %v4259 = vmul.f32 %v4163, %v4246
        %v4260 = vmul.f32 %v4164, %v4251
        %v4261 = vmul.f32 %v4165, %v4256
        %v4262 = vmul.f32 %v4174, %v4241
        %v4263 = vmul.f32 %v4175, %v4246
        %v4264 = vmul.f32 %v4176, %v4251
        %v4265 = vmul.f32 %v4177, %v4256
        %v4266 = vsel %vm4161, 0.0, %v4162
        %v4267 = vsel %vm4161, 0.0, %v4163
        %v4268 = vsel %vm4161, 0.0, %v4164
        %v4269 = vsel %vm4161, 0.0, %v4165
        %4271 = vset.pattern.permute.xlu0 3
        %4272 = vperm.xlu0 %4271, %v4266
        %v4273 = vpop.permute.xlu0 %4272
        %4276 = vset.pattern.permute.xlu0 3
        %4277 = vperm.xlu0 %4276, %v4267
        %v4278 = vpop.permute.xlu0 %4277
        %4281 = vset.pattern.permute.xlu0 3
        %4282 = vperm.xlu0 %4281, %v4268
        %v4283 = vpop.permute.xlu0 %4282
        %4286 = vset.pattern.permute.xlu0 3
        %4287 = vperm.xlu0 %4286, %v4269
        %v4288 = vpop.permute.xlu0 %4287
        %v4290 = vperm.slane %v4258, 3
        %v4291 = vperm.slane %v4259, 3
        %v4292 = vperm.slane %v4260, 3
        %v4293 = vperm.slane %v4261, 3
        %v4294 = vmul.f32 %v4273, %v4290
        %v4295 = vmul.f32 %v4278, %v4291
        %v4296 = vmul.f32 %v4283, %v4292
        %v4297 = vmul.f32 %v4288, %v4293
        %v4298 = vsub.f32 %v4162, %v4294
        %v4299 = vsub.f32 %v4163, %v4295
        %v4300 = vsub.f32 %v4164, %v4296
        %v4301 = vsub.f32 %v4165, %v4297
        %v4302 = vsel %vm4161, %v4290, %v4298
        %v4303 = vsel %vm4161, %v4291, %v4299
        %v4304 = vsel %vm4161, %v4292, %v4300
        %v4305 = vsel %vm4161, %v4293, %v4301
        %v4306 = vperm.slane %v4262, 3
        %v4307 = vperm.slane %v4263, 3
        %v4308 = vperm.slane %v4264, 3
        %v4309 = vperm.slane %v4265, 3
        %v4310 = vmul.f32 %v4273, %v4306
        %v4311 = vmul.f32 %v4278, %v4307
        %v4312 = vmul.f32 %v4283, %v4308
        %v4313 = vmul.f32 %v4288, %v4309
        %v4314 = vsub.f32 %v4174, %v4310
        %v4315 = vsub.f32 %v4175, %v4311
        %v4316 = vsub.f32 %v4176, %v4312
        %v4317 = vsub.f32 %v4177, %v4313
        %v4318 = vsel %vm4161, %v4306, %v4314
        %v4319 = vsel %vm4161, %v4307, %v4315
        %v4320 = vsel %vm4161, %v4308, %v4316
        %v4321 = vsel %vm4161, %v4309, %v4317
        %vm4322 = vcmp.ge.s32.totalorder %v2589, 4
        %v4323 = vand.u32 2147483647, %v4302
        %v4324 = vand.u32 2147483647, %v4303
        %v4325 = vand.u32 2147483647, %v4304
        %v4326 = vand.u32 2147483647, %v4305
        %v4327 = vsel %vm4322, 1, 0
        %vm4328 = vcmp.eq.s32.totalorder %v4327, 1
        %v4329 = vsel %vm4328, %v4323, -1.0
        %v4330 = vsel %vm4328, %v4324, -1.0
        %v4331 = vsel %vm4328, %v4325, -1.0
        %v4332 = vsel %vm4328, %v4326, -1.0
        %vm4333 = vcmask 39968
        %v4334 = vsel %vm4333, %v4329, -inf
        %v4335 = vrot.slane %v4334, 4
        %v4336 = vmax.f32 %v4334, %v4335
        %v4337 = vrot.slane %v4336, 2
        %v4338 = vmax.f32 %v4336, %v4337
        %v4339 = vrot.slane %v4338, 1
        %v4340 = vmax.f32 %v4338, %v4339
        %v4341 = vsel %vm4333, %v4330, -inf
        %v4342 = vrot.slane %v4341, 4
        %v4343 = vmax.f32 %v4341, %v4342
        %v4344 = vrot.slane %v4343, 2
        %v4345 = vmax.f32 %v4343, %v4344
        %v4346 = vrot.slane %v4345, 1
        %v4347 = vmax.f32 %v4345, %v4346
        %v4348 = vsel %vm4333, %v4331, -inf
        %v4349 = vrot.slane %v4348, 4
        %v4350 = vmax.f32 %v4348, %v4349
        %v4351 = vrot.slane %v4350, 2
        %v4352 = vmax.f32 %v4350, %v4351
        %v4353 = vrot.slane %v4352, 1
        %v4354 = vmax.f32 %v4352, %v4353
        %v4355 = vsel %vm4333, %v4332, -inf
        %v4356 = vrot.slane %v4355, 4
        %v4357 = vmax.f32 %v4355, %v4356
        %v4358 = vrot.slane %v4357, 2
        %v4359 = vmax.f32 %v4357, %v4358
        %v4360 = vrot.slane %v4359, 1
        %v4361 = vmax.f32 %v4359, %v4360
        %vm4362 = vcmp.eq.f32.partialorder %v4329, %v4340
        %vm4363 = vcmp.eq.f32.partialorder %v4330, %v4347
        %vm4364 = vcmp.eq.f32.partialorder %v4331, %v4354
        %vm4365 = vcmp.eq.f32.partialorder %v4332, %v4361
        %v4366 = vsel %vm4362, %v2589, 8
        %v4367 = vsel %vm4363, %v2589, 8
        %v4368 = vsel %vm4364, %v2589, 8
        %v4369 = vsel %vm4365, %v2589, 8
        %v4370 = vsel %vm4333, %v4366, 2147483647
        %v4371 = vrot.slane %v4370, 4
        %vm4372 = vcmp.lt.s32.totalorder %v4370, %v4371
        %v4373 = vsel %vm4372, %v4370, %v4371
        %v4374 = vrot.slane %v4373, 2
        %vm4375 = vcmp.lt.s32.totalorder %v4373, %v4374
        %v4376 = vsel %vm4375, %v4373, %v4374
        %v4377 = vrot.slane %v4376, 1
        %vm4378 = vcmp.lt.s32.totalorder %v4376, %v4377
        %v4379 = vsel %vm4378, %v4376, %v4377
        %v4380 = vsel %vm4333, %v4367, 2147483647
        %v4381 = vrot.slane %v4380, 4
        %vm4382 = vcmp.lt.s32.totalorder %v4380, %v4381
        %v4383 = vsel %vm4382, %v4380, %v4381
        %v4384 = vrot.slane %v4383, 2
        %vm4385 = vcmp.lt.s32.totalorder %v4383, %v4384
        %v4386 = vsel %vm4385, %v4383, %v4384
        %v4387 = vrot.slane %v4386, 1
        %vm4388 = vcmp.lt.s32.totalorder %v4386, %v4387
        %v4389 = vsel %vm4388, %v4386, %v4387
        %v4390 = vsel %vm4333, %v4368, 2147483647
        %v4391 = vrot.slane %v4390, 4
        %vm4392 = vcmp.lt.s32.totalorder %v4390, %v4391
        %v4393 = vsel %vm4392, %v4390, %v4391
        %v4394 = vrot.slane %v4393, 2
        %vm4395 = vcmp.lt.s32.totalorder %v4393, %v4394
        %v4396 = vsel %vm4395, %v4393, %v4394
        %v4397 = vrot.slane %v4396, 1
        %vm4398 = vcmp.lt.s32.totalorder %v4396, %v4397
        %v4399 = vsel %vm4398, %v4396, %v4397
        %v4400 = vsel %vm4333, %v4369, 2147483647
        %v4401 = vrot.slane %v4400, 4
        %vm4402 = vcmp.lt.s32.totalorder %v4400, %v4401
        %v4403 = vsel %vm4402, %v4400, %v4401
        %v4404 = vrot.slane %v4403, 2
        %vm4405 = vcmp.lt.s32.totalorder %v4403, %v4404
        %v4406 = vsel %vm4405, %v4403, %v4404
        %v4407 = vrot.slane %v4406, 1
        %vm4408 = vcmp.lt.s32.totalorder %v4406, %v4407
        %v4409 = vsel %vm4408, %v4406, %v4407
        %vm4410 = vcmp.eq.s32.totalorder %v2589, %v4379
        %vm4411 = vcmp.eq.s32.totalorder %v2589, %v4389
        %vm4412 = vcmp.eq.s32.totalorder %v2589, %v4399
        %vm4413 = vcmp.eq.s32.totalorder %v2589, %v4409
        %vm4414 = vcmp.eq.s32.totalorder %v2589, 4
        %v4415 = vsel %vm4410, 1, 0
        %v4416 = vsel %vm4411, 1, 0
        %v4417 = vsel %vm4412, 1, 0
        %v4418 = vsel %vm4413, 1, 0
        %4419 = vset.pattern.permute.xlu0 4
        %4420 = vperm.xlu0 %4419, %v4415
        %v4421 = vpop.permute.xlu0 %4420
        %4422 = vset.pattern.permute.xlu0 4
        %4423 = vperm.xlu0 %4422, %v4416
        %v4424 = vpop.permute.xlu0 %4423
        %4425 = vset.pattern.permute.xlu0 4
        %4426 = vperm.xlu0 %4425, %v4417
        %v4427 = vpop.permute.xlu0 %4426
        %4428 = vset.pattern.permute.xlu0 4
        %4429 = vperm.xlu0 %4428, %v4418
        %v4430 = vpop.permute.xlu0 %4429
        %vm4431 = vcmp.eq.s32.totalorder %v4421, 1
        %vm4432 = vcmp.eq.s32.totalorder %v4424, 1
        %vm4433 = vcmp.eq.s32.totalorder %v4427, 1
        %vm4434 = vcmp.eq.s32.totalorder %v4430, 1
        %v4435 = vsel %vm4431, %v4302, 0.0
        %v4436 = vsel %vm4432, %v4303, 0.0
        %v4437 = vsel %vm4433, %v4304, 0.0
        %v4438 = vsel %vm4434, %v4305, 0.0
        %v4439 = vsel %vm2616, %v4435, 0.0
        %v4440 = vrot.slane %v4439, 4
        %v4441 = vadd.f32 %v4439, %v4440
        %v4442 = vrot.slane %v4441, 2
        %v4443 = vadd.f32 %v4441, %v4442
        %v4444 = vrot.slane %v4443, 1
        %v4445 = vadd.f32 %v4443, %v4444
        %v4446 = vsel %vm2616, %v4436, 0.0
        %v4447 = vrot.slane %v4446, 4
        %v4448 = vadd.f32 %v4446, %v4447
        %v4449 = vrot.slane %v4448, 2
        %v4450 = vadd.f32 %v4448, %v4449
        %v4451 = vrot.slane %v4450, 1
        %v4452 = vadd.f32 %v4450, %v4451
        %v4453 = vsel %vm2616, %v4437, 0.0
        %v4454 = vrot.slane %v4453, 4
        %v4455 = vadd.f32 %v4453, %v4454
        %v4456 = vrot.slane %v4455, 2
        %v4457 = vadd.f32 %v4455, %v4456
        %v4458 = vrot.slane %v4457, 1
        %v4459 = vadd.f32 %v4457, %v4458
        %v4460 = vsel %vm2616, %v4438, 0.0
        %v4461 = vrot.slane %v4460, 4
        %v4462 = vadd.f32 %v4460, %v4461
        %v4463 = vrot.slane %v4462, 2
        %v4464 = vadd.f32 %v4462, %v4463
        %v4465 = vrot.slane %v4464, 1
        %v4466 = vadd.f32 %v4464, %v4465
        %v4467 = vsel %vm4431, %v4318, 0.0
        %v4468 = vsel %vm4432, %v4319, 0.0
        %v4469 = vsel %vm4433, %v4320, 0.0
        %v4470 = vsel %vm4434, %v4321, 0.0
        %v4471 = vsel %vm2616, %v4467, 0.0
        %v4472 = vrot.slane %v4471, 4
        %v4473 = vadd.f32 %v4471, %v4472
        %v4474 = vrot.slane %v4473, 2
        %v4475 = vadd.f32 %v4473, %v4474
        %v4476 = vrot.slane %v4475, 1
        %v4477 = vadd.f32 %v4475, %v4476
        %v4478 = vsel %vm2616, %v4468, 0.0
        %v4479 = vrot.slane %v4478, 4
        %v4480 = vadd.f32 %v4478, %v4479
        %v4481 = vrot.slane %v4480, 2
        %v4482 = vadd.f32 %v4480, %v4481
        %v4483 = vrot.slane %v4482, 1
        %v4484 = vadd.f32 %v4482, %v4483
        %v4485 = vsel %vm2616, %v4469, 0.0
        %v4486 = vrot.slane %v4485, 4
        %v4487 = vadd.f32 %v4485, %v4486
        %v4488 = vrot.slane %v4487, 2
        %v4489 = vadd.f32 %v4487, %v4488
        %v4490 = vrot.slane %v4489, 1
        %v4491 = vadd.f32 %v4489, %v4490
        %v4492 = vsel %vm2616, %v4470, 0.0
        %v4493 = vrot.slane %v4492, 4
        %v4494 = vadd.f32 %v4492, %v4493
        %v4495 = vrot.slane %v4494, 2
        %v4496 = vadd.f32 %v4494, %v4495
        %v4497 = vrot.slane %v4496, 1
        %v4498 = vadd.f32 %v4496, %v4497
        %v4499 = vperm.slane %v4302, 4
        %v4500 = vperm.slane %v4303, 4
        %v4501 = vperm.slane %v4304, 4
        %v4502 = vperm.slane %v4305, 4
        %v4503 = vsel %vm4431, %v4499, %v4302
        %v4504 = vsel %vm4432, %v4500, %v4303
        %v4505 = vsel %vm4433, %v4501, %v4304
        %v4506 = vsel %vm4434, %v4502, %v4305
        %v4507 = vsel %vm4414, 1, 0
        %vm4508 = vcmp.eq.s32.totalorder %v4507, 1
        %v4509 = vsel %vm4508, %v4445, %v4503
        %v4510 = vsel %vm4508, %v4452, %v4504
        %v4511 = vsel %vm4508, %v4459, %v4505
        %v4512 = vsel %vm4508, %v4466, %v4506
        %v4513 = vperm.slane %v4318, 4
        %v4514 = vperm.slane %v4319, 4
        %v4515 = vperm.slane %v4320, 4
        %v4516 = vperm.slane %v4321, 4
        %v4517 = vsel %vm4431, %v4513, %v4318
        %v4518 = vsel %vm4432, %v4514, %v4319
        %v4519 = vsel %vm4433, %v4515, %v4320
        %v4520 = vsel %vm4434, %v4516, %v4321
        %v4521 = vsel %vm4508, %v4477, %v4517
        %v4522 = vsel %vm4508, %v4484, %v4518
        %v4523 = vsel %vm4508, %v4491, %v4519
        %v4524 = vsel %vm4508, %v4498, %v4520
        %v4525 = vrcp.pop %v4509
        %v4526 = vmul.f32 %v4509, %v4525
        %v4527 = vsub.f32 1.0, %v4526
        %v4528 = vmul.f32 %v4525, %v4527
        %v4529 = vadd.f32 %v4525, %v4528
        %vm4530 = vweird.f32 %v4509
        %vm4531 = vweird.f32 %v4525
        %vm4532 = vmor %vm4530, %vm4531
        %v4533 = vsel %vm4532, %v4525, %v4529
        %v4534 = vand.u32 2147483647, %v4509
        %vm4535 = vcmp.eq.f32.partialorder %v4534, 8.507059e+37
        %v4536 = vand.u32 %v4509, 2147483648
        %v4537 = vor.u32 1.1754944e-38, %v4536
        %v4538 = vsel %vm4535, %v4537, %v4533
        %v4539 = vmul.f32 1.0, %v4538
        %v4540 = vrcp.pop %v4510
        %v4541 = vmul.f32 %v4510, %v4540
        %v4542 = vsub.f32 1.0, %v4541
        %v4543 = vmul.f32 %v4540, %v4542
        %v4544 = vadd.f32 %v4540, %v4543
        %vm4545 = vweird.f32 %v4510
        %vm4546 = vweird.f32 %v4540
        %vm4547 = vmor %vm4545, %vm4546
        %v4548 = vsel %vm4547, %v4540, %v4544
        %v4549 = vand.u32 2147483647, %v4510
        %vm4550 = vcmp.eq.f32.partialorder %v4549, 8.507059e+37
        %v4551 = vand.u32 %v4510, 2147483648
        %v4552 = vor.u32 1.1754944e-38, %v4551
        %v4553 = vsel %vm4550, %v4552, %v4548
        %v4554 = vmul.f32 1.0, %v4553
        %v4555 = vrcp.pop %v4511
        %v4556 = vmul.f32 %v4511, %v4555
        %v4557 = vsub.f32 1.0, %v4556
        %v4558 = vmul.f32 %v4555, %v4557
        %v4559 = vadd.f32 %v4555, %v4558
        %vm4560 = vweird.f32 %v4511
        %vm4561 = vweird.f32 %v4555
        %vm4562 = vmor %vm4560, %vm4561
        %v4563 = vsel %vm4562, %v4555, %v4559
        %v4564 = vand.u32 2147483647, %v4511
        %vm4565 = vcmp.eq.f32.partialorder %v4564, 8.507059e+37
        %v4566 = vand.u32 %v4511, 2147483648
        %v4567 = vor.u32 1.1754944e-38, %v4566
        %v4568 = vsel %vm4565, %v4567, %v4563
        %v4569 = vmul.f32 1.0, %v4568
        %v4570 = vrcp.pop %v4512
        %v4571 = vmul.f32 %v4512, %v4570
        %v4572 = vsub.f32 1.0, %v4571
        %v4573 = vmul.f32 %v4570, %v4572
        %v4574 = vadd.f32 %v4570, %v4573
        %vm4575 = vweird.f32 %v4512
        %vm4576 = vweird.f32 %v4570
        %vm4577 = vmor %vm4575, %vm4576
        %v4578 = vsel %vm4577, %v4570, %v4574
        %v4579 = vand.u32 2147483647, %v4512
        %vm4580 = vcmp.eq.f32.partialorder %v4579, 8.507059e+37
        %v4581 = vand.u32 %v4512, 2147483648
        %v4582 = vor.u32 1.1754944e-38, %v4581
        %v4583 = vsel %vm4580, %v4582, %v4578
        %v4584 = vmul.f32 1.0, %v4583
        %4586 = vset.pattern.permute.xlu0 4
        %4587 = vperm.xlu0 %4586, %v4539
        %v4588 = vpop.permute.xlu0 %4587
        %4591 = vset.pattern.permute.xlu0 4
        %4592 = vperm.xlu0 %4591, %v4554
        %v4593 = vpop.permute.xlu0 %4592
        %4596 = vset.pattern.permute.xlu0 4
        %4597 = vperm.xlu0 %4596, %v4569
        %v4598 = vpop.permute.xlu0 %4597
        %4601 = vset.pattern.permute.xlu0 4
        %4602 = vperm.xlu0 %4601, %v4584
        %v4603 = vpop.permute.xlu0 %4602
        %v4605 = vmul.f32 %v4509, %v4588
        %v4606 = vmul.f32 %v4510, %v4593
        %v4607 = vmul.f32 %v4511, %v4598
        %v4608 = vmul.f32 %v4512, %v4603
        %v4609 = vmul.f32 %v4521, %v4588
        %v4610 = vmul.f32 %v4522, %v4593
        %v4611 = vmul.f32 %v4523, %v4598
        %v4612 = vmul.f32 %v4524, %v4603
        %v4613 = vsel %vm4508, 0.0, %v4509
        %v4614 = vsel %vm4508, 0.0, %v4510
        %v4615 = vsel %vm4508, 0.0, %v4511
        %v4616 = vsel %vm4508, 0.0, %v4512
        %4618 = vset.pattern.permute.xlu0 4
        %4619 = vperm.xlu0 %4618, %v4613
        %v4620 = vpop.permute.xlu0 %4619
        %4623 = vset.pattern.permute.xlu0 4
        %4624 = vperm.xlu0 %4623, %v4614
        %v4625 = vpop.permute.xlu0 %4624
        %4628 = vset.pattern.permute.xlu0 4
        %4629 = vperm.xlu0 %4628, %v4615
        %v4630 = vpop.permute.xlu0 %4629
        %4633 = vset.pattern.permute.xlu0 4
        %4634 = vperm.xlu0 %4633, %v4616
        %v4635 = vpop.permute.xlu0 %4634
        %v4637 = vperm.slane %v4605, 4
        %v4638 = vperm.slane %v4606, 4
        %v4639 = vperm.slane %v4607, 4
        %v4640 = vperm.slane %v4608, 4
        %v4641 = vmul.f32 %v4620, %v4637
        %v4642 = vmul.f32 %v4625, %v4638
        %v4643 = vmul.f32 %v4630, %v4639
        %v4644 = vmul.f32 %v4635, %v4640
        %v4645 = vsub.f32 %v4509, %v4641
        %v4646 = vsub.f32 %v4510, %v4642
        %v4647 = vsub.f32 %v4511, %v4643
        %v4648 = vsub.f32 %v4512, %v4644
        %v4649 = vsel %vm4508, %v4637, %v4645
        %v4650 = vsel %vm4508, %v4638, %v4646
        %v4651 = vsel %vm4508, %v4639, %v4647
        %v4652 = vsel %vm4508, %v4640, %v4648
        %v4653 = vperm.slane %v4609, 4
        %v4654 = vperm.slane %v4610, 4
        %v4655 = vperm.slane %v4611, 4
        %v4656 = vperm.slane %v4612, 4
        %v4657 = vmul.f32 %v4620, %v4653
        %v4658 = vmul.f32 %v4625, %v4654
        %v4659 = vmul.f32 %v4630, %v4655
        %v4660 = vmul.f32 %v4635, %v4656
        %v4661 = vsub.f32 %v4521, %v4657
        %v4662 = vsub.f32 %v4522, %v4658
        %v4663 = vsub.f32 %v4523, %v4659
        %v4664 = vsub.f32 %v4524, %v4660
        %v4665 = vsel %vm4508, %v4653, %v4661
        %v4666 = vsel %vm4508, %v4654, %v4662
        %v4667 = vsel %vm4508, %v4655, %v4663
        %v4668 = vsel %vm4508, %v4656, %v4664
        %vm4669 = vcmp.ge.s32.totalorder %v2589, 5
        %v4670 = vand.u32 2147483647, %v4649
        %v4671 = vand.u32 2147483647, %v4650
        %v4672 = vand.u32 2147483647, %v4651
        %v4673 = vand.u32 2147483647, %v4652
        %v4674 = vsel %vm4669, 1, 0
        %vm4675 = vcmp.eq.s32.totalorder %v4674, 1
        %v4676 = vsel %vm4675, %v4670, -1.0
        %v4677 = vsel %vm4675, %v4671, -1.0
        %v4678 = vsel %vm4675, %v4672, -1.0
        %v4679 = vsel %vm4675, %v4673, -1.0
        %vm4680 = vcmask 48168
        %v4681 = vsel %vm4680, %v4676, -inf
        %v4682 = vrot.slane %v4681, 4
        %v4683 = vmax.f32 %v4681, %v4682
        %v4684 = vrot.slane %v4683, 2
        %v4685 = vmax.f32 %v4683, %v4684
        %v4686 = vrot.slane %v4685, 1
        %v4687 = vmax.f32 %v4685, %v4686
        %v4688 = vsel %vm4680, %v4677, -inf
        %v4689 = vrot.slane %v4688, 4
        %v4690 = vmax.f32 %v4688, %v4689
        %v4691 = vrot.slane %v4690, 2
        %v4692 = vmax.f32 %v4690, %v4691
        %v4693 = vrot.slane %v4692, 1
        %v4694 = vmax.f32 %v4692, %v4693
        %v4695 = vsel %vm4680, %v4678, -inf
        %v4696 = vrot.slane %v4695, 4
        %v4697 = vmax.f32 %v4695, %v4696
        %v4698 = vrot.slane %v4697, 2
        %v4699 = vmax.f32 %v4697, %v4698
        %v4700 = vrot.slane %v4699, 1
        %v4701 = vmax.f32 %v4699, %v4700
        %v4702 = vsel %vm4680, %v4679, -inf
        %v4703 = vrot.slane %v4702, 4
        %v4704 = vmax.f32 %v4702, %v4703
        %v4705 = vrot.slane %v4704, 2
        %v4706 = vmax.f32 %v4704, %v4705
        %v4707 = vrot.slane %v4706, 1
        %v4708 = vmax.f32 %v4706, %v4707
        %vm4709 = vcmp.eq.f32.partialorder %v4676, %v4687
        %vm4710 = vcmp.eq.f32.partialorder %v4677, %v4694
        %vm4711 = vcmp.eq.f32.partialorder %v4678, %v4701
        %vm4712 = vcmp.eq.f32.partialorder %v4679, %v4708
        %v4713 = vsel %vm4709, %v2589, 8
        %v4714 = vsel %vm4710, %v2589, 8
        %v4715 = vsel %vm4711, %v2589, 8
        %v4716 = vsel %vm4712, %v2589, 8
        %v4717 = vsel %vm4680, %v4713, 2147483647
        %v4718 = vrot.slane %v4717, 4
        %vm4719 = vcmp.lt.s32.totalorder %v4717, %v4718
        %v4720 = vsel %vm4719, %v4717, %v4718
        %v4721 = vrot.slane %v4720, 2
        %vm4722 = vcmp.lt.s32.totalorder %v4720, %v4721
        %v4723 = vsel %vm4722, %v4720, %v4721
        %v4724 = vrot.slane %v4723, 1
        %vm4725 = vcmp.lt.s32.totalorder %v4723, %v4724
        %v4726 = vsel %vm4725, %v4723, %v4724
        %v4727 = vsel %vm4680, %v4714, 2147483647
        %v4728 = vrot.slane %v4727, 4
        %vm4729 = vcmp.lt.s32.totalorder %v4727, %v4728
        %v4730 = vsel %vm4729, %v4727, %v4728
        %v4731 = vrot.slane %v4730, 2
        %vm4732 = vcmp.lt.s32.totalorder %v4730, %v4731
        %v4733 = vsel %vm4732, %v4730, %v4731
        %v4734 = vrot.slane %v4733, 1
        %vm4735 = vcmp.lt.s32.totalorder %v4733, %v4734
        %v4736 = vsel %vm4735, %v4733, %v4734
        %v4737 = vsel %vm4680, %v4715, 2147483647
        %v4738 = vrot.slane %v4737, 4
        %vm4739 = vcmp.lt.s32.totalorder %v4737, %v4738
        %v4740 = vsel %vm4739, %v4737, %v4738
        %v4741 = vrot.slane %v4740, 2
        %vm4742 = vcmp.lt.s32.totalorder %v4740, %v4741
        %v4743 = vsel %vm4742, %v4740, %v4741
        %v4744 = vrot.slane %v4743, 1
        %vm4745 = vcmp.lt.s32.totalorder %v4743, %v4744
        %v4746 = vsel %vm4745, %v4743, %v4744
        %v4747 = vsel %vm4680, %v4716, 2147483647
        %v4748 = vrot.slane %v4747, 4
        %vm4749 = vcmp.lt.s32.totalorder %v4747, %v4748
        %v4750 = vsel %vm4749, %v4747, %v4748
        %v4751 = vrot.slane %v4750, 2
        %vm4752 = vcmp.lt.s32.totalorder %v4750, %v4751
        %v4753 = vsel %vm4752, %v4750, %v4751
        %v4754 = vrot.slane %v4753, 1
        %vm4755 = vcmp.lt.s32.totalorder %v4753, %v4754
        %v4756 = vsel %vm4755, %v4753, %v4754
        %vm4757 = vcmp.eq.s32.totalorder %v2589, %v4726
        %vm4758 = vcmp.eq.s32.totalorder %v2589, %v4736
        %vm4759 = vcmp.eq.s32.totalorder %v2589, %v4746
        %vm4760 = vcmp.eq.s32.totalorder %v2589, %v4756
        %vm4761 = vcmp.eq.s32.totalorder %v2589, 5
        %v4762 = vsel %vm4757, 1, 0
        %v4763 = vsel %vm4758, 1, 0
        %v4764 = vsel %vm4759, 1, 0
        %v4765 = vsel %vm4760, 1, 0
        %4766 = vset.pattern.permute.xlu0 5
        %4767 = vperm.xlu0 %4766, %v4762
        %v4768 = vpop.permute.xlu0 %4767
        %4769 = vset.pattern.permute.xlu0 5
        %4770 = vperm.xlu0 %4769, %v4763
        %v4771 = vpop.permute.xlu0 %4770
        %4772 = vset.pattern.permute.xlu0 5
        %4773 = vperm.xlu0 %4772, %v4764
        %v4774 = vpop.permute.xlu0 %4773
        %4775 = vset.pattern.permute.xlu0 5
        %4776 = vperm.xlu0 %4775, %v4765
        %v4777 = vpop.permute.xlu0 %4776
        %vm4778 = vcmp.eq.s32.totalorder %v4768, 1
        %vm4779 = vcmp.eq.s32.totalorder %v4771, 1
        %vm4780 = vcmp.eq.s32.totalorder %v4774, 1
        %vm4781 = vcmp.eq.s32.totalorder %v4777, 1
        %v4782 = vsel %vm4778, %v4649, 0.0
        %v4783 = vsel %vm4779, %v4650, 0.0
        %v4784 = vsel %vm4780, %v4651, 0.0
        %v4785 = vsel %vm4781, %v4652, 0.0
        %v4786 = vsel %vm2616, %v4782, 0.0
        %v4787 = vrot.slane %v4786, 4
        %v4788 = vadd.f32 %v4786, %v4787
        %v4789 = vrot.slane %v4788, 2
        %v4790 = vadd.f32 %v4788, %v4789
        %v4791 = vrot.slane %v4790, 1
        %v4792 = vadd.f32 %v4790, %v4791
        %v4793 = vsel %vm2616, %v4783, 0.0
        %v4794 = vrot.slane %v4793, 4
        %v4795 = vadd.f32 %v4793, %v4794
        %v4796 = vrot.slane %v4795, 2
        %v4797 = vadd.f32 %v4795, %v4796
        %v4798 = vrot.slane %v4797, 1
        %v4799 = vadd.f32 %v4797, %v4798
        %v4800 = vsel %vm2616, %v4784, 0.0
        %v4801 = vrot.slane %v4800, 4
        %v4802 = vadd.f32 %v4800, %v4801
        %v4803 = vrot.slane %v4802, 2
        %v4804 = vadd.f32 %v4802, %v4803
        %v4805 = vrot.slane %v4804, 1
        %v4806 = vadd.f32 %v4804, %v4805
        %v4807 = vsel %vm2616, %v4785, 0.0
        %v4808 = vrot.slane %v4807, 4
        %v4809 = vadd.f32 %v4807, %v4808
        %v4810 = vrot.slane %v4809, 2
        %v4811 = vadd.f32 %v4809, %v4810
        %v4812 = vrot.slane %v4811, 1
        %v4813 = vadd.f32 %v4811, %v4812
        %v4814 = vsel %vm4778, %v4665, 0.0
        %v4815 = vsel %vm4779, %v4666, 0.0
        %v4816 = vsel %vm4780, %v4667, 0.0
        %v4817 = vsel %vm4781, %v4668, 0.0
        %v4818 = vsel %vm2616, %v4814, 0.0
        %v4819 = vrot.slane %v4818, 4
        %v4820 = vadd.f32 %v4818, %v4819
        %v4821 = vrot.slane %v4820, 2
        %v4822 = vadd.f32 %v4820, %v4821
        %v4823 = vrot.slane %v4822, 1
        %v4824 = vadd.f32 %v4822, %v4823
        %v4825 = vsel %vm2616, %v4815, 0.0
        %v4826 = vrot.slane %v4825, 4
        %v4827 = vadd.f32 %v4825, %v4826
        %v4828 = vrot.slane %v4827, 2
        %v4829 = vadd.f32 %v4827, %v4828
        %v4830 = vrot.slane %v4829, 1
        %v4831 = vadd.f32 %v4829, %v4830
        %v4832 = vsel %vm2616, %v4816, 0.0
        %v4833 = vrot.slane %v4832, 4
        %v4834 = vadd.f32 %v4832, %v4833
        %v4835 = vrot.slane %v4834, 2
        %v4836 = vadd.f32 %v4834, %v4835
        %v4837 = vrot.slane %v4836, 1
        %v4838 = vadd.f32 %v4836, %v4837
        %v4839 = vsel %vm2616, %v4817, 0.0
        %v4840 = vrot.slane %v4839, 4
        %v4841 = vadd.f32 %v4839, %v4840
        %v4842 = vrot.slane %v4841, 2
        %v4843 = vadd.f32 %v4841, %v4842
        %v4844 = vrot.slane %v4843, 1
        %v4845 = vadd.f32 %v4843, %v4844
        %v4846 = vperm.slane %v4649, 5
        %v4847 = vperm.slane %v4650, 5
        %v4848 = vperm.slane %v4651, 5
        %v4849 = vperm.slane %v4652, 5
        %v4850 = vsel %vm4778, %v4846, %v4649
        %v4851 = vsel %vm4779, %v4847, %v4650
        %v4852 = vsel %vm4780, %v4848, %v4651
        %v4853 = vsel %vm4781, %v4849, %v4652
        %v4854 = vsel %vm4761, 1, 0
        %vm4855 = vcmp.eq.s32.totalorder %v4854, 1
        %v4856 = vsel %vm4855, %v4792, %v4850
        %v4857 = vsel %vm4855, %v4799, %v4851
        %v4858 = vsel %vm4855, %v4806, %v4852
        %v4859 = vsel %vm4855, %v4813, %v4853
        %v4860 = vperm.slane %v4665, 5
        %v4861 = vperm.slane %v4666, 5
        %v4862 = vperm.slane %v4667, 5
        %v4863 = vperm.slane %v4668, 5
        %v4864 = vsel %vm4778, %v4860, %v4665
        %v4865 = vsel %vm4779, %v4861, %v4666
        %v4866 = vsel %vm4780, %v4862, %v4667
        %v4867 = vsel %vm4781, %v4863, %v4668
        %v4868 = vsel %vm4855, %v4824, %v4864
        %v4869 = vsel %vm4855, %v4831, %v4865
        %v4870 = vsel %vm4855, %v4838, %v4866
        %v4871 = vsel %vm4855, %v4845, %v4867
        %v4872 = vrcp.pop %v4856
        %v4873 = vmul.f32 %v4856, %v4872
        %v4874 = vsub.f32 1.0, %v4873
        %v4875 = vmul.f32 %v4872, %v4874
        %v4876 = vadd.f32 %v4872, %v4875
        %vm4877 = vweird.f32 %v4856
        %vm4878 = vweird.f32 %v4872
        %vm4879 = vmor %vm4877, %vm4878
        %v4880 = vsel %vm4879, %v4872, %v4876
        %v4881 = vand.u32 2147483647, %v4856
        %vm4882 = vcmp.eq.f32.partialorder %v4881, 8.507059e+37
        %v4883 = vand.u32 %v4856, 2147483648
        %v4884 = vor.u32 1.1754944e-38, %v4883
        %v4885 = vsel %vm4882, %v4884, %v4880
        %v4886 = vmul.f32 1.0, %v4885
        %v4887 = vrcp.pop %v4857
        %v4888 = vmul.f32 %v4857, %v4887
        %v4889 = vsub.f32 1.0, %v4888
        %v4890 = vmul.f32 %v4887, %v4889
        %v4891 = vadd.f32 %v4887, %v4890
        %vm4892 = vweird.f32 %v4857
        %vm4893 = vweird.f32 %v4887
        %vm4894 = vmor %vm4892, %vm4893
        %v4895 = vsel %vm4894, %v4887, %v4891
        %v4896 = vand.u32 2147483647, %v4857
        %vm4897 = vcmp.eq.f32.partialorder %v4896, 8.507059e+37
        %v4898 = vand.u32 %v4857, 2147483648
        %v4899 = vor.u32 1.1754944e-38, %v4898
        %v4900 = vsel %vm4897, %v4899, %v4895
        %v4901 = vmul.f32 1.0, %v4900
        %v4902 = vrcp.pop %v4858
        %v4903 = vmul.f32 %v4858, %v4902
        %v4904 = vsub.f32 1.0, %v4903
        %v4905 = vmul.f32 %v4902, %v4904
        %v4906 = vadd.f32 %v4902, %v4905
        %vm4907 = vweird.f32 %v4858
        %vm4908 = vweird.f32 %v4902
        %vm4909 = vmor %vm4907, %vm4908
        %v4910 = vsel %vm4909, %v4902, %v4906
        %v4911 = vand.u32 2147483647, %v4858
        %vm4912 = vcmp.eq.f32.partialorder %v4911, 8.507059e+37
        %v4913 = vand.u32 %v4858, 2147483648
        %v4914 = vor.u32 1.1754944e-38, %v4913
        %v4915 = vsel %vm4912, %v4914, %v4910
        %v4916 = vmul.f32 1.0, %v4915
        %v4917 = vrcp.pop %v4859
        %v4918 = vmul.f32 %v4859, %v4917
        %v4919 = vsub.f32 1.0, %v4918
        %v4920 = vmul.f32 %v4917, %v4919
        %v4921 = vadd.f32 %v4917, %v4920
        %vm4922 = vweird.f32 %v4859
        %vm4923 = vweird.f32 %v4917
        %vm4924 = vmor %vm4922, %vm4923
        %v4925 = vsel %vm4924, %v4917, %v4921
        %v4926 = vand.u32 2147483647, %v4859
        %vm4927 = vcmp.eq.f32.partialorder %v4926, 8.507059e+37
        %v4928 = vand.u32 %v4859, 2147483648
        %v4929 = vor.u32 1.1754944e-38, %v4928
        %v4930 = vsel %vm4927, %v4929, %v4925
        %v4931 = vmul.f32 1.0, %v4930
        %4933 = vset.pattern.permute.xlu0 5
        %4934 = vperm.xlu0 %4933, %v4886
        %v4935 = vpop.permute.xlu0 %4934
        %4938 = vset.pattern.permute.xlu0 5
        %4939 = vperm.xlu0 %4938, %v4901
        %v4940 = vpop.permute.xlu0 %4939
        %4943 = vset.pattern.permute.xlu0 5
        %4944 = vperm.xlu0 %4943, %v4916
        %v4945 = vpop.permute.xlu0 %4944
        %4948 = vset.pattern.permute.xlu0 5
        %4949 = vperm.xlu0 %4948, %v4931
        %v4950 = vpop.permute.xlu0 %4949
        %v4952 = vmul.f32 %v4856, %v4935
        %v4953 = vmul.f32 %v4857, %v4940
        %v4954 = vmul.f32 %v4858, %v4945
        %v4955 = vmul.f32 %v4859, %v4950
        %v4956 = vmul.f32 %v4868, %v4935
        %v4957 = vmul.f32 %v4869, %v4940
        %v4958 = vmul.f32 %v4870, %v4945
        %v4959 = vmul.f32 %v4871, %v4950
        %v4960 = vsel %vm4855, 0.0, %v4856
        %v4961 = vsel %vm4855, 0.0, %v4857
        %v4962 = vsel %vm4855, 0.0, %v4858
        %v4963 = vsel %vm4855, 0.0, %v4859
        %4965 = vset.pattern.permute.xlu0 5
        %4966 = vperm.xlu0 %4965, %v4960
        %v4967 = vpop.permute.xlu0 %4966
        %4970 = vset.pattern.permute.xlu0 5
        %4971 = vperm.xlu0 %4970, %v4961
        %v4972 = vpop.permute.xlu0 %4971
        %4975 = vset.pattern.permute.xlu0 5
        %4976 = vperm.xlu0 %4975, %v4962
        %v4977 = vpop.permute.xlu0 %4976
        %4980 = vset.pattern.permute.xlu0 5
        %4981 = vperm.xlu0 %4980, %v4963
        %v4982 = vpop.permute.xlu0 %4981
        %v4984 = vperm.slane %v4952, 5
        %v4985 = vperm.slane %v4953, 5
        %v4986 = vperm.slane %v4954, 5
        %v4987 = vperm.slane %v4955, 5
        %v4988 = vmul.f32 %v4967, %v4984
        %v4989 = vmul.f32 %v4972, %v4985
        %v4990 = vmul.f32 %v4977, %v4986
        %v4991 = vmul.f32 %v4982, %v4987
        %v4992 = vsub.f32 %v4856, %v4988
        %v4993 = vsub.f32 %v4857, %v4989
        %v4994 = vsub.f32 %v4858, %v4990
        %v4995 = vsub.f32 %v4859, %v4991
        %v4996 = vsel %vm4855, %v4984, %v4992
        %v4997 = vsel %vm4855, %v4985, %v4993
        %v4998 = vsel %vm4855, %v4986, %v4994
        %v4999 = vsel %vm4855, %v4987, %v4995
        %v5000 = vperm.slane %v4956, 5
        %v5001 = vperm.slane %v4957, 5
        %v5002 = vperm.slane %v4958, 5
        %v5003 = vperm.slane %v4959, 5
        %v5004 = vmul.f32 %v4967, %v5000
        %v5005 = vmul.f32 %v4972, %v5001
        %v5006 = vmul.f32 %v4977, %v5002
        %v5007 = vmul.f32 %v4982, %v5003
        %v5008 = vsub.f32 %v4868, %v5004
        %v5009 = vsub.f32 %v4869, %v5005
        %v5010 = vsub.f32 %v4870, %v5006
        %v5011 = vsub.f32 %v4871, %v5007
        %v5012 = vsel %vm4855, %v5000, %v5008
        %v5013 = vsel %vm4855, %v5001, %v5009
        %v5014 = vsel %vm4855, %v5002, %v5010
        %v5015 = vsel %vm4855, %v5003, %v5011
        %vm5016 = vcmp.ge.s32.totalorder %v2589, 6
        %v5017 = vand.u32 2147483647, %v4996
        %v5018 = vand.u32 2147483647, %v4997
        %v5019 = vand.u32 2147483647, %v4998
        %v5020 = vand.u32 2147483647, %v4999
        %v5021 = vsel %vm5016, 1, 0
        %vm5022 = vcmp.eq.s32.totalorder %v5021, 1
        %v5023 = vsel %vm5022, %v5017, -1.0
        %v5024 = vsel %vm5022, %v5018, -1.0
        %v5025 = vsel %vm5022, %v5019, -1.0
        %v5026 = vsel %vm5022, %v5020, -1.0
        %vm5027 = vcmask 56368
        %v5028 = vsel %vm5027, %v5023, -inf
        %v5029 = vrot.slane %v5028, 4
        %v5030 = vmax.f32 %v5028, %v5029
        %v5031 = vrot.slane %v5030, 2
        %v5032 = vmax.f32 %v5030, %v5031
        %v5033 = vrot.slane %v5032, 1
        %v5034 = vmax.f32 %v5032, %v5033
        %v5035 = vsel %vm5027, %v5024, -inf
        %v5036 = vrot.slane %v5035, 4
        %v5037 = vmax.f32 %v5035, %v5036
        %v5038 = vrot.slane %v5037, 2
        %v5039 = vmax.f32 %v5037, %v5038
        %v5040 = vrot.slane %v5039, 1
        %v5041 = vmax.f32 %v5039, %v5040
        %v5042 = vsel %vm5027, %v5025, -inf
        %v5043 = vrot.slane %v5042, 4
        %v5044 = vmax.f32 %v5042, %v5043
        %v5045 = vrot.slane %v5044, 2
        %v5046 = vmax.f32 %v5044, %v5045
        %v5047 = vrot.slane %v5046, 1
        %v5048 = vmax.f32 %v5046, %v5047
        %v5049 = vsel %vm5027, %v5026, -inf
        %v5050 = vrot.slane %v5049, 4
        %v5051 = vmax.f32 %v5049, %v5050
        %v5052 = vrot.slane %v5051, 2
        %v5053 = vmax.f32 %v5051, %v5052
        %v5054 = vrot.slane %v5053, 1
        %v5055 = vmax.f32 %v5053, %v5054
        %vm5056 = vcmp.eq.f32.partialorder %v5023, %v5034
        %vm5057 = vcmp.eq.f32.partialorder %v5024, %v5041
        %vm5058 = vcmp.eq.f32.partialorder %v5025, %v5048
        %vm5059 = vcmp.eq.f32.partialorder %v5026, %v5055
        %v5060 = vsel %vm5056, %v2589, 8
        %v5061 = vsel %vm5057, %v2589, 8
        %v5062 = vsel %vm5058, %v2589, 8
        %v5063 = vsel %vm5059, %v2589, 8
        %v5064 = vsel %vm5027, %v5060, 2147483647
        %v5065 = vrot.slane %v5064, 4
        %vm5066 = vcmp.lt.s32.totalorder %v5064, %v5065
        %v5067 = vsel %vm5066, %v5064, %v5065
        %v5068 = vrot.slane %v5067, 2
        %vm5069 = vcmp.lt.s32.totalorder %v5067, %v5068
        %v5070 = vsel %vm5069, %v5067, %v5068
        %v5071 = vrot.slane %v5070, 1
        %vm5072 = vcmp.lt.s32.totalorder %v5070, %v5071
        %v5073 = vsel %vm5072, %v5070, %v5071
        %v5074 = vsel %vm5027, %v5061, 2147483647
        %v5075 = vrot.slane %v5074, 4
        %vm5076 = vcmp.lt.s32.totalorder %v5074, %v5075
        %v5077 = vsel %vm5076, %v5074, %v5075
        %v5078 = vrot.slane %v5077, 2
        %vm5079 = vcmp.lt.s32.totalorder %v5077, %v5078
        %v5080 = vsel %vm5079, %v5077, %v5078
        %v5081 = vrot.slane %v5080, 1
        %vm5082 = vcmp.lt.s32.totalorder %v5080, %v5081
        %v5083 = vsel %vm5082, %v5080, %v5081
        %v5084 = vsel %vm5027, %v5062, 2147483647
        %v5085 = vrot.slane %v5084, 4
        %vm5086 = vcmp.lt.s32.totalorder %v5084, %v5085
        %v5087 = vsel %vm5086, %v5084, %v5085
        %v5088 = vrot.slane %v5087, 2
        %vm5089 = vcmp.lt.s32.totalorder %v5087, %v5088
        %v5090 = vsel %vm5089, %v5087, %v5088
        %v5091 = vrot.slane %v5090, 1
        %vm5092 = vcmp.lt.s32.totalorder %v5090, %v5091
        %v5093 = vsel %vm5092, %v5090, %v5091
        %v5094 = vsel %vm5027, %v5063, 2147483647
        %v5095 = vrot.slane %v5094, 4
        %vm5096 = vcmp.lt.s32.totalorder %v5094, %v5095
        %v5097 = vsel %vm5096, %v5094, %v5095
        %v5098 = vrot.slane %v5097, 2
        %vm5099 = vcmp.lt.s32.totalorder %v5097, %v5098
        %v5100 = vsel %vm5099, %v5097, %v5098
        %v5101 = vrot.slane %v5100, 1
        %vm5102 = vcmp.lt.s32.totalorder %v5100, %v5101
        %v5103 = vsel %vm5102, %v5100, %v5101
        %vm5104 = vcmp.eq.s32.totalorder %v2589, %v5073
        %vm5105 = vcmp.eq.s32.totalorder %v2589, %v5083
        %vm5106 = vcmp.eq.s32.totalorder %v2589, %v5093
        %vm5107 = vcmp.eq.s32.totalorder %v2589, %v5103
        %vm5108 = vcmp.eq.s32.totalorder %v2589, 6
        %v5109 = vsel %vm5104, 1, 0
        %v5110 = vsel %vm5105, 1, 0
        %v5111 = vsel %vm5106, 1, 0
        %v5112 = vsel %vm5107, 1, 0
        %5113 = vset.pattern.permute.xlu0 6
        %5114 = vperm.xlu0 %5113, %v5109
        %v5115 = vpop.permute.xlu0 %5114
        %5116 = vset.pattern.permute.xlu0 6
        %5117 = vperm.xlu0 %5116, %v5110
        %v5118 = vpop.permute.xlu0 %5117
        %5119 = vset.pattern.permute.xlu0 6
        %5120 = vperm.xlu0 %5119, %v5111
        %v5121 = vpop.permute.xlu0 %5120
        %5122 = vset.pattern.permute.xlu0 6
        %5123 = vperm.xlu0 %5122, %v5112
        %v5124 = vpop.permute.xlu0 %5123
        %vm5125 = vcmp.eq.s32.totalorder %v5115, 1
        %vm5126 = vcmp.eq.s32.totalorder %v5118, 1
        %vm5127 = vcmp.eq.s32.totalorder %v5121, 1
        %vm5128 = vcmp.eq.s32.totalorder %v5124, 1
        %v5129 = vsel %vm5125, %v4996, 0.0
        %v5130 = vsel %vm5126, %v4997, 0.0
        %v5131 = vsel %vm5127, %v4998, 0.0
        %v5132 = vsel %vm5128, %v4999, 0.0
        %v5133 = vsel %vm2616, %v5129, 0.0
        %v5134 = vrot.slane %v5133, 4
        %v5135 = vadd.f32 %v5133, %v5134
        %v5136 = vrot.slane %v5135, 2
        %v5137 = vadd.f32 %v5135, %v5136
        %v5138 = vrot.slane %v5137, 1
        %v5139 = vadd.f32 %v5137, %v5138
        %v5140 = vsel %vm2616, %v5130, 0.0
        %v5141 = vrot.slane %v5140, 4
        %v5142 = vadd.f32 %v5140, %v5141
        %v5143 = vrot.slane %v5142, 2
        %v5144 = vadd.f32 %v5142, %v5143
        %v5145 = vrot.slane %v5144, 1
        %v5146 = vadd.f32 %v5144, %v5145
        %v5147 = vsel %vm2616, %v5131, 0.0
        %v5148 = vrot.slane %v5147, 4
        %v5149 = vadd.f32 %v5147, %v5148
        %v5150 = vrot.slane %v5149, 2
        %v5151 = vadd.f32 %v5149, %v5150
        %v5152 = vrot.slane %v5151, 1
        %v5153 = vadd.f32 %v5151, %v5152
        %v5154 = vsel %vm2616, %v5132, 0.0
        %v5155 = vrot.slane %v5154, 4
        %v5156 = vadd.f32 %v5154, %v5155
        %v5157 = vrot.slane %v5156, 2
        %v5158 = vadd.f32 %v5156, %v5157
        %v5159 = vrot.slane %v5158, 1
        %v5160 = vadd.f32 %v5158, %v5159
        %v5161 = vsel %vm5125, %v5012, 0.0
        %v5162 = vsel %vm5126, %v5013, 0.0
        %v5163 = vsel %vm5127, %v5014, 0.0
        %v5164 = vsel %vm5128, %v5015, 0.0
        %v5165 = vsel %vm2616, %v5161, 0.0
        %v5166 = vrot.slane %v5165, 4
        %v5167 = vadd.f32 %v5165, %v5166
        %v5168 = vrot.slane %v5167, 2
        %v5169 = vadd.f32 %v5167, %v5168
        %v5170 = vrot.slane %v5169, 1
        %v5171 = vadd.f32 %v5169, %v5170
        %v5172 = vsel %vm2616, %v5162, 0.0
        %v5173 = vrot.slane %v5172, 4
        %v5174 = vadd.f32 %v5172, %v5173
        %v5175 = vrot.slane %v5174, 2
        %v5176 = vadd.f32 %v5174, %v5175
        %v5177 = vrot.slane %v5176, 1
        %v5178 = vadd.f32 %v5176, %v5177
        %v5179 = vsel %vm2616, %v5163, 0.0
        %v5180 = vrot.slane %v5179, 4
        %v5181 = vadd.f32 %v5179, %v5180
        %v5182 = vrot.slane %v5181, 2
        %v5183 = vadd.f32 %v5181, %v5182
        %v5184 = vrot.slane %v5183, 1
        %v5185 = vadd.f32 %v5183, %v5184
        %v5186 = vsel %vm2616, %v5164, 0.0
        %v5187 = vrot.slane %v5186, 4
        %v5188 = vadd.f32 %v5186, %v5187
        %v5189 = vrot.slane %v5188, 2
        %v5190 = vadd.f32 %v5188, %v5189
        %v5191 = vrot.slane %v5190, 1
        %v5192 = vadd.f32 %v5190, %v5191
        %v5193 = vperm.slane %v4996, 6
        %v5194 = vperm.slane %v4997, 6
        %v5195 = vperm.slane %v4998, 6
        %v5196 = vperm.slane %v4999, 6
        %v5197 = vsel %vm5125, %v5193, %v4996
        %v5198 = vsel %vm5126, %v5194, %v4997
        %v5199 = vsel %vm5127, %v5195, %v4998
        %v5200 = vsel %vm5128, %v5196, %v4999
        %v5201 = vsel %vm5108, 1, 0
        %vm5202 = vcmp.eq.s32.totalorder %v5201, 1
        %v5203 = vsel %vm5202, %v5139, %v5197
        %v5204 = vsel %vm5202, %v5146, %v5198
        %v5205 = vsel %vm5202, %v5153, %v5199
        %v5206 = vsel %vm5202, %v5160, %v5200
        %v5207 = vperm.slane %v5012, 6
        %v5208 = vperm.slane %v5013, 6
        %v5209 = vperm.slane %v5014, 6
        %v5210 = vperm.slane %v5015, 6
        %v5211 = vsel %vm5125, %v5207, %v5012
        %v5212 = vsel %vm5126, %v5208, %v5013
        %v5213 = vsel %vm5127, %v5209, %v5014
        %v5214 = vsel %vm5128, %v5210, %v5015
        %v5215 = vsel %vm5202, %v5171, %v5211
        %v5216 = vsel %vm5202, %v5178, %v5212
        %v5217 = vsel %vm5202, %v5185, %v5213
        %v5218 = vsel %vm5202, %v5192, %v5214
        %v5219 = vrcp.pop %v5203
        %v5220 = vmul.f32 %v5203, %v5219
        %v5221 = vsub.f32 1.0, %v5220
        %v5222 = vmul.f32 %v5219, %v5221
        %v5223 = vadd.f32 %v5219, %v5222
        %vm5224 = vweird.f32 %v5203
        %vm5225 = vweird.f32 %v5219
        %vm5226 = vmor %vm5224, %vm5225
        %v5227 = vsel %vm5226, %v5219, %v5223
        %v5228 = vand.u32 2147483647, %v5203
        %vm5229 = vcmp.eq.f32.partialorder %v5228, 8.507059e+37
        %v5230 = vand.u32 %v5203, 2147483648
        %v5231 = vor.u32 1.1754944e-38, %v5230
        %v5232 = vsel %vm5229, %v5231, %v5227
        %v5233 = vmul.f32 1.0, %v5232
        %v5234 = vrcp.pop %v5204
        %v5235 = vmul.f32 %v5204, %v5234
        %v5236 = vsub.f32 1.0, %v5235
        %v5237 = vmul.f32 %v5234, %v5236
        %v5238 = vadd.f32 %v5234, %v5237
        %vm5239 = vweird.f32 %v5204
        %vm5240 = vweird.f32 %v5234
        %vm5241 = vmor %vm5239, %vm5240
        %v5242 = vsel %vm5241, %v5234, %v5238
        %v5243 = vand.u32 2147483647, %v5204
        %vm5244 = vcmp.eq.f32.partialorder %v5243, 8.507059e+37
        %v5245 = vand.u32 %v5204, 2147483648
        %v5246 = vor.u32 1.1754944e-38, %v5245
        %v5247 = vsel %vm5244, %v5246, %v5242
        %v5248 = vmul.f32 1.0, %v5247
        %v5249 = vrcp.pop %v5205
        %v5250 = vmul.f32 %v5205, %v5249
        %v5251 = vsub.f32 1.0, %v5250
        %v5252 = vmul.f32 %v5249, %v5251
        %v5253 = vadd.f32 %v5249, %v5252
        %vm5254 = vweird.f32 %v5205
        %vm5255 = vweird.f32 %v5249
        %vm5256 = vmor %vm5254, %vm5255
        %v5257 = vsel %vm5256, %v5249, %v5253
        %v5258 = vand.u32 2147483647, %v5205
        %vm5259 = vcmp.eq.f32.partialorder %v5258, 8.507059e+37
        %v5260 = vand.u32 %v5205, 2147483648
        %v5261 = vor.u32 1.1754944e-38, %v5260
        %v5262 = vsel %vm5259, %v5261, %v5257
        %v5263 = vmul.f32 1.0, %v5262
        %v5264 = vrcp.pop %v5206
        %v5265 = vmul.f32 %v5206, %v5264
        %v5266 = vsub.f32 1.0, %v5265
        %v5267 = vmul.f32 %v5264, %v5266
        %v5268 = vadd.f32 %v5264, %v5267
        %vm5269 = vweird.f32 %v5206
        %vm5270 = vweird.f32 %v5264
        %vm5271 = vmor %vm5269, %vm5270
        %v5272 = vsel %vm5271, %v5264, %v5268
        %v5273 = vand.u32 2147483647, %v5206
        %vm5274 = vcmp.eq.f32.partialorder %v5273, 8.507059e+37
        %v5275 = vand.u32 %v5206, 2147483648
        %v5276 = vor.u32 1.1754944e-38, %v5275
        %v5277 = vsel %vm5274, %v5276, %v5272
        %v5278 = vmul.f32 1.0, %v5277
        %5280 = vset.pattern.permute.xlu0 6
        %5281 = vperm.xlu0 %5280, %v5233
        %v5282 = vpop.permute.xlu0 %5281
        %5285 = vset.pattern.permute.xlu0 6
        %5286 = vperm.xlu0 %5285, %v5248
        %v5287 = vpop.permute.xlu0 %5286
        %5290 = vset.pattern.permute.xlu0 6
        %5291 = vperm.xlu0 %5290, %v5263
        %v5292 = vpop.permute.xlu0 %5291
        %5295 = vset.pattern.permute.xlu0 6
        %5296 = vperm.xlu0 %5295, %v5278
        %v5297 = vpop.permute.xlu0 %5296
        %v5299 = vmul.f32 %v5203, %v5282
        %v5300 = vmul.f32 %v5204, %v5287
        %v5301 = vmul.f32 %v5205, %v5292
        %v5302 = vmul.f32 %v5206, %v5297
        %v5303 = vmul.f32 %v5215, %v5282
        %v5304 = vmul.f32 %v5216, %v5287
        %v5305 = vmul.f32 %v5217, %v5292
        %v5306 = vmul.f32 %v5218, %v5297
        %v5307 = vsel %vm5202, 0.0, %v5203
        %v5308 = vsel %vm5202, 0.0, %v5204
        %v5309 = vsel %vm5202, 0.0, %v5205
        %v5310 = vsel %vm5202, 0.0, %v5206
        %5312 = vset.pattern.permute.xlu0 6
        %5313 = vperm.xlu0 %5312, %v5307
        %v5314 = vpop.permute.xlu0 %5313
        %5317 = vset.pattern.permute.xlu0 6
        %5318 = vperm.xlu0 %5317, %v5308
        %v5319 = vpop.permute.xlu0 %5318
        %5322 = vset.pattern.permute.xlu0 6
        %5323 = vperm.xlu0 %5322, %v5309
        %v5324 = vpop.permute.xlu0 %5323
        %5327 = vset.pattern.permute.xlu0 6
        %5328 = vperm.xlu0 %5327, %v5310
        %v5329 = vpop.permute.xlu0 %5328
        %v5331 = vperm.slane %v5299, 6
        %v5332 = vperm.slane %v5300, 6
        %v5333 = vperm.slane %v5301, 6
        %v5334 = vperm.slane %v5302, 6
        %v5335 = vmul.f32 %v5314, %v5331
        %v5336 = vmul.f32 %v5319, %v5332
        %v5337 = vmul.f32 %v5324, %v5333
        %v5338 = vmul.f32 %v5329, %v5334
        %v5339 = vsub.f32 %v5203, %v5335
        %v5340 = vsub.f32 %v5204, %v5336
        %v5341 = vsub.f32 %v5205, %v5337
        %v5342 = vsub.f32 %v5206, %v5338
        %v5343 = vsel %vm5202, %v5331, %v5339
        %v5344 = vsel %vm5202, %v5332, %v5340
        %v5345 = vsel %vm5202, %v5333, %v5341
        %v5346 = vsel %vm5202, %v5334, %v5342
        %v5347 = vperm.slane %v5303, 6
        %v5348 = vperm.slane %v5304, 6
        %v5349 = vperm.slane %v5305, 6
        %v5350 = vperm.slane %v5306, 6
        %v5351 = vmul.f32 %v5314, %v5347
        %v5352 = vmul.f32 %v5319, %v5348
        %v5353 = vmul.f32 %v5324, %v5349
        %v5354 = vmul.f32 %v5329, %v5350
        %v5355 = vsub.f32 %v5215, %v5351
        %v5356 = vsub.f32 %v5216, %v5352
        %v5357 = vsub.f32 %v5217, %v5353
        %v5358 = vsub.f32 %v5218, %v5354
        %v5359 = vsel %vm5202, %v5347, %v5355
        %v5360 = vsel %vm5202, %v5348, %v5356
        %v5361 = vsel %vm5202, %v5349, %v5357
        %v5362 = vsel %vm5202, %v5350, %v5358
        %vm5363 = vcmp.ge.s32.totalorder %v2589, 7
        %v5364 = vand.u32 2147483647, %v5343
        %v5365 = vand.u32 2147483647, %v5344
        %v5366 = vand.u32 2147483647, %v5345
        %v5367 = vand.u32 2147483647, %v5346
        %v5368 = vsel %vm5363, 1, 0
        %vm5369 = vcmp.eq.s32.totalorder %v5368, 1
        %v5370 = vsel %vm5369, %v5364, -1.0
        %v5371 = vsel %vm5369, %v5365, -1.0
        %v5372 = vsel %vm5369, %v5366, -1.0
        %v5373 = vsel %vm5369, %v5367, -1.0
        %vm5374 = vcmask 64568
        %v5375 = vsel %vm5374, %v5370, -inf
        %v5376 = vrot.slane %v5375, 4
        %v5377 = vmax.f32 %v5375, %v5376
        %v5378 = vrot.slane %v5377, 2
        %v5379 = vmax.f32 %v5377, %v5378
        %v5380 = vrot.slane %v5379, 1
        %v5381 = vmax.f32 %v5379, %v5380
        %v5382 = vsel %vm5374, %v5371, -inf
        %v5383 = vrot.slane %v5382, 4
        %v5384 = vmax.f32 %v5382, %v5383
        %v5385 = vrot.slane %v5384, 2
        %v5386 = vmax.f32 %v5384, %v5385
        %v5387 = vrot.slane %v5386, 1
        %v5388 = vmax.f32 %v5386, %v5387
        %v5389 = vsel %vm5374, %v5372, -inf
        %v5390 = vrot.slane %v5389, 4
        %v5391 = vmax.f32 %v5389, %v5390
        %v5392 = vrot.slane %v5391, 2
        %v5393 = vmax.f32 %v5391, %v5392
        %v5394 = vrot.slane %v5393, 1
        %v5395 = vmax.f32 %v5393, %v5394
        %v5396 = vsel %vm5374, %v5373, -inf
        %v5397 = vrot.slane %v5396, 4
        %v5398 = vmax.f32 %v5396, %v5397
        %v5399 = vrot.slane %v5398, 2
        %v5400 = vmax.f32 %v5398, %v5399
        %v5401 = vrot.slane %v5400, 1
        %v5402 = vmax.f32 %v5400, %v5401
        %vm5403 = vcmp.eq.f32.partialorder %v5370, %v5381
        %vm5404 = vcmp.eq.f32.partialorder %v5371, %v5388
        %vm5405 = vcmp.eq.f32.partialorder %v5372, %v5395
        %vm5406 = vcmp.eq.f32.partialorder %v5373, %v5402
        %v5407 = vsel %vm5403, %v2589, 8
        %v5408 = vsel %vm5404, %v2589, 8
        %v5409 = vsel %vm5405, %v2589, 8
        %v5410 = vsel %vm5406, %v2589, 8
        %v5411 = vsel %vm5374, %v5407, 2147483647
        %v5412 = vrot.slane %v5411, 4
        %vm5413 = vcmp.lt.s32.totalorder %v5411, %v5412
        %v5414 = vsel %vm5413, %v5411, %v5412
        %v5415 = vrot.slane %v5414, 2
        %vm5416 = vcmp.lt.s32.totalorder %v5414, %v5415
        %v5417 = vsel %vm5416, %v5414, %v5415
        %v5418 = vrot.slane %v5417, 1
        %vm5419 = vcmp.lt.s32.totalorder %v5417, %v5418
        %v5420 = vsel %vm5419, %v5417, %v5418
        %v5421 = vsel %vm5374, %v5408, 2147483647
        %v5422 = vrot.slane %v5421, 4
        %vm5423 = vcmp.lt.s32.totalorder %v5421, %v5422
        %v5424 = vsel %vm5423, %v5421, %v5422
        %v5425 = vrot.slane %v5424, 2
        %vm5426 = vcmp.lt.s32.totalorder %v5424, %v5425
        %v5427 = vsel %vm5426, %v5424, %v5425
        %v5428 = vrot.slane %v5427, 1
        %vm5429 = vcmp.lt.s32.totalorder %v5427, %v5428
        %v5430 = vsel %vm5429, %v5427, %v5428
        %v5431 = vsel %vm5374, %v5409, 2147483647
        %v5432 = vrot.slane %v5431, 4
        %vm5433 = vcmp.lt.s32.totalorder %v5431, %v5432
        %v5434 = vsel %vm5433, %v5431, %v5432
        %v5435 = vrot.slane %v5434, 2
        %vm5436 = vcmp.lt.s32.totalorder %v5434, %v5435
        %v5437 = vsel %vm5436, %v5434, %v5435
        %v5438 = vrot.slane %v5437, 1
        %vm5439 = vcmp.lt.s32.totalorder %v5437, %v5438
        %v5440 = vsel %vm5439, %v5437, %v5438
        %v5441 = vsel %vm5374, %v5410, 2147483647
        %v5442 = vrot.slane %v5441, 4
        %vm5443 = vcmp.lt.s32.totalorder %v5441, %v5442
        %v5444 = vsel %vm5443, %v5441, %v5442
        %v5445 = vrot.slane %v5444, 2
        %vm5446 = vcmp.lt.s32.totalorder %v5444, %v5445
        %v5447 = vsel %vm5446, %v5444, %v5445
        %v5448 = vrot.slane %v5447, 1
        %vm5449 = vcmp.lt.s32.totalorder %v5447, %v5448
        %v5450 = vsel %vm5449, %v5447, %v5448
        %vm5451 = vcmp.eq.s32.totalorder %v2589, %v5420
        %vm5452 = vcmp.eq.s32.totalorder %v2589, %v5430
        %vm5453 = vcmp.eq.s32.totalorder %v2589, %v5440
        %vm5454 = vcmp.eq.s32.totalorder %v2589, %v5450
        %vm5455 = vcmp.eq.s32.totalorder %v2589, 7
        %v5456 = vsel %vm5451, 1, 0
        %v5457 = vsel %vm5452, 1, 0
        %v5458 = vsel %vm5453, 1, 0
        %v5459 = vsel %vm5454, 1, 0
        %5460 = vset.pattern.permute.xlu0 7
        %5461 = vperm.xlu0 %5460, %v5456
        %v5462 = vpop.permute.xlu0 %5461
        %5463 = vset.pattern.permute.xlu0 7
        %5464 = vperm.xlu0 %5463, %v5457
        %v5465 = vpop.permute.xlu0 %5464
        %5466 = vset.pattern.permute.xlu0 7
        %5467 = vperm.xlu0 %5466, %v5458
        %v5468 = vpop.permute.xlu0 %5467
        %5469 = vset.pattern.permute.xlu0 7
        %5470 = vperm.xlu0 %5469, %v5459
        %v5471 = vpop.permute.xlu0 %5470
        %vm5472 = vcmp.eq.s32.totalorder %v5462, 1
        %vm5473 = vcmp.eq.s32.totalorder %v5465, 1
        %vm5474 = vcmp.eq.s32.totalorder %v5468, 1
        %vm5475 = vcmp.eq.s32.totalorder %v5471, 1
        %v5476 = vsel %vm5472, %v5343, 0.0
        %v5477 = vsel %vm5473, %v5344, 0.0
        %v5478 = vsel %vm5474, %v5345, 0.0
        %v5479 = vsel %vm5475, %v5346, 0.0
        %v5480 = vsel %vm2616, %v5476, 0.0
        %v5481 = vrot.slane %v5480, 4
        %v5482 = vadd.f32 %v5480, %v5481
        %v5483 = vrot.slane %v5482, 2
        %v5484 = vadd.f32 %v5482, %v5483
        %v5485 = vrot.slane %v5484, 1
        %v5486 = vadd.f32 %v5484, %v5485
        %v5487 = vsel %vm2616, %v5477, 0.0
        %v5488 = vrot.slane %v5487, 4
        %v5489 = vadd.f32 %v5487, %v5488
        %v5490 = vrot.slane %v5489, 2
        %v5491 = vadd.f32 %v5489, %v5490
        %v5492 = vrot.slane %v5491, 1
        %v5493 = vadd.f32 %v5491, %v5492
        %v5494 = vsel %vm2616, %v5478, 0.0
        %v5495 = vrot.slane %v5494, 4
        %v5496 = vadd.f32 %v5494, %v5495
        %v5497 = vrot.slane %v5496, 2
        %v5498 = vadd.f32 %v5496, %v5497
        %v5499 = vrot.slane %v5498, 1
        %v5500 = vadd.f32 %v5498, %v5499
        %v5501 = vsel %vm2616, %v5479, 0.0
        %v5502 = vrot.slane %v5501, 4
        %v5503 = vadd.f32 %v5501, %v5502
        %v5504 = vrot.slane %v5503, 2
        %v5505 = vadd.f32 %v5503, %v5504
        %v5506 = vrot.slane %v5505, 1
        %v5507 = vadd.f32 %v5505, %v5506
        %v5508 = vsel %vm5472, %v5359, 0.0
        %v5509 = vsel %vm5473, %v5360, 0.0
        %v5510 = vsel %vm5474, %v5361, 0.0
        %v5511 = vsel %vm5475, %v5362, 0.0
        %v5512 = vsel %vm2616, %v5508, 0.0
        %v5513 = vrot.slane %v5512, 4
        %v5514 = vadd.f32 %v5512, %v5513
        %v5515 = vrot.slane %v5514, 2
        %v5516 = vadd.f32 %v5514, %v5515
        %v5517 = vrot.slane %v5516, 1
        %v5518 = vadd.f32 %v5516, %v5517
        %v5519 = vsel %vm2616, %v5509, 0.0
        %v5520 = vrot.slane %v5519, 4
        %v5521 = vadd.f32 %v5519, %v5520
        %v5522 = vrot.slane %v5521, 2
        %v5523 = vadd.f32 %v5521, %v5522
        %v5524 = vrot.slane %v5523, 1
        %v5525 = vadd.f32 %v5523, %v5524
        %v5526 = vsel %vm2616, %v5510, 0.0
        %v5527 = vrot.slane %v5526, 4
        %v5528 = vadd.f32 %v5526, %v5527
        %v5529 = vrot.slane %v5528, 2
        %v5530 = vadd.f32 %v5528, %v5529
        %v5531 = vrot.slane %v5530, 1
        %v5532 = vadd.f32 %v5530, %v5531
        %v5533 = vsel %vm2616, %v5511, 0.0
        %v5534 = vrot.slane %v5533, 4
        %v5535 = vadd.f32 %v5533, %v5534
        %v5536 = vrot.slane %v5535, 2
        %v5537 = vadd.f32 %v5535, %v5536
        %v5538 = vrot.slane %v5537, 1
        %v5539 = vadd.f32 %v5537, %v5538
        %v5540 = vperm.slane %v5343, 7
        %v5541 = vperm.slane %v5344, 7
        %v5542 = vperm.slane %v5345, 7
        %v5543 = vperm.slane %v5346, 7
        %v5544 = vsel %vm5472, %v5540, %v5343
        %v5545 = vsel %vm5473, %v5541, %v5344
        %v5546 = vsel %vm5474, %v5542, %v5345
        %v5547 = vsel %vm5475, %v5543, %v5346
        %v5548 = vsel %vm5455, 1, 0
        %vm5549 = vcmp.eq.s32.totalorder %v5548, 1
        %v5550 = vsel %vm5549, %v5486, %v5544
        %v5551 = vsel %vm5549, %v5493, %v5545
        %v5552 = vsel %vm5549, %v5500, %v5546
        %v5553 = vsel %vm5549, %v5507, %v5547
        %v5554 = vperm.slane %v5359, 7
        %v5555 = vperm.slane %v5360, 7
        %v5556 = vperm.slane %v5361, 7
        %v5557 = vperm.slane %v5362, 7
        %v5558 = vsel %vm5472, %v5554, %v5359
        %v5559 = vsel %vm5473, %v5555, %v5360
        %v5560 = vsel %vm5474, %v5556, %v5361
        %v5561 = vsel %vm5475, %v5557, %v5362
        %v5562 = vsel %vm5549, %v5518, %v5558
        %v5563 = vsel %vm5549, %v5525, %v5559
        %v5564 = vsel %vm5549, %v5532, %v5560
        %v5565 = vsel %vm5549, %v5539, %v5561
        %v5566 = vrcp.pop %v5550
        %v5567 = vmul.f32 %v5550, %v5566
        %v5568 = vsub.f32 1.0, %v5567
        %v5569 = vmul.f32 %v5566, %v5568
        %v5570 = vadd.f32 %v5566, %v5569
        %vm5571 = vweird.f32 %v5550
        %vm5572 = vweird.f32 %v5566
        %vm5573 = vmor %vm5571, %vm5572
        %v5574 = vsel %vm5573, %v5566, %v5570
        %v5575 = vand.u32 2147483647, %v5550
        %vm5576 = vcmp.eq.f32.partialorder %v5575, 8.507059e+37
        %v5577 = vand.u32 %v5550, 2147483648
        %v5578 = vor.u32 1.1754944e-38, %v5577
        %v5579 = vsel %vm5576, %v5578, %v5574
        %v5580 = vmul.f32 1.0, %v5579
        %v5581 = vrcp.pop %v5551
        %v5582 = vmul.f32 %v5551, %v5581
        %v5583 = vsub.f32 1.0, %v5582
        %v5584 = vmul.f32 %v5581, %v5583
        %v5585 = vadd.f32 %v5581, %v5584
        %vm5586 = vweird.f32 %v5551
        %vm5587 = vweird.f32 %v5581
        %vm5588 = vmor %vm5586, %vm5587
        %v5589 = vsel %vm5588, %v5581, %v5585
        %v5590 = vand.u32 2147483647, %v5551
        %vm5591 = vcmp.eq.f32.partialorder %v5590, 8.507059e+37
        %v5592 = vand.u32 %v5551, 2147483648
        %v5593 = vor.u32 1.1754944e-38, %v5592
        %v5594 = vsel %vm5591, %v5593, %v5589
        %v5595 = vmul.f32 1.0, %v5594
        %v5596 = vrcp.pop %v5552
        %v5597 = vmul.f32 %v5552, %v5596
        %v5598 = vsub.f32 1.0, %v5597
        %v5599 = vmul.f32 %v5596, %v5598
        %v5600 = vadd.f32 %v5596, %v5599
        %vm5601 = vweird.f32 %v5552
        %vm5602 = vweird.f32 %v5596
        %vm5603 = vmor %vm5601, %vm5602
        %v5604 = vsel %vm5603, %v5596, %v5600
        %v5605 = vand.u32 2147483647, %v5552
        %vm5606 = vcmp.eq.f32.partialorder %v5605, 8.507059e+37
        %v5607 = vand.u32 %v5552, 2147483648
        %v5608 = vor.u32 1.1754944e-38, %v5607
        %v5609 = vsel %vm5606, %v5608, %v5604
        %v5610 = vmul.f32 1.0, %v5609
        %v5611 = vrcp.pop %v5553
        %v5612 = vmul.f32 %v5553, %v5611
        %v5613 = vsub.f32 1.0, %v5612
        %v5614 = vmul.f32 %v5611, %v5613
        %v5615 = vadd.f32 %v5611, %v5614
        %vm5616 = vweird.f32 %v5553
        %vm5617 = vweird.f32 %v5611
        %vm5618 = vmor %vm5616, %vm5617
        %v5619 = vsel %vm5618, %v5611, %v5615
        %v5620 = vand.u32 2147483647, %v5553
        %vm5621 = vcmp.eq.f32.partialorder %v5620, 8.507059e+37
        %v5622 = vand.u32 %v5553, 2147483648
        %v5623 = vor.u32 1.1754944e-38, %v5622
        %v5624 = vsel %vm5621, %v5623, %v5619
        %v5625 = vmul.f32 1.0, %v5624
        %5627 = vset.pattern.permute.xlu0 7
        %5628 = vperm.xlu0 %5627, %v5580
        %v5629 = vpop.permute.xlu0 %5628
        %5632 = vset.pattern.permute.xlu0 7
        %5633 = vperm.xlu0 %5632, %v5595
        %v5634 = vpop.permute.xlu0 %5633
        %5637 = vset.pattern.permute.xlu0 7
        %5638 = vperm.xlu0 %5637, %v5610
        %v5639 = vpop.permute.xlu0 %5638
        %5642 = vset.pattern.permute.xlu0 7
        %5643 = vperm.xlu0 %5642, %v5625
        %v5644 = vpop.permute.xlu0 %5643
        %v5646 = vmul.f32 %v5562, %v5629
        %v5647 = vmul.f32 %v5563, %v5634
        %v5648 = vmul.f32 %v5564, %v5639
        %v5649 = vmul.f32 %v5565, %v5644
        %v5650 = vsel %vm5549, 0.0, %v5550
        %v5651 = vsel %vm5549, 0.0, %v5551
        %v5652 = vsel %vm5549, 0.0, %v5552
        %v5653 = vsel %vm5549, 0.0, %v5553
        %5655 = vset.pattern.permute.xlu0 7
        %5656 = vperm.xlu0 %5655, %v5650
        %v5657 = vpop.permute.xlu0 %5656
        %5660 = vset.pattern.permute.xlu0 7
        %5661 = vperm.xlu0 %5660, %v5651
        %v5662 = vpop.permute.xlu0 %5661
        %5665 = vset.pattern.permute.xlu0 7
        %5666 = vperm.xlu0 %5665, %v5652
        %v5667 = vpop.permute.xlu0 %5666
        %5670 = vset.pattern.permute.xlu0 7
        %5671 = vperm.xlu0 %5670, %v5653
        %v5672 = vpop.permute.xlu0 %5671
        %v5674 = vperm.slane %v5646, 7
        %v5675 = vperm.slane %v5647, 7
        %v5676 = vperm.slane %v5648, 7
        %v5677 = vperm.slane %v5649, 7
        %v5678 = vmul.f32 %v5657, %v5674
        %v5679 = vmul.f32 %v5662, %v5675
        %v5680 = vmul.f32 %v5667, %v5676
        %v5681 = vmul.f32 %v5672, %v5677
        %v5682 = vsub.f32 %v5562, %v5678
        %v5683 = vsub.f32 %v5563, %v5679
        %v5684 = vsub.f32 %v5564, %v5680
        %v5685 = vsub.f32 %v5565, %v5681
        %v5686 = vsel %vm5549, %v5674, %v5682
        %v5687 = vsel %vm5549, %v5675, %v5683
        %v5688 = vsel %vm5549, %v5676, %v5684
        %v5689 = vsel %vm5549, %v5677, %v5685
        %v5690 = vmul.f32 %v5686, %v2594
        %v5691 = vmul.f32 %v5687, %v2594
        %v5692 = vmul.f32 %v5688, %v2594
        %v5693 = vmul.f32 %v5689, %v2594
        %v5694 = vsel %vm2616, %v5690, 0.0
        %v5695 = vrot.slane %v5694, 4
        %v5696 = vadd.f32 %v5694, %v5695
        %v5697 = vrot.slane %v5696, 2
        %v5698 = vadd.f32 %v5696, %v5697
        %v5699 = vrot.slane %v5698, 1
        %v5700 = vadd.f32 %v5698, %v5699
        %v5701 = vsel %vm2616, %v5691, 0.0
        %v5702 = vrot.slane %v5701, 4
        %v5703 = vadd.f32 %v5701, %v5702
        %v5704 = vrot.slane %v5703, 2
        %v5705 = vadd.f32 %v5703, %v5704
        %v5706 = vrot.slane %v5705, 1
        %v5707 = vadd.f32 %v5705, %v5706
        %v5708 = vsel %vm2616, %v5692, 0.0
        %v5709 = vrot.slane %v5708, 4
        %v5710 = vadd.f32 %v5708, %v5709
        %v5711 = vrot.slane %v5710, 2
        %v5712 = vadd.f32 %v5710, %v5711
        %v5713 = vrot.slane %v5712, 1
        %v5714 = vadd.f32 %v5712, %v5713
        %v5715 = vsel %vm2616, %v5693, 0.0
        %v5716 = vrot.slane %v5715, 4
        %v5717 = vadd.f32 %v5715, %v5716
        %v5718 = vrot.slane %v5717, 2
        %v5719 = vadd.f32 %v5717, %v5718
        %v5720 = vrot.slane %v5719, 1
        %v5721 = vadd.f32 %v5719, %v5720
        %v5722 = vmul.f32 %v2645, %v5700
        %v5723 = vmul.f32 %v2646, %v5707
        %v5724 = vmul.f32 %v2647, %v5714
        %v5725 = vmul.f32 %v2648, %v5721
        %v5726 = vmul.f32 %v2645, %v5686
        %v5727 = vmul.f32 %v2646, %v5687
        %v5728 = vmul.f32 %v2647, %v5688
        %v5729 = vmul.f32 %v2648, %v5689
        %vm5730 = vcmp.ne.s32.totalorder %v2591, 0
        %v5731 = vsel %vm5730, 1, 0
        %vm5732 = vcmp.eq.s32.totalorder %v5731, 1
        %v5733 = vsel %vm5732, %v5722, 0.0
        %v5734 = vsel %vm5732, %v5723, 0.0
        %v5735 = vsel %vm5732, %v5724, 0.0
        %v5736 = vsel %vm5732, %v5725, 0.0
        %vm5737 = vcmp.ne.s32.totalorder %v2589, 0
        %v5738 = vsel %vm5737, 1, 0
        %vm5739 = vcmp.eq.s32.totalorder %v5738, 1
        %v5740 = vsel %vm5739, %v5726, 0.0
        %v5741 = vsel %vm5739, %v5727, 0.0
        %v5742 = vsel %vm5739, %v5728, 0.0
        %v5743 = vsel %vm5739, %v5729, 0.0
        %v5744 = vsub.f32 %v5733, %v5740
        %v5745 = vsub.f32 %v5734, %v5741
        %v5746 = vsub.f32 %v5735, %v5742
        %v5747 = vsub.f32 %v5736, %v5743
        %v5748 = vmul.f32 %v2671, %v5686
        %v5749 = vmul.f32 %v2678, %v5687
        %v5750 = vmul.f32 %v2685, %v5688
        %v5751 = vmul.f32 %v2692, %v5689
        %5752 = vst.msk [vmem:[%s343] sm:$0xff] %vm2616, %v5744
        %5753 = vst.msk [vmem:[%s343 + $0x8] sm:$0xff] %vm2616, %v5745
        %5754 = vst.msk [vmem:[%s343 + $0x10] sm:$0xff] %vm2616, %v5746
        %5755 = vst.msk [vmem:[%s343 + $0x18] sm:$0xff] %vm2616, %v5747
        %vm5756 = vcmask 57344
        %5757 = vst.msk [vmem:[%s348] sm:$0x1] %vm5756, %v5748
        %5758 = vst.msk [vmem:[%s348 + $0x1] sm:$0x1] %vm5756, %v5749
        %5759 = vst.msk [vmem:[%s348 + $0x2] sm:$0x1] %vm5756, %v5750
        %5760 = vst.msk [vmem:[%s348 + $0x3] sm:$0x1] %vm5756, %v5751
        %s5761 = smul.u32 4, %s21
        %p5762 = scmp.lt.s32.totalorder %s5761, 7
        %s5763 = scalar_select %p5762, %s5761, 7
        %s5764 = smul.addr %s5763, 8
        %s5765 = scalar_lea.vmem %s6, %s5764
        %s5766 = smul.u32 4, %s21
        %p5767 = scmp.lt.s32.totalorder %s5766, 7
        %s5768 = scalar_select %p5767, %s5766, 7
        %s5769 = scalar_lea.vmem %s7, %s5768
        // Predicated region
        $region53: #{_lambda_.1} parent=43 // pred_check
          %p5770 = pneg %p175
        $region54: #{_lambda_.1} parent=43 // pred_check_branch
          %5772 = sbr.rel (%p5770) target = $region56
        $region55: #{_lambda_.1} parent=43 // pred_region
          %s5773 = smul.u32 4, %s21
        $region56: #{_lambda_.1} parent=43 // pred_fallthru
          _
        // Predicated region
        $region57: #{_lambda_.1} parent=43 // pred_check
          %p5774 = pneg %p201
        $region58: #{_lambda_.1} parent=43 // pred_check_branch
          %5776 = sbr.rel (%p5774) target = $region60
        $region59: #{_lambda_.1} parent=43 // pred_region
          %s5777 = smul.u32 4, %s21
        $region60: #{_lambda_.1} parent=43 // pred_fallthru
          _
      $region44: #{_lambda_.1} parent=5 // pred_fallthru
        _
      %p5778 = scmp.le.s32.totalorder 2, %s16
      // Predicated region
      $region61: #{_lambda_.1} parent=5 // pred_check
        %p5779 = pneg %p5778
      $region62: #{_lambda_.1} parent=5 // pred_check_branch
        %5781 = sbr.rel (%p5779) target = $region64
      $region63: #{_lambda_.1} parent=5 // pred_region
        %s5782 = ssub.s32 %s16, 2
        // Predicated region
        $region65: #{_lambda_.1} parent=63 // pred_check
          %p5783 = pneg %p181
        $region66: #{_lambda_.1} parent=63 // pred_check_branch
          %5785 = sbr.rel (%p5783) target = $region68
        $region67: #{_lambda_.1} parent=63 // pred_region
          %s5786 = smul.u32 4, %s22
          %p5787 = scmp.lt.s32.totalorder %s5786, 7
          %s5788 = scalar_select %p5787, %s5786, 7
          %s5789 = smul.addr %s5788, 8
          %s5790 = scalar_lea.vmem %s6, %s5789
        $region68: #{_lambda_.1} parent=63 // pred_fallthru
          _
        // Predicated region
        $region69: #{_lambda_.1} parent=63 // pred_check
          %p5791 = pneg %p207
        $region70: #{_lambda_.1} parent=63 // pred_check_branch
          %5793 = sbr.rel (%p5791) target = $region72
        $region71: #{_lambda_.1} parent=63 // pred_region
          %s5794 = smul.u32 4, %s22
          %p5795 = scmp.lt.s32.totalorder %s5794, 7
          %s5796 = scalar_select %p5795, %s5794, 7
          %s5797 = scalar_lea.vmem %s7, %s5796
        $region72: #{_lambda_.1} parent=63 // pred_fallthru
          _
      $region64: #{_lambda_.1} parent=5 // pred_fallthru
        _
    $region6: #{_lambda_.1} parent=1 // loop_footer
      %s20 = sadd.s32 1, %s16
    $region7: #{_lambda_.1} parent=1 // loop_footer_branch
      %15 = sbr.rel target = $region3
    $region8: #{_lambda_.1} parent=1 // loop_exit
      _
    %5798 = vsyncpa [#allocation3], 1
    %s5799 = scalar_lea.sflag [#allocation3], 1
    %5800 = vsyncpa %s5799, 1
    %5801 = vsyncpa [#allocation5], 1

</llo_original>
